<compile_context>
chip_gen: v5e
topology: v5e:2x2
jax: 0.10.0
libtpu: 0.0.40
codegen_flags: <defaults>
</compile_context>

<pallas_src>
import functools

import jax
import jax.numpy as jnp
import numpy as np
from jax.experimental import pallas as pl
from jax.experimental.pallas import tpu as pltpu


# ---------------------------------------------------------------------------
# In-kernel helpers
# ---------------------------------------------------------------------------
def _elu(y):
    # ELU(alpha=1). exp(min(y,0))-1 (rather than expm1) keeps the Mosaic lowering simple.
    return jnp.where(y > 0.0, y, jnp.exp(jnp.minimum(y, 0.0)) - 1.0)


def _conv_elu_pool_layer(a, w_ref, b_ref, k):
    """Conv(k,k,'VALID') -> MaxPool2d(2,2) (floor) -> +bias -> ELU on VMEM values.

    a:     [N, H, W, C]   activation value (f32, or bf16 for the layer-1 patches)
    w_ref: [k*k*C, OC]    bf16 weight ref, rows ordered (ki, kj, c)
    b_ref: [1, OC]        f32 bias ref
    returns [N, PH, PW, OC] f32 value.
    """
    n, h, wd, c = a.shape
    oc = w_ref.shape[-1]
    oh, ow = h - k + 1, wd - k + 1
    ph, pw = oh // 2, ow // 2
    oht, owt = 2 * ph, 2 * pw            # even-truncated conv grid (floor pooling)
    m = n * oht * owt

    # im2col: one [M, k*k*C] LHS (lane-concat of the k*k shifted views) -> ONE MXU dot.
    cols = [a[:, ki:ki + oht, kj:kj + owt, :].reshape(m, c)
            for ki in range(k) for kj in range(k)]
    lhs = cols[0] if len(cols) == 1 else jnp.concatenate(cols, axis=-1)
    acc = jnp.dot(lhs.astype(jnp.bfloat16), w_ref[...],
                  preferred_element_type=jnp.float32)            # [M, OC] f32

    # 2x2 max pool via parity split (rows of acc are ordered (n, oy, ox)).
    z = acc.reshape(n, ph, 2, owt, oc)
    z = jnp.maximum(z[:, :, 0], z[:, :, 1])          # pool over oy parity -> [N,PH,OWt,OC]
    z = z.reshape(n, ph, pw, 2, oc)
    z = jnp.maximum(z[:, :, :, 0], z[:, :, :, 1])    # pool over ox parity -> [N,PH,PW,OC]

    # Bias + ELU once, after the max (exact because ELU is monotone increasing).
    return _elu(z + b_ref[...])


# ---------------------------------------------------------------------------
# Fused kernel: all 4 x (conv -> ELU -> maxpool -> dropout[eval]) stages, one sample
# ---------------------------------------------------------------------------
def _convnet_kernel(p1_ref, w1_ref, b1_ref, w2_ref, b2_ref,
                    w3_ref, b3_ref, w4_ref, b4_ref, o_ref, *, ks):
    a = p1_ref[...]                                   # [1, 2*PH1, 2*PW1, k1*k1] bf16
    w_refs = (w1_ref, w2_ref, w3_ref, w4_ref)
    b_refs = (b1_ref, b2_ref, b3_ref, b4_ref)
    for k, w_ref, b_ref in zip(ks, w_refs, b_refs):
        a = _conv_elu_pool_layer(a, w_ref, b_ref, k)  # stays resident in VMEM (f32)
    o_ref[...] = a.astype(o_ref.dtype)                # [1, PH4, PW4, 256] lane-dense


# ---------------------------------------------------------------------------
# Wrapper (jit-ed): one pallas_call for the whole ConvLayer, grid over batch
# ---------------------------------------------------------------------------
def _const_spec(arr):
    nd = arr.ndim
    return pl.BlockSpec(arr.shape, lambda i, _nd=nd: (0,) * _nd)


@jax.jit
def conv_layer_forward(x_nchw, params):
    """x_nchw: [N, 1, H, W] float32; params: list of (weight [OC,C,K,K], bias [OC])."""
    n, _, h, w = x_nchw.shape
    xs = x_nchw[:, 0]                                    # [N, H, W]  (in_channels == 1)

    # Layer-1 im2col in the (jit-fused) wrapper: 16 plain slices + one stack, bf16.
    # Feature order (ki, kj); only the even-truncated 2*PH1 x 2*PW1 grid is built.
    w1_t, _ = params[0]
    k1 = w1_t.shape[-1]
    ph1, pw1 = (h - k1 + 1) // 2, (w - k1 + 1) // 2
    oht1, owt1 = 2 * ph1, 2 * pw1
    cols = [xs[:, ki:ki + oht1, kj:kj + owt1]
            for ki in range(k1) for kj in range(k1)]
    p1 = jnp.stack(cols, axis=-1).astype(jnp.bfloat16)   # [N, 2*PH1, 2*PW1, k1*k1]

    # Weights: [OC,C,KH,KW] -> [KH,KW,C,OC] -> [k*k*C, OC] bf16 (rows ordered (ki,kj,c)).
    flat_w, flat_b, kk_list = [], [], []
    for wgt, bias in params:
        oc, c, kk, _ = wgt.shape
        flat_w.append(jnp.transpose(wgt, (2, 3, 1, 0))
                      .reshape(kk * kk * c, oc).astype(jnp.bfloat16))
        flat_b.append(bias.reshape(1, oc).astype(jnp.float32))
        kk_list.append(kk)
    # In-kernel, layer 1 is a 1x1 conv over the pre-built patch channels.
    ks = (1,) + tuple(kk_list[1:])

    # Output spatial size after the remaining conv+pool stages.
    cur_h, cur_w = ph1, pw1
    for kk in ks[1:]:
        cur_h, cur_w = (cur_h - kk + 1) // 2, (cur_w - kk + 1) // 2
    oc_last = params[-1][0].shape[0]

    inputs = [p1]
    for wf, bf in zip(flat_w, flat_b):
        inputs += [wf, bf]

    in_specs = [pl.BlockSpec((1, oht1, owt1, k1 * k1), lambda i: (i, 0, 0, 0))]
    in_specs += [_const_spec(t) for t in inputs[1:]]     # weights/biases: resident

    kernel = functools.partial(_convnet_kernel, ks=ks)
    out = pl.pallas_call(
        kernel,
        out_shape=jax.ShapeDtypeStruct((n, cur_h, cur_w, oc_last), jnp.float32),
        grid=(n,),
        in_specs=in_specs,
        out_specs=pl.BlockSpec((1, cur_h, cur_w, oc_last), lambda i: (i, 0, 0, 0)),
        compiler_params=pltpu.CompilerParams(dimension_semantics=("parallel",)),
    )(*inputs)

    # nn.Flatten(start_dim=-3): flatten (C, H, W) in NCHW order.
    return jnp.transpose(out, (0, 3, 1, 2)).reshape(n, -1)


# ---------------------------------------------------------------------------
# Pure-JAX reference (correctness sanity check)
# ---------------------------------------------------------------------------
def conv_layer_reference(x_nchw, params):
    y = x_nchw
    for w, b in params:
        y = jax.lax.conv_general_dilated(
            y, w, window_strides=(1, 1), padding="VALID",
            dimension_numbers=("NCHW", "OIHW", "NCHW"))
        y = y + b[None, :, None, None]
        y = jnp.where(y > 0.0, y, jnp.exp(jnp.minimum(y, 0.0)) - 1.0)  # ELU
        y = jax.lax.reduce_window(y, -jnp.inf, jax.lax.max,
                                  (1, 1, 2, 2), (1, 1, 2, 2), "VALID")
        # Dropout2d: identity in eval mode.
    return y.reshape(y.shape[0], -1)


# ---------------------------------------------------------------------------
# Parameter setup (deterministic, synthetic)
# ---------------------------------------------------------------------------
def init_params(key):
    # (in_channels, out_channels, kernel) per layer, matching the PyTorch module.
    layer_cfg = [(1, 32, 4), (32, 64, 3), (64, 128, 2), (128, 256, 1)]
    params = []
    for c, oc, k in layer_cfg:
        key, kw, kb = jax.random.split(key, 3)
        fan_in = c * k * k
        bound = 1.0 / np.sqrt(fan_in)
        w = jax.random.uniform(kw, (oc, c, k, k), jnp.float32, -bound, bound)
        b = jax.random.uniform(kb, (oc,), jnp.float32, -bound, bound)
        params.append((w, b))
    return params


if __name__ == "__main__":
    key = jax.random.PRNGKey(0)
    k_x, k_p = jax.random.split(key)

    # 1 input channel, 36x36 spatial -> after the 4 blocks spatial is 1x1 -> [N, 256].
    x = jax.random.normal(k_x, (2, 1, 36, 36), jnp.float32)
    params = init_params(k_p)

    out = jax.block_until_ready(conv_layer_forward(x, params))
    assert out.shape == (2, 256), out.shape

    ref = jax.block_until_ready(conv_layer_reference(x, params))
    np.testing.assert_allclose(np.asarray(out), np.asarray(ref), rtol=2e-2, atol=3e-2)

    print("KERNEL_OK")
</pallas_src>

<mosaic_0001>
module attributes {stable_mosaic.version = 11 : i64} {
  func.func @_convnet_kernel(%arg0: i32, %arg1: memref<1x32x32x16xbf16, #tpu.memory_space<vmem>>, %arg2: memref<16x32xbf16, #tpu.memory_space<vmem>>, %arg3: memref<1x32xf32, #tpu.memory_space<vmem>>, %arg4: memref<288x64xbf16, #tpu.memory_space<vmem>>, %arg5: memref<1x64xf32, #tpu.memory_space<vmem>>, %arg6: memref<256x128xbf16, #tpu.memory_space<vmem>>, %arg7: memref<1x128xf32, #tpu.memory_space<vmem>>, %arg8: memref<128x256xbf16, #tpu.memory_space<vmem>>, %arg9: memref<1x256xf32, #tpu.memory_space<vmem>>, %arg10: memref<1x1x1x256xf32, #tpu.memory_space<vmem>>) attributes {dimension_semantics = [#tpu.dimension_semantics<parallel>], iteration_bounds = array<i64: 2>, scalar_prefetch = 0 : i64, scratch_operands = 0 : i64, tpu.core_type = #tpu.core_type<tc>, window_params = [{transform_indices = @transform_0, window_bounds = array<i64: 1, 32, 32, 16>}, {pipeline_mode = #tpu.pipeline_mode<synchronous>, transform_indices = @transform_1, window_bounds = array<i64: 16, 32>}, {pipeline_mode = #tpu.pipeline_mode<synchronous>, transform_indices = @transform_2, window_bounds = array<i64: 1, 32>}, {pipeline_mode = #tpu.pipeline_mode<synchronous>, transform_indices = @transform_3, window_bounds = array<i64: 288, 64>}, {pipeline_mode = #tpu.pipeline_mode<synchronous>, transform_indices = @transform_4, window_bounds = array<i64: 1, 64>}, {pipeline_mode = #tpu.pipeline_mode<synchronous>, transform_indices = @transform_5, window_bounds = array<i64: 256, 128>}, {pipeline_mode = #tpu.pipeline_mode<synchronous>, transform_indices = @transform_6, window_bounds = array<i64: 1, 128>}, {pipeline_mode = #tpu.pipeline_mode<synchronous>, transform_indices = @transform_7, window_bounds = array<i64: 128, 256>}, {pipeline_mode = #tpu.pipeline_mode<synchronous>, transform_indices = @transform_8, window_bounds = array<i64: 1, 256>}, {transform_indices = @transform_9, window_bounds = array<i64: 1, 1, 1, 256>}]} {
    %c0 = arith.constant 0 : index
    %c0_0 = arith.constant 0 : index
    %c0_1 = arith.constant 0 : index
    %c0_2 = arith.constant 0 : index
    %0 = vector.load %arg1[%c0, %c0_0, %c0_1, %c0_2] : memref<1x32x32x16xbf16, #tpu.memory_space<vmem>>, vector<1x32x32x16xbf16>
    %1 = vector.shape_cast %0 : vector<1x32x32x16xbf16> to vector<1024x16xbf16>
    %c0_3 = arith.constant 0 : index
    %c0_4 = arith.constant 0 : index
    %2 = vector.load %arg2[%c0_3, %c0_4] : memref<16x32xbf16, #tpu.memory_space<vmem>>, vector<16x32xbf16>
    %cst = arith.constant dense<0.000000e+00> : vector<1024x32xf32>
    %3 = tpu.matmul %1, %2, %cst {dimension_numbers = #tpu.dot_dimension_numbers<[1], [0], [0], [1], [0, 0, 1, 1], [], []>} : vector<1024x16xbf16>, vector<16x32xbf16>, vector<1024x32xf32> -> vector<1024x32xf32>
    %4 = vector.shape_cast %3 : vector<1024x32xf32> to vector<1x16x2x32x32xf32>
    %5 = vector.extract_strided_slice %4 {offsets = [0, 0, 0, 0, 0], sizes = [1, 16, 1, 32, 32], strides = [1, 1, 1, 1, 1]} : vector<1x16x2x32x32xf32> to vector<1x16x1x32x32xf32>
    %6 = vector.shape_cast %5 : vector<1x16x1x32x32xf32> to vector<1x16x32x32xf32>
    %7 = vector.extract_strided_slice %4 {offsets = [0, 0, 1, 0, 0], sizes = [1, 16, 1, 32, 32], strides = [1, 1, 1, 1, 1]} : vector<1x16x2x32x32xf32> to vector<1x16x1x32x32xf32>
    %8 = vector.shape_cast %7 : vector<1x16x1x32x32xf32> to vector<1x16x32x32xf32>
    %9 = arith.maximumf %6, %8 : vector<1x16x32x32xf32>
    %10 = vector.shape_cast %9 : vector<1x16x32x32xf32> to vector<1x16x16x2x32xf32>
    %11 = vector.extract_strided_slice %10 {offsets = [0, 0, 0, 0, 0], sizes = [1, 16, 16, 1, 32], strides = [1, 1, 1, 1, 1]} : vector<1x16x16x2x32xf32> to vector<1x16x16x1x32xf32>
    %12 = vector.shape_cast %11 : vector<1x16x16x1x32xf32> to vector<1x16x16x32xf32>
    %13 = vector.extract_strided_slice %10 {offsets = [0, 0, 0, 1, 0], sizes = [1, 16, 16, 1, 32], strides = [1, 1, 1, 1, 1]} : vector<1x16x16x2x32xf32> to vector<1x16x16x1x32xf32>
    %14 = vector.shape_cast %13 : vector<1x16x16x1x32xf32> to vector<1x16x16x32xf32>
    %15 = arith.maximumf %12, %14 : vector<1x16x16x32xf32>
    %c0_5 = arith.constant 0 : index
    %c0_6 = arith.constant 0 : index
    %16 = vector.load %arg3[%c0_5, %c0_6] : memref<1x32xf32, #tpu.memory_space<vmem>>, vector<1x32xf32>
    %17 = vector.shape_cast %16 : vector<1x32xf32> to vector<1x1x1x32xf32>
    %18 = vector.broadcast %17 : vector<1x1x1x32xf32> to vector<1x16x16x32xf32>
    %19 = arith.addf %15, %18 : vector<1x16x16x32xf32>
    %cst_7 = arith.constant 0.000000e+00 : f32
    %20 = vector.broadcast %cst_7 : f32 to vector<1x16x16x32xf32>
    %21 = arith.cmpf ogt, %19, %20 : vector<1x16x16x32xf32>
    %cst_8 = arith.constant 0.000000e+00 : f32
    %22 = vector.broadcast %cst_8 : f32 to vector<1x16x16x32xf32>
    %23 = arith.minimumf %19, %22 : vector<1x16x16x32xf32>
    %24 = math.exp %23 : vector<1x16x16x32xf32>
    %cst_9 = arith.constant 1.000000e+00 : f32
    %25 = vector.broadcast %cst_9 : f32 to vector<1x16x16x32xf32>
    %26 = arith.subf %24, %25 : vector<1x16x16x32xf32>
    %27 = arith.select %21, %19, %26 : vector<1x16x16x32xi1>, vector<1x16x16x32xf32>
    %28 = vector.extract_strided_slice %27 {offsets = [0, 0, 0, 0], sizes = [1, 14, 14, 32], strides = [1, 1, 1, 1]} : vector<1x16x16x32xf32> to vector<1x14x14x32xf32>
    %29 = vector.shape_cast %28 : vector<1x14x14x32xf32> to vector<196x32xf32>
    %30 = vector.extract_strided_slice %27 {offsets = [0, 0, 1, 0], sizes = [1, 14, 14, 32], strides = [1, 1, 1, 1]} : vector<1x16x16x32xf32> to vector<1x14x14x32xf32>
    %31 = vector.shape_cast %30 : vector<1x14x14x32xf32> to vector<196x32xf32>
    %32 = vector.extract_strided_slice %27 {offsets = [0, 0, 2, 0], sizes = [1, 14, 14, 32], strides = [1, 1, 1, 1]} : vector<1x16x16x32xf32> to vector<1x14x14x32xf32>
    %33 = vector.shape_cast %32 : vector<1x14x14x32xf32> to vector<196x32xf32>
    %34 = vector.extract_strided_slice %27 {offsets = [0, 1, 0, 0], sizes = [1, 14, 14, 32], strides = [1, 1, 1, 1]} : vector<1x16x16x32xf32> to vector<1x14x14x32xf32>
    %35 = vector.shape_cast %34 : vector<1x14x14x32xf32> to vector<196x32xf32>
    %36 = vector.extract_strided_slice %27 {offsets = [0, 1, 1, 0], sizes = [1, 14, 14, 32], strides = [1, 1, 1, 1]} : vector<1x16x16x32xf32> to vector<1x14x14x32xf32>
    %37 = vector.shape_cast %36 : vector<1x14x14x32xf32> to vector<196x32xf32>
    %38 = vector.extract_strided_slice %27 {offsets = [0, 1, 2, 0], sizes = [1, 14, 14, 32], strides = [1, 1, 1, 1]} : vector<1x16x16x32xf32> to vector<1x14x14x32xf32>
    %39 = vector.shape_cast %38 : vector<1x14x14x32xf32> to vector<196x32xf32>
    %40 = vector.extract_strided_slice %27 {offsets = [0, 2, 0, 0], sizes = [1, 14, 14, 32], strides = [1, 1, 1, 1]} : vector<1x16x16x32xf32> to vector<1x14x14x32xf32>
    %41 = vector.shape_cast %40 : vector<1x14x14x32xf32> to vector<196x32xf32>
    %42 = vector.extract_strided_slice %27 {offsets = [0, 2, 1, 0], sizes = [1, 14, 14, 32], strides = [1, 1, 1, 1]} : vector<1x16x16x32xf32> to vector<1x14x14x32xf32>
    %43 = vector.shape_cast %42 : vector<1x14x14x32xf32> to vector<196x32xf32>
    %44 = vector.extract_strided_slice %27 {offsets = [0, 2, 2, 0], sizes = [1, 14, 14, 32], strides = [1, 1, 1, 1]} : vector<1x16x16x32xf32> to vector<1x14x14x32xf32>
    %45 = vector.shape_cast %44 : vector<1x14x14x32xf32> to vector<196x32xf32>
    %46 = tpu.concatenate %29, %31, %33, %35, %37, %39, %41, %43, %45 in 1 : vector<196x32xf32>, vector<196x32xf32>, vector<196x32xf32>, vector<196x32xf32>, vector<196x32xf32>, vector<196x32xf32>, vector<196x32xf32>, vector<196x32xf32>, vector<196x32xf32> -> vector<196x288xf32>
    %47 = arith.truncf %46 : vector<196x288xf32> to vector<196x288xbf16>
    %c0_10 = arith.constant 0 : index
    %c0_11 = arith.constant 0 : index
    %48 = vector.load %arg4[%c0_10, %c0_11] : memref<288x64xbf16, #tpu.memory_space<vmem>>, vector<288x64xbf16>
    %cst_12 = arith.constant dense<0.000000e+00> : vector<196x64xf32>
    %49 = tpu.matmul %47, %48, %cst_12 {dimension_numbers = #tpu.dot_dimension_numbers<[1], [0], [0], [1], [0, 0, 1, 1], [], []>} : vector<196x288xbf16>, vector<288x64xbf16>, vector<196x64xf32> -> vector<196x64xf32>
    %50 = vector.shape_cast %49 : vector<196x64xf32> to vector<1x7x2x14x64xf32>
    %51 = vector.extract_strided_slice %50 {offsets = [0, 0, 0, 0, 0], sizes = [1, 7, 1, 14, 64], strides = [1, 1, 1, 1, 1]} : vector<1x7x2x14x64xf32> to vector<1x7x1x14x64xf32>
    %52 = vector.shape_cast %51 : vector<1x7x1x14x64xf32> to vector<1x7x14x64xf32>
    %53 = vector.extract_strided_slice %50 {offsets = [0, 0, 1, 0, 0], sizes = [1, 7, 1, 14, 64], strides = [1, 1, 1, 1, 1]} : vector<1x7x2x14x64xf32> to vector<1x7x1x14x64xf32>
    %54 = vector.shape_cast %53 : vector<1x7x1x14x64xf32> to vector<1x7x14x64xf32>
    %55 = arith.maximumf %52, %54 : vector<1x7x14x64xf32>
    %56 = vector.shape_cast %55 : vector<1x7x14x64xf32> to vector<1x7x7x2x64xf32>
    %57 = vector.extract_strided_slice %56 {offsets = [0, 0, 0, 0, 0], sizes = [1, 7, 7, 1, 64], strides = [1, 1, 1, 1, 1]} : vector<1x7x7x2x64xf32> to vector<1x7x7x1x64xf32>
    %58 = vector.shape_cast %57 : vector<1x7x7x1x64xf32> to vector<1x7x7x64xf32>
    %59 = vector.extract_strided_slice %56 {offsets = [0, 0, 0, 1, 0], sizes = [1, 7, 7, 1, 64], strides = [1, 1, 1, 1, 1]} : vector<1x7x7x2x64xf32> to vector<1x7x7x1x64xf32>
    %60 = vector.shape_cast %59 : vector<1x7x7x1x64xf32> to vector<1x7x7x64xf32>
    %61 = arith.maximumf %58, %60 : vector<1x7x7x64xf32>
    %c0_13 = arith.constant 0 : index
    %c0_14 = arith.constant 0 : index
    %62 = vector.load %arg5[%c0_13, %c0_14] : memref<1x64xf32, #tpu.memory_space<vmem>>, vector<1x64xf32>
    %63 = vector.shape_cast %62 : vector<1x64xf32> to vector<1x1x1x64xf32>
    %64 = vector.broadcast %63 : vector<1x1x1x64xf32> to vector<1x7x7x64xf32>
    %65 = arith.addf %61, %64 : vector<1x7x7x64xf32>
    %cst_15 = arith.constant 0.000000e+00 : f32
    %66 = vector.broadcast %cst_15 : f32 to vector<1x7x7x64xf32>
    %67 = arith.cmpf ogt, %65, %66 : vector<1x7x7x64xf32>
    %cst_16 = arith.constant 0.000000e+00 : f32
    %68 = vector.broadcast %cst_16 : f32 to vector<1x7x7x64xf32>
    %69 = arith.minimumf %65, %68 : vector<1x7x7x64xf32>
    %70 = math.exp %69 : vector<1x7x7x64xf32>
    %cst_17 = arith.constant 1.000000e+00 : f32
    %71 = vector.broadcast %cst_17 : f32 to vector<1x7x7x64xf32>
    %72 = arith.subf %70, %71 : vector<1x7x7x64xf32>
    %73 = arith.select %67, %65, %72 : vector<1x7x7x64xi1>, vector<1x7x7x64xf32>
    %74 = vector.extract_strided_slice %73 {offsets = [0, 0, 0, 0], sizes = [1, 6, 6, 64], strides = [1, 1, 1, 1]} : vector<1x7x7x64xf32> to vector<1x6x6x64xf32>
    %75 = vector.shape_cast %74 : vector<1x6x6x64xf32> to vector<36x64xf32>
    %76 = vector.extract_strided_slice %73 {offsets = [0, 0, 1, 0], sizes = [1, 6, 6, 64], strides = [1, 1, 1, 1]} : vector<1x7x7x64xf32> to vector<1x6x6x64xf32>
    %77 = vector.shape_cast %76 : vector<1x6x6x64xf32> to vector<36x64xf32>
    %78 = vector.extract_strided_slice %73 {offsets = [0, 1, 0, 0], sizes = [1, 6, 6, 64], strides = [1, 1, 1, 1]} : vector<1x7x7x64xf32> to vector<1x6x6x64xf32>
    %79 = vector.shape_cast %78 : vector<1x6x6x64xf32> to vector<36x64xf32>
    %80 = vector.extract_strided_slice %73 {offsets = [0, 1, 1, 0], sizes = [1, 6, 6, 64], strides = [1, 1, 1, 1]} : vector<1x7x7x64xf32> to vector<1x6x6x64xf32>
    %81 = vector.shape_cast %80 : vector<1x6x6x64xf32> to vector<36x64xf32>
    %82 = tpu.concatenate %75, %77, %79, %81 in 1 : vector<36x64xf32>, vector<36x64xf32>, vector<36x64xf32>, vector<36x64xf32> -> vector<36x256xf32>
    %83 = arith.truncf %82 : vector<36x256xf32> to vector<36x256xbf16>
    %c0_18 = arith.constant 0 : index
    %c0_19 = arith.constant 0 : index
    %84 = vector.load %arg6[%c0_18, %c0_19] : memref<256x128xbf16, #tpu.memory_space<vmem>>, vector<256x128xbf16>
    %cst_20 = arith.constant dense<0.000000e+00> : vector<36x128xf32>
    %85 = tpu.matmul %83, %84, %cst_20 {dimension_numbers = #tpu.dot_dimension_numbers<[1], [0], [0], [1], [0, 0, 1, 1], [], []>} : vector<36x256xbf16>, vector<256x128xbf16>, vector<36x128xf32> -> vector<36x128xf32>
    %86 = vector.shape_cast %85 : vector<36x128xf32> to vector<1x3x2x6x128xf32>
    %87 = vector.extract_strided_slice %86 {offsets = [0, 0, 0, 0, 0], sizes = [1, 3, 1, 6, 128], strides = [1, 1, 1, 1, 1]} : vector<1x3x2x6x128xf32> to vector<1x3x1x6x128xf32>
    %88 = vector.shape_cast %87 : vector<1x3x1x6x128xf32> to vector<1x3x6x128xf32>
    %89 = vector.extract_strided_slice %86 {offsets = [0, 0, 1, 0, 0], sizes = [1, 3, 1, 6, 128], strides = [1, 1, 1, 1, 1]} : vector<1x3x2x6x128xf32> to vector<1x3x1x6x128xf32>
    %90 = vector.shape_cast %89 : vector<1x3x1x6x128xf32> to vector<1x3x6x128xf32>
    %91 = arith.maximumf %88, %90 : vector<1x3x6x128xf32>
    %92 = vector.shape_cast %91 : vector<1x3x6x128xf32> to vector<1x3x3x2x128xf32>
    %93 = vector.extract_strided_slice %92 {offsets = [0, 0, 0, 0, 0], sizes = [1, 3, 3, 1, 128], strides = [1, 1, 1, 1, 1]} : vector<1x3x3x2x128xf32> to vector<1x3x3x1x128xf32>
    %94 = vector.shape_cast %93 : vector<1x3x3x1x128xf32> to vector<1x3x3x128xf32>
    %95 = vector.extract_strided_slice %92 {offsets = [0, 0, 0, 1, 0], sizes = [1, 3, 3, 1, 128], strides = [1, 1, 1, 1, 1]} : vector<1x3x3x2x128xf32> to vector<1x3x3x1x128xf32>
    %96 = vector.shape_cast %95 : vector<1x3x3x1x128xf32> to vector<1x3x3x128xf32>
    %97 = arith.maximumf %94, %96 : vector<1x3x3x128xf32>
    %c0_21 = arith.constant 0 : index
    %c0_22 = arith.constant 0 : index
    %98 = vector.load %arg7[%c0_21, %c0_22] : memref<1x128xf32, #tpu.memory_space<vmem>>, vector<1x128xf32>
    %99 = vector.shape_cast %98 : vector<1x128xf32> to vector<1x1x1x128xf32>
    %100 = vector.broadcast %99 : vector<1x1x1x128xf32> to vector<1x3x3x128xf32>
    %101 = arith.addf %97, %100 : vector<1x3x3x128xf32>
    %cst_23 = arith.constant 0.000000e+00 : f32
    %102 = vector.broadcast %cst_23 : f32 to vector<1x3x3x128xf32>
    %103 = arith.cmpf ogt, %101, %102 : vector<1x3x3x128xf32>
    %cst_24 = arith.constant 0.000000e+00 : f32
    %104 = vector.broadcast %cst_24 : f32 to vector<1x3x3x128xf32>
    %105 = arith.minimumf %101, %104 : vector<1x3x3x128xf32>
    %106 = math.exp %105 : vector<1x3x3x128xf32>
    %cst_25 = arith.constant 1.000000e+00 : f32
    %107 = vector.broadcast %cst_25 : f32 to vector<1x3x3x128xf32>
    %108 = arith.subf %106, %107 : vector<1x3x3x128xf32>
    %109 = arith.select %103, %101, %108 : vector<1x3x3x128xi1>, vector<1x3x3x128xf32>
    %110 = vector.extract_strided_slice %109 {offsets = [0, 0, 0, 0], sizes = [1, 2, 2, 128], strides = [1, 1, 1, 1]} : vector<1x3x3x128xf32> to vector<1x2x2x128xf32>
    %111 = vector.shape_cast %110 : vector<1x2x2x128xf32> to vector<4x128xf32>
    %112 = arith.truncf %111 : vector<4x128xf32> to vector<4x128xbf16>
    %c0_26 = arith.constant 0 : index
    %c0_27 = arith.constant 0 : index
    %113 = vector.load %arg8[%c0_26, %c0_27] : memref<128x256xbf16, #tpu.memory_space<vmem>>, vector<128x256xbf16>
    %cst_28 = arith.constant dense<0.000000e+00> : vector<4x256xf32>
    %114 = tpu.matmul %112, %113, %cst_28 {dimension_numbers = #tpu.dot_dimension_numbers<[1], [0], [0], [1], [0, 0, 1, 1], [], []>} : vector<4x128xbf16>, vector<128x256xbf16>, vector<4x256xf32> -> vector<4x256xf32>
    %115 = vector.shape_cast %114 : vector<4x256xf32> to vector<1x1x2x2x256xf32>
    %116 = vector.extract_strided_slice %115 {offsets = [0, 0, 0, 0, 0], sizes = [1, 1, 1, 2, 256], strides = [1, 1, 1, 1, 1]} : vector<1x1x2x2x256xf32> to vector<1x1x1x2x256xf32>
    %117 = vector.shape_cast %116 : vector<1x1x1x2x256xf32> to vector<1x1x2x256xf32>
    %118 = vector.extract_strided_slice %115 {offsets = [0, 0, 1, 0, 0], sizes = [1, 1, 1, 2, 256], strides = [1, 1, 1, 1, 1]} : vector<1x1x2x2x256xf32> to vector<1x1x1x2x256xf32>
    %119 = vector.shape_cast %118 : vector<1x1x1x2x256xf32> to vector<1x1x2x256xf32>
    %120 = arith.maximumf %117, %119 : vector<1x1x2x256xf32>
    %121 = vector.shape_cast %120 : vector<1x1x2x256xf32> to vector<1x1x1x2x256xf32>
    %122 = vector.extract_strided_slice %121 {offsets = [0, 0, 0, 0, 0], sizes = [1, 1, 1, 1, 256], strides = [1, 1, 1, 1, 1]} : vector<1x1x1x2x256xf32> to vector<1x1x1x1x256xf32>
    %123 = vector.shape_cast %122 : vector<1x1x1x1x256xf32> to vector<1x1x1x256xf32>
    %124 = vector.extract_strided_slice %121 {offsets = [0, 0, 0, 1, 0], sizes = [1, 1, 1, 1, 256], strides = [1, 1, 1, 1, 1]} : vector<1x1x1x2x256xf32> to vector<1x1x1x1x256xf32>
    %125 = vector.shape_cast %124 : vector<1x1x1x1x256xf32> to vector<1x1x1x256xf32>
    %126 = arith.maximumf %123, %125 : vector<1x1x1x256xf32>
    %c0_29 = arith.constant 0 : index
    %c0_30 = arith.constant 0 : index
    %127 = vector.load %arg9[%c0_29, %c0_30] : memref<1x256xf32, #tpu.memory_space<vmem>>, vector<1x256xf32>
    %128 = vector.shape_cast %127 : vector<1x256xf32> to vector<1x1x1x256xf32>
    %129 = arith.addf %126, %128 : vector<1x1x1x256xf32>
    %cst_31 = arith.constant 0.000000e+00 : f32
    %130 = vector.broadcast %cst_31 : f32 to vector<1x1x1x256xf32>
    %131 = arith.cmpf ogt, %129, %130 : vector<1x1x1x256xf32>
    %cst_32 = arith.constant 0.000000e+00 : f32
    %132 = vector.broadcast %cst_32 : f32 to vector<1x1x1x256xf32>
    %133 = arith.minimumf %129, %132 : vector<1x1x1x256xf32>
    %134 = math.exp %133 : vector<1x1x1x256xf32>
    %cst_33 = arith.constant 1.000000e+00 : f32
    %135 = vector.broadcast %cst_33 : f32 to vector<1x1x1x256xf32>
    %136 = arith.subf %134, %135 : vector<1x1x1x256xf32>
    %137 = arith.select %131, %129, %136 : vector<1x1x1x256xi1>, vector<1x1x1x256xf32>
    %c0_34 = arith.constant 0 : index
    %c0_35 = arith.constant 0 : index
    %c0_36 = arith.constant 0 : index
    %c0_37 = arith.constant 0 : index
    %138 = vector.load %arg10[%c0_34, %c0_35, %c0_36, %c0_37] : memref<1x1x1x256xf32, #tpu.memory_space<vmem>>, vector<1x1x1x256xf32>
    tpu.vector_store %arg10[%c0_34, %c0_35, %c0_36, %c0_37], %137 {strides = array<i32>} : memref<1x1x1x256xf32, #tpu.memory_space<vmem>>, vector<1x1x1x256xf32>,
    return
  }
  func.func @transform_0(%arg0: i32) -> (i32, i32, i32, i32) {
    %c0_i32 = arith.constant 0 : i32
    %c0_i32_0 = arith.constant 0 : i32
    %c0_i32_1 = arith.constant 0 : i32
    %c0_i32_2 = arith.constant 0 : i32
    return %arg0, %c0_i32, %c0_i32_0, %c0_i32_1 : i32, i32, i32, i32
  }
  func.func @transform_1(%arg0: i32) -> (i32, i32) {
    %c0_i32 = arith.constant 0 : i32
    %c0_i32_0 = arith.constant 0 : i32
    %c0_i32_1 = arith.constant 0 : i32
    return %c0_i32, %c0_i32_0 : i32, i32
  }
  func.func @transform_2(%arg0: i32) -> (i32, i32) {
    %c0_i32 = arith.constant 0 : i32
    %c0_i32_0 = arith.constant 0 : i32
    %c0_i32_1 = arith.constant 0 : i32
    return %c0_i32, %c0_i32_0 : i32, i32
  }
  func.func @transform_3(%arg0: i32) -> (i32, i32) {
    %c0_i32 = arith.constant 0 : i32
    %c0_i32_0 = arith.constant 0 : i32
    %c0_i32_1 = arith.constant 0 : i32
    return %c0_i32, %c0_i32_0 : i32, i32
  }
  func.func @transform_4(%arg0: i32) -> (i32, i32) {
    %c0_i32 = arith.constant 0 : i32
    %c0_i32_0 = arith.constant 0 : i32
    %c0_i32_1 = arith.constant 0 : i32
    return %c0_i32, %c0_i32_0 : i32, i32
  }
  func.func @transform_5(%arg0: i32) -> (i32, i32) {
    %c0_i32 = arith.constant 0 : i32
    %c0_i32_0 = arith.constant 0 : i32
    %c0_i32_1 = arith.constant 0 : i32
    return %c0_i32, %c0_i32_0 : i32, i32
  }
  func.func @transform_6(%arg0: i32) -> (i32, i32) {
    %c0_i32 = arith.constant 0 : i32
    %c0_i32_0 = arith.constant 0 : i32
    %c0_i32_1 = arith.constant 0 : i32
    return %c0_i32, %c0_i32_0 : i32, i32
  }
  func.func @transform_7(%arg0: i32) -> (i32, i32) {
    %c0_i32 = arith.constant 0 : i32
    %c0_i32_0 = arith.constant 0 : i32
    %c0_i32_1 = arith.constant 0 : i32
    return %c0_i32, %c0_i32_0 : i32, i32
  }
  func.func @transform_8(%arg0: i32) -> (i32, i32) {
    %c0_i32 = arith.constant 0 : i32
    %c0_i32_0 = arith.constant 0 : i32
    %c0_i32_1 = arith.constant 0 : i32
    return %c0_i32, %c0_i32_0 : i32, i32
  }
  func.func @transform_9(%arg0: i32) -> (i32, i32, i32, i32) {
    %c0_i32 = arith.constant 0 : i32
    %c0_i32_0 = arith.constant 0 : i32
    %c0_i32_1 = arith.constant 0 : i32
    %c0_i32_2 = arith.constant 0 : i32
    return %arg0, %c0_i32, %c0_i32_0, %c0_i32_1 : i32, i32, i32, i32
  }
}

</mosaic_0001>

<llo_original>
// kernel: conv_layer_forward.1
$region0: #{conv_layer_forward.1}
  #allocation0 [shape = 'u32[]', space=smem, size = 0x4, offset = 0x4, fixed_abs, tag = 'smem constant byte address 0x4 - core index']
  #allocation1 [shape = 'u32[72,128]{1,0:T(1,128)}', space=vmem, size = 0x9000, scoped, tag = 'internal scratch']
  %s0 = inlined_call_operand.vmem [shape: bf16[2,32,32,16], index: 0, kind: input, shape index: {}]
  %s1 = inlined_call_operand.vmem [shape: bf16[16,32], index: 1, kind: input, shape index: {}]
  %s2 = inlined_call_operand.vmem [shape: f32[1,32], index: 2, kind: input, shape index: {}]
  %s3 = inlined_call_operand.vmem [shape: bf16[288,64], index: 3, kind: input, shape index: {}]
  %s4 = inlined_call_operand.vmem [shape: f32[1,64], index: 4, kind: input, shape index: {}]
  %s5 = inlined_call_operand.vmem [shape: bf16[256,128], index: 5, kind: input, shape index: {}]
  %s6 = inlined_call_operand.vmem [shape: f32[1,128], index: 6, kind: input, shape index: {}]
  %s7 = inlined_call_operand.vmem [shape: bf16[128,256], index: 7, kind: input, shape index: {}]
  %s8 = inlined_call_operand.vmem [shape: f32[1,256], index: 8, kind: input, shape index: {}]
  %s9 = inlined_call_operand.vmem [shape: f32[2,1,1,256], index: 9, kind: output, shape index: {}]
  %s10 = sld [smem:[#allocation0]]
  $region69: #{conv_layer_forward.1} parent=0
    _
  %s12 = ssub.s32 1, %s10
  %s13 = scalar_select 0, %s12, %s10
  loop: start=0, step=1, limit=4
  $region2: #{conv_layer_forward.1} parent=0 // loop_pre_header
    _
  $region3: #{conv_layer_forward.1} parent=0 // loop_header
    %s15 = sphi 0, %s19
    %p16 = scmp.ge.s32.totalorder %s15, 4
    %s25 = sphi 0, %s27
    %s28 = sphi 0, %s25
    %s29 = sphi 0, %s28
    %s45 = sphi 0, %s29
    %s49 = sphi 0, %s49
    %s51 = sphi 0, %s49
    %s52 = sphi 0, %s51
    %s66 = sphi 0, %s52
    %s70 = sphi 0, %s70
    %s72 = sphi 0, %s70
    %s73 = sphi 0, %s72
    %s87 = sphi 0, %s73
    %s91 = sphi 0, %s91
    %s93 = sphi 0, %s91
    %s94 = sphi 0, %s93
    %s108 = sphi 0, %s94
    %s112 = sphi 0, %s112
    %s114 = sphi 0, %s112
    %s115 = sphi 0, %s114
    %s129 = sphi 0, %s115
    %s133 = sphi 0, %s133
    %s135 = sphi 0, %s133
    %s136 = sphi 0, %s135
    %s150 = sphi 0, %s136
    %s154 = sphi 0, %s154
    %s156 = sphi 0, %s154
    %s157 = sphi 0, %s156
    %s171 = sphi 0, %s157
    %s175 = sphi 0, %s175
    %s177 = sphi 0, %s175
    %s178 = sphi 0, %s177
    %s192 = sphi 0, %s178
    %s196 = sphi 0, %s196
    %s198 = sphi 0, %s196
    %s199 = sphi 0, %s198
    %s213 = sphi 0, %s199
    %s219 = sphi 0, %s221
    %s222 = sphi 0, %s219
    %s223 = sphi 0, %s222
    %s239 = sphi 0, %s223
  $region4: #{conv_layer_forward.1} parent=0 // loop_header_branch
    %18 = sbr.rel (%p16) target = $region8
  $region5: #{conv_layer_forward.1} parent=0 // loop_body
    %s20 = ssub.s32 %s15, 1
    %s21 = ssub.s32 %s15, 2
    %s22 = sadd.s32 %s15, 1
    %s23 = ssub.s32 %s15, %s22
    %p24 = scmp.eq.s32.totalorder %s23, 0
    %s26 = sadd.s32 %s25, 1
    %s27 = scalar_select %p24, %s25, %s26
    %p30 = pneg %p24
    %p31 = scmp.eq.s32.totalorder %s15, 1
    %p32 = por %p30, %p31
    %p33 = scmp.ne.s32.totalorder %s25, %s28
    %p34 = scmp.eq.s32.totalorder %s15, 0
    %p35 = por %p33, %p34
    %p36 = scmp.ne.s32.totalorder %s25, %s28
    %p37 = scmp.eq.s32.totalorder %s20, 1
    %p38 = por %p36, %p37
    %p39 = scmp.ne.s32.totalorder %s28, %s29
    %p40 = scmp.eq.s32.totalorder %s20, 0
    %p41 = por %p39, %p40
    %p42 = scmp.ne.s32.totalorder %s28, %s29
    %p43 = scmp.eq.s32.totalorder %s21, 1
    %p44 = por %p42, %p43
    %p46 = scmp.ne.s32.totalorder %s29, %s45
    %p47 = scmp.eq.s32.totalorder %s21, 0
    %p48 = por %p46, %p47
    %s50 = sadd.s32 %s49, 1
    %p53 = scmp.eq.s32.totalorder %s15, 1
    %p54 = scmp.ne.s32.totalorder %s49, %s51
    %p55 = scmp.eq.s32.totalorder %s15, 0
    %p56 = por %p54, %p55
    %p57 = scmp.ne.s32.totalorder %s49, %s51
    %p58 = scmp.eq.s32.totalorder %s20, 1
    %p59 = por %p57, %p58
    %p60 = scmp.ne.s32.totalorder %s51, %s52
    %p61 = scmp.eq.s32.totalorder %s20, 0
    %p62 = por %p60, %p61
    %p63 = scmp.ne.s32.totalorder %s51, %s52
    %p64 = scmp.eq.s32.totalorder %s21, 1
    %p65 = por %p63, %p64
    %p67 = scmp.ne.s32.totalorder %s52, %s66
    %p68 = scmp.eq.s32.totalorder %s21, 0
    %p69 = por %p67, %p68
    %s71 = sadd.s32 %s70, 1
    %p74 = scmp.eq.s32.totalorder %s15, 1
    %p75 = scmp.ne.s32.totalorder %s70, %s72
    %p76 = scmp.eq.s32.totalorder %s15, 0
    %p77 = por %p75, %p76
    %p78 = scmp.ne.s32.totalorder %s70, %s72
    %p79 = scmp.eq.s32.totalorder %s20, 1
    %p80 = por %p78, %p79
    %p81 = scmp.ne.s32.totalorder %s72, %s73
    %p82 = scmp.eq.s32.totalorder %s20, 0
    %p83 = por %p81, %p82
    %p84 = scmp.ne.s32.totalorder %s72, %s73
    %p85 = scmp.eq.s32.totalorder %s21, 1
    %p86 = por %p84, %p85
    %p88 = scmp.ne.s32.totalorder %s73, %s87
    %p89 = scmp.eq.s32.totalorder %s21, 0
    %p90 = por %p88, %p89
    %s92 = sadd.s32 %s91, 1
    %p95 = scmp.eq.s32.totalorder %s15, 1
    %p96 = scmp.ne.s32.totalorder %s91, %s93
    %p97 = scmp.eq.s32.totalorder %s15, 0
    %p98 = por %p96, %p97
    %p99 = scmp.ne.s32.totalorder %s91, %s93
    %p100 = scmp.eq.s32.totalorder %s20, 1
    %p101 = por %p99, %p100
    %p102 = scmp.ne.s32.totalorder %s93, %s94
    %p103 = scmp.eq.s32.totalorder %s20, 0
    %p104 = por %p102, %p103
    %p105 = scmp.ne.s32.totalorder %s93, %s94
    %p106 = scmp.eq.s32.totalorder %s21, 1
    %p107 = por %p105, %p106
    %p109 = scmp.ne.s32.totalorder %s94, %s108
    %p110 = scmp.eq.s32.totalorder %s21, 0
    %p111 = por %p109, %p110
    %s113 = sadd.s32 %s112, 1
    %p116 = scmp.eq.s32.totalorder %s15, 1
    %p117 = scmp.ne.s32.totalorder %s112, %s114
    %p118 = scmp.eq.s32.totalorder %s15, 0
    %p119 = por %p117, %p118
    %p120 = scmp.ne.s32.totalorder %s112, %s114
    %p121 = scmp.eq.s32.totalorder %s20, 1
    %p122 = por %p120, %p121
    %p123 = scmp.ne.s32.totalorder %s114, %s115
    %p124 = scmp.eq.s32.totalorder %s20, 0
    %p125 = por %p123, %p124
    %p126 = scmp.ne.s32.totalorder %s114, %s115
    %p127 = scmp.eq.s32.totalorder %s21, 1
    %p128 = por %p126, %p127
    %p130 = scmp.ne.s32.totalorder %s115, %s129
    %p131 = scmp.eq.s32.totalorder %s21, 0
    %p132 = por %p130, %p131
    %s134 = sadd.s32 %s133, 1
    %p137 = scmp.eq.s32.totalorder %s15, 1
    %p138 = scmp.ne.s32.totalorder %s133, %s135
    %p139 = scmp.eq.s32.totalorder %s15, 0
    %p140 = por %p138, %p139
    %p141 = scmp.ne.s32.totalorder %s133, %s135
    %p142 = scmp.eq.s32.totalorder %s20, 1
    %p143 = por %p141, %p142
    %p144 = scmp.ne.s32.totalorder %s135, %s136
    %p145 = scmp.eq.s32.totalorder %s20, 0
    %p146 = por %p144, %p145
    %p147 = scmp.ne.s32.totalorder %s135, %s136
    %p148 = scmp.eq.s32.totalorder %s21, 1
    %p149 = por %p147, %p148
    %p151 = scmp.ne.s32.totalorder %s136, %s150
    %p152 = scmp.eq.s32.totalorder %s21, 0
    %p153 = por %p151, %p152
    %s155 = sadd.s32 %s154, 1
    %p158 = scmp.eq.s32.totalorder %s15, 1
    %p159 = scmp.ne.s32.totalorder %s154, %s156
    %p160 = scmp.eq.s32.totalorder %s15, 0
    %p161 = por %p159, %p160
    %p162 = scmp.ne.s32.totalorder %s154, %s156
    %p163 = scmp.eq.s32.totalorder %s20, 1
    %p164 = por %p162, %p163
    %p165 = scmp.ne.s32.totalorder %s156, %s157
    %p166 = scmp.eq.s32.totalorder %s20, 0
    %p167 = por %p165, %p166
    %p168 = scmp.ne.s32.totalorder %s156, %s157
    %p169 = scmp.eq.s32.totalorder %s21, 1
    %p170 = por %p168, %p169
    %p172 = scmp.ne.s32.totalorder %s157, %s171
    %p173 = scmp.eq.s32.totalorder %s21, 0
    %p174 = por %p172, %p173
    %s176 = sadd.s32 %s175, 1
    %p179 = scmp.eq.s32.totalorder %s15, 1
    %p180 = scmp.ne.s32.totalorder %s175, %s177
    %p181 = scmp.eq.s32.totalorder %s15, 0
    %p182 = por %p180, %p181
    %p183 = scmp.ne.s32.totalorder %s175, %s177
    %p184 = scmp.eq.s32.totalorder %s20, 1
    %p185 = por %p183, %p184
    %p186 = scmp.ne.s32.totalorder %s177, %s178
    %p187 = scmp.eq.s32.totalorder %s20, 0
    %p188 = por %p186, %p187
    %p189 = scmp.ne.s32.totalorder %s177, %s178
    %p190 = scmp.eq.s32.totalorder %s21, 1
    %p191 = por %p189, %p190
    %p193 = scmp.ne.s32.totalorder %s178, %s192
    %p194 = scmp.eq.s32.totalorder %s21, 0
    %p195 = por %p193, %p194
    %s197 = sadd.s32 %s196, 1
    %p200 = scmp.eq.s32.totalorder %s15, 1
    %p201 = scmp.ne.s32.totalorder %s196, %s198
    %p202 = scmp.eq.s32.totalorder %s15, 0
    %p203 = por %p201, %p202
    %p204 = scmp.ne.s32.totalorder %s196, %s198
    %p205 = scmp.eq.s32.totalorder %s20, 1
    %p206 = por %p204, %p205
    %p207 = scmp.ne.s32.totalorder %s198, %s199
    %p208 = scmp.eq.s32.totalorder %s20, 0
    %p209 = por %p207, %p208
    %p210 = scmp.ne.s32.totalorder %s198, %s199
    %p211 = scmp.eq.s32.totalorder %s21, 1
    %p212 = por %p210, %p211
    %p214 = scmp.ne.s32.totalorder %s199, %s213
    %p215 = scmp.eq.s32.totalorder %s21, 0
    %p216 = por %p214, %p215
    %s217 = ssub.s32 %s15, %s22
    %p218 = scmp.eq.s32.totalorder %s217, 0
    %s220 = sadd.s32 %s219, 1
    %s221 = scalar_select %p218, %s219, %s220
    %p224 = pneg %p218
    %p225 = scmp.eq.s32.totalorder %s15, 1
    %p226 = por %p224, %p225
    %p227 = scmp.ne.s32.totalorder %s219, %s222
    %p228 = scmp.eq.s32.totalorder %s15, 0
    %p229 = por %p227, %p228
    %p230 = scmp.ne.s32.totalorder %s219, %s222
    %p231 = scmp.eq.s32.totalorder %s20, 1
    %p232 = por %p230, %p231
    %p233 = scmp.ne.s32.totalorder %s222, %s223
    %p234 = scmp.eq.s32.totalorder %s20, 0
    %p235 = por %p233, %p234
    %p236 = scmp.ne.s32.totalorder %s222, %s223
    %p237 = scmp.eq.s32.totalorder %s21, 1
    %p238 = por %p236, %p237
    %p240 = scmp.ne.s32.totalorder %s223, %s239
    %p241 = scmp.eq.s32.totalorder %s21, 0
    %p242 = por %p240, %p241
    %p243 = scmp.le.s32.totalorder 1, %s15
    %p244 = scmp.lt.s32.totalorder %s15, 3
    %p245 = pnand %p243, %p244
    %p246 = pneg %p245
    // Predicated region
    $region9: #{conv_layer_forward.1} parent=5 // pred_check
      _
    $region10: #{conv_layer_forward.1} parent=5 // pred_check_branch
      %248 = sbr.rel (%p245) target = $region12
    $region11: #{conv_layer_forward.1} parent=5 // pred_region
      %s249 = ssub.s32 %s15, 1
      // Predicated region
      $region13: #{conv_layer_forward.1} parent=11 // pred_check
        %p250 = pneg %p62
      $region14: #{conv_layer_forward.1} parent=11 // pred_check_branch
        %252 = sbr.rel (%p250) target = $region16
      $region15: #{conv_layer_forward.1} parent=11 // pred_region
        _
      $region16: #{conv_layer_forward.1} parent=11 // pred_fallthru
        _
      // Predicated region
      $region17: #{conv_layer_forward.1} parent=11 // pred_check
        %p253 = pneg %p83
      $region18: #{conv_layer_forward.1} parent=11 // pred_check_branch
        %255 = sbr.rel (%p253) target = $region20
      $region19: #{conv_layer_forward.1} parent=11 // pred_region
        _
      $region20: #{conv_layer_forward.1} parent=11 // pred_fallthru
        _
      // Predicated region
      $region21: #{conv_layer_forward.1} parent=11 // pred_check
        %p256 = pneg %p104
      $region22: #{conv_layer_forward.1} parent=11 // pred_check_branch
        %258 = sbr.rel (%p256) target = $region24
      $region23: #{conv_layer_forward.1} parent=11 // pred_region
        _
      $region24: #{conv_layer_forward.1} parent=11 // pred_fallthru
        _
      // Predicated region
      $region25: #{conv_layer_forward.1} parent=11 // pred_check
        %p259 = pneg %p125
      $region26: #{conv_layer_forward.1} parent=11 // pred_check_branch
        %261 = sbr.rel (%p259) target = $region28
      $region27: #{conv_layer_forward.1} parent=11 // pred_region
        _
      $region28: #{conv_layer_forward.1} parent=11 // pred_fallthru
        _
      // Predicated region
      $region29: #{conv_layer_forward.1} parent=11 // pred_check
        %p262 = pneg %p146
      $region30: #{conv_layer_forward.1} parent=11 // pred_check_branch
        %264 = sbr.rel (%p262) target = $region32
      $region31: #{conv_layer_forward.1} parent=11 // pred_region
        _
      $region32: #{conv_layer_forward.1} parent=11 // pred_fallthru
        _
      // Predicated region
      $region33: #{conv_layer_forward.1} parent=11 // pred_check
        %p265 = pneg %p167
      $region34: #{conv_layer_forward.1} parent=11 // pred_check_branch
        %267 = sbr.rel (%p265) target = $region36
      $region35: #{conv_layer_forward.1} parent=11 // pred_region
        _
      $region36: #{conv_layer_forward.1} parent=11 // pred_fallthru
        _
      // Predicated region
      $region37: #{conv_layer_forward.1} parent=11 // pred_check
        %p268 = pneg %p188
      $region38: #{conv_layer_forward.1} parent=11 // pred_check_branch
        %270 = sbr.rel (%p268) target = $region40
      $region39: #{conv_layer_forward.1} parent=11 // pred_region
        _
      $region40: #{conv_layer_forward.1} parent=11 // pred_fallthru
        _
      // Predicated region
      $region41: #{conv_layer_forward.1} parent=11 // pred_check
        %p271 = pneg %p209
      $region42: #{conv_layer_forward.1} parent=11 // pred_check_branch
        %273 = sbr.rel (%p271) target = $region44
      $region43: #{conv_layer_forward.1} parent=11 // pred_region
        _
      $region44: #{conv_layer_forward.1} parent=11 // pred_fallthru
        _
    $region12: #{conv_layer_forward.1} parent=5 // pred_fallthru
      _
    %p274 = scmp.lt.s32.totalorder %s15, 2
    // Predicated region
    $region45: #{conv_layer_forward.1} parent=5 // pred_check
      %p275 = pneg %p274
    $region46: #{conv_layer_forward.1} parent=5 // pred_check_branch
      %277 = sbr.rel (%p275) target = $region48
    $region47: #{conv_layer_forward.1} parent=5 // pred_region
      // Predicated region
      $region49: #{conv_layer_forward.1} parent=47 // pred_check
        %p278 = pneg %p35
      $region50: #{conv_layer_forward.1} parent=47 // pred_check_branch
        %280 = sbr.rel (%p278) target = $region52
      $region51: #{conv_layer_forward.1} parent=47 // pred_region
        %p281 = scmp.lt.s32.totalorder %s15, 1
        %s282 = scalar_select %p281, %s15, 1
        %s283 = smul.addr %s282, 128
        %s284 = smul.addr %s283, 4
        %s285 = scalar_lea.vmem %s0, %s284
      $region52: #{conv_layer_forward.1} parent=47 // pred_fallthru
        _
    $region48: #{conv_layer_forward.1} parent=5 // pred_fallthru
      _
    %p286 = scmp.le.s32.totalorder 1, %s15
    %p287 = scmp.lt.s32.totalorder %s15, 3
    %p288 = pnand %p286, %p287
    %p289 = pneg %p288
    // Predicated region
    $region53: #{conv_layer_forward.1} parent=5 // pred_check
      _
    $region54: #{conv_layer_forward.1} parent=5 // pred_check_branch
      %291 = sbr.rel (%p288) target = $region56
    $region55: #{conv_layer_forward.1} parent=5 // pred_region
      %s292 = ssub.s32 %s15, 1
      %p293 = scmp.lt.s32.totalorder %s20, 1
      %s294 = scalar_select %p293, %s20, 1
      %s295 = smul.addr %s294, 128
      %s296 = smul.addr %s295, 4
      %s297 = scalar_lea.vmem %s0, %s296
      %p298 = pneg %p41
      %p299 = pneg %p38
      %p300 = pneg %p62
      %p301 = pneg %p59
      %p302 = pneg %p83
      %p303 = pneg %p80
      %p304 = pneg %p104
      %p305 = pneg %p101
      %p306 = pneg %p125
      %p307 = pneg %p122
      %p308 = pneg %p146
      %p309 = pneg %p143
      %p310 = pneg %p167
      %p311 = pneg %p164
      %p312 = pneg %p188
      %p313 = pneg %p185
      %p314 = pneg %p209
      %p315 = pneg %p206
      %p316 = pneg %p235
      %p317 = pneg %p232
      %p318 = scmp.lt.s32.totalorder %s20, 1
      %s319 = scalar_select %p318, %s20, 1
      %s320 = smul.addr %s319, 2
      %s321 = scalar_lea.vmem %s9, %s320
      %p322 = scmp.lt.s32.totalorder %s20, 1
      %s323 = scalar_select %p322, %s20, 1
      %s324 = smul.addr %s323, 128
      %s325 = smul.addr %s324, 4
      %s326 = scalar_lea.vmem %s0, %s325
      %p327 = scmp.lt.s32.totalorder %s20, 1
      %s328 = scalar_select %p327, %s20, 1
      %s329 = smul.addr %s328, 2
      %s330 = scalar_lea.vmem %s9, %s329
      %v332 = vld [vmem:[%s326] sm:$0xf]
      %v333 = vld [vmem:[%s326 + $0x4] sm:$0xf]
      %v334 = vld [vmem:[%s326 + $0x8] sm:$0xf]
      %v335 = vld [vmem:[%s326 + $0xc] sm:$0xf]
      %v336 = vld [vmem:[%s326 + $0x10] sm:$0xf]
      %v337 = vld [vmem:[%s326 + $0x14] sm:$0xf]
      %v338 = vld [vmem:[%s326 + $0x18] sm:$0xf]
      %v339 = vld [vmem:[%s326 + $0x1c] sm:$0xf]
      %v340 = vld [vmem:[%s326 + $0x20] sm:$0xf]
      %v341 = vld [vmem:[%s326 + $0x24] sm:$0xf]
      %v342 = vld [vmem:[%s326 + $0x28] sm:$0xf]
      %v343 = vld [vmem:[%s326 + $0x2c] sm:$0xf]
      %v344 = vld [vmem:[%s326 + $0x30] sm:$0xf]
      %v345 = vld [vmem:[%s326 + $0x34] sm:$0xf]
      %v346 = vld [vmem:[%s326 + $0x38] sm:$0xf]
      %v347 = vld [vmem:[%s326 + $0x3c] sm:$0xf]
      %v348 = vld [vmem:[%s326 + $0x40] sm:$0xf]
      %v349 = vld [vmem:[%s326 + $0x44] sm:$0xf]
      %v350 = vld [vmem:[%s326 + $0x48] sm:$0xf]
      %v351 = vld [vmem:[%s326 + $0x4c] sm:$0xf]
      %v352 = vld [vmem:[%s326 + $0x50] sm:$0xf]
      %v353 = vld [vmem:[%s326 + $0x54] sm:$0xf]
      %v354 = vld [vmem:[%s326 + $0x58] sm:$0xf]
      %v355 = vld [vmem:[%s326 + $0x5c] sm:$0xf]
      %v356 = vld [vmem:[%s326 + $0x60] sm:$0xf]
      %v357 = vld [vmem:[%s326 + $0x64] sm:$0xf]
      %v358 = vld [vmem:[%s326 + $0x68] sm:$0xf]
      %v359 = vld [vmem:[%s326 + $0x6c] sm:$0xf]
      %v360 = vld [vmem:[%s326 + $0x70] sm:$0xf]
      %v361 = vld [vmem:[%s326 + $0x74] sm:$0xf]
      %v362 = vld [vmem:[%s326 + $0x78] sm:$0xf]
      %v363 = vld [vmem:[%s326 + $0x7c] sm:$0xf]
      %v364 = vld [vmem:[%s326 + $0x80] sm:$0xf]
      %v365 = vld [vmem:[%s326 + $0x84] sm:$0xf]
      %v366 = vld [vmem:[%s326 + $0x88] sm:$0xf]
      %v367 = vld [vmem:[%s326 + $0x8c] sm:$0xf]
      %v368 = vld [vmem:[%s326 + $0x90] sm:$0xf]
      %v369 = vld [vmem:[%s326 + $0x94] sm:$0xf]
      %v370 = vld [vmem:[%s326 + $0x98] sm:$0xf]
      %v371 = vld [vmem:[%s326 + $0x9c] sm:$0xf]
      %v372 = vld [vmem:[%s326 + $0xa0] sm:$0xf]
      %v373 = vld [vmem:[%s326 + $0xa4] sm:$0xf]
      %v374 = vld [vmem:[%s326 + $0xa8] sm:$0xf]
      %v375 = vld [vmem:[%s326 + $0xac] sm:$0xf]
      %v376 = vld [vmem:[%s326 + $0xb0] sm:$0xf]
      %v377 = vld [vmem:[%s326 + $0xb4] sm:$0xf]
      %v378 = vld [vmem:[%s326 + $0xb8] sm:$0xf]
      %v379 = vld [vmem:[%s326 + $0xbc] sm:$0xf]
      %v380 = vld [vmem:[%s326 + $0xc0] sm:$0xf]
      %v381 = vld [vmem:[%s326 + $0xc4] sm:$0xf]
      %v382 = vld [vmem:[%s326 + $0xc8] sm:$0xf]
      %v383 = vld [vmem:[%s326 + $0xcc] sm:$0xf]
      %v384 = vld [vmem:[%s326 + $0xd0] sm:$0xf]
      %v385 = vld [vmem:[%s326 + $0xd4] sm:$0xf]
      %v386 = vld [vmem:[%s326 + $0xd8] sm:$0xf]
      %v387 = vld [vmem:[%s326 + $0xdc] sm:$0xf]
      %v388 = vld [vmem:[%s326 + $0xe0] sm:$0xf]
      %v389 = vld [vmem:[%s326 + $0xe4] sm:$0xf]
      %v390 = vld [vmem:[%s326 + $0xe8] sm:$0xf]
      %v391 = vld [vmem:[%s326 + $0xec] sm:$0xf]
      %v392 = vld [vmem:[%s326 + $0xf0] sm:$0xf]
      %v393 = vld [vmem:[%s326 + $0xf4] sm:$0xf]
      %v394 = vld [vmem:[%s326 + $0xf8] sm:$0xf]
      %v395 = vld [vmem:[%s326 + $0xfc] sm:$0xf]
      %v396 = vld [vmem:[%s326 + $0x100] sm:$0xf]
      %v397 = vld [vmem:[%s326 + $0x104] sm:$0xf]
      %v398 = vld [vmem:[%s326 + $0x108] sm:$0xf]
      %v399 = vld [vmem:[%s326 + $0x10c] sm:$0xf]
      %v400 = vld [vmem:[%s326 + $0x110] sm:$0xf]
      %v401 = vld [vmem:[%s326 + $0x114] sm:$0xf]
      %v402 = vld [vmem:[%s326 + $0x118] sm:$0xf]
      %v403 = vld [vmem:[%s326 + $0x11c] sm:$0xf]
      %v404 = vld [vmem:[%s326 + $0x120] sm:$0xf]
      %v405 = vld [vmem:[%s326 + $0x124] sm:$0xf]
      %v406 = vld [vmem:[%s326 + $0x128] sm:$0xf]
      %v407 = vld [vmem:[%s326 + $0x12c] sm:$0xf]
      %v408 = vld [vmem:[%s326 + $0x130] sm:$0xf]
      %v409 = vld [vmem:[%s326 + $0x134] sm:$0xf]
      %v410 = vld [vmem:[%s326 + $0x138] sm:$0xf]
      %v411 = vld [vmem:[%s326 + $0x13c] sm:$0xf]
      %v412 = vld [vmem:[%s326 + $0x140] sm:$0xf]
      %v413 = vld [vmem:[%s326 + $0x144] sm:$0xf]
      %v414 = vld [vmem:[%s326 + $0x148] sm:$0xf]
      %v415 = vld [vmem:[%s326 + $0x14c] sm:$0xf]
      %v416 = vld [vmem:[%s326 + $0x150] sm:$0xf]
      %v417 = vld [vmem:[%s326 + $0x154] sm:$0xf]
      %v418 = vld [vmem:[%s326 + $0x158] sm:$0xf]
      %v419 = vld [vmem:[%s326 + $0x15c] sm:$0xf]
      %v420 = vld [vmem:[%s326 + $0x160] sm:$0xf]
      %v421 = vld [vmem:[%s326 + $0x164] sm:$0xf]
      %v422 = vld [vmem:[%s326 + $0x168] sm:$0xf]
      %v423 = vld [vmem:[%s326 + $0x16c] sm:$0xf]
      %v424 = vld [vmem:[%s326 + $0x170] sm:$0xf]
      %v425 = vld [vmem:[%s326 + $0x174] sm:$0xf]
      %v426 = vld [vmem:[%s326 + $0x178] sm:$0xf]
      %v427 = vld [vmem:[%s326 + $0x17c] sm:$0xf]
      %v428 = vld [vmem:[%s326 + $0x180] sm:$0xf]
      %v429 = vld [vmem:[%s326 + $0x184] sm:$0xf]
      %v430 = vld [vmem:[%s326 + $0x188] sm:$0xf]
      %v431 = vld [vmem:[%s326 + $0x18c] sm:$0xf]
      %v432 = vld [vmem:[%s326 + $0x190] sm:$0xf]
      %v433 = vld [vmem:[%s326 + $0x194] sm:$0xf]
      %v434 = vld [vmem:[%s326 + $0x198] sm:$0xf]
      %v435 = vld [vmem:[%s326 + $0x19c] sm:$0xf]
      %v436 = vld [vmem:[%s326 + $0x1a0] sm:$0xf]
      %v437 = vld [vmem:[%s326 + $0x1a4] sm:$0xf]
      %v438 = vld [vmem:[%s326 + $0x1a8] sm:$0xf]
      %v439 = vld [vmem:[%s326 + $0x1ac] sm:$0xf]
      %v440 = vld [vmem:[%s326 + $0x1b0] sm:$0xf]
      %v441 = vld [vmem:[%s326 + $0x1b4] sm:$0xf]
      %v442 = vld [vmem:[%s326 + $0x1b8] sm:$0xf]
      %v443 = vld [vmem:[%s326 + $0x1bc] sm:$0xf]
      %v444 = vld [vmem:[%s326 + $0x1c0] sm:$0xf]
      %v445 = vld [vmem:[%s326 + $0x1c4] sm:$0xf]
      %v446 = vld [vmem:[%s326 + $0x1c8] sm:$0xf]
      %v447 = vld [vmem:[%s326 + $0x1cc] sm:$0xf]
      %v448 = vld [vmem:[%s326 + $0x1d0] sm:$0xf]
      %v449 = vld [vmem:[%s326 + $0x1d4] sm:$0xf]
      %v450 = vld [vmem:[%s326 + $0x1d8] sm:$0xf]
      %v451 = vld [vmem:[%s326 + $0x1dc] sm:$0xf]
      %v452 = vld [vmem:[%s326 + $0x1e0] sm:$0xf]
      %v453 = vld [vmem:[%s326 + $0x1e4] sm:$0xf]
      %v454 = vld [vmem:[%s326 + $0x1e8] sm:$0xf]
      %v455 = vld [vmem:[%s326 + $0x1ec] sm:$0xf]
      %v456 = vld [vmem:[%s326 + $0x1f0] sm:$0xf]
      %v457 = vld [vmem:[%s326 + $0x1f4] sm:$0xf]
      %v458 = vld [vmem:[%s326 + $0x1f8] sm:$0xf]
      %v459 = vld [vmem:[%s326 + $0x1fc] sm:$0xf]
      %v460 = vld [vmem:[%s1] sm:$0xf]
      %v461 = vld [vmem:[%s1 + $0x4] sm:$0xf]
      %v590 = vunpack.c.l.b16 %v332
      %v591 = vunpack.c.l.b16 %v333
      %v592 = vunpack.c.l.b16 %v334
      %v593 = vunpack.c.l.b16 %v335
      %v594 = vunpack.c.l.b16 %v336
      %v595 = vunpack.c.l.b16 %v337
      %v596 = vunpack.c.l.b16 %v338
      %v597 = vunpack.c.l.b16 %v339
      %v598 = vunpack.c.l.b16 %v340
      %v599 = vunpack.c.l.b16 %v341
      %v600 = vunpack.c.l.b16 %v342
      %v601 = vunpack.c.l.b16 %v343
      %v602 = vunpack.c.l.b16 %v344
      %v603 = vunpack.c.l.b16 %v345
      %v604 = vunpack.c.l.b16 %v346
      %v605 = vunpack.c.l.b16 %v347
      %v606 = vunpack.c.l.b16 %v348
      %v607 = vunpack.c.l.b16 %v349
      %v608 = vunpack.c.l.b16 %v350
      %v609 = vunpack.c.l.b16 %v351
      %v610 = vunpack.c.l.b16 %v352
      %v611 = vunpack.c.l.b16 %v353
      %v612 = vunpack.c.l.b16 %v354
      %v613 = vunpack.c.l.b16 %v355
      %v614 = vunpack.c.l.b16 %v356
      %v615 = vunpack.c.l.b16 %v357
      %v616 = vunpack.c.l.b16 %v358
      %v617 = vunpack.c.l.b16 %v359
      %v618 = vunpack.c.l.b16 %v360
      %v619 = vunpack.c.l.b16 %v361
      %v620 = vunpack.c.l.b16 %v362
      %v621 = vunpack.c.l.b16 %v363
      %v622 = vunpack.c.l.b16 %v364
      %v623 = vunpack.c.l.b16 %v365
      %v624 = vunpack.c.l.b16 %v366
      %v625 = vunpack.c.l.b16 %v367
      %v626 = vunpack.c.l.b16 %v368
      %v627 = vunpack.c.l.b16 %v369
      %v628 = vunpack.c.l.b16 %v370
      %v629 = vunpack.c.l.b16 %v371
      %v630 = vunpack.c.l.b16 %v372
      %v631 = vunpack.c.l.b16 %v373
      %v632 = vunpack.c.l.b16 %v374
      %v633 = vunpack.c.l.b16 %v375
      %v634 = vunpack.c.l.b16 %v376
      %v635 = vunpack.c.l.b16 %v377
      %v636 = vunpack.c.l.b16 %v378
      %v637 = vunpack.c.l.b16 %v379
      %v638 = vunpack.c.l.b16 %v380
      %v639 = vunpack.c.l.b16 %v381
      %v640 = vunpack.c.l.b16 %v382
      %v641 = vunpack.c.l.b16 %v383
      %v642 = vunpack.c.l.b16 %v384
      %v643 = vunpack.c.l.b16 %v385
      %v644 = vunpack.c.l.b16 %v386
      %v645 = vunpack.c.l.b16 %v387
      %v646 = vunpack.c.l.b16 %v388
      %v647 = vunpack.c.l.b16 %v389
      %v648 = vunpack.c.l.b16 %v390
      %v649 = vunpack.c.l.b16 %v391
      %v650 = vunpack.c.l.b16 %v392
      %v651 = vunpack.c.l.b16 %v393
      %v652 = vunpack.c.l.b16 %v394
      %v653 = vunpack.c.l.b16 %v395
      %v654 = vunpack.c.l.b16 %v396
      %v655 = vunpack.c.l.b16 %v397
      %v656 = vunpack.c.l.b16 %v398
      %v657 = vunpack.c.l.b16 %v399
      %v658 = vunpack.c.l.b16 %v400
      %v659 = vunpack.c.l.b16 %v401
      %v660 = vunpack.c.l.b16 %v402
      %v661 = vunpack.c.l.b16 %v403
      %v662 = vunpack.c.l.b16 %v404
      %v663 = vunpack.c.l.b16 %v405
      %v664 = vunpack.c.l.b16 %v406
      %v665 = vunpack.c.l.b16 %v407
      %v666 = vunpack.c.l.b16 %v408
      %v667 = vunpack.c.l.b16 %v409
      %v668 = vunpack.c.l.b16 %v410
      %v669 = vunpack.c.l.b16 %v411
      %v670 = vunpack.c.l.b16 %v412
      %v671 = vunpack.c.l.b16 %v413
      %v672 = vunpack.c.l.b16 %v414
      %v673 = vunpack.c.l.b16 %v415
      %v674 = vunpack.c.l.b16 %v416
      %v675 = vunpack.c.l.b16 %v417
      %v676 = vunpack.c.l.b16 %v418
      %v677 = vunpack.c.l.b16 %v419
      %v678 = vunpack.c.l.b16 %v420
      %v679 = vunpack.c.l.b16 %v421
      %v680 = vunpack.c.l.b16 %v422
      %v681 = vunpack.c.l.b16 %v423
      %v682 = vunpack.c.l.b16 %v424
      %v683 = vunpack.c.l.b16 %v425
      %v684 = vunpack.c.l.b16 %v426
      %v685 = vunpack.c.l.b16 %v427
      %v686 = vunpack.c.l.b16 %v428
      %v687 = vunpack.c.l.b16 %v429
      %v688 = vunpack.c.l.b16 %v430
      %v689 = vunpack.c.l.b16 %v431
      %v690 = vunpack.c.l.b16 %v432
      %v691 = vunpack.c.l.b16 %v433
      %v692 = vunpack.c.l.b16 %v434
      %v693 = vunpack.c.l.b16 %v435
      %v694 = vunpack.c.l.b16 %v436
      %v695 = vunpack.c.l.b16 %v437
      %v696 = vunpack.c.l.b16 %v438
      %v697 = vunpack.c.l.b16 %v439
      %v698 = vunpack.c.l.b16 %v440
      %v699 = vunpack.c.l.b16 %v441
      %v700 = vunpack.c.l.b16 %v442
      %v701 = vunpack.c.l.b16 %v443
      %v702 = vunpack.c.l.b16 %v444
      %v703 = vunpack.c.l.b16 %v445
      %v704 = vunpack.c.l.b16 %v446
      %v705 = vunpack.c.l.b16 %v447
      %v706 = vunpack.c.l.b16 %v448
      %v707 = vunpack.c.l.b16 %v449
      %v708 = vunpack.c.l.b16 %v450
      %v709 = vunpack.c.l.b16 %v451
      %v710 = vunpack.c.l.b16 %v452
      %v711 = vunpack.c.l.b16 %v453
      %v712 = vunpack.c.l.b16 %v454
      %v713 = vunpack.c.l.b16 %v455
      %v714 = vunpack.c.l.b16 %v456
      %v715 = vunpack.c.l.b16 %v457
      %v716 = vunpack.c.l.b16 %v458
      %v717 = vunpack.c.l.b16 %v459
      %v718 = vpack.c.b16 %v591, %v590
      %v719 = vpack.c.b16 %v593, %v592
      %v720 = vpack.c.b16 %v595, %v594
      %v721 = vpack.c.b16 %v597, %v596
      %v722 = vpack.c.b16 %v599, %v598
      %v723 = vpack.c.b16 %v601, %v600
      %v724 = vpack.c.b16 %v603, %v602
      %v725 = vpack.c.b16 %v605, %v604
      %v726 = vpack.c.b16 %v607, %v606
      %v727 = vpack.c.b16 %v609, %v608
      %v728 = vpack.c.b16 %v611, %v610
      %v729 = vpack.c.b16 %v613, %v612
      %v730 = vpack.c.b16 %v615, %v614
      %v731 = vpack.c.b16 %v617, %v616
      %v732 = vpack.c.b16 %v619, %v618
      %v733 = vpack.c.b16 %v621, %v620
      %v734 = vpack.c.b16 %v623, %v622
      %v735 = vpack.c.b16 %v625, %v624
      %v736 = vpack.c.b16 %v627, %v626
      %v737 = vpack.c.b16 %v629, %v628
      %v738 = vpack.c.b16 %v631, %v630
      %v739 = vpack.c.b16 %v633, %v632
      %v740 = vpack.c.b16 %v635, %v634
      %v741 = vpack.c.b16 %v637, %v636
      %v742 = vpack.c.b16 %v639, %v638
      %v743 = vpack.c.b16 %v641, %v640
      %v744 = vpack.c.b16 %v643, %v642
      %v745 = vpack.c.b16 %v645, %v644
      %v746 = vpack.c.b16 %v647, %v646
      %v747 = vpack.c.b16 %v649, %v648
      %v748 = vpack.c.b16 %v651, %v650
      %v749 = vpack.c.b16 %v653, %v652
      %v750 = vpack.c.b16 %v655, %v654
      %v751 = vpack.c.b16 %v657, %v656
      %v752 = vpack.c.b16 %v659, %v658
      %v753 = vpack.c.b16 %v661, %v660
      %v754 = vpack.c.b16 %v663, %v662
      %v755 = vpack.c.b16 %v665, %v664
      %v756 = vpack.c.b16 %v667, %v666
      %v757 = vpack.c.b16 %v669, %v668
      %v758 = vpack.c.b16 %v671, %v670
      %v759 = vpack.c.b16 %v673, %v672
      %v760 = vpack.c.b16 %v675, %v674
      %v761 = vpack.c.b16 %v677, %v676
      %v762 = vpack.c.b16 %v679, %v678
      %v763 = vpack.c.b16 %v681, %v680
      %v764 = vpack.c.b16 %v683, %v682
      %v765 = vpack.c.b16 %v685, %v684
      %v766 = vpack.c.b16 %v687, %v686
      %v767 = vpack.c.b16 %v689, %v688
      %v768 = vpack.c.b16 %v691, %v690
      %v769 = vpack.c.b16 %v693, %v692
      %v770 = vpack.c.b16 %v695, %v694
      %v771 = vpack.c.b16 %v697, %v696
      %v772 = vpack.c.b16 %v699, %v698
      %v773 = vpack.c.b16 %v701, %v700
      %v774 = vpack.c.b16 %v703, %v702
      %v775 = vpack.c.b16 %v705, %v704
      %v776 = vpack.c.b16 %v707, %v706
      %v777 = vpack.c.b16 %v709, %v708
      %v778 = vpack.c.b16 %v711, %v710
      %v779 = vpack.c.b16 %v713, %v712
      %v780 = vpack.c.b16 %v715, %v714
      %v781 = vpack.c.b16 %v717, %v716
      %v784 = vunpack.c.l.b16 %v460
      %v785 = vunpack.c.l.b16 %v461
      %v786 = vpack.c.b16 %v785, %v784
      %vm788 = vcmask 130048
      %v790 = vsel %vm788, %v718, 0
      %v793 = vsel %vm788, %v719, 0
      %v796 = vsel %vm788, %v720, 0
      %v799 = vsel %vm788, %v721, 0
      %v802 = vsel %vm788, %v722, 0
      %v805 = vsel %vm788, %v723, 0
      %v808 = vsel %vm788, %v724, 0
      %v811 = vsel %vm788, %v725, 0
      %v814 = vsel %vm788, %v726, 0
      %v817 = vsel %vm788, %v727, 0
      %v820 = vsel %vm788, %v728, 0
      %v823 = vsel %vm788, %v729, 0
      %v826 = vsel %vm788, %v730, 0
      %v829 = vsel %vm788, %v731, 0
      %v832 = vsel %vm788, %v732, 0
      %v835 = vsel %vm788, %v733, 0
      %v838 = vsel %vm788, %v734, 0
      %v841 = vsel %vm788, %v735, 0
      %v844 = vsel %vm788, %v736, 0
      %v847 = vsel %vm788, %v737, 0
      %v850 = vsel %vm788, %v738, 0
      %v853 = vsel %vm788, %v739, 0
      %v856 = vsel %vm788, %v740, 0
      %v859 = vsel %vm788, %v741, 0
      %v862 = vsel %vm788, %v742, 0
      %v865 = vsel %vm788, %v743, 0
      %v868 = vsel %vm788, %v744, 0
      %v871 = vsel %vm788, %v745, 0
      %v874 = vsel %vm788, %v746, 0
      %v877 = vsel %vm788, %v747, 0
      %v880 = vsel %vm788, %v748, 0
      %v883 = vsel %vm788, %v749, 0
      %v886 = vsel %vm788, %v750, 0
      %v889 = vsel %vm788, %v751, 0
      %v892 = vsel %vm788, %v752, 0
      %v895 = vsel %vm788, %v753, 0
      %v898 = vsel %vm788, %v754, 0
      %v901 = vsel %vm788, %v755, 0
      %v904 = vsel %vm788, %v756, 0
      %v907 = vsel %vm788, %v757, 0
      %v910 = vsel %vm788, %v758, 0
      %v913 = vsel %vm788, %v759, 0
      %v916 = vsel %vm788, %v760, 0
      %v919 = vsel %vm788, %v761, 0
      %v922 = vsel %vm788, %v762, 0
      %v925 = vsel %vm788, %v763, 0
      %v928 = vsel %vm788, %v764, 0
      %v931 = vsel %vm788, %v765, 0
      %v934 = vsel %vm788, %v766, 0
      %v937 = vsel %vm788, %v767, 0
      %v940 = vsel %vm788, %v768, 0
      %v943 = vsel %vm788, %v769, 0
      %v946 = vsel %vm788, %v770, 0
      %v949 = vsel %vm788, %v771, 0
      %v952 = vsel %vm788, %v772, 0
      %v955 = vsel %vm788, %v773, 0
      %v958 = vsel %vm788, %v774, 0
      %v961 = vsel %vm788, %v775, 0
      %v964 = vsel %vm788, %v776, 0
      %v967 = vsel %vm788, %v777, 0
      %v970 = vsel %vm788, %v778, 0
      %v973 = vsel %vm788, %v779, 0
      %v976 = vsel %vm788, %v780, 0
      %v979 = vsel %vm788, %v781, 0
      %981 = vmatpush.bf16.msra.mxu0 0
      %982 = vmatpush.bf16.msra.mxu0 0
      %983 = vmatpush.bf16.msra.mxu0 0
      %984 = vmatpush.bf16.msra.mxu0 0
      %985 = vmatpush.bf16.msra.mxu0 0
      %986 = vmatpush.bf16.msra.mxu0 0
      %987 = vmatpush.bf16.msra.mxu0 0
      %988 = vmatpush.bf16.msra.mxu0 %v786
      %989 = vmatmul.bf16.gmra.mxu0 %v790
      %v990 = vpop.f32.mrf.mxu0
      %v991 = vadd.f32 0.0, %v990
      %v992 = vpop.f32.mrf.mxu0
      %v993 = vadd.f32 0.0, %v992
      %994 = vmatmul.bf16.gmra.mxu0 %v793
      %v995 = vpop.f32.mrf.mxu0
      %v996 = vadd.f32 0.0, %v995
      %v997 = vpop.f32.mrf.mxu0
      %v998 = vadd.f32 0.0, %v997
      %999 = vmatmul.bf16.gmra.mxu0 %v796
      %v1000 = vpop.f32.mrf.mxu0
      %v1001 = vadd.f32 0.0, %v1000
      %v1002 = vpop.f32.mrf.mxu0
      %v1003 = vadd.f32 0.0, %v1002
      %1004 = vmatmul.bf16.gmra.mxu0 %v799
      %v1005 = vpop.f32.mrf.mxu0
      %v1006 = vadd.f32 0.0, %v1005
      %v1007 = vpop.f32.mrf.mxu0
      %v1008 = vadd.f32 0.0, %v1007
      %1009 = vmatmul.bf16.gmra.mxu0 %v802
      %v1010 = vpop.f32.mrf.mxu0
      %v1011 = vadd.f32 0.0, %v1010
      %v1012 = vpop.f32.mrf.mxu0
      %v1013 = vadd.f32 0.0, %v1012
      %1014 = vmatmul.bf16.gmra.mxu0 %v805
      %v1015 = vpop.f32.mrf.mxu0
      %v1016 = vadd.f32 0.0, %v1015
      %v1017 = vpop.f32.mrf.mxu0
      %v1018 = vadd.f32 0.0, %v1017
      %1019 = vmatmul.bf16.gmra.mxu0 %v808
      %v1020 = vpop.f32.mrf.mxu0
      %v1021 = vadd.f32 0.0, %v1020
      %v1022 = vpop.f32.mrf.mxu0
      %v1023 = vadd.f32 0.0, %v1022
      %1024 = vmatmul.bf16.gmra.mxu0 %v811
      %v1025 = vpop.f32.mrf.mxu0
      %v1026 = vadd.f32 0.0, %v1025
      %v1027 = vpop.f32.mrf.mxu0
      %v1028 = vadd.f32 0.0, %v1027
      %1029 = vmatmul.bf16.gmra.mxu0 %v814
      %v1030 = vpop.f32.mrf.mxu0
      %v1031 = vadd.f32 0.0, %v1030
      %v1032 = vpop.f32.mrf.mxu0
      %v1033 = vadd.f32 0.0, %v1032
      %1034 = vmatmul.bf16.gmra.mxu0 %v817
      %v1035 = vpop.f32.mrf.mxu0
      %v1036 = vadd.f32 0.0, %v1035
      %v1037 = vpop.f32.mrf.mxu0
      %v1038 = vadd.f32 0.0, %v1037
      %1039 = vmatmul.bf16.gmra.mxu0 %v820
      %v1040 = vpop.f32.mrf.mxu0
      %v1041 = vadd.f32 0.0, %v1040
      %v1042 = vpop.f32.mrf.mxu0
      %v1043 = vadd.f32 0.0, %v1042
      %1044 = vmatmul.bf16.gmra.mxu0 %v823
      %v1045 = vpop.f32.mrf.mxu0
      %v1046 = vadd.f32 0.0, %v1045
      %v1047 = vpop.f32.mrf.mxu0
      %v1048 = vadd.f32 0.0, %v1047
      %1049 = vmatmul.bf16.gmra.mxu0 %v826
      %v1050 = vpop.f32.mrf.mxu0
      %v1051 = vadd.f32 0.0, %v1050
      %v1052 = vpop.f32.mrf.mxu0
      %v1053 = vadd.f32 0.0, %v1052
      %1054 = vmatmul.bf16.gmra.mxu0 %v829
      %v1055 = vpop.f32.mrf.mxu0
      %v1056 = vadd.f32 0.0, %v1055
      %v1057 = vpop.f32.mrf.mxu0
      %v1058 = vadd.f32 0.0, %v1057
      %1059 = vmatmul.bf16.gmra.mxu0 %v832
      %v1060 = vpop.f32.mrf.mxu0
      %v1061 = vadd.f32 0.0, %v1060
      %v1062 = vpop.f32.mrf.mxu0
      %v1063 = vadd.f32 0.0, %v1062
      %1064 = vmatmul.bf16.gmra.mxu0 %v835
      %v1065 = vpop.f32.mrf.mxu0
      %v1066 = vadd.f32 0.0, %v1065
      %v1067 = vpop.f32.mrf.mxu0
      %v1068 = vadd.f32 0.0, %v1067
      %1069 = vmatmul.bf16.gmra.mxu0 %v838
      %v1070 = vpop.f32.mrf.mxu0
      %v1071 = vadd.f32 0.0, %v1070
      %v1072 = vpop.f32.mrf.mxu0
      %v1073 = vadd.f32 0.0, %v1072
      %1074 = vmatmul.bf16.gmra.mxu0 %v841
      %v1075 = vpop.f32.mrf.mxu0
      %v1076 = vadd.f32 0.0, %v1075
      %v1077 = vpop.f32.mrf.mxu0
      %v1078 = vadd.f32 0.0, %v1077
      %1079 = vmatmul.bf16.gmra.mxu0 %v844
      %v1080 = vpop.f32.mrf.mxu0
      %v1081 = vadd.f32 0.0, %v1080
      %v1082 = vpop.f32.mrf.mxu0
      %v1083 = vadd.f32 0.0, %v1082
      %1084 = vmatmul.bf16.gmra.mxu0 %v847
      %v1085 = vpop.f32.mrf.mxu0
      %v1086 = vadd.f32 0.0, %v1085
      %v1087 = vpop.f32.mrf.mxu0
      %v1088 = vadd.f32 0.0, %v1087
      %1089 = vmatmul.bf16.gmra.mxu0 %v850
      %v1090 = vpop.f32.mrf.mxu0
      %v1091 = vadd.f32 0.0, %v1090
      %v1092 = vpop.f32.mrf.mxu0
      %v1093 = vadd.f32 0.0, %v1092
      %1094 = vmatmul.bf16.gmra.mxu0 %v853
      %v1095 = vpop.f32.mrf.mxu0
      %v1096 = vadd.f32 0.0, %v1095
      %v1097 = vpop.f32.mrf.mxu0
      %v1098 = vadd.f32 0.0, %v1097
      %1099 = vmatmul.bf16.gmra.mxu0 %v856
      %v1100 = vpop.f32.mrf.mxu0
      %v1101 = vadd.f32 0.0, %v1100
      %v1102 = vpop.f32.mrf.mxu0
      %v1103 = vadd.f32 0.0, %v1102
      %1104 = vmatmul.bf16.gmra.mxu0 %v859
      %v1105 = vpop.f32.mrf.mxu0
      %v1106 = vadd.f32 0.0, %v1105
      %v1107 = vpop.f32.mrf.mxu0
      %v1108 = vadd.f32 0.0, %v1107
      %1109 = vmatmul.bf16.gmra.mxu0 %v862
      %v1110 = vpop.f32.mrf.mxu0
      %v1111 = vadd.f32 0.0, %v1110
      %v1112 = vpop.f32.mrf.mxu0
      %v1113 = vadd.f32 0.0, %v1112
      %1114 = vmatmul.bf16.gmra.mxu0 %v865
      %v1115 = vpop.f32.mrf.mxu0
      %v1116 = vadd.f32 0.0, %v1115
      %v1117 = vpop.f32.mrf.mxu0
      %v1118 = vadd.f32 0.0, %v1117
      %1119 = vmatmul.bf16.gmra.mxu0 %v868
      %v1120 = vpop.f32.mrf.mxu0
      %v1121 = vadd.f32 0.0, %v1120
      %v1122 = vpop.f32.mrf.mxu0
      %v1123 = vadd.f32 0.0, %v1122
      %1124 = vmatmul.bf16.gmra.mxu0 %v871
      %v1125 = vpop.f32.mrf.mxu0
      %v1126 = vadd.f32 0.0, %v1125
      %v1127 = vpop.f32.mrf.mxu0
      %v1128 = vadd.f32 0.0, %v1127
      %1129 = vmatmul.bf16.gmra.mxu0 %v874
      %v1130 = vpop.f32.mrf.mxu0
      %v1131 = vadd.f32 0.0, %v1130
      %v1132 = vpop.f32.mrf.mxu0
      %v1133 = vadd.f32 0.0, %v1132
      %1134 = vmatmul.bf16.gmra.mxu0 %v877
      %v1135 = vpop.f32.mrf.mxu0
      %v1136 = vadd.f32 0.0, %v1135
      %v1137 = vpop.f32.mrf.mxu0
      %v1138 = vadd.f32 0.0, %v1137
      %1139 = vmatmul.bf16.gmra.mxu0 %v880
      %v1140 = vpop.f32.mrf.mxu0
      %v1141 = vadd.f32 0.0, %v1140
      %v1142 = vpop.f32.mrf.mxu0
      %v1143 = vadd.f32 0.0, %v1142
      %1144 = vmatmul.bf16.gmra.mxu0 %v883
      %v1145 = vpop.f32.mrf.mxu0
      %v1146 = vadd.f32 0.0, %v1145
      %v1147 = vpop.f32.mrf.mxu0
      %v1148 = vadd.f32 0.0, %v1147
      %1149 = vmatmul.bf16.gmra.mxu0 %v886
      %v1150 = vpop.f32.mrf.mxu0
      %v1151 = vadd.f32 0.0, %v1150
      %v1152 = vpop.f32.mrf.mxu0
      %v1153 = vadd.f32 0.0, %v1152
      %1154 = vmatmul.bf16.gmra.mxu0 %v889
      %v1155 = vpop.f32.mrf.mxu0
      %v1156 = vadd.f32 0.0, %v1155
      %v1157 = vpop.f32.mrf.mxu0
      %v1158 = vadd.f32 0.0, %v1157
      %1159 = vmatmul.bf16.gmra.mxu0 %v892
      %v1160 = vpop.f32.mrf.mxu0
      %v1161 = vadd.f32 0.0, %v1160
      %v1162 = vpop.f32.mrf.mxu0
      %v1163 = vadd.f32 0.0, %v1162
      %1164 = vmatmul.bf16.gmra.mxu0 %v895
      %v1165 = vpop.f32.mrf.mxu0
      %v1166 = vadd.f32 0.0, %v1165
      %v1167 = vpop.f32.mrf.mxu0
      %v1168 = vadd.f32 0.0, %v1167
      %1169 = vmatmul.bf16.gmra.mxu0 %v898
      %v1170 = vpop.f32.mrf.mxu0
      %v1171 = vadd.f32 0.0, %v1170
      %v1172 = vpop.f32.mrf.mxu0
      %v1173 = vadd.f32 0.0, %v1172
      %1174 = vmatmul.bf16.gmra.mxu0 %v901
      %v1175 = vpop.f32.mrf.mxu0
      %v1176 = vadd.f32 0.0, %v1175
      %v1177 = vpop.f32.mrf.mxu0
      %v1178 = vadd.f32 0.0, %v1177
      %1179 = vmatmul.bf16.gmra.mxu0 %v904
      %v1180 = vpop.f32.mrf.mxu0
      %v1181 = vadd.f32 0.0, %v1180
      %v1182 = vpop.f32.mrf.mxu0
      %v1183 = vadd.f32 0.0, %v1182
      %1184 = vmatmul.bf16.gmra.mxu0 %v907
      %v1185 = vpop.f32.mrf.mxu0
      %v1186 = vadd.f32 0.0, %v1185
      %v1187 = vpop.f32.mrf.mxu0
      %v1188 = vadd.f32 0.0, %v1187
      %1189 = vmatmul.bf16.gmra.mxu0 %v910
      %v1190 = vpop.f32.mrf.mxu0
      %v1191 = vadd.f32 0.0, %v1190
      %v1192 = vpop.f32.mrf.mxu0
      %v1193 = vadd.f32 0.0, %v1192
      %1194 = vmatmul.bf16.gmra.mxu0 %v913
      %v1195 = vpop.f32.mrf.mxu0
      %v1196 = vadd.f32 0.0, %v1195
      %v1197 = vpop.f32.mrf.mxu0
      %v1198 = vadd.f32 0.0, %v1197
      %1199 = vmatmul.bf16.gmra.mxu0 %v916
      %v1200 = vpop.f32.mrf.mxu0
      %v1201 = vadd.f32 0.0, %v1200
      %v1202 = vpop.f32.mrf.mxu0
      %v1203 = vadd.f32 0.0, %v1202
      %1204 = vmatmul.bf16.gmra.mxu0 %v919
      %v1205 = vpop.f32.mrf.mxu0
      %v1206 = vadd.f32 0.0, %v1205
      %v1207 = vpop.f32.mrf.mxu0
      %v1208 = vadd.f32 0.0, %v1207
      %1209 = vmatmul.bf16.gmra.mxu0 %v922
      %v1210 = vpop.f32.mrf.mxu0
      %v1211 = vadd.f32 0.0, %v1210
      %v1212 = vpop.f32.mrf.mxu0
      %v1213 = vadd.f32 0.0, %v1212
      %1214 = vmatmul.bf16.gmra.mxu0 %v925
      %v1215 = vpop.f32.mrf.mxu0
      %v1216 = vadd.f32 0.0, %v1215
      %v1217 = vpop.f32.mrf.mxu0
      %v1218 = vadd.f32 0.0, %v1217
      %1219 = vmatmul.bf16.gmra.mxu0 %v928
      %v1220 = vpop.f32.mrf.mxu0
      %v1221 = vadd.f32 0.0, %v1220
      %v1222 = vpop.f32.mrf.mxu0
      %v1223 = vadd.f32 0.0, %v1222
      %1224 = vmatmul.bf16.gmra.mxu0 %v931
      %v1225 = vpop.f32.mrf.mxu0
      %v1226 = vadd.f32 0.0, %v1225
      %v1227 = vpop.f32.mrf.mxu0
      %v1228 = vadd.f32 0.0, %v1227
      %1229 = vmatmul.bf16.gmra.mxu0 %v934
      %v1230 = vpop.f32.mrf.mxu0
      %v1231 = vadd.f32 0.0, %v1230
      %v1232 = vpop.f32.mrf.mxu0
      %v1233 = vadd.f32 0.0, %v1232
      %1234 = vmatmul.bf16.gmra.mxu0 %v937
      %v1235 = vpop.f32.mrf.mxu0
      %v1236 = vadd.f32 0.0, %v1235
      %v1237 = vpop.f32.mrf.mxu0
      %v1238 = vadd.f32 0.0, %v1237
      %1239 = vmatmul.bf16.gmra.mxu0 %v940
      %v1240 = vpop.f32.mrf.mxu0
      %v1241 = vadd.f32 0.0, %v1240
      %v1242 = vpop.f32.mrf.mxu0
      %v1243 = vadd.f32 0.0, %v1242
      %1244 = vmatmul.bf16.gmra.mxu0 %v943
      %v1245 = vpop.f32.mrf.mxu0
      %v1246 = vadd.f32 0.0, %v1245
      %v1247 = vpop.f32.mrf.mxu0
      %v1248 = vadd.f32 0.0, %v1247
      %1249 = vmatmul.bf16.gmra.mxu0 %v946
      %v1250 = vpop.f32.mrf.mxu0
      %v1251 = vadd.f32 0.0, %v1250
      %v1252 = vpop.f32.mrf.mxu0
      %v1253 = vadd.f32 0.0, %v1252
      %1254 = vmatmul.bf16.gmra.mxu0 %v949
      %v1255 = vpop.f32.mrf.mxu0
      %v1256 = vadd.f32 0.0, %v1255
      %v1257 = vpop.f32.mrf.mxu0
      %v1258 = vadd.f32 0.0, %v1257
      %1259 = vmatmul.bf16.gmra.mxu0 %v952
      %v1260 = vpop.f32.mrf.mxu0
      %v1261 = vadd.f32 0.0, %v1260
      %v1262 = vpop.f32.mrf.mxu0
      %v1263 = vadd.f32 0.0, %v1262
      %1264 = vmatmul.bf16.gmra.mxu0 %v955
      %v1265 = vpop.f32.mrf.mxu0
      %v1266 = vadd.f32 0.0, %v1265
      %v1267 = vpop.f32.mrf.mxu0
      %v1268 = vadd.f32 0.0, %v1267
      %1269 = vmatmul.bf16.gmra.mxu0 %v958
      %v1270 = vpop.f32.mrf.mxu0
      %v1271 = vadd.f32 0.0, %v1270
      %v1272 = vpop.f32.mrf.mxu0
      %v1273 = vadd.f32 0.0, %v1272
      %1274 = vmatmul.bf16.gmra.mxu0 %v961
      %v1275 = vpop.f32.mrf.mxu0
      %v1276 = vadd.f32 0.0, %v1275
      %v1277 = vpop.f32.mrf.mxu0
      %v1278 = vadd.f32 0.0, %v1277
      %1279 = vmatmul.bf16.gmra.mxu0 %v964
      %v1280 = vpop.f32.mrf.mxu0
      %v1281 = vadd.f32 0.0, %v1280
      %v1282 = vpop.f32.mrf.mxu0
      %v1283 = vadd.f32 0.0, %v1282
      %1284 = vmatmul.bf16.gmra.mxu0 %v967
      %v1285 = vpop.f32.mrf.mxu0
      %v1286 = vadd.f32 0.0, %v1285
      %v1287 = vpop.f32.mrf.mxu0
      %v1288 = vadd.f32 0.0, %v1287
      %1289 = vmatmul.bf16.gmra.mxu0 %v970
      %v1290 = vpop.f32.mrf.mxu0
      %v1291 = vadd.f32 0.0, %v1290
      %v1292 = vpop.f32.mrf.mxu0
      %v1293 = vadd.f32 0.0, %v1292
      %1294 = vmatmul.bf16.gmra.mxu0 %v973
      %v1295 = vpop.f32.mrf.mxu0
      %v1296 = vadd.f32 0.0, %v1295
      %v1297 = vpop.f32.mrf.mxu0
      %v1298 = vadd.f32 0.0, %v1297
      %1299 = vmatmul.bf16.gmra.mxu0 %v976
      %v1300 = vpop.f32.mrf.mxu0
      %v1301 = vadd.f32 0.0, %v1300
      %v1302 = vpop.f32.mrf.mxu0
      %v1303 = vadd.f32 0.0, %v1302
      %1304 = vmatmul.bf16.gmra.mxu0 %v979
      %v1305 = vpop.f32.mrf.mxu0
      %v1306 = vadd.f32 0.0, %v1305
      %v1307 = vpop.f32.mrf.mxu0
      %v1308 = vadd.f32 0.0, %v1307
      %1309 = vdwg.mxu0
      %v1310 = vmax.f32 %v991, %v1001
      %v1311 = vmax.f32 %v993, %v1003
      %v1312 = vmax.f32 %v996, %v1006
      %v1313 = vmax.f32 %v998, %v1008
      %v1314 = vmax.f32 %v1011, %v1021
      %v1315 = vmax.f32 %v1013, %v1023
      %v1316 = vmax.f32 %v1016, %v1026
      %v1317 = vmax.f32 %v1018, %v1028
      %v1318 = vmax.f32 %v1031, %v1041
      %v1319 = vmax.f32 %v1033, %v1043
      %v1320 = vmax.f32 %v1036, %v1046
      %v1321 = vmax.f32 %v1038, %v1048
      %v1322 = vmax.f32 %v1051, %v1061
      %v1323 = vmax.f32 %v1053, %v1063
      %v1324 = vmax.f32 %v1056, %v1066
      %v1325 = vmax.f32 %v1058, %v1068
      %v1326 = vmax.f32 %v1071, %v1081
      %v1327 = vmax.f32 %v1073, %v1083
      %v1328 = vmax.f32 %v1076, %v1086
      %v1329 = vmax.f32 %v1078, %v1088
      %v1330 = vmax.f32 %v1091, %v1101
      %v1331 = vmax.f32 %v1093, %v1103
      %v1332 = vmax.f32 %v1096, %v1106
      %v1333 = vmax.f32 %v1098, %v1108
      %v1334 = vmax.f32 %v1111, %v1121
      %v1335 = vmax.f32 %v1113, %v1123
      %v1336 = vmax.f32 %v1116, %v1126
      %v1337 = vmax.f32 %v1118, %v1128
      %v1338 = vmax.f32 %v1131, %v1141
      %v1339 = vmax.f32 %v1133, %v1143
      %v1340 = vmax.f32 %v1136, %v1146
      %v1341 = vmax.f32 %v1138, %v1148
      %v1342 = vmax.f32 %v1151, %v1161
      %v1343 = vmax.f32 %v1153, %v1163
      %v1344 = vmax.f32 %v1156, %v1166
      %v1345 = vmax.f32 %v1158, %v1168
      %v1346 = vmax.f32 %v1171, %v1181
      %v1347 = vmax.f32 %v1173, %v1183
      %v1348 = vmax.f32 %v1176, %v1186
      %v1349 = vmax.f32 %v1178, %v1188
      %v1350 = vmax.f32 %v1191, %v1201
      %v1351 = vmax.f32 %v1193, %v1203
      %v1352 = vmax.f32 %v1196, %v1206
      %v1353 = vmax.f32 %v1198, %v1208
      %v1354 = vmax.f32 %v1211, %v1221
      %v1355 = vmax.f32 %v1213, %v1223
      %v1356 = vmax.f32 %v1216, %v1226
      %v1357 = vmax.f32 %v1218, %v1228
      %v1358 = vmax.f32 %v1231, %v1241
      %v1359 = vmax.f32 %v1233, %v1243
      %v1360 = vmax.f32 %v1236, %v1246
      %v1361 = vmax.f32 %v1238, %v1248
      %v1362 = vmax.f32 %v1251, %v1261
      %v1363 = vmax.f32 %v1253, %v1263
      %v1364 = vmax.f32 %v1256, %v1266
      %v1365 = vmax.f32 %v1258, %v1268
      %v1366 = vmax.f32 %v1271, %v1281
      %v1367 = vmax.f32 %v1273, %v1283
      %v1368 = vmax.f32 %v1276, %v1286
      %v1369 = vmax.f32 %v1278, %v1288
      %v1370 = vmax.f32 %v1291, %v1301
      %v1371 = vmax.f32 %v1293, %v1303
      %v1372 = vmax.f32 %v1296, %v1306
      %v1373 = vmax.f32 %v1298, %v1308
      %v1438 = vrot.slane %v1310, 2
      %v1439 = vrot.slane %v1310, 4
      %v1440 = vrot.slane %v1310, 6
      %v1441 = vrot.slane %v1311, 2
      %v1442 = vrot.slane %v1311, 4
      %v1443 = vrot.slane %v1311, 6
      %v1444 = vrot.slane %v1312, 2
      %v1445 = vrot.slane %v1312, 4
      %v1446 = vrot.slane %v1312, 6
      %v1447 = vrot.slane %v1313, 2
      %v1448 = vrot.slane %v1313, 4
      %v1449 = vrot.slane %v1313, 6
      %v1450 = vrot.slane %v1314, 2
      %v1451 = vrot.slane %v1314, 4
      %v1452 = vrot.slane %v1314, 6
      %v1453 = vrot.slane %v1315, 2
      %v1454 = vrot.slane %v1315, 4
      %v1455 = vrot.slane %v1315, 6
      %v1456 = vrot.slane %v1316, 2
      %v1457 = vrot.slane %v1316, 4
      %v1458 = vrot.slane %v1316, 6
      %v1459 = vrot.slane %v1317, 2
      %v1460 = vrot.slane %v1317, 4
      %v1461 = vrot.slane %v1317, 6
      %v1462 = vrot.slane %v1318, 2
      %v1463 = vrot.slane %v1318, 4
      %v1464 = vrot.slane %v1318, 6
      %v1465 = vrot.slane %v1319, 2
      %v1466 = vrot.slane %v1319, 4
      %v1467 = vrot.slane %v1319, 6
      %v1468 = vrot.slane %v1320, 2
      %v1469 = vrot.slane %v1320, 4
      %v1470 = vrot.slane %v1320, 6
      %v1471 = vrot.slane %v1321, 2
      %v1472 = vrot.slane %v1321, 4
      %v1473 = vrot.slane %v1321, 6
      %v1474 = vrot.slane %v1322, 2
      %v1475 = vrot.slane %v1322, 4
      %v1476 = vrot.slane %v1322, 6
      %v1477 = vrot.slane %v1323, 2
      %v1478 = vrot.slane %v1323, 4
      %v1479 = vrot.slane %v1323, 6
      %v1480 = vrot.slane %v1324, 2
      %v1481 = vrot.slane %v1324, 4
      %v1482 = vrot.slane %v1324, 6
      %v1483 = vrot.slane %v1325, 2
      %v1484 = vrot.slane %v1325, 4
      %v1485 = vrot.slane %v1325, 6
      %v1486 = vrot.slane %v1326, 2
      %v1487 = vrot.slane %v1326, 4
      %v1488 = vrot.slane %v1326, 6
      %v1489 = vrot.slane %v1327, 2
      %v1490 = vrot.slane %v1327, 4
      %v1491 = vrot.slane %v1327, 6
      %v1492 = vrot.slane %v1328, 2
      %v1493 = vrot.slane %v1328, 4
      %v1494 = vrot.slane %v1328, 6
      %v1495 = vrot.slane %v1329, 2
      %v1496 = vrot.slane %v1329, 4
      %v1497 = vrot.slane %v1329, 6
      %v1498 = vrot.slane %v1330, 2
      %v1499 = vrot.slane %v1330, 4
      %v1500 = vrot.slane %v1330, 6
      %v1501 = vrot.slane %v1331, 2
      %v1502 = vrot.slane %v1331, 4
      %v1503 = vrot.slane %v1331, 6
      %v1504 = vrot.slane %v1332, 2
      %v1505 = vrot.slane %v1332, 4
      %v1506 = vrot.slane %v1332, 6
      %v1507 = vrot.slane %v1333, 2
      %v1508 = vrot.slane %v1333, 4
      %v1509 = vrot.slane %v1333, 6
      %v1510 = vrot.slane %v1334, 2
      %v1511 = vrot.slane %v1334, 4
      %v1512 = vrot.slane %v1334, 6
      %v1513 = vrot.slane %v1335, 2
      %v1514 = vrot.slane %v1335, 4
      %v1515 = vrot.slane %v1335, 6
      %v1516 = vrot.slane %v1336, 2
      %v1517 = vrot.slane %v1336, 4
      %v1518 = vrot.slane %v1336, 6
      %v1519 = vrot.slane %v1337, 2
      %v1520 = vrot.slane %v1337, 4
      %v1521 = vrot.slane %v1337, 6
      %v1522 = vrot.slane %v1338, 2
      %v1523 = vrot.slane %v1338, 4
      %v1524 = vrot.slane %v1338, 6
      %v1525 = vrot.slane %v1339, 2
      %v1526 = vrot.slane %v1339, 4
      %v1527 = vrot.slane %v1339, 6
      %v1528 = vrot.slane %v1340, 2
      %v1529 = vrot.slane %v1340, 4
      %v1530 = vrot.slane %v1340, 6
      %v1531 = vrot.slane %v1341, 2
      %v1532 = vrot.slane %v1341, 4
      %v1533 = vrot.slane %v1341, 6
      %v1534 = vrot.slane %v1342, 2
      %v1535 = vrot.slane %v1342, 4
      %v1536 = vrot.slane %v1342, 6
      %v1537 = vrot.slane %v1343, 2
      %v1538 = vrot.slane %v1343, 4
      %v1539 = vrot.slane %v1343, 6
      %v1540 = vrot.slane %v1344, 2
      %v1541 = vrot.slane %v1344, 4
      %v1542 = vrot.slane %v1344, 6
      %v1543 = vrot.slane %v1345, 2
      %v1544 = vrot.slane %v1345, 4
      %v1545 = vrot.slane %v1345, 6
      %v1546 = vrot.slane %v1346, 2
      %v1547 = vrot.slane %v1346, 4
      %v1548 = vrot.slane %v1346, 6
      %v1549 = vrot.slane %v1347, 2
      %v1550 = vrot.slane %v1347, 4
      %v1551 = vrot.slane %v1347, 6
      %v1552 = vrot.slane %v1348, 2
      %v1553 = vrot.slane %v1348, 4
      %v1554 = vrot.slane %v1348, 6
      %v1555 = vrot.slane %v1349, 2
      %v1556 = vrot.slane %v1349, 4
      %v1557 = vrot.slane %v1349, 6
      %v1558 = vrot.slane %v1350, 2
      %v1559 = vrot.slane %v1350, 4
      %v1560 = vrot.slane %v1350, 6
      %v1561 = vrot.slane %v1351, 2
      %v1562 = vrot.slane %v1351, 4
      %v1563 = vrot.slane %v1351, 6
      %v1564 = vrot.slane %v1352, 2
      %v1565 = vrot.slane %v1352, 4
      %v1566 = vrot.slane %v1352, 6
      %v1567 = vrot.slane %v1353, 2
      %v1568 = vrot.slane %v1353, 4
      %v1569 = vrot.slane %v1353, 6
      %v1570 = vrot.slane %v1354, 2
      %v1571 = vrot.slane %v1354, 4
      %v1572 = vrot.slane %v1354, 6
      %v1573 = vrot.slane %v1355, 2
      %v1574 = vrot.slane %v1355, 4
      %v1575 = vrot.slane %v1355, 6
      %v1576 = vrot.slane %v1356, 2
      %v1577 = vrot.slane %v1356, 4
      %v1578 = vrot.slane %v1356, 6
      %v1579 = vrot.slane %v1357, 2
      %v1580 = vrot.slane %v1357, 4
      %v1581 = vrot.slane %v1357, 6
      %v1582 = vrot.slane %v1358, 2
      %v1583 = vrot.slane %v1358, 4
      %v1584 = vrot.slane %v1358, 6
      %v1585 = vrot.slane %v1359, 2
      %v1586 = vrot.slane %v1359, 4
      %v1587 = vrot.slane %v1359, 6
      %v1588 = vrot.slane %v1360, 2
      %v1589 = vrot.slane %v1360, 4
      %v1590 = vrot.slane %v1360, 6
      %v1591 = vrot.slane %v1361, 2
      %v1592 = vrot.slane %v1361, 4
      %v1593 = vrot.slane %v1361, 6
      %v1594 = vrot.slane %v1362, 2
      %v1595 = vrot.slane %v1362, 4
      %v1596 = vrot.slane %v1362, 6
      %v1597 = vrot.slane %v1363, 2
      %v1598 = vrot.slane %v1363, 4
      %v1599 = vrot.slane %v1363, 6
      %v1600 = vrot.slane %v1364, 2
      %v1601 = vrot.slane %v1364, 4
      %v1602 = vrot.slane %v1364, 6
      %v1603 = vrot.slane %v1365, 2
      %v1604 = vrot.slane %v1365, 4
      %v1605 = vrot.slane %v1365, 6
      %v1606 = vrot.slane %v1366, 2
      %v1607 = vrot.slane %v1366, 4
      %v1608 = vrot.slane %v1366, 6
      %v1609 = vrot.slane %v1367, 2
      %v1610 = vrot.slane %v1367, 4
      %v1611 = vrot.slane %v1367, 6
      %v1612 = vrot.slane %v1368, 2
      %v1613 = vrot.slane %v1368, 4
      %v1614 = vrot.slane %v1368, 6
      %v1615 = vrot.slane %v1369, 2
      %v1616 = vrot.slane %v1369, 4
      %v1617 = vrot.slane %v1369, 6
      %v1618 = vrot.slane %v1370, 2
      %v1619 = vrot.slane %v1370, 4
      %v1620 = vrot.slane %v1370, 6
      %v1621 = vrot.slane %v1371, 2
      %v1622 = vrot.slane %v1371, 4
      %v1623 = vrot.slane %v1371, 6
      %v1624 = vrot.slane %v1372, 2
      %v1625 = vrot.slane %v1372, 4
      %v1626 = vrot.slane %v1372, 6
      %v1627 = vrot.slane %v1373, 2
      %v1628 = vrot.slane %v1373, 4
      %v1629 = vrot.slane %v1373, 6
      %v1822 = vrot.slane %v1310, 7
      %v1823 = vrot.slane %v1822, 2
      %v1824 = vrot.slane %v1438, 7
      %v1825 = vrot.slane %v1824, 2
      %v1826 = vrot.slane %v1439, 7
      %v1827 = vrot.slane %v1826, 2
      %v1828 = vrot.slane %v1440, 7
      %v1829 = vrot.slane %v1828, 2
      %v1830 = vrot.slane %v1311, 7
      %v1831 = vrot.slane %v1830, 2
      %v1832 = vrot.slane %v1441, 7
      %v1833 = vrot.slane %v1832, 2
      %v1834 = vrot.slane %v1442, 7
      %v1835 = vrot.slane %v1834, 2
      %v1836 = vrot.slane %v1443, 7
      %v1837 = vrot.slane %v1836, 2
      %v1838 = vrot.slane %v1312, 7
      %v1839 = vrot.slane %v1838, 2
      %v1840 = vrot.slane %v1444, 7
      %v1841 = vrot.slane %v1840, 2
      %v1842 = vrot.slane %v1445, 7
      %v1843 = vrot.slane %v1842, 2
      %v1844 = vrot.slane %v1446, 7
      %v1845 = vrot.slane %v1844, 2
      %v1846 = vrot.slane %v1313, 7
      %v1847 = vrot.slane %v1846, 2
      %v1848 = vrot.slane %v1447, 7
      %v1849 = vrot.slane %v1848, 2
      %v1850 = vrot.slane %v1448, 7
      %v1851 = vrot.slane %v1850, 2
      %v1852 = vrot.slane %v1449, 7
      %v1853 = vrot.slane %v1852, 2
      %v1854 = vrot.slane %v1314, 7
      %v1855 = vrot.slane %v1854, 2
      %v1856 = vrot.slane %v1450, 7
      %v1857 = vrot.slane %v1856, 2
      %v1858 = vrot.slane %v1451, 7
      %v1859 = vrot.slane %v1858, 2
      %v1860 = vrot.slane %v1452, 7
      %v1861 = vrot.slane %v1860, 2
      %v1862 = vrot.slane %v1315, 7
      %v1863 = vrot.slane %v1862, 2
      %v1864 = vrot.slane %v1453, 7
      %v1865 = vrot.slane %v1864, 2
      %v1866 = vrot.slane %v1454, 7
      %v1867 = vrot.slane %v1866, 2
      %v1868 = vrot.slane %v1455, 7
      %v1869 = vrot.slane %v1868, 2
      %v1870 = vrot.slane %v1316, 7
      %v1871 = vrot.slane %v1870, 2
      %v1872 = vrot.slane %v1456, 7
      %v1873 = vrot.slane %v1872, 2
      %v1874 = vrot.slane %v1457, 7
      %v1875 = vrot.slane %v1874, 2
      %v1876 = vrot.slane %v1458, 7
      %v1877 = vrot.slane %v1876, 2
      %v1878 = vrot.slane %v1317, 7
      %v1879 = vrot.slane %v1878, 2
      %v1880 = vrot.slane %v1459, 7
      %v1881 = vrot.slane %v1880, 2
      %v1882 = vrot.slane %v1460, 7
      %v1883 = vrot.slane %v1882, 2
      %v1884 = vrot.slane %v1461, 7
      %v1885 = vrot.slane %v1884, 2
      %v1886 = vrot.slane %v1318, 7
      %v1887 = vrot.slane %v1886, 2
      %v1888 = vrot.slane %v1462, 7
      %v1889 = vrot.slane %v1888, 2
      %v1890 = vrot.slane %v1463, 7
      %v1891 = vrot.slane %v1890, 2
      %v1892 = vrot.slane %v1464, 7
      %v1893 = vrot.slane %v1892, 2
      %v1894 = vrot.slane %v1319, 7
      %v1895 = vrot.slane %v1894, 2
      %v1896 = vrot.slane %v1465, 7
      %v1897 = vrot.slane %v1896, 2
      %v1898 = vrot.slane %v1466, 7
      %v1899 = vrot.slane %v1898, 2
      %v1900 = vrot.slane %v1467, 7
      %v1901 = vrot.slane %v1900, 2
      %v1902 = vrot.slane %v1320, 7
      %v1903 = vrot.slane %v1902, 2
      %v1904 = vrot.slane %v1468, 7
      %v1905 = vrot.slane %v1904, 2
      %v1906 = vrot.slane %v1469, 7
      %v1907 = vrot.slane %v1906, 2
      %v1908 = vrot.slane %v1470, 7
      %v1909 = vrot.slane %v1908, 2
      %v1910 = vrot.slane %v1321, 7
      %v1911 = vrot.slane %v1910, 2
      %v1912 = vrot.slane %v1471, 7
      %v1913 = vrot.slane %v1912, 2
      %v1914 = vrot.slane %v1472, 7
      %v1915 = vrot.slane %v1914, 2
      %v1916 = vrot.slane %v1473, 7
      %v1917 = vrot.slane %v1916, 2
      %v1918 = vrot.slane %v1322, 7
      %v1919 = vrot.slane %v1918, 2
      %v1920 = vrot.slane %v1474, 7
      %v1921 = vrot.slane %v1920, 2
      %v1922 = vrot.slane %v1475, 7
      %v1923 = vrot.slane %v1922, 2
      %v1924 = vrot.slane %v1476, 7
      %v1925 = vrot.slane %v1924, 2
      %v1926 = vrot.slane %v1323, 7
      %v1927 = vrot.slane %v1926, 2
      %v1928 = vrot.slane %v1477, 7
      %v1929 = vrot.slane %v1928, 2
      %v1930 = vrot.slane %v1478, 7
      %v1931 = vrot.slane %v1930, 2
      %v1932 = vrot.slane %v1479, 7
      %v1933 = vrot.slane %v1932, 2
      %v1934 = vrot.slane %v1324, 7
      %v1935 = vrot.slane %v1934, 2
      %v1936 = vrot.slane %v1480, 7
      %v1937 = vrot.slane %v1936, 2
      %v1938 = vrot.slane %v1481, 7
      %v1939 = vrot.slane %v1938, 2
      %v1940 = vrot.slane %v1482, 7
      %v1941 = vrot.slane %v1940, 2
      %v1942 = vrot.slane %v1325, 7
      %v1943 = vrot.slane %v1942, 2
      %v1944 = vrot.slane %v1483, 7
      %v1945 = vrot.slane %v1944, 2
      %v1946 = vrot.slane %v1484, 7
      %v1947 = vrot.slane %v1946, 2
      %v1948 = vrot.slane %v1485, 7
      %v1949 = vrot.slane %v1948, 2
      %v1950 = vrot.slane %v1326, 7
      %v1951 = vrot.slane %v1950, 2
      %v1952 = vrot.slane %v1486, 7
      %v1953 = vrot.slane %v1952, 2
      %v1954 = vrot.slane %v1487, 7
      %v1955 = vrot.slane %v1954, 2
      %v1956 = vrot.slane %v1488, 7
      %v1957 = vrot.slane %v1956, 2
      %v1958 = vrot.slane %v1327, 7
      %v1959 = vrot.slane %v1958, 2
      %v1960 = vrot.slane %v1489, 7
      %v1961 = vrot.slane %v1960, 2
      %v1962 = vrot.slane %v1490, 7
      %v1963 = vrot.slane %v1962, 2
      %v1964 = vrot.slane %v1491, 7
      %v1965 = vrot.slane %v1964, 2
      %v1966 = vrot.slane %v1328, 7
      %v1967 = vrot.slane %v1966, 2
      %v1968 = vrot.slane %v1492, 7
      %v1969 = vrot.slane %v1968, 2
      %v1970 = vrot.slane %v1493, 7
      %v1971 = vrot.slane %v1970, 2
      %v1972 = vrot.slane %v1494, 7
      %v1973 = vrot.slane %v1972, 2
      %v1974 = vrot.slane %v1329, 7
      %v1975 = vrot.slane %v1974, 2
      %v1976 = vrot.slane %v1495, 7
      %v1977 = vrot.slane %v1976, 2
      %v1978 = vrot.slane %v1496, 7
      %v1979 = vrot.slane %v1978, 2
      %v1980 = vrot.slane %v1497, 7
      %v1981 = vrot.slane %v1980, 2
      %v1982 = vrot.slane %v1330, 7
      %v1983 = vrot.slane %v1982, 2
      %v1984 = vrot.slane %v1498, 7
      %v1985 = vrot.slane %v1984, 2
      %v1986 = vrot.slane %v1499, 7
      %v1987 = vrot.slane %v1986, 2
      %v1988 = vrot.slane %v1500, 7
      %v1989 = vrot.slane %v1988, 2
      %v1990 = vrot.slane %v1331, 7
      %v1991 = vrot.slane %v1990, 2
      %v1992 = vrot.slane %v1501, 7
      %v1993 = vrot.slane %v1992, 2
      %v1994 = vrot.slane %v1502, 7
      %v1995 = vrot.slane %v1994, 2
      %v1996 = vrot.slane %v1503, 7
      %v1997 = vrot.slane %v1996, 2
      %v1998 = vrot.slane %v1332, 7
      %v1999 = vrot.slane %v1998, 2
      %v2000 = vrot.slane %v1504, 7
      %v2001 = vrot.slane %v2000, 2
      %v2002 = vrot.slane %v1505, 7
      %v2003 = vrot.slane %v2002, 2
      %v2004 = vrot.slane %v1506, 7
      %v2005 = vrot.slane %v2004, 2
      %v2006 = vrot.slane %v1333, 7
      %v2007 = vrot.slane %v2006, 2
      %v2008 = vrot.slane %v1507, 7
      %v2009 = vrot.slane %v2008, 2
      %v2010 = vrot.slane %v1508, 7
      %v2011 = vrot.slane %v2010, 2
      %v2012 = vrot.slane %v1509, 7
      %v2013 = vrot.slane %v2012, 2
      %v2014 = vrot.slane %v1334, 7
      %v2015 = vrot.slane %v2014, 2
      %v2016 = vrot.slane %v1510, 7
      %v2017 = vrot.slane %v2016, 2
      %v2018 = vrot.slane %v1511, 7
      %v2019 = vrot.slane %v2018, 2
      %v2020 = vrot.slane %v1512, 7
      %v2021 = vrot.slane %v2020, 2
      %v2022 = vrot.slane %v1335, 7
      %v2023 = vrot.slane %v2022, 2
      %v2024 = vrot.slane %v1513, 7
      %v2025 = vrot.slane %v2024, 2
      %v2026 = vrot.slane %v1514, 7
      %v2027 = vrot.slane %v2026, 2
      %v2028 = vrot.slane %v1515, 7
      %v2029 = vrot.slane %v2028, 2
      %v2030 = vrot.slane %v1336, 7
      %v2031 = vrot.slane %v2030, 2
      %v2032 = vrot.slane %v1516, 7
      %v2033 = vrot.slane %v2032, 2
      %v2034 = vrot.slane %v1517, 7
      %v2035 = vrot.slane %v2034, 2
      %v2036 = vrot.slane %v1518, 7
      %v2037 = vrot.slane %v2036, 2
      %v2038 = vrot.slane %v1337, 7
      %v2039 = vrot.slane %v2038, 2
      %v2040 = vrot.slane %v1519, 7
      %v2041 = vrot.slane %v2040, 2
      %v2042 = vrot.slane %v1520, 7
      %v2043 = vrot.slane %v2042, 2
      %v2044 = vrot.slane %v1521, 7
      %v2045 = vrot.slane %v2044, 2
      %v2046 = vrot.slane %v1338, 7
      %v2047 = vrot.slane %v2046, 2
      %v2048 = vrot.slane %v1522, 7
      %v2049 = vrot.slane %v2048, 2
      %v2050 = vrot.slane %v1523, 7
      %v2051 = vrot.slane %v2050, 2
      %v2052 = vrot.slane %v1524, 7
      %v2053 = vrot.slane %v2052, 2
      %v2054 = vrot.slane %v1339, 7
      %v2055 = vrot.slane %v2054, 2
      %v2056 = vrot.slane %v1525, 7
      %v2057 = vrot.slane %v2056, 2
      %v2058 = vrot.slane %v1526, 7
      %v2059 = vrot.slane %v2058, 2
      %v2060 = vrot.slane %v1527, 7
      %v2061 = vrot.slane %v2060, 2
      %v2062 = vrot.slane %v1340, 7
      %v2063 = vrot.slane %v2062, 2
      %v2064 = vrot.slane %v1528, 7
      %v2065 = vrot.slane %v2064, 2
      %v2066 = vrot.slane %v1529, 7
      %v2067 = vrot.slane %v2066, 2
      %v2068 = vrot.slane %v1530, 7
      %v2069 = vrot.slane %v2068, 2
      %v2070 = vrot.slane %v1341, 7
      %v2071 = vrot.slane %v2070, 2
      %v2072 = vrot.slane %v1531, 7
      %v2073 = vrot.slane %v2072, 2
      %v2074 = vrot.slane %v1532, 7
      %v2075 = vrot.slane %v2074, 2
      %v2076 = vrot.slane %v1533, 7
      %v2077 = vrot.slane %v2076, 2
      %v2078 = vrot.slane %v1342, 7
      %v2079 = vrot.slane %v2078, 2
      %v2080 = vrot.slane %v1534, 7
      %v2081 = vrot.slane %v2080, 2
      %v2082 = vrot.slane %v1535, 7
      %v2083 = vrot.slane %v2082, 2
      %v2084 = vrot.slane %v1536, 7
      %v2085 = vrot.slane %v2084, 2
      %v2086 = vrot.slane %v1343, 7
      %v2087 = vrot.slane %v2086, 2
      %v2088 = vrot.slane %v1537, 7
      %v2089 = vrot.slane %v2088, 2
      %v2090 = vrot.slane %v1538, 7
      %v2091 = vrot.slane %v2090, 2
      %v2092 = vrot.slane %v1539, 7
      %v2093 = vrot.slane %v2092, 2
      %v2094 = vrot.slane %v1344, 7
      %v2095 = vrot.slane %v2094, 2
      %v2096 = vrot.slane %v1540, 7
      %v2097 = vrot.slane %v2096, 2
      %v2098 = vrot.slane %v1541, 7
      %v2099 = vrot.slane %v2098, 2
      %v2100 = vrot.slane %v1542, 7
      %v2101 = vrot.slane %v2100, 2
      %v2102 = vrot.slane %v1345, 7
      %v2103 = vrot.slane %v2102, 2
      %v2104 = vrot.slane %v1543, 7
      %v2105 = vrot.slane %v2104, 2
      %v2106 = vrot.slane %v1544, 7
      %v2107 = vrot.slane %v2106, 2
      %v2108 = vrot.slane %v1545, 7
      %v2109 = vrot.slane %v2108, 2
      %v2110 = vrot.slane %v1346, 7
      %v2111 = vrot.slane %v2110, 2
      %v2112 = vrot.slane %v1546, 7
      %v2113 = vrot.slane %v2112, 2
      %v2114 = vrot.slane %v1547, 7
      %v2115 = vrot.slane %v2114, 2
      %v2116 = vrot.slane %v1548, 7
      %v2117 = vrot.slane %v2116, 2
      %v2118 = vrot.slane %v1347, 7
      %v2119 = vrot.slane %v2118, 2
      %v2120 = vrot.slane %v1549, 7
      %v2121 = vrot.slane %v2120, 2
      %v2122 = vrot.slane %v1550, 7
      %v2123 = vrot.slane %v2122, 2
      %v2124 = vrot.slane %v1551, 7
      %v2125 = vrot.slane %v2124, 2
      %v2126 = vrot.slane %v1348, 7
      %v2127 = vrot.slane %v2126, 2
      %v2128 = vrot.slane %v1552, 7
      %v2129 = vrot.slane %v2128, 2
      %v2130 = vrot.slane %v1553, 7
      %v2131 = vrot.slane %v2130, 2
      %v2132 = vrot.slane %v1554, 7
      %v2133 = vrot.slane %v2132, 2
      %v2134 = vrot.slane %v1349, 7
      %v2135 = vrot.slane %v2134, 2
      %v2136 = vrot.slane %v1555, 7
      %v2137 = vrot.slane %v2136, 2
      %v2138 = vrot.slane %v1556, 7
      %v2139 = vrot.slane %v2138, 2
      %v2140 = vrot.slane %v1557, 7
      %v2141 = vrot.slane %v2140, 2
      %v2142 = vrot.slane %v1350, 7
      %v2143 = vrot.slane %v2142, 2
      %v2144 = vrot.slane %v1558, 7
      %v2145 = vrot.slane %v2144, 2
      %v2146 = vrot.slane %v1559, 7
      %v2147 = vrot.slane %v2146, 2
      %v2148 = vrot.slane %v1560, 7
      %v2149 = vrot.slane %v2148, 2
      %v2150 = vrot.slane %v1351, 7
      %v2151 = vrot.slane %v2150, 2
      %v2152 = vrot.slane %v1561, 7
      %v2153 = vrot.slane %v2152, 2
      %v2154 = vrot.slane %v1562, 7
      %v2155 = vrot.slane %v2154, 2
      %v2156 = vrot.slane %v1563, 7
      %v2157 = vrot.slane %v2156, 2
      %v2158 = vrot.slane %v1352, 7
      %v2159 = vrot.slane %v2158, 2
      %v2160 = vrot.slane %v1564, 7
      %v2161 = vrot.slane %v2160, 2
      %v2162 = vrot.slane %v1565, 7
      %v2163 = vrot.slane %v2162, 2
      %v2164 = vrot.slane %v1566, 7
      %v2165 = vrot.slane %v2164, 2
      %v2166 = vrot.slane %v1353, 7
      %v2167 = vrot.slane %v2166, 2
      %v2168 = vrot.slane %v1567, 7
      %v2169 = vrot.slane %v2168, 2
      %v2170 = vrot.slane %v1568, 7
      %v2171 = vrot.slane %v2170, 2
      %v2172 = vrot.slane %v1569, 7
      %v2173 = vrot.slane %v2172, 2
      %v2174 = vrot.slane %v1354, 7
      %v2175 = vrot.slane %v2174, 2
      %v2176 = vrot.slane %v1570, 7
      %v2177 = vrot.slane %v2176, 2
      %v2178 = vrot.slane %v1571, 7
      %v2179 = vrot.slane %v2178, 2
      %v2180 = vrot.slane %v1572, 7
      %v2181 = vrot.slane %v2180, 2
      %v2182 = vrot.slane %v1355, 7
      %v2183 = vrot.slane %v2182, 2
      %v2184 = vrot.slane %v1573, 7
      %v2185 = vrot.slane %v2184, 2
      %v2186 = vrot.slane %v1574, 7
      %v2187 = vrot.slane %v2186, 2
      %v2188 = vrot.slane %v1575, 7
      %v2189 = vrot.slane %v2188, 2
      %v2190 = vrot.slane %v1356, 7
      %v2191 = vrot.slane %v2190, 2
      %v2192 = vrot.slane %v1576, 7
      %v2193 = vrot.slane %v2192, 2
      %v2194 = vrot.slane %v1577, 7
      %v2195 = vrot.slane %v2194, 2
      %v2196 = vrot.slane %v1578, 7
      %v2197 = vrot.slane %v2196, 2
      %v2198 = vrot.slane %v1357, 7
      %v2199 = vrot.slane %v2198, 2
      %v2200 = vrot.slane %v1579, 7
      %v2201 = vrot.slane %v2200, 2
      %v2202 = vrot.slane %v1580, 7
      %v2203 = vrot.slane %v2202, 2
      %v2204 = vrot.slane %v1581, 7
      %v2205 = vrot.slane %v2204, 2
      %v2206 = vrot.slane %v1358, 7
      %v2207 = vrot.slane %v2206, 2
      %v2208 = vrot.slane %v1582, 7
      %v2209 = vrot.slane %v2208, 2
      %v2210 = vrot.slane %v1583, 7
      %v2211 = vrot.slane %v2210, 2
      %v2212 = vrot.slane %v1584, 7
      %v2213 = vrot.slane %v2212, 2
      %v2214 = vrot.slane %v1359, 7
      %v2215 = vrot.slane %v2214, 2
      %v2216 = vrot.slane %v1585, 7
      %v2217 = vrot.slane %v2216, 2
      %v2218 = vrot.slane %v1586, 7
      %v2219 = vrot.slane %v2218, 2
      %v2220 = vrot.slane %v1587, 7
      %v2221 = vrot.slane %v2220, 2
      %v2222 = vrot.slane %v1360, 7
      %v2223 = vrot.slane %v2222, 2
      %v2224 = vrot.slane %v1588, 7
      %v2225 = vrot.slane %v2224, 2
      %v2226 = vrot.slane %v1589, 7
      %v2227 = vrot.slane %v2226, 2
      %v2228 = vrot.slane %v1590, 7
      %v2229 = vrot.slane %v2228, 2
      %v2230 = vrot.slane %v1361, 7
      %v2231 = vrot.slane %v2230, 2
      %v2232 = vrot.slane %v1591, 7
      %v2233 = vrot.slane %v2232, 2
      %v2234 = vrot.slane %v1592, 7
      %v2235 = vrot.slane %v2234, 2
      %v2236 = vrot.slane %v1593, 7
      %v2237 = vrot.slane %v2236, 2
      %v2238 = vrot.slane %v1362, 7
      %v2239 = vrot.slane %v2238, 2
      %v2240 = vrot.slane %v1594, 7
      %v2241 = vrot.slane %v2240, 2
      %v2242 = vrot.slane %v1595, 7
      %v2243 = vrot.slane %v2242, 2
      %v2244 = vrot.slane %v1596, 7
      %v2245 = vrot.slane %v2244, 2
      %v2246 = vrot.slane %v1363, 7
      %v2247 = vrot.slane %v2246, 2
      %v2248 = vrot.slane %v1597, 7
      %v2249 = vrot.slane %v2248, 2
      %v2250 = vrot.slane %v1598, 7
      %v2251 = vrot.slane %v2250, 2
      %v2252 = vrot.slane %v1599, 7
      %v2253 = vrot.slane %v2252, 2
      %v2254 = vrot.slane %v1364, 7
      %v2255 = vrot.slane %v2254, 2
      %v2256 = vrot.slane %v1600, 7
      %v2257 = vrot.slane %v2256, 2
      %v2258 = vrot.slane %v1601, 7
      %v2259 = vrot.slane %v2258, 2
      %v2260 = vrot.slane %v1602, 7
      %v2261 = vrot.slane %v2260, 2
      %v2262 = vrot.slane %v1365, 7
      %v2263 = vrot.slane %v2262, 2
      %v2264 = vrot.slane %v1603, 7
      %v2265 = vrot.slane %v2264, 2
      %v2266 = vrot.slane %v1604, 7
      %v2267 = vrot.slane %v2266, 2
      %v2268 = vrot.slane %v1605, 7
      %v2269 = vrot.slane %v2268, 2
      %v2270 = vrot.slane %v1366, 7
      %v2271 = vrot.slane %v2270, 2
      %v2272 = vrot.slane %v1606, 7
      %v2273 = vrot.slane %v2272, 2
      %v2274 = vrot.slane %v1607, 7
      %v2275 = vrot.slane %v2274, 2
      %v2276 = vrot.slane %v1608, 7
      %v2277 = vrot.slane %v2276, 2
      %v2278 = vrot.slane %v1367, 7
      %v2279 = vrot.slane %v2278, 2
      %v2280 = vrot.slane %v1609, 7
      %v2281 = vrot.slane %v2280, 2
      %v2282 = vrot.slane %v1610, 7
      %v2283 = vrot.slane %v2282, 2
      %v2284 = vrot.slane %v1611, 7
      %v2285 = vrot.slane %v2284, 2
      %v2286 = vrot.slane %v1368, 7
      %v2287 = vrot.slane %v2286, 2
      %v2288 = vrot.slane %v1612, 7
      %v2289 = vrot.slane %v2288, 2
      %v2290 = vrot.slane %v1613, 7
      %v2291 = vrot.slane %v2290, 2
      %v2292 = vrot.slane %v1614, 7
      %v2293 = vrot.slane %v2292, 2
      %v2294 = vrot.slane %v1369, 7
      %v2295 = vrot.slane %v2294, 2
      %v2296 = vrot.slane %v1615, 7
      %v2297 = vrot.slane %v2296, 2
      %v2298 = vrot.slane %v1616, 7
      %v2299 = vrot.slane %v2298, 2
      %v2300 = vrot.slane %v1617, 7
      %v2301 = vrot.slane %v2300, 2
      %v2302 = vrot.slane %v1370, 7
      %v2303 = vrot.slane %v2302, 2
      %v2304 = vrot.slane %v1618, 7
      %v2305 = vrot.slane %v2304, 2
      %v2306 = vrot.slane %v1619, 7
      %v2307 = vrot.slane %v2306, 2
      %v2308 = vrot.slane %v1620, 7
      %v2309 = vrot.slane %v2308, 2
      %v2310 = vrot.slane %v1371, 7
      %v2311 = vrot.slane %v2310, 2
      %v2312 = vrot.slane %v1621, 7
      %v2313 = vrot.slane %v2312, 2
      %v2314 = vrot.slane %v1622, 7
      %v2315 = vrot.slane %v2314, 2
      %v2316 = vrot.slane %v1623, 7
      %v2317 = vrot.slane %v2316, 2
      %v2318 = vrot.slane %v1372, 7
      %v2319 = vrot.slane %v2318, 2
      %v2320 = vrot.slane %v1624, 7
      %v2321 = vrot.slane %v2320, 2
      %v2322 = vrot.slane %v1625, 7
      %v2323 = vrot.slane %v2322, 2
      %v2324 = vrot.slane %v1626, 7
      %v2325 = vrot.slane %v2324, 2
      %v2326 = vrot.slane %v1373, 7
      %v2327 = vrot.slane %v2326, 2
      %v2328 = vrot.slane %v1627, 7
      %v2329 = vrot.slane %v2328, 2
      %v2330 = vrot.slane %v1628, 7
      %v2331 = vrot.slane %v2330, 2
      %v2332 = vrot.slane %v1629, 7
      %v2333 = vrot.slane %v2332, 2
      %v2590 = vmax.f32 %v1310, %v1823
      %v2591 = vmax.f32 %v1438, %v1825
      %v2592 = vmax.f32 %v1439, %v1827
      %v2593 = vmax.f32 %v1440, %v1829
      %v2594 = vmax.f32 %v1311, %v1831
      %v2595 = vmax.f32 %v1441, %v1833
      %v2596 = vmax.f32 %v1442, %v1835
      %v2597 = vmax.f32 %v1443, %v1837
      %v2598 = vmax.f32 %v1312, %v1839
      %v2599 = vmax.f32 %v1444, %v1841
      %v2600 = vmax.f32 %v1445, %v1843
      %v2601 = vmax.f32 %v1446, %v1845
      %v2602 = vmax.f32 %v1313, %v1847
      %v2603 = vmax.f32 %v1447, %v1849
      %v2604 = vmax.f32 %v1448, %v1851
      %v2605 = vmax.f32 %v1449, %v1853
      %v2606 = vmax.f32 %v1314, %v1855
      %v2607 = vmax.f32 %v1450, %v1857
      %v2608 = vmax.f32 %v1451, %v1859
      %v2609 = vmax.f32 %v1452, %v1861
      %v2610 = vmax.f32 %v1315, %v1863
      %v2611 = vmax.f32 %v1453, %v1865
      %v2612 = vmax.f32 %v1454, %v1867
      %v2613 = vmax.f32 %v1455, %v1869
      %v2614 = vmax.f32 %v1316, %v1871
      %v2615 = vmax.f32 %v1456, %v1873
      %v2616 = vmax.f32 %v1457, %v1875
      %v2617 = vmax.f32 %v1458, %v1877
      %v2618 = vmax.f32 %v1317, %v1879
      %v2619 = vmax.f32 %v1459, %v1881
      %v2620 = vmax.f32 %v1460, %v1883
      %v2621 = vmax.f32 %v1461, %v1885
      %v2622 = vmax.f32 %v1318, %v1887
      %v2623 = vmax.f32 %v1462, %v1889
      %v2624 = vmax.f32 %v1463, %v1891
      %v2625 = vmax.f32 %v1464, %v1893
      %v2626 = vmax.f32 %v1319, %v1895
      %v2627 = vmax.f32 %v1465, %v1897
      %v2628 = vmax.f32 %v1466, %v1899
      %v2629 = vmax.f32 %v1467, %v1901
      %v2630 = vmax.f32 %v1320, %v1903
      %v2631 = vmax.f32 %v1468, %v1905
      %v2632 = vmax.f32 %v1469, %v1907
      %v2633 = vmax.f32 %v1470, %v1909
      %v2634 = vmax.f32 %v1321, %v1911
      %v2635 = vmax.f32 %v1471, %v1913
      %v2636 = vmax.f32 %v1472, %v1915
      %v2637 = vmax.f32 %v1473, %v1917
      %v2638 = vmax.f32 %v1322, %v1919
      %v2639 = vmax.f32 %v1474, %v1921
      %v2640 = vmax.f32 %v1475, %v1923
      %v2641 = vmax.f32 %v1476, %v1925
      %v2642 = vmax.f32 %v1323, %v1927
      %v2643 = vmax.f32 %v1477, %v1929
      %v2644 = vmax.f32 %v1478, %v1931
      %v2645 = vmax.f32 %v1479, %v1933
      %v2646 = vmax.f32 %v1324, %v1935
      %v2647 = vmax.f32 %v1480, %v1937
      %v2648 = vmax.f32 %v1481, %v1939
      %v2649 = vmax.f32 %v1482, %v1941
      %v2650 = vmax.f32 %v1325, %v1943
      %v2651 = vmax.f32 %v1483, %v1945
      %v2652 = vmax.f32 %v1484, %v1947
      %v2653 = vmax.f32 %v1485, %v1949
      %v2654 = vmax.f32 %v1326, %v1951
      %v2655 = vmax.f32 %v1486, %v1953
      %v2656 = vmax.f32 %v1487, %v1955
      %v2657 = vmax.f32 %v1488, %v1957
      %v2658 = vmax.f32 %v1327, %v1959
      %v2659 = vmax.f32 %v1489, %v1961
      %v2660 = vmax.f32 %v1490, %v1963
      %v2661 = vmax.f32 %v1491, %v1965
      %v2662 = vmax.f32 %v1328, %v1967
      %v2663 = vmax.f32 %v1492, %v1969
      %v2664 = vmax.f32 %v1493, %v1971
      %v2665 = vmax.f32 %v1494, %v1973
      %v2666 = vmax.f32 %v1329, %v1975
      %v2667 = vmax.f32 %v1495, %v1977
      %v2668 = vmax.f32 %v1496, %v1979
      %v2669 = vmax.f32 %v1497, %v1981
      %v2670 = vmax.f32 %v1330, %v1983
      %v2671 = vmax.f32 %v1498, %v1985
      %v2672 = vmax.f32 %v1499, %v1987
      %v2673 = vmax.f32 %v1500, %v1989
      %v2674 = vmax.f32 %v1331, %v1991
      %v2675 = vmax.f32 %v1501, %v1993
      %v2676 = vmax.f32 %v1502, %v1995
      %v2677 = vmax.f32 %v1503, %v1997
      %v2678 = vmax.f32 %v1332, %v1999
      %v2679 = vmax.f32 %v1504, %v2001
      %v2680 = vmax.f32 %v1505, %v2003
      %v2681 = vmax.f32 %v1506, %v2005
      %v2682 = vmax.f32 %v1333, %v2007
      %v2683 = vmax.f32 %v1507, %v2009
      %v2684 = vmax.f32 %v1508, %v2011
      %v2685 = vmax.f32 %v1509, %v2013
      %v2686 = vmax.f32 %v1334, %v2015
      %v2687 = vmax.f32 %v1510, %v2017
      %v2688 = vmax.f32 %v1511, %v2019
      %v2689 = vmax.f32 %v1512, %v2021
      %v2690 = vmax.f32 %v1335, %v2023
      %v2691 = vmax.f32 %v1513, %v2025
      %v2692 = vmax.f32 %v1514, %v2027
      %v2693 = vmax.f32 %v1515, %v2029
      %v2694 = vmax.f32 %v1336, %v2031
      %v2695 = vmax.f32 %v1516, %v2033
      %v2696 = vmax.f32 %v1517, %v2035
      %v2697 = vmax.f32 %v1518, %v2037
      %v2698 = vmax.f32 %v1337, %v2039
      %v2699 = vmax.f32 %v1519, %v2041
      %v2700 = vmax.f32 %v1520, %v2043
      %v2701 = vmax.f32 %v1521, %v2045
      %v2702 = vmax.f32 %v1338, %v2047
      %v2703 = vmax.f32 %v1522, %v2049
      %v2704 = vmax.f32 %v1523, %v2051
      %v2705 = vmax.f32 %v1524, %v2053
      %v2706 = vmax.f32 %v1339, %v2055
      %v2707 = vmax.f32 %v1525, %v2057
      %v2708 = vmax.f32 %v1526, %v2059
      %v2709 = vmax.f32 %v1527, %v2061
      %v2710 = vmax.f32 %v1340, %v2063
      %v2711 = vmax.f32 %v1528, %v2065
      %v2712 = vmax.f32 %v1529, %v2067
      %v2713 = vmax.f32 %v1530, %v2069
      %v2714 = vmax.f32 %v1341, %v2071
      %v2715 = vmax.f32 %v1531, %v2073
      %v2716 = vmax.f32 %v1532, %v2075
      %v2717 = vmax.f32 %v1533, %v2077
      %v2718 = vmax.f32 %v1342, %v2079
      %v2719 = vmax.f32 %v1534, %v2081
      %v2720 = vmax.f32 %v1535, %v2083
      %v2721 = vmax.f32 %v1536, %v2085
      %v2722 = vmax.f32 %v1343, %v2087
      %v2723 = vmax.f32 %v1537, %v2089
      %v2724 = vmax.f32 %v1538, %v2091
      %v2725 = vmax.f32 %v1539, %v2093
      %v2726 = vmax.f32 %v1344, %v2095
      %v2727 = vmax.f32 %v1540, %v2097
      %v2728 = vmax.f32 %v1541, %v2099
      %v2729 = vmax.f32 %v1542, %v2101
      %v2730 = vmax.f32 %v1345, %v2103
      %v2731 = vmax.f32 %v1543, %v2105
      %v2732 = vmax.f32 %v1544, %v2107
      %v2733 = vmax.f32 %v1545, %v2109
      %v2734 = vmax.f32 %v1346, %v2111
      %v2735 = vmax.f32 %v1546, %v2113
      %v2736 = vmax.f32 %v1547, %v2115
      %v2737 = vmax.f32 %v1548, %v2117
      %v2738 = vmax.f32 %v1347, %v2119
      %v2739 = vmax.f32 %v1549, %v2121
      %v2740 = vmax.f32 %v1550, %v2123
      %v2741 = vmax.f32 %v1551, %v2125
      %v2742 = vmax.f32 %v1348, %v2127
      %v2743 = vmax.f32 %v1552, %v2129
      %v2744 = vmax.f32 %v1553, %v2131
      %v2745 = vmax.f32 %v1554, %v2133
      %v2746 = vmax.f32 %v1349, %v2135
      %v2747 = vmax.f32 %v1555, %v2137
      %v2748 = vmax.f32 %v1556, %v2139
      %v2749 = vmax.f32 %v1557, %v2141
      %v2750 = vmax.f32 %v1350, %v2143
      %v2751 = vmax.f32 %v1558, %v2145
      %v2752 = vmax.f32 %v1559, %v2147
      %v2753 = vmax.f32 %v1560, %v2149
      %v2754 = vmax.f32 %v1351, %v2151
      %v2755 = vmax.f32 %v1561, %v2153
      %v2756 = vmax.f32 %v1562, %v2155
      %v2757 = vmax.f32 %v1563, %v2157
      %v2758 = vmax.f32 %v1352, %v2159
      %v2759 = vmax.f32 %v1564, %v2161
      %v2760 = vmax.f32 %v1565, %v2163
      %v2761 = vmax.f32 %v1566, %v2165
      %v2762 = vmax.f32 %v1353, %v2167
      %v2763 = vmax.f32 %v1567, %v2169
      %v2764 = vmax.f32 %v1568, %v2171
      %v2765 = vmax.f32 %v1569, %v2173
      %v2766 = vmax.f32 %v1354, %v2175
      %v2767 = vmax.f32 %v1570, %v2177
      %v2768 = vmax.f32 %v1571, %v2179
      %v2769 = vmax.f32 %v1572, %v2181
      %v2770 = vmax.f32 %v1355, %v2183
      %v2771 = vmax.f32 %v1573, %v2185
      %v2772 = vmax.f32 %v1574, %v2187
      %v2773 = vmax.f32 %v1575, %v2189
      %v2774 = vmax.f32 %v1356, %v2191
      %v2775 = vmax.f32 %v1576, %v2193
      %v2776 = vmax.f32 %v1577, %v2195
      %v2777 = vmax.f32 %v1578, %v2197
      %v2778 = vmax.f32 %v1357, %v2199
      %v2779 = vmax.f32 %v1579, %v2201
      %v2780 = vmax.f32 %v1580, %v2203
      %v2781 = vmax.f32 %v1581, %v2205
      %v2782 = vmax.f32 %v1358, %v2207
      %v2783 = vmax.f32 %v1582, %v2209
      %v2784 = vmax.f32 %v1583, %v2211
      %v2785 = vmax.f32 %v1584, %v2213
      %v2786 = vmax.f32 %v1359, %v2215
      %v2787 = vmax.f32 %v1585, %v2217
      %v2788 = vmax.f32 %v1586, %v2219
      %v2789 = vmax.f32 %v1587, %v2221
      %v2790 = vmax.f32 %v1360, %v2223
      %v2791 = vmax.f32 %v1588, %v2225
      %v2792 = vmax.f32 %v1589, %v2227
      %v2793 = vmax.f32 %v1590, %v2229
      %v2794 = vmax.f32 %v1361, %v2231
      %v2795 = vmax.f32 %v1591, %v2233
      %v2796 = vmax.f32 %v1592, %v2235
      %v2797 = vmax.f32 %v1593, %v2237
      %v2798 = vmax.f32 %v1362, %v2239
      %v2799 = vmax.f32 %v1594, %v2241
      %v2800 = vmax.f32 %v1595, %v2243
      %v2801 = vmax.f32 %v1596, %v2245
      %v2802 = vmax.f32 %v1363, %v2247
      %v2803 = vmax.f32 %v1597, %v2249
      %v2804 = vmax.f32 %v1598, %v2251
      %v2805 = vmax.f32 %v1599, %v2253
      %v2806 = vmax.f32 %v1364, %v2255
      %v2807 = vmax.f32 %v1600, %v2257
      %v2808 = vmax.f32 %v1601, %v2259
      %v2809 = vmax.f32 %v1602, %v2261
      %v2810 = vmax.f32 %v1365, %v2263
      %v2811 = vmax.f32 %v1603, %v2265
      %v2812 = vmax.f32 %v1604, %v2267
      %v2813 = vmax.f32 %v1605, %v2269
      %v2814 = vmax.f32 %v1366, %v2271
      %v2815 = vmax.f32 %v1606, %v2273
      %v2816 = vmax.f32 %v1607, %v2275
      %v2817 = vmax.f32 %v1608, %v2277
      %v2818 = vmax.f32 %v1367, %v2279
      %v2819 = vmax.f32 %v1609, %v2281
      %v2820 = vmax.f32 %v1610, %v2283
      %v2821 = vmax.f32 %v1611, %v2285
      %v2822 = vmax.f32 %v1368, %v2287
      %v2823 = vmax.f32 %v1612, %v2289
      %v2824 = vmax.f32 %v1613, %v2291
      %v2825 = vmax.f32 %v1614, %v2293
      %v2826 = vmax.f32 %v1369, %v2295
      %v2827 = vmax.f32 %v1615, %v2297
      %v2828 = vmax.f32 %v1616, %v2299
      %v2829 = vmax.f32 %v1617, %v2301
      %v2830 = vmax.f32 %v1370, %v2303
      %v2831 = vmax.f32 %v1618, %v2305
      %v2832 = vmax.f32 %v1619, %v2307
      %v2833 = vmax.f32 %v1620, %v2309
      %v2834 = vmax.f32 %v1371, %v2311
      %v2835 = vmax.f32 %v1621, %v2313
      %v2836 = vmax.f32 %v1622, %v2315
      %v2837 = vmax.f32 %v1623, %v2317
      %v2838 = vmax.f32 %v1372, %v2319
      %v2839 = vmax.f32 %v1624, %v2321
      %v2840 = vmax.f32 %v1625, %v2323
      %v2841 = vmax.f32 %v1626, %v2325
      %v2842 = vmax.f32 %v1373, %v2327
      %v2843 = vmax.f32 %v1627, %v2329
      %v2844 = vmax.f32 %v1628, %v2331
      %v2845 = vmax.f32 %v1629, %v2333
      %v2846 = vld [vmem:[%s2] sm:$0x1]
      %v2848 = vperm.slane %v2846, 0
      %v2849 = vrot.slane %v2848, 2
      %v2850 = vrot.slane %v2848, 4
      %v2851 = vrot.slane %v2848, 6
      %v2852 = vrot.slane %v2848, 1
      %v2853 = vrot.slane %v2849, 1
      %v2854 = vrot.slane %v2850, 1
      %v2855 = vrot.slane %v2851, 1
      %v2864 = vadd.f32 %v2590, %v2848
      %v2865 = vadd.f32 %v2591, %v2852
      %v2866 = vadd.f32 %v2592, %v2849
      %v2867 = vadd.f32 %v2593, %v2853
      %v2868 = vadd.f32 %v2594, %v2850
      %v2869 = vadd.f32 %v2595, %v2854
      %v2870 = vadd.f32 %v2596, %v2851
      %v2871 = vadd.f32 %v2597, %v2855
      %v2872 = vadd.f32 %v2598, %v2848
      %v2873 = vadd.f32 %v2599, %v2852
      %v2874 = vadd.f32 %v2600, %v2849
      %v2875 = vadd.f32 %v2601, %v2853
      %v2876 = vadd.f32 %v2602, %v2850
      %v2877 = vadd.f32 %v2603, %v2854
      %v2878 = vadd.f32 %v2604, %v2851
      %v2879 = vadd.f32 %v2605, %v2855
      %v2880 = vadd.f32 %v2606, %v2848
      %v2881 = vadd.f32 %v2607, %v2852
      %v2882 = vadd.f32 %v2608, %v2849
      %v2883 = vadd.f32 %v2609, %v2853
      %v2884 = vadd.f32 %v2610, %v2850
      %v2885 = vadd.f32 %v2611, %v2854
      %v2886 = vadd.f32 %v2612, %v2851
      %v2887 = vadd.f32 %v2613, %v2855
      %v2888 = vadd.f32 %v2614, %v2848
      %v2889 = vadd.f32 %v2615, %v2852
      %v2890 = vadd.f32 %v2616, %v2849
      %v2891 = vadd.f32 %v2617, %v2853
      %v2892 = vadd.f32 %v2618, %v2850
      %v2893 = vadd.f32 %v2619, %v2854
      %v2894 = vadd.f32 %v2620, %v2851
      %v2895 = vadd.f32 %v2621, %v2855
      %v2896 = vadd.f32 %v2622, %v2848
      %v2897 = vadd.f32 %v2623, %v2852
      %v2898 = vadd.f32 %v2624, %v2849
      %v2899 = vadd.f32 %v2625, %v2853
      %v2900 = vadd.f32 %v2626, %v2850
      %v2901 = vadd.f32 %v2627, %v2854
      %v2902 = vadd.f32 %v2628, %v2851
      %v2903 = vadd.f32 %v2629, %v2855
      %v2904 = vadd.f32 %v2630, %v2848
      %v2905 = vadd.f32 %v2631, %v2852
      %v2906 = vadd.f32 %v2632, %v2849
      %v2907 = vadd.f32 %v2633, %v2853
      %v2908 = vadd.f32 %v2634, %v2850
      %v2909 = vadd.f32 %v2635, %v2854
      %v2910 = vadd.f32 %v2636, %v2851
      %v2911 = vadd.f32 %v2637, %v2855
      %v2912 = vadd.f32 %v2638, %v2848
      %v2913 = vadd.f32 %v2639, %v2852
      %v2914 = vadd.f32 %v2640, %v2849
      %v2915 = vadd.f32 %v2641, %v2853
      %v2916 = vadd.f32 %v2642, %v2850
      %v2917 = vadd.f32 %v2643, %v2854
      %v2918 = vadd.f32 %v2644, %v2851
      %v2919 = vadd.f32 %v2645, %v2855
      %v2920 = vadd.f32 %v2646, %v2848
      %v2921 = vadd.f32 %v2647, %v2852
      %v2922 = vadd.f32 %v2648, %v2849
      %v2923 = vadd.f32 %v2649, %v2853
      %v2924 = vadd.f32 %v2650, %v2850
      %v2925 = vadd.f32 %v2651, %v2854
      %v2926 = vadd.f32 %v2652, %v2851
      %v2927 = vadd.f32 %v2653, %v2855
      %v2928 = vadd.f32 %v2654, %v2848
      %v2929 = vadd.f32 %v2655, %v2852
      %v2930 = vadd.f32 %v2656, %v2849
      %v2931 = vadd.f32 %v2657, %v2853
      %v2932 = vadd.f32 %v2658, %v2850
      %v2933 = vadd.f32 %v2659, %v2854
      %v2934 = vadd.f32 %v2660, %v2851
      %v2935 = vadd.f32 %v2661, %v2855
      %v2936 = vadd.f32 %v2662, %v2848
      %v2937 = vadd.f32 %v2663, %v2852
      %v2938 = vadd.f32 %v2664, %v2849
      %v2939 = vadd.f32 %v2665, %v2853
      %v2940 = vadd.f32 %v2666, %v2850
      %v2941 = vadd.f32 %v2667, %v2854
      %v2942 = vadd.f32 %v2668, %v2851
      %v2943 = vadd.f32 %v2669, %v2855
      %v2944 = vadd.f32 %v2670, %v2848
      %v2945 = vadd.f32 %v2671, %v2852
      %v2946 = vadd.f32 %v2672, %v2849
      %v2947 = vadd.f32 %v2673, %v2853
      %v2948 = vadd.f32 %v2674, %v2850
      %v2949 = vadd.f32 %v2675, %v2854
      %v2950 = vadd.f32 %v2676, %v2851
      %v2951 = vadd.f32 %v2677, %v2855
      %v2952 = vadd.f32 %v2678, %v2848
      %v2953 = vadd.f32 %v2679, %v2852
      %v2954 = vadd.f32 %v2680, %v2849
      %v2955 = vadd.f32 %v2681, %v2853
      %v2956 = vadd.f32 %v2682, %v2850
      %v2957 = vadd.f32 %v2683, %v2854
      %v2958 = vadd.f32 %v2684, %v2851
      %v2959 = vadd.f32 %v2685, %v2855
      %v2960 = vadd.f32 %v2686, %v2848
      %v2961 = vadd.f32 %v2687, %v2852
      %v2962 = vadd.f32 %v2688, %v2849
      %v2963 = vadd.f32 %v2689, %v2853
      %v2964 = vadd.f32 %v2690, %v2850
      %v2965 = vadd.f32 %v2691, %v2854
      %v2966 = vadd.f32 %v2692, %v2851
      %v2967 = vadd.f32 %v2693, %v2855
      %v2968 = vadd.f32 %v2694, %v2848
      %v2969 = vadd.f32 %v2695, %v2852
      %v2970 = vadd.f32 %v2696, %v2849
      %v2971 = vadd.f32 %v2697, %v2853
      %v2972 = vadd.f32 %v2698, %v2850
      %v2973 = vadd.f32 %v2699, %v2854
      %v2974 = vadd.f32 %v2700, %v2851
      %v2975 = vadd.f32 %v2701, %v2855
      %v2976 = vadd.f32 %v2702, %v2848
      %v2977 = vadd.f32 %v2703, %v2852
      %v2978 = vadd.f32 %v2704, %v2849
      %v2979 = vadd.f32 %v2705, %v2853
      %v2980 = vadd.f32 %v2706, %v2850
      %v2981 = vadd.f32 %v2707, %v2854
      %v2982 = vadd.f32 %v2708, %v2851
      %v2983 = vadd.f32 %v2709, %v2855
      %v2984 = vadd.f32 %v2710, %v2848
      %v2985 = vadd.f32 %v2711, %v2852
      %v2986 = vadd.f32 %v2712, %v2849
      %v2987 = vadd.f32 %v2713, %v2853
      %v2988 = vadd.f32 %v2714, %v2850
      %v2989 = vadd.f32 %v2715, %v2854
      %v2990 = vadd.f32 %v2716, %v2851
      %v2991 = vadd.f32 %v2717, %v2855
      %v2992 = vadd.f32 %v2718, %v2848
      %v2993 = vadd.f32 %v2719, %v2852
      %v2994 = vadd.f32 %v2720, %v2849
      %v2995 = vadd.f32 %v2721, %v2853
      %v2996 = vadd.f32 %v2722, %v2850
      %v2997 = vadd.f32 %v2723, %v2854
      %v2998 = vadd.f32 %v2724, %v2851
      %v2999 = vadd.f32 %v2725, %v2855
      %v3000 = vadd.f32 %v2726, %v2848
      %v3001 = vadd.f32 %v2727, %v2852
      %v3002 = vadd.f32 %v2728, %v2849
      %v3003 = vadd.f32 %v2729, %v2853
      %v3004 = vadd.f32 %v2730, %v2850
      %v3005 = vadd.f32 %v2731, %v2854
      %v3006 = vadd.f32 %v2732, %v2851
      %v3007 = vadd.f32 %v2733, %v2855
      %v3008 = vadd.f32 %v2734, %v2848
      %v3009 = vadd.f32 %v2735, %v2852
      %v3010 = vadd.f32 %v2736, %v2849
      %v3011 = vadd.f32 %v2737, %v2853
      %v3012 = vadd.f32 %v2738, %v2850
      %v3013 = vadd.f32 %v2739, %v2854
      %v3014 = vadd.f32 %v2740, %v2851
      %v3015 = vadd.f32 %v2741, %v2855
      %v3016 = vadd.f32 %v2742, %v2848
      %v3017 = vadd.f32 %v2743, %v2852
      %v3018 = vadd.f32 %v2744, %v2849
      %v3019 = vadd.f32 %v2745, %v2853
      %v3020 = vadd.f32 %v2746, %v2850
      %v3021 = vadd.f32 %v2747, %v2854
      %v3022 = vadd.f32 %v2748, %v2851
      %v3023 = vadd.f32 %v2749, %v2855
      %v3024 = vadd.f32 %v2750, %v2848
      %v3025 = vadd.f32 %v2751, %v2852
      %v3026 = vadd.f32 %v2752, %v2849
      %v3027 = vadd.f32 %v2753, %v2853
      %v3028 = vadd.f32 %v2754, %v2850
      %v3029 = vadd.f32 %v2755, %v2854
      %v3030 = vadd.f32 %v2756, %v2851
      %v3031 = vadd.f32 %v2757, %v2855
      %v3032 = vadd.f32 %v2758, %v2848
      %v3033 = vadd.f32 %v2759, %v2852
      %v3034 = vadd.f32 %v2760, %v2849
      %v3035 = vadd.f32 %v2761, %v2853
      %v3036 = vadd.f32 %v2762, %v2850
      %v3037 = vadd.f32 %v2763, %v2854
      %v3038 = vadd.f32 %v2764, %v2851
      %v3039 = vadd.f32 %v2765, %v2855
      %v3040 = vadd.f32 %v2766, %v2848
      %v3041 = vadd.f32 %v2767, %v2852
      %v3042 = vadd.f32 %v2768, %v2849
      %v3043 = vadd.f32 %v2769, %v2853
      %v3044 = vadd.f32 %v2770, %v2850
      %v3045 = vadd.f32 %v2771, %v2854
      %v3046 = vadd.f32 %v2772, %v2851
      %v3047 = vadd.f32 %v2773, %v2855
      %v3048 = vadd.f32 %v2774, %v2848
      %v3049 = vadd.f32 %v2775, %v2852
      %v3050 = vadd.f32 %v2776, %v2849
      %v3051 = vadd.f32 %v2777, %v2853
      %v3052 = vadd.f32 %v2778, %v2850
      %v3053 = vadd.f32 %v2779, %v2854
      %v3054 = vadd.f32 %v2780, %v2851
      %v3055 = vadd.f32 %v2781, %v2855
      %v3056 = vadd.f32 %v2782, %v2848
      %v3057 = vadd.f32 %v2783, %v2852
      %v3058 = vadd.f32 %v2784, %v2849
      %v3059 = vadd.f32 %v2785, %v2853
      %v3060 = vadd.f32 %v2786, %v2850
      %v3061 = vadd.f32 %v2787, %v2854
      %v3062 = vadd.f32 %v2788, %v2851
      %v3063 = vadd.f32 %v2789, %v2855
      %v3064 = vadd.f32 %v2790, %v2848
      %v3065 = vadd.f32 %v2791, %v2852
      %v3066 = vadd.f32 %v2792, %v2849
      %v3067 = vadd.f32 %v2793, %v2853
      %v3068 = vadd.f32 %v2794, %v2850
      %v3069 = vadd.f32 %v2795, %v2854
      %v3070 = vadd.f32 %v2796, %v2851
      %v3071 = vadd.f32 %v2797, %v2855
      %v3072 = vadd.f32 %v2798, %v2848
      %v3073 = vadd.f32 %v2799, %v2852
      %v3074 = vadd.f32 %v2800, %v2849
      %v3075 = vadd.f32 %v2801, %v2853
      %v3076 = vadd.f32 %v2802, %v2850
      %v3077 = vadd.f32 %v2803, %v2854
      %v3078 = vadd.f32 %v2804, %v2851
      %v3079 = vadd.f32 %v2805, %v2855
      %v3080 = vadd.f32 %v2806, %v2848
      %v3081 = vadd.f32 %v2807, %v2852
      %v3082 = vadd.f32 %v2808, %v2849
      %v3083 = vadd.f32 %v2809, %v2853
      %v3084 = vadd.f32 %v2810, %v2850
      %v3085 = vadd.f32 %v2811, %v2854
      %v3086 = vadd.f32 %v2812, %v2851
      %v3087 = vadd.f32 %v2813, %v2855
      %v3088 = vadd.f32 %v2814, %v2848
      %v3089 = vadd.f32 %v2815, %v2852
      %v3090 = vadd.f32 %v2816, %v2849
      %v3091 = vadd.f32 %v2817, %v2853
      %v3092 = vadd.f32 %v2818, %v2850
      %v3093 = vadd.f32 %v2819, %v2854
      %v3094 = vadd.f32 %v2820, %v2851
      %v3095 = vadd.f32 %v2821, %v2855
      %v3096 = vadd.f32 %v2822, %v2848
      %v3097 = vadd.f32 %v2823, %v2852
      %v3098 = vadd.f32 %v2824, %v2849
      %v3099 = vadd.f32 %v2825, %v2853
      %v3100 = vadd.f32 %v2826, %v2850
      %v3101 = vadd.f32 %v2827, %v2854
      %v3102 = vadd.f32 %v2828, %v2851
      %v3103 = vadd.f32 %v2829, %v2855
      %v3104 = vadd.f32 %v2830, %v2848
      %v3105 = vadd.f32 %v2831, %v2852
      %v3106 = vadd.f32 %v2832, %v2849
      %v3107 = vadd.f32 %v2833, %v2853
      %v3108 = vadd.f32 %v2834, %v2850
      %v3109 = vadd.f32 %v2835, %v2854
      %v3110 = vadd.f32 %v2836, %v2851
      %v3111 = vadd.f32 %v2837, %v2855
      %v3112 = vadd.f32 %v2838, %v2848
      %v3113 = vadd.f32 %v2839, %v2852
      %v3114 = vadd.f32 %v2840, %v2849
      %v3115 = vadd.f32 %v2841, %v2853
      %v3116 = vadd.f32 %v2842, %v2850
      %v3117 = vadd.f32 %v2843, %v2854
      %v3118 = vadd.f32 %v2844, %v2851
      %v3119 = vadd.f32 %v2845, %v2855
      %vm3120 = vcmp.gt.f32.partialorder %v2864, 0.0
      %vm3121 = vcmp.gt.f32.partialorder %v2865, 0.0
      %vm3122 = vcmp.gt.f32.partialorder %v2866, 0.0
      %vm3123 = vcmp.gt.f32.partialorder %v2867, 0.0
      %vm3124 = vcmp.gt.f32.partialorder %v2868, 0.0
      %vm3125 = vcmp.gt.f32.partialorder %v2869, 0.0
      %vm3126 = vcmp.gt.f32.partialorder %v2870, 0.0
      %vm3127 = vcmp.gt.f32.partialorder %v2871, 0.0
      %vm3128 = vcmp.gt.f32.partialorder %v2872, 0.0
      %vm3129 = vcmp.gt.f32.partialorder %v2873, 0.0
      %vm3130 = vcmp.gt.f32.partialorder %v2874, 0.0
      %vm3131 = vcmp.gt.f32.partialorder %v2875, 0.0
      %vm3132 = vcmp.gt.f32.partialorder %v2876, 0.0
      %vm3133 = vcmp.gt.f32.partialorder %v2877, 0.0
      %vm3134 = vcmp.gt.f32.partialorder %v2878, 0.0
      %vm3135 = vcmp.gt.f32.partialorder %v2879, 0.0
      %vm3136 = vcmp.gt.f32.partialorder %v2880, 0.0
      %vm3137 = vcmp.gt.f32.partialorder %v2881, 0.0
      %vm3138 = vcmp.gt.f32.partialorder %v2882, 0.0
      %vm3139 = vcmp.gt.f32.partialorder %v2883, 0.0
      %vm3140 = vcmp.gt.f32.partialorder %v2884, 0.0
      %vm3141 = vcmp.gt.f32.partialorder %v2885, 0.0
      %vm3142 = vcmp.gt.f32.partialorder %v2886, 0.0
      %vm3143 = vcmp.gt.f32.partialorder %v2887, 0.0
      %vm3144 = vcmp.gt.f32.partialorder %v2888, 0.0
      %vm3145 = vcmp.gt.f32.partialorder %v2889, 0.0
      %vm3146 = vcmp.gt.f32.partialorder %v2890, 0.0
      %vm3147 = vcmp.gt.f32.partialorder %v2891, 0.0
      %vm3148 = vcmp.gt.f32.partialorder %v2892, 0.0
      %vm3149 = vcmp.gt.f32.partialorder %v2893, 0.0
      %vm3150 = vcmp.gt.f32.partialorder %v2894, 0.0
      %vm3151 = vcmp.gt.f32.partialorder %v2895, 0.0
      %vm3152 = vcmp.gt.f32.partialorder %v2896, 0.0
      %vm3153 = vcmp.gt.f32.partialorder %v2897, 0.0
      %vm3154 = vcmp.gt.f32.partialorder %v2898, 0.0
      %vm3155 = vcmp.gt.f32.partialorder %v2899, 0.0
      %vm3156 = vcmp.gt.f32.partialorder %v2900, 0.0
      %vm3157 = vcmp.gt.f32.partialorder %v2901, 0.0
      %vm3158 = vcmp.gt.f32.partialorder %v2902, 0.0
      %vm3159 = vcmp.gt.f32.partialorder %v2903, 0.0
      %vm3160 = vcmp.gt.f32.partialorder %v2904, 0.0
      %vm3161 = vcmp.gt.f32.partialorder %v2905, 0.0
      %vm3162 = vcmp.gt.f32.partialorder %v2906, 0.0
      %vm3163 = vcmp.gt.f32.partialorder %v2907, 0.0
      %vm3164 = vcmp.gt.f32.partialorder %v2908, 0.0
      %vm3165 = vcmp.gt.f32.partialorder %v2909, 0.0
      %vm3166 = vcmp.gt.f32.partialorder %v2910, 0.0
      %vm3167 = vcmp.gt.f32.partialorder %v2911, 0.0
      %vm3168 = vcmp.gt.f32.partialorder %v2912, 0.0
      %vm3169 = vcmp.gt.f32.partialorder %v2913, 0.0
      %vm3170 = vcmp.gt.f32.partialorder %v2914, 0.0
      %vm3171 = vcmp.gt.f32.partialorder %v2915, 0.0
      %vm3172 = vcmp.gt.f32.partialorder %v2916, 0.0
      %vm3173 = vcmp.gt.f32.partialorder %v2917, 0.0
      %vm3174 = vcmp.gt.f32.partialorder %v2918, 0.0
      %vm3175 = vcmp.gt.f32.partialorder %v2919, 0.0
      %vm3176 = vcmp.gt.f32.partialorder %v2920, 0.0
      %vm3177 = vcmp.gt.f32.partialorder %v2921, 0.0
      %vm3178 = vcmp.gt.f32.partialorder %v2922, 0.0
      %vm3179 = vcmp.gt.f32.partialorder %v2923, 0.0
      %vm3180 = vcmp.gt.f32.partialorder %v2924, 0.0
      %vm3181 = vcmp.gt.f32.partialorder %v2925, 0.0
      %vm3182 = vcmp.gt.f32.partialorder %v2926, 0.0
      %vm3183 = vcmp.gt.f32.partialorder %v2927, 0.0
      %vm3184 = vcmp.gt.f32.partialorder %v2928, 0.0
      %vm3185 = vcmp.gt.f32.partialorder %v2929, 0.0
      %vm3186 = vcmp.gt.f32.partialorder %v2930, 0.0
      %vm3187 = vcmp.gt.f32.partialorder %v2931, 0.0
      %vm3188 = vcmp.gt.f32.partialorder %v2932, 0.0
      %vm3189 = vcmp.gt.f32.partialorder %v2933, 0.0
      %vm3190 = vcmp.gt.f32.partialorder %v2934, 0.0
      %vm3191 = vcmp.gt.f32.partialorder %v2935, 0.0
      %vm3192 = vcmp.gt.f32.partialorder %v2936, 0.0
      %vm3193 = vcmp.gt.f32.partialorder %v2937, 0.0
      %vm3194 = vcmp.gt.f32.partialorder %v2938, 0.0
      %vm3195 = vcmp.gt.f32.partialorder %v2939, 0.0
      %vm3196 = vcmp.gt.f32.partialorder %v2940, 0.0
      %vm3197 = vcmp.gt.f32.partialorder %v2941, 0.0
      %vm3198 = vcmp.gt.f32.partialorder %v2942, 0.0
      %vm3199 = vcmp.gt.f32.partialorder %v2943, 0.0
      %vm3200 = vcmp.gt.f32.partialorder %v2944, 0.0
      %vm3201 = vcmp.gt.f32.partialorder %v2945, 0.0
      %vm3202 = vcmp.gt.f32.partialorder %v2946, 0.0
      %vm3203 = vcmp.gt.f32.partialorder %v2947, 0.0
      %vm3204 = vcmp.gt.f32.partialorder %v2948, 0.0
      %vm3205 = vcmp.gt.f32.partialorder %v2949, 0.0
      %vm3206 = vcmp.gt.f32.partialorder %v2950, 0.0
      %vm3207 = vcmp.gt.f32.partialorder %v2951, 0.0
      %vm3208 = vcmp.gt.f32.partialorder %v2952, 0.0
      %vm3209 = vcmp.gt.f32.partialorder %v2953, 0.0
      %vm3210 = vcmp.gt.f32.partialorder %v2954, 0.0
      %vm3211 = vcmp.gt.f32.partialorder %v2955, 0.0
      %vm3212 = vcmp.gt.f32.partialorder %v2956, 0.0
      %vm3213 = vcmp.gt.f32.partialorder %v2957, 0.0
      %vm3214 = vcmp.gt.f32.partialorder %v2958, 0.0
      %vm3215 = vcmp.gt.f32.partialorder %v2959, 0.0
      %vm3216 = vcmp.gt.f32.partialorder %v2960, 0.0
      %vm3217 = vcmp.gt.f32.partialorder %v2961, 0.0
      %vm3218 = vcmp.gt.f32.partialorder %v2962, 0.0
      %vm3219 = vcmp.gt.f32.partialorder %v2963, 0.0
      %vm3220 = vcmp.gt.f32.partialorder %v2964, 0.0
      %vm3221 = vcmp.gt.f32.partialorder %v2965, 0.0
      %vm3222 = vcmp.gt.f32.partialorder %v2966, 0.0
      %vm3223 = vcmp.gt.f32.partialorder %v2967, 0.0
      %vm3224 = vcmp.gt.f32.partialorder %v2968, 0.0
      %vm3225 = vcmp.gt.f32.partialorder %v2969, 0.0
      %vm3226 = vcmp.gt.f32.partialorder %v2970, 0.0
      %vm3227 = vcmp.gt.f32.partialorder %v2971, 0.0
      %vm3228 = vcmp.gt.f32.partialorder %v2972, 0.0
      %vm3229 = vcmp.gt.f32.partialorder %v2973, 0.0
      %vm3230 = vcmp.gt.f32.partialorder %v2974, 0.0
      %vm3231 = vcmp.gt.f32.partialorder %v2975, 0.0
      %vm3232 = vcmp.gt.f32.partialorder %v2976, 0.0
      %vm3233 = vcmp.gt.f32.partialorder %v2977, 0.0
      %vm3234 = vcmp.gt.f32.partialorder %v2978, 0.0
      %vm3235 = vcmp.gt.f32.partialorder %v2979, 0.0
      %vm3236 = vcmp.gt.f32.partialorder %v2980, 0.0
      %vm3237 = vcmp.gt.f32.partialorder %v2981, 0.0
      %vm3238 = vcmp.gt.f32.partialorder %v2982, 0.0
      %vm3239 = vcmp.gt.f32.partialorder %v2983, 0.0
      %vm3240 = vcmp.gt.f32.partialorder %v2984, 0.0
      %vm3241 = vcmp.gt.f32.partialorder %v2985, 0.0
      %vm3242 = vcmp.gt.f32.partialorder %v2986, 0.0
      %vm3243 = vcmp.gt.f32.partialorder %v2987, 0.0
      %vm3244 = vcmp.gt.f32.partialorder %v2988, 0.0
      %vm3245 = vcmp.gt.f32.partialorder %v2989, 0.0
      %vm3246 = vcmp.gt.f32.partialorder %v2990, 0.0
      %vm3247 = vcmp.gt.f32.partialorder %v2991, 0.0
      %vm3248 = vcmp.gt.f32.partialorder %v2992, 0.0
      %vm3249 = vcmp.gt.f32.partialorder %v2993, 0.0
      %vm3250 = vcmp.gt.f32.partialorder %v2994, 0.0
      %vm3251 = vcmp.gt.f32.partialorder %v2995, 0.0
      %vm3252 = vcmp.gt.f32.partialorder %v2996, 0.0
      %vm3253 = vcmp.gt.f32.partialorder %v2997, 0.0
      %vm3254 = vcmp.gt.f32.partialorder %v2998, 0.0
      %vm3255 = vcmp.gt.f32.partialorder %v2999, 0.0
      %vm3256 = vcmp.gt.f32.partialorder %v3000, 0.0
      %vm3257 = vcmp.gt.f32.partialorder %v3001, 0.0
      %vm3258 = vcmp.gt.f32.partialorder %v3002, 0.0
      %vm3259 = vcmp.gt.f32.partialorder %v3003, 0.0
      %vm3260 = vcmp.gt.f32.partialorder %v3004, 0.0
      %vm3261 = vcmp.gt.f32.partialorder %v3005, 0.0
      %vm3262 = vcmp.gt.f32.partialorder %v3006, 0.0
      %vm3263 = vcmp.gt.f32.partialorder %v3007, 0.0
      %vm3264 = vcmp.gt.f32.partialorder %v3008, 0.0
      %vm3265 = vcmp.gt.f32.partialorder %v3009, 0.0
      %vm3266 = vcmp.gt.f32.partialorder %v3010, 0.0
      %vm3267 = vcmp.gt.f32.partialorder %v3011, 0.0
      %vm3268 = vcmp.gt.f32.partialorder %v3012, 0.0
      %vm3269 = vcmp.gt.f32.partialorder %v3013, 0.0
      %vm3270 = vcmp.gt.f32.partialorder %v3014, 0.0
      %vm3271 = vcmp.gt.f32.partialorder %v3015, 0.0
      %vm3272 = vcmp.gt.f32.partialorder %v3016, 0.0
      %vm3273 = vcmp.gt.f32.partialorder %v3017, 0.0
      %vm3274 = vcmp.gt.f32.partialorder %v3018, 0.0
      %vm3275 = vcmp.gt.f32.partialorder %v3019, 0.0
      %vm3276 = vcmp.gt.f32.partialorder %v3020, 0.0
      %vm3277 = vcmp.gt.f32.partialorder %v3021, 0.0
      %vm3278 = vcmp.gt.f32.partialorder %v3022, 0.0
      %vm3279 = vcmp.gt.f32.partialorder %v3023, 0.0
      %vm3280 = vcmp.gt.f32.partialorder %v3024, 0.0
      %vm3281 = vcmp.gt.f32.partialorder %v3025, 0.0
      %vm3282 = vcmp.gt.f32.partialorder %v3026, 0.0
      %vm3283 = vcmp.gt.f32.partialorder %v3027, 0.0
      %vm3284 = vcmp.gt.f32.partialorder %v3028, 0.0
      %vm3285 = vcmp.gt.f32.partialorder %v3029, 0.0
      %vm3286 = vcmp.gt.f32.partialorder %v3030, 0.0
      %vm3287 = vcmp.gt.f32.partialorder %v3031, 0.0
      %vm3288 = vcmp.gt.f32.partialorder %v3032, 0.0
      %vm3289 = vcmp.gt.f32.partialorder %v3033, 0.0
      %vm3290 = vcmp.gt.f32.partialorder %v3034, 0.0
      %vm3291 = vcmp.gt.f32.partialorder %v3035, 0.0
      %vm3292 = vcmp.gt.f32.partialorder %v3036, 0.0
      %vm3293 = vcmp.gt.f32.partialorder %v3037, 0.0
      %vm3294 = vcmp.gt.f32.partialorder %v3038, 0.0
      %vm3295 = vcmp.gt.f32.partialorder %v3039, 0.0
      %vm3296 = vcmp.gt.f32.partialorder %v3040, 0.0
      %vm3297 = vcmp.gt.f32.partialorder %v3041, 0.0
      %vm3298 = vcmp.gt.f32.partialorder %v3042, 0.0
      %vm3299 = vcmp.gt.f32.partialorder %v3043, 0.0
      %vm3300 = vcmp.gt.f32.partialorder %v3044, 0.0
      %vm3301 = vcmp.gt.f32.partialorder %v3045, 0.0
      %vm3302 = vcmp.gt.f32.partialorder %v3046, 0.0
      %vm3303 = vcmp.gt.f32.partialorder %v3047, 0.0
      %vm3304 = vcmp.gt.f32.partialorder %v3048, 0.0
      %vm3305 = vcmp.gt.f32.partialorder %v3049, 0.0
      %vm3306 = vcmp.gt.f32.partialorder %v3050, 0.0
      %vm3307 = vcmp.gt.f32.partialorder %v3051, 0.0
      %vm3308 = vcmp.gt.f32.partialorder %v3052, 0.0
      %vm3309 = vcmp.gt.f32.partialorder %v3053, 0.0
      %vm3310 = vcmp.gt.f32.partialorder %v3054, 0.0
      %vm3311 = vcmp.gt.f32.partialorder %v3055, 0.0
      %vm3312 = vcmp.gt.f32.partialorder %v3056, 0.0
      %vm3313 = vcmp.gt.f32.partialorder %v3057, 0.0
      %vm3314 = vcmp.gt.f32.partialorder %v3058, 0.0
      %vm3315 = vcmp.gt.f32.partialorder %v3059, 0.0
      %vm3316 = vcmp.gt.f32.partialorder %v3060, 0.0
      %vm3317 = vcmp.gt.f32.partialorder %v3061, 0.0
      %vm3318 = vcmp.gt.f32.partialorder %v3062, 0.0
      %vm3319 = vcmp.gt.f32.partialorder %v3063, 0.0
      %vm3320 = vcmp.gt.f32.partialorder %v3064, 0.0
      %vm3321 = vcmp.gt.f32.partialorder %v3065, 0.0
      %vm3322 = vcmp.gt.f32.partialorder %v3066, 0.0
      %vm3323 = vcmp.gt.f32.partialorder %v3067, 0.0
      %vm3324 = vcmp.gt.f32.partialorder %v3068, 0.0
      %vm3325 = vcmp.gt.f32.partialorder %v3069, 0.0
      %vm3326 = vcmp.gt.f32.partialorder %v3070, 0.0
      %vm3327 = vcmp.gt.f32.partialorder %v3071, 0.0
      %vm3328 = vcmp.gt.f32.partialorder %v3072, 0.0
      %vm3329 = vcmp.gt.f32.partialorder %v3073, 0.0
      %vm3330 = vcmp.gt.f32.partialorder %v3074, 0.0
      %vm3331 = vcmp.gt.f32.partialorder %v3075, 0.0
      %vm3332 = vcmp.gt.f32.partialorder %v3076, 0.0
      %vm3333 = vcmp.gt.f32.partialorder %v3077, 0.0
      %vm3334 = vcmp.gt.f32.partialorder %v3078, 0.0
      %vm3335 = vcmp.gt.f32.partialorder %v3079, 0.0
      %vm3336 = vcmp.gt.f32.partialorder %v3080, 0.0
      %vm3337 = vcmp.gt.f32.partialorder %v3081, 0.0
      %vm3338 = vcmp.gt.f32.partialorder %v3082, 0.0
      %vm3339 = vcmp.gt.f32.partialorder %v3083, 0.0
      %vm3340 = vcmp.gt.f32.partialorder %v3084, 0.0
      %vm3341 = vcmp.gt.f32.partialorder %v3085, 0.0
      %vm3342 = vcmp.gt.f32.partialorder %v3086, 0.0
      %vm3343 = vcmp.gt.f32.partialorder %v3087, 0.0
      %vm3344 = vcmp.gt.f32.partialorder %v3088, 0.0
      %vm3345 = vcmp.gt.f32.partialorder %v3089, 0.0
      %vm3346 = vcmp.gt.f32.partialorder %v3090, 0.0
      %vm3347 = vcmp.gt.f32.partialorder %v3091, 0.0
      %vm3348 = vcmp.gt.f32.partialorder %v3092, 0.0
      %vm3349 = vcmp.gt.f32.partialorder %v3093, 0.0
      %vm3350 = vcmp.gt.f32.partialorder %v3094, 0.0
      %vm3351 = vcmp.gt.f32.partialorder %v3095, 0.0
      %vm3352 = vcmp.gt.f32.partialorder %v3096, 0.0
      %vm3353 = vcmp.gt.f32.partialorder %v3097, 0.0
      %vm3354 = vcmp.gt.f32.partialorder %v3098, 0.0
      %vm3355 = vcmp.gt.f32.partialorder %v3099, 0.0
      %vm3356 = vcmp.gt.f32.partialorder %v3100, 0.0
      %vm3357 = vcmp.gt.f32.partialorder %v3101, 0.0
      %vm3358 = vcmp.gt.f32.partialorder %v3102, 0.0
      %vm3359 = vcmp.gt.f32.partialorder %v3103, 0.0
      %vm3360 = vcmp.gt.f32.partialorder %v3104, 0.0
      %vm3361 = vcmp.gt.f32.partialorder %v3105, 0.0
      %vm3362 = vcmp.gt.f32.partialorder %v3106, 0.0
      %vm3363 = vcmp.gt.f32.partialorder %v3107, 0.0
      %vm3364 = vcmp.gt.f32.partialorder %v3108, 0.0
      %vm3365 = vcmp.gt.f32.partialorder %v3109, 0.0
      %vm3366 = vcmp.gt.f32.partialorder %v3110, 0.0
      %vm3367 = vcmp.gt.f32.partialorder %v3111, 0.0
      %vm3368 = vcmp.gt.f32.partialorder %v3112, 0.0
      %vm3369 = vcmp.gt.f32.partialorder %v3113, 0.0
      %vm3370 = vcmp.gt.f32.partialorder %v3114, 0.0
      %vm3371 = vcmp.gt.f32.partialorder %v3115, 0.0
      %vm3372 = vcmp.gt.f32.partialorder %v3116, 0.0
      %vm3373 = vcmp.gt.f32.partialorder %v3117, 0.0
      %vm3374 = vcmp.gt.f32.partialorder %v3118, 0.0
      %vm3375 = vcmp.gt.f32.partialorder %v3119, 0.0
      %v3376 = vmin.f32 %v2864, 0.0
      %v3377 = vmin.f32 %v2865, 0.0
      %v3378 = vmin.f32 %v2866, 0.0
      %v3379 = vmin.f32 %v2867, 0.0
      %v3380 = vmin.f32 %v2868, 0.0
      %v3381 = vmin.f32 %v2869, 0.0
      %v3382 = vmin.f32 %v2870, 0.0
      %v3383 = vmin.f32 %v2871, 0.0
      %v3384 = vmin.f32 %v2872, 0.0
      %v3385 = vmin.f32 %v2873, 0.0
      %v3386 = vmin.f32 %v2874, 0.0
      %v3387 = vmin.f32 %v2875, 0.0
      %v3388 = vmin.f32 %v2876, 0.0
      %v3389 = vmin.f32 %v2877, 0.0
      %v3390 = vmin.f32 %v2878, 0.0
      %v3391 = vmin.f32 %v2879, 0.0
      %v3392 = vmin.f32 %v2880, 0.0
      %v3393 = vmin.f32 %v2881, 0.0
      %v3394 = vmin.f32 %v2882, 0.0
      %v3395 = vmin.f32 %v2883, 0.0
      %v3396 = vmin.f32 %v2884, 0.0
      %v3397 = vmin.f32 %v2885, 0.0
      %v3398 = vmin.f32 %v2886, 0.0
      %v3399 = vmin.f32 %v2887, 0.0
      %v3400 = vmin.f32 %v2888, 0.0
      %v3401 = vmin.f32 %v2889, 0.0
      %v3402 = vmin.f32 %v2890, 0.0
      %v3403 = vmin.f32 %v2891, 0.0
      %v3404 = vmin.f32 %v2892, 0.0
      %v3405 = vmin.f32 %v2893, 0.0
      %v3406 = vmin.f32 %v2894, 0.0
      %v3407 = vmin.f32 %v2895, 0.0
      %v3408 = vmin.f32 %v2896, 0.0
      %v3409 = vmin.f32 %v2897, 0.0
      %v3410 = vmin.f32 %v2898, 0.0
      %v3411 = vmin.f32 %v2899, 0.0
      %v3412 = vmin.f32 %v2900, 0.0
      %v3413 = vmin.f32 %v2901, 0.0
      %v3414 = vmin.f32 %v2902, 0.0
      %v3415 = vmin.f32 %v2903, 0.0
      %v3416 = vmin.f32 %v2904, 0.0
      %v3417 = vmin.f32 %v2905, 0.0
      %v3418 = vmin.f32 %v2906, 0.0
      %v3419 = vmin.f32 %v2907, 0.0
      %v3420 = vmin.f32 %v2908, 0.0
      %v3421 = vmin.f32 %v2909, 0.0
      %v3422 = vmin.f32 %v2910, 0.0
      %v3423 = vmin.f32 %v2911, 0.0
      %v3424 = vmin.f32 %v2912, 0.0
      %v3425 = vmin.f32 %v2913, 0.0
      %v3426 = vmin.f32 %v2914, 0.0
      %v3427 = vmin.f32 %v2915, 0.0
      %v3428 = vmin.f32 %v2916, 0.0
      %v3429 = vmin.f32 %v2917, 0.0
      %v3430 = vmin.f32 %v2918, 0.0
      %v3431 = vmin.f32 %v2919, 0.0
      %v3432 = vmin.f32 %v2920, 0.0
      %v3433 = vmin.f32 %v2921, 0.0
      %v3434 = vmin.f32 %v2922, 0.0
      %v3435 = vmin.f32 %v2923, 0.0
      %v3436 = vmin.f32 %v2924, 0.0
      %v3437 = vmin.f32 %v2925, 0.0
      %v3438 = vmin.f32 %v2926, 0.0
      %v3439 = vmin.f32 %v2927, 0.0
      %v3440 = vmin.f32 %v2928, 0.0
      %v3441 = vmin.f32 %v2929, 0.0
      %v3442 = vmin.f32 %v2930, 0.0
      %v3443 = vmin.f32 %v2931, 0.0
      %v3444 = vmin.f32 %v2932, 0.0
      %v3445 = vmin.f32 %v2933, 0.0
      %v3446 = vmin.f32 %v2934, 0.0
      %v3447 = vmin.f32 %v2935, 0.0
      %v3448 = vmin.f32 %v2936, 0.0
      %v3449 = vmin.f32 %v2937, 0.0
      %v3450 = vmin.f32 %v2938, 0.0
      %v3451 = vmin.f32 %v2939, 0.0
      %v3452 = vmin.f32 %v2940, 0.0
      %v3453 = vmin.f32 %v2941, 0.0
      %v3454 = vmin.f32 %v2942, 0.0
      %v3455 = vmin.f32 %v2943, 0.0
      %v3456 = vmin.f32 %v2944, 0.0
      %v3457 = vmin.f32 %v2945, 0.0
      %v3458 = vmin.f32 %v2946, 0.0
      %v3459 = vmin.f32 %v2947, 0.0
      %v3460 = vmin.f32 %v2948, 0.0
      %v3461 = vmin.f32 %v2949, 0.0
      %v3462 = vmin.f32 %v2950, 0.0
      %v3463 = vmin.f32 %v2951, 0.0
      %v3464 = vmin.f32 %v2952, 0.0
      %v3465 = vmin.f32 %v2953, 0.0
      %v3466 = vmin.f32 %v2954, 0.0
      %v3467 = vmin.f32 %v2955, 0.0
      %v3468 = vmin.f32 %v2956, 0.0
      %v3469 = vmin.f32 %v2957, 0.0
      %v3470 = vmin.f32 %v2958, 0.0
      %v3471 = vmin.f32 %v2959, 0.0
      %v3472 = vmin.f32 %v2960, 0.0
      %v3473 = vmin.f32 %v2961, 0.0
      %v3474 = vmin.f32 %v2962, 0.0
      %v3475 = vmin.f32 %v2963, 0.0
      %v3476 = vmin.f32 %v2964, 0.0
      %v3477 = vmin.f32 %v2965, 0.0
      %v3478 = vmin.f32 %v2966, 0.0
      %v3479 = vmin.f32 %v2967, 0.0
      %v3480 = vmin.f32 %v2968, 0.0
      %v3481 = vmin.f32 %v2969, 0.0
      %v3482 = vmin.f32 %v2970, 0.0
      %v3483 = vmin.f32 %v2971, 0.0
      %v3484 = vmin.f32 %v2972, 0.0
      %v3485 = vmin.f32 %v2973, 0.0
      %v3486 = vmin.f32 %v2974, 0.0
      %v3487 = vmin.f32 %v2975, 0.0
      %v3488 = vmin.f32 %v2976, 0.0
      %v3489 = vmin.f32 %v2977, 0.0
      %v3490 = vmin.f32 %v2978, 0.0
      %v3491 = vmin.f32 %v2979, 0.0
      %v3492 = vmin.f32 %v2980, 0.0
      %v3493 = vmin.f32 %v2981, 0.0
      %v3494 = vmin.f32 %v2982, 0.0
      %v3495 = vmin.f32 %v2983, 0.0
      %v3496 = vmin.f32 %v2984, 0.0
      %v3497 = vmin.f32 %v2985, 0.0
      %v3498 = vmin.f32 %v2986, 0.0
      %v3499 = vmin.f32 %v2987, 0.0
      %v3500 = vmin.f32 %v2988, 0.0
      %v3501 = vmin.f32 %v2989, 0.0
      %v3502 = vmin.f32 %v2990, 0.0
      %v3503 = vmin.f32 %v2991, 0.0
      %v3504 = vmin.f32 %v2992, 0.0
      %v3505 = vmin.f32 %v2993, 0.0
      %v3506 = vmin.f32 %v2994, 0.0
      %v3507 = vmin.f32 %v2995, 0.0
      %v3508 = vmin.f32 %v2996, 0.0
      %v3509 = vmin.f32 %v2997, 0.0
      %v3510 = vmin.f32 %v2998, 0.0
      %v3511 = vmin.f32 %v2999, 0.0
      %v3512 = vmin.f32 %v3000, 0.0
      %v3513 = vmin.f32 %v3001, 0.0
      %v3514 = vmin.f32 %v3002, 0.0
      %v3515 = vmin.f32 %v3003, 0.0
      %v3516 = vmin.f32 %v3004, 0.0
      %v3517 = vmin.f32 %v3005, 0.0
      %v3518 = vmin.f32 %v3006, 0.0
      %v3519 = vmin.f32 %v3007, 0.0
      %v3520 = vmin.f32 %v3008, 0.0
      %v3521 = vmin.f32 %v3009, 0.0
      %v3522 = vmin.f32 %v3010, 0.0
      %v3523 = vmin.f32 %v3011, 0.0
      %v3524 = vmin.f32 %v3012, 0.0
      %v3525 = vmin.f32 %v3013, 0.0
      %v3526 = vmin.f32 %v3014, 0.0
      %v3527 = vmin.f32 %v3015, 0.0
      %v3528 = vmin.f32 %v3016, 0.0
      %v3529 = vmin.f32 %v3017, 0.0
      %v3530 = vmin.f32 %v3018, 0.0
      %v3531 = vmin.f32 %v3019, 0.0
      %v3532 = vmin.f32 %v3020, 0.0
      %v3533 = vmin.f32 %v3021, 0.0
      %v3534 = vmin.f32 %v3022, 0.0
      %v3535 = vmin.f32 %v3023, 0.0
      %v3536 = vmin.f32 %v3024, 0.0
      %v3537 = vmin.f32 %v3025, 0.0
      %v3538 = vmin.f32 %v3026, 0.0
      %v3539 = vmin.f32 %v3027, 0.0
      %v3540 = vmin.f32 %v3028, 0.0
      %v3541 = vmin.f32 %v3029, 0.0
      %v3542 = vmin.f32 %v3030, 0.0
      %v3543 = vmin.f32 %v3031, 0.0
      %v3544 = vmin.f32 %v3032, 0.0
      %v3545 = vmin.f32 %v3033, 0.0
      %v3546 = vmin.f32 %v3034, 0.0
      %v3547 = vmin.f32 %v3035, 0.0
      %v3548 = vmin.f32 %v3036, 0.0
      %v3549 = vmin.f32 %v3037, 0.0
      %v3550 = vmin.f32 %v3038, 0.0
      %v3551 = vmin.f32 %v3039, 0.0
      %v3552 = vmin.f32 %v3040, 0.0
      %v3553 = vmin.f32 %v3041, 0.0
      %v3554 = vmin.f32 %v3042, 0.0
      %v3555 = vmin.f32 %v3043, 0.0
      %v3556 = vmin.f32 %v3044, 0.0
      %v3557 = vmin.f32 %v3045, 0.0
      %v3558 = vmin.f32 %v3046, 0.0
      %v3559 = vmin.f32 %v3047, 0.0
      %v3560 = vmin.f32 %v3048, 0.0
      %v3561 = vmin.f32 %v3049, 0.0
      %v3562 = vmin.f32 %v3050, 0.0
      %v3563 = vmin.f32 %v3051, 0.0
      %v3564 = vmin.f32 %v3052, 0.0
      %v3565 = vmin.f32 %v3053, 0.0
      %v3566 = vmin.f32 %v3054, 0.0
      %v3567 = vmin.f32 %v3055, 0.0
      %v3568 = vmin.f32 %v3056, 0.0
      %v3569 = vmin.f32 %v3057, 0.0
      %v3570 = vmin.f32 %v3058, 0.0
      %v3571 = vmin.f32 %v3059, 0.0
      %v3572 = vmin.f32 %v3060, 0.0
      %v3573 = vmin.f32 %v3061, 0.0
      %v3574 = vmin.f32 %v3062, 0.0
      %v3575 = vmin.f32 %v3063, 0.0
      %v3576 = vmin.f32 %v3064, 0.0
      %v3577 = vmin.f32 %v3065, 0.0
      %v3578 = vmin.f32 %v3066, 0.0
      %v3579 = vmin.f32 %v3067, 0.0
      %v3580 = vmin.f32 %v3068, 0.0
      %v3581 = vmin.f32 %v3069, 0.0
      %v3582 = vmin.f32 %v3070, 0.0
      %v3583 = vmin.f32 %v3071, 0.0
      %v3584 = vmin.f32 %v3072, 0.0
      %v3585 = vmin.f32 %v3073, 0.0
      %v3586 = vmin.f32 %v3074, 0.0
      %v3587 = vmin.f32 %v3075, 0.0
      %v3588 = vmin.f32 %v3076, 0.0
      %v3589 = vmin.f32 %v3077, 0.0
      %v3590 = vmin.f32 %v3078, 0.0
      %v3591 = vmin.f32 %v3079, 0.0
      %v3592 = vmin.f32 %v3080, 0.0
      %v3593 = vmin.f32 %v3081, 0.0
      %v3594 = vmin.f32 %v3082, 0.0
      %v3595 = vmin.f32 %v3083, 0.0
      %v3596 = vmin.f32 %v3084, 0.0
      %v3597 = vmin.f32 %v3085, 0.0
      %v3598 = vmin.f32 %v3086, 0.0
      %v3599 = vmin.f32 %v3087, 0.0
      %v3600 = vmin.f32 %v3088, 0.0
      %v3601 = vmin.f32 %v3089, 0.0
      %v3602 = vmin.f32 %v3090, 0.0
      %v3603 = vmin.f32 %v3091, 0.0
      %v3604 = vmin.f32 %v3092, 0.0
      %v3605 = vmin.f32 %v3093, 0.0
      %v3606 = vmin.f32 %v3094, 0.0
      %v3607 = vmin.f32 %v3095, 0.0
      %v3608 = vmin.f32 %v3096, 0.0
      %v3609 = vmin.f32 %v3097, 0.0
      %v3610 = vmin.f32 %v3098, 0.0
      %v3611 = vmin.f32 %v3099, 0.0
      %v3612 = vmin.f32 %v3100, 0.0
      %v3613 = vmin.f32 %v3101, 0.0
      %v3614 = vmin.f32 %v3102, 0.0
      %v3615 = vmin.f32 %v3103, 0.0
      %v3616 = vmin.f32 %v3104, 0.0
      %v3617 = vmin.f32 %v3105, 0.0
      %v3618 = vmin.f32 %v3106, 0.0
      %v3619 = vmin.f32 %v3107, 0.0
      %v3620 = vmin.f32 %v3108, 0.0
      %v3621 = vmin.f32 %v3109, 0.0
      %v3622 = vmin.f32 %v3110, 0.0
      %v3623 = vmin.f32 %v3111, 0.0
      %v3624 = vmin.f32 %v3112, 0.0
      %v3625 = vmin.f32 %v3113, 0.0
      %v3626 = vmin.f32 %v3114, 0.0
      %v3627 = vmin.f32 %v3115, 0.0
      %v3628 = vmin.f32 %v3116, 0.0
      %v3629 = vmin.f32 %v3117, 0.0
      %v3630 = vmin.f32 %v3118, 0.0
      %v3631 = vmin.f32 %v3119, 0.0
      %v3632 = vmul.f32 %v3376, 1.442695
      %v3633 = vpow.pop %v3632
      %v3634 = vmul.f32 %v3377, 1.442695
      %v3635 = vpow.pop %v3634
      %v3636 = vmul.f32 %v3378, 1.442695
      %v3637 = vpow.pop %v3636
      %v3638 = vmul.f32 %v3379, 1.442695
      %v3639 = vpow.pop %v3638
      %v3640 = vmul.f32 %v3380, 1.442695
      %v3641 = vpow.pop %v3640
      %v3642 = vmul.f32 %v3381, 1.442695
      %v3643 = vpow.pop %v3642
      %v3644 = vmul.f32 %v3382, 1.442695
      %v3645 = vpow.pop %v3644
      %v3646 = vmul.f32 %v3383, 1.442695
      %v3647 = vpow.pop %v3646
      %v3648 = vmul.f32 %v3384, 1.442695
      %v3649 = vpow.pop %v3648
      %v3650 = vmul.f32 %v3385, 1.442695
      %v3651 = vpow.pop %v3650
      %v3652 = vmul.f32 %v3386, 1.442695
      %v3653 = vpow.pop %v3652
      %v3654 = vmul.f32 %v3387, 1.442695
      %v3655 = vpow.pop %v3654
      %v3656 = vmul.f32 %v3388, 1.442695
      %v3657 = vpow.pop %v3656
      %v3658 = vmul.f32 %v3389, 1.442695
      %v3659 = vpow.pop %v3658
      %v3660 = vmul.f32 %v3390, 1.442695
      %v3661 = vpow.pop %v3660
      %v3662 = vmul.f32 %v3391, 1.442695
      %v3663 = vpow.pop %v3662
      %v3664 = vmul.f32 %v3392, 1.442695
      %v3665 = vpow.pop %v3664
      %v3666 = vmul.f32 %v3393, 1.442695
      %v3667 = vpow.pop %v3666
      %v3668 = vmul.f32 %v3394, 1.442695
      %v3669 = vpow.pop %v3668
      %v3670 = vmul.f32 %v3395, 1.442695
      %v3671 = vpow.pop %v3670
      %v3672 = vmul.f32 %v3396, 1.442695
      %v3673 = vpow.pop %v3672
      %v3674 = vmul.f32 %v3397, 1.442695
      %v3675 = vpow.pop %v3674
      %v3676 = vmul.f32 %v3398, 1.442695
      %v3677 = vpow.pop %v3676
      %v3678 = vmul.f32 %v3399, 1.442695
      %v3679 = vpow.pop %v3678
      %v3680 = vmul.f32 %v3400, 1.442695
      %v3681 = vpow.pop %v3680
      %v3682 = vmul.f32 %v3401, 1.442695
      %v3683 = vpow.pop %v3682
      %v3684 = vmul.f32 %v3402, 1.442695
      %v3685 = vpow.pop %v3684
      %v3686 = vmul.f32 %v3403, 1.442695
      %v3687 = vpow.pop %v3686
      %v3688 = vmul.f32 %v3404, 1.442695
      %v3689 = vpow.pop %v3688
      %v3690 = vmul.f32 %v3405, 1.442695
      %v3691 = vpow.pop %v3690
      %v3692 = vmul.f32 %v3406, 1.442695
      %v3693 = vpow.pop %v3692
      %v3694 = vmul.f32 %v3407, 1.442695
      %v3695 = vpow.pop %v3694
      %v3696 = vmul.f32 %v3408, 1.442695
      %v3697 = vpow.pop %v3696
      %v3698 = vmul.f32 %v3409, 1.442695
      %v3699 = vpow.pop %v3698
      %v3700 = vmul.f32 %v3410, 1.442695
      %v3701 = vpow.pop %v3700
      %v3702 = vmul.f32 %v3411, 1.442695
      %v3703 = vpow.pop %v3702
      %v3704 = vmul.f32 %v3412, 1.442695
      %v3705 = vpow.pop %v3704
      %v3706 = vmul.f32 %v3413, 1.442695
      %v3707 = vpow.pop %v3706
      %v3708 = vmul.f32 %v3414, 1.442695
      %v3709 = vpow.pop %v3708
      %v3710 = vmul.f32 %v3415, 1.442695
      %v3711 = vpow.pop %v3710
      %v3712 = vmul.f32 %v3416, 1.442695
      %v3713 = vpow.pop %v3712
      %v3714 = vmul.f32 %v3417, 1.442695
      %v3715 = vpow.pop %v3714
      %v3716 = vmul.f32 %v3418, 1.442695
      %v3717 = vpow.pop %v3716
      %v3718 = vmul.f32 %v3419, 1.442695
      %v3719 = vpow.pop %v3718
      %v3720 = vmul.f32 %v3420, 1.442695
      %v3721 = vpow.pop %v3720
      %v3722 = vmul.f32 %v3421, 1.442695
      %v3723 = vpow.pop %v3722
      %v3724 = vmul.f32 %v3422, 1.442695
      %v3725 = vpow.pop %v3724
      %v3726 = vmul.f32 %v3423, 1.442695
      %v3727 = vpow.pop %v3726
      %v3728 = vmul.f32 %v3424, 1.442695
      %v3729 = vpow.pop %v3728
      %v3730 = vmul.f32 %v3425, 1.442695
      %v3731 = vpow.pop %v3730
      %v3732 = vmul.f32 %v3426, 1.442695
      %v3733 = vpow.pop %v3732
      %v3734 = vmul.f32 %v3427, 1.442695
      %v3735 = vpow.pop %v3734
      %v3736 = vmul.f32 %v3428, 1.442695
      %v3737 = vpow.pop %v3736
      %v3738 = vmul.f32 %v3429, 1.442695
      %v3739 = vpow.pop %v3738
      %v3740 = vmul.f32 %v3430, 1.442695
      %v3741 = vpow.pop %v3740
      %v3742 = vmul.f32 %v3431, 1.442695
      %v3743 = vpow.pop %v3742
      %v3744 = vmul.f32 %v3432, 1.442695
      %v3745 = vpow.pop %v3744
      %v3746 = vmul.f32 %v3433, 1.442695
      %v3747 = vpow.pop %v3746
      %v3748 = vmul.f32 %v3434, 1.442695
      %v3749 = vpow.pop %v3748
      %v3750 = vmul.f32 %v3435, 1.442695
      %v3751 = vpow.pop %v3750
      %v3752 = vmul.f32 %v3436, 1.442695
      %v3753 = vpow.pop %v3752
      %v3754 = vmul.f32 %v3437, 1.442695
      %v3755 = vpow.pop %v3754
      %v3756 = vmul.f32 %v3438, 1.442695
      %v3757 = vpow.pop %v3756
      %v3758 = vmul.f32 %v3439, 1.442695
      %v3759 = vpow.pop %v3758
      %v3760 = vmul.f32 %v3440, 1.442695
      %v3761 = vpow.pop %v3760
      %v3762 = vmul.f32 %v3441, 1.442695
      %v3763 = vpow.pop %v3762
      %v3764 = vmul.f32 %v3442, 1.442695
      %v3765 = vpow.pop %v3764
      %v3766 = vmul.f32 %v3443, 1.442695
      %v3767 = vpow.pop %v3766
      %v3768 = vmul.f32 %v3444, 1.442695
      %v3769 = vpow.pop %v3768
      %v3770 = vmul.f32 %v3445, 1.442695
      %v3771 = vpow.pop %v3770
      %v3772 = vmul.f32 %v3446, 1.442695
      %v3773 = vpow.pop %v3772
      %v3774 = vmul.f32 %v3447, 1.442695
      %v3775 = vpow.pop %v3774
      %v3776 = vmul.f32 %v3448, 1.442695
      %v3777 = vpow.pop %v3776
      %v3778 = vmul.f32 %v3449, 1.442695
      %v3779 = vpow.pop %v3778
      %v3780 = vmul.f32 %v3450, 1.442695
      %v3781 = vpow.pop %v3780
      %v3782 = vmul.f32 %v3451, 1.442695
      %v3783 = vpow.pop %v3782
      %v3784 = vmul.f32 %v3452, 1.442695
      %v3785 = vpow.pop %v3784
      %v3786 = vmul.f32 %v3453, 1.442695
      %v3787 = vpow.pop %v3786
      %v3788 = vmul.f32 %v3454, 1.442695
      %v3789 = vpow.pop %v3788
      %v3790 = vmul.f32 %v3455, 1.442695
      %v3791 = vpow.pop %v3790
      %v3792 = vmul.f32 %v3456, 1.442695
      %v3793 = vpow.pop %v3792
      %v3794 = vmul.f32 %v3457, 1.442695
      %v3795 = vpow.pop %v3794
      %v3796 = vmul.f32 %v3458, 1.442695
      %v3797 = vpow.pop %v3796
      %v3798 = vmul.f32 %v3459, 1.442695
      %v3799 = vpow.pop %v3798
      %v3800 = vmul.f32 %v3460, 1.442695
      %v3801 = vpow.pop %v3800
      %v3802 = vmul.f32 %v3461, 1.442695
      %v3803 = vpow.pop %v3802
      %v3804 = vmul.f32 %v3462, 1.442695
      %v3805 = vpow.pop %v3804
      %v3806 = vmul.f32 %v3463, 1.442695
      %v3807 = vpow.pop %v3806
      %v3808 = vmul.f32 %v3464, 1.442695
      %v3809 = vpow.pop %v3808
      %v3810 = vmul.f32 %v3465, 1.442695
      %v3811 = vpow.pop %v3810
      %v3812 = vmul.f32 %v3466, 1.442695
      %v3813 = vpow.pop %v3812
      %v3814 = vmul.f32 %v3467, 1.442695
      %v3815 = vpow.pop %v3814
      %v3816 = vmul.f32 %v3468, 1.442695
      %v3817 = vpow.pop %v3816
      %v3818 = vmul.f32 %v3469, 1.442695
      %v3819 = vpow.pop %v3818
      %v3820 = vmul.f32 %v3470, 1.442695
      %v3821 = vpow.pop %v3820
      %v3822 = vmul.f32 %v3471, 1.442695
      %v3823 = vpow.pop %v3822
      %v3824 = vmul.f32 %v3472, 1.442695
      %v3825 = vpow.pop %v3824
      %v3826 = vmul.f32 %v3473, 1.442695
      %v3827 = vpow.pop %v3826
      %v3828 = vmul.f32 %v3474, 1.442695
      %v3829 = vpow.pop %v3828
      %v3830 = vmul.f32 %v3475, 1.442695
      %v3831 = vpow.pop %v3830
      %v3832 = vmul.f32 %v3476, 1.442695
      %v3833 = vpow.pop %v3832
      %v3834 = vmul.f32 %v3477, 1.442695
      %v3835 = vpow.pop %v3834
      %v3836 = vmul.f32 %v3478, 1.442695
      %v3837 = vpow.pop %v3836
      %v3838 = vmul.f32 %v3479, 1.442695
      %v3839 = vpow.pop %v3838
      %v3840 = vmul.f32 %v3480, 1.442695
      %v3841 = vpow.pop %v3840
      %v3842 = vmul.f32 %v3481, 1.442695
      %v3843 = vpow.pop %v3842
      %v3844 = vmul.f32 %v3482, 1.442695
      %v3845 = vpow.pop %v3844
      %v3846 = vmul.f32 %v3483, 1.442695
      %v3847 = vpow.pop %v3846
      %v3848 = vmul.f32 %v3484, 1.442695
      %v3849 = vpow.pop %v3848
      %v3850 = vmul.f32 %v3485, 1.442695
      %v3851 = vpow.pop %v3850
      %v3852 = vmul.f32 %v3486, 1.442695
      %v3853 = vpow.pop %v3852
      %v3854 = vmul.f32 %v3487, 1.442695
      %v3855 = vpow.pop %v3854
      %v3856 = vmul.f32 %v3488, 1.442695
      %v3857 = vpow.pop %v3856
      %v3858 = vmul.f32 %v3489, 1.442695
      %v3859 = vpow.pop %v3858
      %v3860 = vmul.f32 %v3490, 1.442695
      %v3861 = vpow.pop %v3860
      %v3862 = vmul.f32 %v3491, 1.442695
      %v3863 = vpow.pop %v3862
      %v3864 = vmul.f32 %v3492, 1.442695
      %v3865 = vpow.pop %v3864
      %v3866 = vmul.f32 %v3493, 1.442695
      %v3867 = vpow.pop %v3866
      %v3868 = vmul.f32 %v3494, 1.442695
      %v3869 = vpow.pop %v3868
      %v3870 = vmul.f32 %v3495, 1.442695
      %v3871 = vpow.pop %v3870
      %v3872 = vmul.f32 %v3496, 1.442695
      %v3873 = vpow.pop %v3872
      %v3874 = vmul.f32 %v3497, 1.442695
      %v3875 = vpow.pop %v3874
      %v3876 = vmul.f32 %v3498, 1.442695
      %v3877 = vpow.pop %v3876
      %v3878 = vmul.f32 %v3499, 1.442695
      %v3879 = vpow.pop %v3878
      %v3880 = vmul.f32 %v3500, 1.442695
      %v3881 = vpow.pop %v3880
      %v3882 = vmul.f32 %v3501, 1.442695
      %v3883 = vpow.pop %v3882
      %v3884 = vmul.f32 %v3502, 1.442695
      %v3885 = vpow.pop %v3884
      %v3886 = vmul.f32 %v3503, 1.442695
      %v3887 = vpow.pop %v3886
      %v3888 = vmul.f32 %v3504, 1.442695
      %v3889 = vpow.pop %v3888
      %v3890 = vmul.f32 %v3505, 1.442695
      %v3891 = vpow.pop %v3890
      %v3892 = vmul.f32 %v3506, 1.442695
      %v3893 = vpow.pop %v3892
      %v3894 = vmul.f32 %v3507, 1.442695
      %v3895 = vpow.pop %v3894
      %v3896 = vmul.f32 %v3508, 1.442695
      %v3897 = vpow.pop %v3896
      %v3898 = vmul.f32 %v3509, 1.442695
      %v3899 = vpow.pop %v3898
      %v3900 = vmul.f32 %v3510, 1.442695
      %v3901 = vpow.pop %v3900
      %v3902 = vmul.f32 %v3511, 1.442695
      %v3903 = vpow.pop %v3902
      %v3904 = vmul.f32 %v3512, 1.442695
      %v3905 = vpow.pop %v3904
      %v3906 = vmul.f32 %v3513, 1.442695
      %v3907 = vpow.pop %v3906
      %v3908 = vmul.f32 %v3514, 1.442695
      %v3909 = vpow.pop %v3908
      %v3910 = vmul.f32 %v3515, 1.442695
      %v3911 = vpow.pop %v3910
      %v3912 = vmul.f32 %v3516, 1.442695
      %v3913 = vpow.pop %v3912
      %v3914 = vmul.f32 %v3517, 1.442695
      %v3915 = vpow.pop %v3914
      %v3916 = vmul.f32 %v3518, 1.442695
      %v3917 = vpow.pop %v3916
      %v3918 = vmul.f32 %v3519, 1.442695
      %v3919 = vpow.pop %v3918
      %v3920 = vmul.f32 %v3520, 1.442695
      %v3921 = vpow.pop %v3920
      %v3922 = vmul.f32 %v3521, 1.442695
      %v3923 = vpow.pop %v3922
      %v3924 = vmul.f32 %v3522, 1.442695
      %v3925 = vpow.pop %v3924
      %v3926 = vmul.f32 %v3523, 1.442695
      %v3927 = vpow.pop %v3926
      %v3928 = vmul.f32 %v3524, 1.442695
      %v3929 = vpow.pop %v3928
      %v3930 = vmul.f32 %v3525, 1.442695
      %v3931 = vpow.pop %v3930
      %v3932 = vmul.f32 %v3526, 1.442695
      %v3933 = vpow.pop %v3932
      %v3934 = vmul.f32 %v3527, 1.442695
      %v3935 = vpow.pop %v3934
      %v3936 = vmul.f32 %v3528, 1.442695
      %v3937 = vpow.pop %v3936
      %v3938 = vmul.f32 %v3529, 1.442695
      %v3939 = vpow.pop %v3938
      %v3940 = vmul.f32 %v3530, 1.442695
      %v3941 = vpow.pop %v3940
      %v3942 = vmul.f32 %v3531, 1.442695
      %v3943 = vpow.pop %v3942
      %v3944 = vmul.f32 %v3532, 1.442695
      %v3945 = vpow.pop %v3944
      %v3946 = vmul.f32 %v3533, 1.442695
      %v3947 = vpow.pop %v3946
      %v3948 = vmul.f32 %v3534, 1.442695
      %v3949 = vpow.pop %v3948
      %v3950 = vmul.f32 %v3535, 1.442695
      %v3951 = vpow.pop %v3950
      %v3952 = vmul.f32 %v3536, 1.442695
      %v3953 = vpow.pop %v3952
      %v3954 = vmul.f32 %v3537, 1.442695
      %v3955 = vpow.pop %v3954
      %v3956 = vmul.f32 %v3538, 1.442695
      %v3957 = vpow.pop %v3956
      %v3958 = vmul.f32 %v3539, 1.442695
      %v3959 = vpow.pop %v3958
      %v3960 = vmul.f32 %v3540, 1.442695
      %v3961 = vpow.pop %v3960
      %v3962 = vmul.f32 %v3541, 1.442695
      %v3963 = vpow.pop %v3962
      %v3964 = vmul.f32 %v3542, 1.442695
      %v3965 = vpow.pop %v3964
      %v3966 = vmul.f32 %v3543, 1.442695
      %v3967 = vpow.pop %v3966
      %v3968 = vmul.f32 %v3544, 1.442695
      %v3969 = vpow.pop %v3968
      %v3970 = vmul.f32 %v3545, 1.442695
      %v3971 = vpow.pop %v3970
      %v3972 = vmul.f32 %v3546, 1.442695
      %v3973 = vpow.pop %v3972
      %v3974 = vmul.f32 %v3547, 1.442695
      %v3975 = vpow.pop %v3974
      %v3976 = vmul.f32 %v3548, 1.442695
      %v3977 = vpow.pop %v3976
      %v3978 = vmul.f32 %v3549, 1.442695
      %v3979 = vpow.pop %v3978
      %v3980 = vmul.f32 %v3550, 1.442695
      %v3981 = vpow.pop %v3980
      %v3982 = vmul.f32 %v3551, 1.442695
      %v3983 = vpow.pop %v3982
      %v3984 = vmul.f32 %v3552, 1.442695
      %v3985 = vpow.pop %v3984
      %v3986 = vmul.f32 %v3553, 1.442695
      %v3987 = vpow.pop %v3986
      %v3988 = vmul.f32 %v3554, 1.442695
      %v3989 = vpow.pop %v3988
      %v3990 = vmul.f32 %v3555, 1.442695
      %v3991 = vpow.pop %v3990
      %v3992 = vmul.f32 %v3556, 1.442695
      %v3993 = vpow.pop %v3992
      %v3994 = vmul.f32 %v3557, 1.442695
      %v3995 = vpow.pop %v3994
      %v3996 = vmul.f32 %v3558, 1.442695
      %v3997 = vpow.pop %v3996
      %v3998 = vmul.f32 %v3559, 1.442695
      %v3999 = vpow.pop %v3998
      %v4000 = vmul.f32 %v3560, 1.442695
      %v4001 = vpow.pop %v4000
      %v4002 = vmul.f32 %v3561, 1.442695
      %v4003 = vpow.pop %v4002
      %v4004 = vmul.f32 %v3562, 1.442695
      %v4005 = vpow.pop %v4004
      %v4006 = vmul.f32 %v3563, 1.442695
      %v4007 = vpow.pop %v4006
      %v4008 = vmul.f32 %v3564, 1.442695
      %v4009 = vpow.pop %v4008
      %v4010 = vmul.f32 %v3565, 1.442695
      %v4011 = vpow.pop %v4010
      %v4012 = vmul.f32 %v3566, 1.442695
      %v4013 = vpow.pop %v4012
      %v4014 = vmul.f32 %v3567, 1.442695
      %v4015 = vpow.pop %v4014
      %v4016 = vmul.f32 %v3568, 1.442695
      %v4017 = vpow.pop %v4016
      %v4018 = vmul.f32 %v3569, 1.442695
      %v4019 = vpow.pop %v4018
      %v4020 = vmul.f32 %v3570, 1.442695
      %v4021 = vpow.pop %v4020
      %v4022 = vmul.f32 %v3571, 1.442695
      %v4023 = vpow.pop %v4022
      %v4024 = vmul.f32 %v3572, 1.442695
      %v4025 = vpow.pop %v4024
      %v4026 = vmul.f32 %v3573, 1.442695
      %v4027 = vpow.pop %v4026
      %v4028 = vmul.f32 %v3574, 1.442695
      %v4029 = vpow.pop %v4028
      %v4030 = vmul.f32 %v3575, 1.442695
      %v4031 = vpow.pop %v4030
      %v4032 = vmul.f32 %v3576, 1.442695
      %v4033 = vpow.pop %v4032
      %v4034 = vmul.f32 %v3577, 1.442695
      %v4035 = vpow.pop %v4034
      %v4036 = vmul.f32 %v3578, 1.442695
      %v4037 = vpow.pop %v4036
      %v4038 = vmul.f32 %v3579, 1.442695
      %v4039 = vpow.pop %v4038
      %v4040 = vmul.f32 %v3580, 1.442695
      %v4041 = vpow.pop %v4040
      %v4042 = vmul.f32 %v3581, 1.442695
      %v4043 = vpow.pop %v4042
      %v4044 = vmul.f32 %v3582, 1.442695
      %v4045 = vpow.pop %v4044
      %v4046 = vmul.f32 %v3583, 1.442695
      %v4047 = vpow.pop %v4046
      %v4048 = vmul.f32 %v3584, 1.442695
      %v4049 = vpow.pop %v4048
      %v4050 = vmul.f32 %v3585, 1.442695
      %v4051 = vpow.pop %v4050
      %v4052 = vmul.f32 %v3586, 1.442695
      %v4053 = vpow.pop %v4052
      %v4054 = vmul.f32 %v3587, 1.442695
      %v4055 = vpow.pop %v4054
      %v4056 = vmul.f32 %v3588, 1.442695
      %v4057 = vpow.pop %v4056
      %v4058 = vmul.f32 %v3589, 1.442695
      %v4059 = vpow.pop %v4058
      %v4060 = vmul.f32 %v3590, 1.442695
      %v4061 = vpow.pop %v4060
      %v4062 = vmul.f32 %v3591, 1.442695
      %v4063 = vpow.pop %v4062
      %v4064 = vmul.f32 %v3592, 1.442695
      %v4065 = vpow.pop %v4064
      %v4066 = vmul.f32 %v3593, 1.442695
      %v4067 = vpow.pop %v4066
      %v4068 = vmul.f32 %v3594, 1.442695
      %v4069 = vpow.pop %v4068
      %v4070 = vmul.f32 %v3595, 1.442695
      %v4071 = vpow.pop %v4070
      %v4072 = vmul.f32 %v3596, 1.442695
      %v4073 = vpow.pop %v4072
      %v4074 = vmul.f32 %v3597, 1.442695
      %v4075 = vpow.pop %v4074
      %v4076 = vmul.f32 %v3598, 1.442695
      %v4077 = vpow.pop %v4076
      %v4078 = vmul.f32 %v3599, 1.442695
      %v4079 = vpow.pop %v4078
      %v4080 = vmul.f32 %v3600, 1.442695
      %v4081 = vpow.pop %v4080
      %v4082 = vmul.f32 %v3601, 1.442695
      %v4083 = vpow.pop %v4082
      %v4084 = vmul.f32 %v3602, 1.442695
      %v4085 = vpow.pop %v4084
      %v4086 = vmul.f32 %v3603, 1.442695
      %v4087 = vpow.pop %v4086
      %v4088 = vmul.f32 %v3604, 1.442695
      %v4089 = vpow.pop %v4088
      %v4090 = vmul.f32 %v3605, 1.442695
      %v4091 = vpow.pop %v4090
      %v4092 = vmul.f32 %v3606, 1.442695
      %v4093 = vpow.pop %v4092
      %v4094 = vmul.f32 %v3607, 1.442695
      %v4095 = vpow.pop %v4094
      %v4096 = vmul.f32 %v3608, 1.442695
      %v4097 = vpow.pop %v4096
      %v4098 = vmul.f32 %v3609, 1.442695
      %v4099 = vpow.pop %v4098
      %v4100 = vmul.f32 %v3610, 1.442695
      %v4101 = vpow.pop %v4100
      %v4102 = vmul.f32 %v3611, 1.442695
      %v4103 = vpow.pop %v4102
      %v4104 = vmul.f32 %v3612, 1.442695
      %v4105 = vpow.pop %v4104
      %v4106 = vmul.f32 %v3613, 1.442695
      %v4107 = vpow.pop %v4106
      %v4108 = vmul.f32 %v3614, 1.442695
      %v4109 = vpow.pop %v4108
      %v4110 = vmul.f32 %v3615, 1.442695
      %v4111 = vpow.pop %v4110
      %v4112 = vmul.f32 %v3616, 1.442695
      %v4113 = vpow.pop %v4112
      %v4114 = vmul.f32 %v3617, 1.442695
      %v4115 = vpow.pop %v4114
      %v4116 = vmul.f32 %v3618, 1.442695
      %v4117 = vpow.pop %v4116
      %v4118 = vmul.f32 %v3619, 1.442695
      %v4119 = vpow.pop %v4118
      %v4120 = vmul.f32 %v3620, 1.442695
      %v4121 = vpow.pop %v4120
      %v4122 = vmul.f32 %v3621, 1.442695
      %v4123 = vpow.pop %v4122
      %v4124 = vmul.f32 %v3622, 1.442695
      %v4125 = vpow.pop %v4124
      %v4126 = vmul.f32 %v3623, 1.442695
      %v4127 = vpow.pop %v4126
      %v4128 = vmul.f32 %v3624, 1.442695
      %v4129 = vpow.pop %v4128
      %v4130 = vmul.f32 %v3625, 1.442695
      %v4131 = vpow.pop %v4130
      %v4132 = vmul.f32 %v3626, 1.442695
      %v4133 = vpow.pop %v4132
      %v4134 = vmul.f32 %v3627, 1.442695
      %v4135 = vpow.pop %v4134
      %v4136 = vmul.f32 %v3628, 1.442695
      %v4137 = vpow.pop %v4136
      %v4138 = vmul.f32 %v3629, 1.442695
      %v4139 = vpow.pop %v4138
      %v4140 = vmul.f32 %v3630, 1.442695
      %v4141 = vpow.pop %v4140
      %v4142 = vmul.f32 %v3631, 1.442695
      %v4143 = vpow.pop %v4142
      %v4144 = vsub.f32 %v3633, 1.0
      %v4145 = vsub.f32 %v3635, 1.0
      %v4146 = vsub.f32 %v3637, 1.0
      %v4147 = vsub.f32 %v3639, 1.0
      %v4148 = vsub.f32 %v3641, 1.0
      %v4149 = vsub.f32 %v3643, 1.0
      %v4150 = vsub.f32 %v3645, 1.0
      %v4151 = vsub.f32 %v3647, 1.0
      %v4152 = vsub.f32 %v3649, 1.0
      %v4153 = vsub.f32 %v3651, 1.0
      %v4154 = vsub.f32 %v3653, 1.0
      %v4155 = vsub.f32 %v3655, 1.0
      %v4156 = vsub.f32 %v3657, 1.0
      %v4157 = vsub.f32 %v3659, 1.0
      %v4158 = vsub.f32 %v3661, 1.0
      %v4159 = vsub.f32 %v3663, 1.0
      %v4160 = vsub.f32 %v3665, 1.0
      %v4161 = vsub.f32 %v3667, 1.0
      %v4162 = vsub.f32 %v3669, 1.0
      %v4163 = vsub.f32 %v3671, 1.0
      %v4164 = vsub.f32 %v3673, 1.0
      %v4165 = vsub.f32 %v3675, 1.0
      %v4166 = vsub.f32 %v3677, 1.0
      %v4167 = vsub.f32 %v3679, 1.0
      %v4168 = vsub.f32 %v3681, 1.0
      %v4169 = vsub.f32 %v3683, 1.0
      %v4170 = vsub.f32 %v3685, 1.0
      %v4171 = vsub.f32 %v3687, 1.0
      %v4172 = vsub.f32 %v3689, 1.0
      %v4173 = vsub.f32 %v3691, 1.0
      %v4174 = vsub.f32 %v3693, 1.0
      %v4175 = vsub.f32 %v3695, 1.0
      %v4176 = vsub.f32 %v3697, 1.0
      %v4177 = vsub.f32 %v3699, 1.0
      %v4178 = vsub.f32 %v3701, 1.0
      %v4179 = vsub.f32 %v3703, 1.0
      %v4180 = vsub.f32 %v3705, 1.0
      %v4181 = vsub.f32 %v3707, 1.0
      %v4182 = vsub.f32 %v3709, 1.0
      %v4183 = vsub.f32 %v3711, 1.0
      %v4184 = vsub.f32 %v3713, 1.0
      %v4185 = vsub.f32 %v3715, 1.0
      %v4186 = vsub.f32 %v3717, 1.0
      %v4187 = vsub.f32 %v3719, 1.0
      %v4188 = vsub.f32 %v3721, 1.0
      %v4189 = vsub.f32 %v3723, 1.0
      %v4190 = vsub.f32 %v3725, 1.0
      %v4191 = vsub.f32 %v3727, 1.0
      %v4192 = vsub.f32 %v3729, 1.0
      %v4193 = vsub.f32 %v3731, 1.0
      %v4194 = vsub.f32 %v3733, 1.0
      %v4195 = vsub.f32 %v3735, 1.0
      %v4196 = vsub.f32 %v3737, 1.0
      %v4197 = vsub.f32 %v3739, 1.0
      %v4198 = vsub.f32 %v3741, 1.0
      %v4199 = vsub.f32 %v3743, 1.0
      %v4200 = vsub.f32 %v3745, 1.0
      %v4201 = vsub.f32 %v3747, 1.0
      %v4202 = vsub.f32 %v3749, 1.0
      %v4203 = vsub.f32 %v3751, 1.0
      %v4204 = vsub.f32 %v3753, 1.0
      %v4205 = vsub.f32 %v3755, 1.0
      %v4206 = vsub.f32 %v3757, 1.0
      %v4207 = vsub.f32 %v3759, 1.0
      %v4208 = vsub.f32 %v3761, 1.0
      %v4209 = vsub.f32 %v3763, 1.0
      %v4210 = vsub.f32 %v3765, 1.0
      %v4211 = vsub.f32 %v3767, 1.0
      %v4212 = vsub.f32 %v3769, 1.0
      %v4213 = vsub.f32 %v3771, 1.0
      %v4214 = vsub.f32 %v3773, 1.0
      %v4215 = vsub.f32 %v3775, 1.0
      %v4216 = vsub.f32 %v3777, 1.0
      %v4217 = vsub.f32 %v3779, 1.0
      %v4218 = vsub.f32 %v3781, 1.0
      %v4219 = vsub.f32 %v3783, 1.0
      %v4220 = vsub.f32 %v3785, 1.0
      %v4221 = vsub.f32 %v3787, 1.0
      %v4222 = vsub.f32 %v3789, 1.0
      %v4223 = vsub.f32 %v3791, 1.0
      %v4224 = vsub.f32 %v3793, 1.0
      %v4225 = vsub.f32 %v3795, 1.0
      %v4226 = vsub.f32 %v3797, 1.0
      %v4227 = vsub.f32 %v3799, 1.0
      %v4228 = vsub.f32 %v3801, 1.0
      %v4229 = vsub.f32 %v3803, 1.0
      %v4230 = vsub.f32 %v3805, 1.0
      %v4231 = vsub.f32 %v3807, 1.0
      %v4232 = vsub.f32 %v3809, 1.0
      %v4233 = vsub.f32 %v3811, 1.0
      %v4234 = vsub.f32 %v3813, 1.0
      %v4235 = vsub.f32 %v3815, 1.0
      %v4236 = vsub.f32 %v3817, 1.0
      %v4237 = vsub.f32 %v3819, 1.0
      %v4238 = vsub.f32 %v3821, 1.0
      %v4239 = vsub.f32 %v3823, 1.0
      %v4240 = vsub.f32 %v3825, 1.0
      %v4241 = vsub.f32 %v3827, 1.0
      %v4242 = vsub.f32 %v3829, 1.0
      %v4243 = vsub.f32 %v3831, 1.0
      %v4244 = vsub.f32 %v3833, 1.0
      %v4245 = vsub.f32 %v3835, 1.0
      %v4246 = vsub.f32 %v3837, 1.0
      %v4247 = vsub.f32 %v3839, 1.0
      %v4248 = vsub.f32 %v3841, 1.0
      %v4249 = vsub.f32 %v3843, 1.0
      %v4250 = vsub.f32 %v3845, 1.0
      %v4251 = vsub.f32 %v3847, 1.0
      %v4252 = vsub.f32 %v3849, 1.0
      %v4253 = vsub.f32 %v3851, 1.0
      %v4254 = vsub.f32 %v3853, 1.0
      %v4255 = vsub.f32 %v3855, 1.0
      %v4256 = vsub.f32 %v3857, 1.0
      %v4257 = vsub.f32 %v3859, 1.0
      %v4258 = vsub.f32 %v3861, 1.0
      %v4259 = vsub.f32 %v3863, 1.0
      %v4260 = vsub.f32 %v3865, 1.0
      %v4261 = vsub.f32 %v3867, 1.0
      %v4262 = vsub.f32 %v3869, 1.0
      %v4263 = vsub.f32 %v3871, 1.0
      %v4264 = vsub.f32 %v3873, 1.0
      %v4265 = vsub.f32 %v3875, 1.0
      %v4266 = vsub.f32 %v3877, 1.0
      %v4267 = vsub.f32 %v3879, 1.0
      %v4268 = vsub.f32 %v3881, 1.0
      %v4269 = vsub.f32 %v3883, 1.0
      %v4270 = vsub.f32 %v3885, 1.0
      %v4271 = vsub.f32 %v3887, 1.0
      %v4272 = vsub.f32 %v3889, 1.0
      %v4273 = vsub.f32 %v3891, 1.0
      %v4274 = vsub.f32 %v3893, 1.0
      %v4275 = vsub.f32 %v3895, 1.0
      %v4276 = vsub.f32 %v3897, 1.0
      %v4277 = vsub.f32 %v3899, 1.0
      %v4278 = vsub.f32 %v3901, 1.0
      %v4279 = vsub.f32 %v3903, 1.0
      %v4280 = vsub.f32 %v3905, 1.0
      %v4281 = vsub.f32 %v3907, 1.0
      %v4282 = vsub.f32 %v3909, 1.0
      %v4283 = vsub.f32 %v3911, 1.0
      %v4284 = vsub.f32 %v3913, 1.0
      %v4285 = vsub.f32 %v3915, 1.0
      %v4286 = vsub.f32 %v3917, 1.0
      %v4287 = vsub.f32 %v3919, 1.0
      %v4288 = vsub.f32 %v3921, 1.0
      %v4289 = vsub.f32 %v3923, 1.0
      %v4290 = vsub.f32 %v3925, 1.0
      %v4291 = vsub.f32 %v3927, 1.0
      %v4292 = vsub.f32 %v3929, 1.0
      %v4293 = vsub.f32 %v3931, 1.0
      %v4294 = vsub.f32 %v3933, 1.0
      %v4295 = vsub.f32 %v3935, 1.0
      %v4296 = vsub.f32 %v3937, 1.0
      %v4297 = vsub.f32 %v3939, 1.0
      %v4298 = vsub.f32 %v3941, 1.0
      %v4299 = vsub.f32 %v3943, 1.0
      %v4300 = vsub.f32 %v3945, 1.0
      %v4301 = vsub.f32 %v3947, 1.0
      %v4302 = vsub.f32 %v3949, 1.0
      %v4303 = vsub.f32 %v3951, 1.0
      %v4304 = vsub.f32 %v3953, 1.0
      %v4305 = vsub.f32 %v3955, 1.0
      %v4306 = vsub.f32 %v3957, 1.0
      %v4307 = vsub.f32 %v3959, 1.0
      %v4308 = vsub.f32 %v3961, 1.0
      %v4309 = vsub.f32 %v3963, 1.0
      %v4310 = vsub.f32 %v3965, 1.0
      %v4311 = vsub.f32 %v3967, 1.0
      %v4312 = vsub.f32 %v3969, 1.0
      %v4313 = vsub.f32 %v3971, 1.0
      %v4314 = vsub.f32 %v3973, 1.0
      %v4315 = vsub.f32 %v3975, 1.0
      %v4316 = vsub.f32 %v3977, 1.0
      %v4317 = vsub.f32 %v3979, 1.0
      %v4318 = vsub.f32 %v3981, 1.0
      %v4319 = vsub.f32 %v3983, 1.0
      %v4320 = vsub.f32 %v3985, 1.0
      %v4321 = vsub.f32 %v3987, 1.0
      %v4322 = vsub.f32 %v3989, 1.0
      %v4323 = vsub.f32 %v3991, 1.0
      %v4324 = vsub.f32 %v3993, 1.0
      %v4325 = vsub.f32 %v3995, 1.0
      %v4326 = vsub.f32 %v3997, 1.0
      %v4327 = vsub.f32 %v3999, 1.0
      %v4328 = vsub.f32 %v4001, 1.0
      %v4329 = vsub.f32 %v4003, 1.0
      %v4330 = vsub.f32 %v4005, 1.0
      %v4331 = vsub.f32 %v4007, 1.0
      %v4332 = vsub.f32 %v4009, 1.0
      %v4333 = vsub.f32 %v4011, 1.0
      %v4334 = vsub.f32 %v4013, 1.0
      %v4335 = vsub.f32 %v4015, 1.0
      %v4336 = vsub.f32 %v4017, 1.0
      %v4337 = vsub.f32 %v4019, 1.0
      %v4338 = vsub.f32 %v4021, 1.0
      %v4339 = vsub.f32 %v4023, 1.0
      %v4340 = vsub.f32 %v4025, 1.0
      %v4341 = vsub.f32 %v4027, 1.0
      %v4342 = vsub.f32 %v4029, 1.0
      %v4343 = vsub.f32 %v4031, 1.0
      %v4344 = vsub.f32 %v4033, 1.0
      %v4345 = vsub.f32 %v4035, 1.0
      %v4346 = vsub.f32 %v4037, 1.0
      %v4347 = vsub.f32 %v4039, 1.0
      %v4348 = vsub.f32 %v4041, 1.0
      %v4349 = vsub.f32 %v4043, 1.0
      %v4350 = vsub.f32 %v4045, 1.0
      %v4351 = vsub.f32 %v4047, 1.0
      %v4352 = vsub.f32 %v4049, 1.0
      %v4353 = vsub.f32 %v4051, 1.0
      %v4354 = vsub.f32 %v4053, 1.0
      %v4355 = vsub.f32 %v4055, 1.0
      %v4356 = vsub.f32 %v4057, 1.0
      %v4357 = vsub.f32 %v4059, 1.0
      %v4358 = vsub.f32 %v4061, 1.0
      %v4359 = vsub.f32 %v4063, 1.0
      %v4360 = vsub.f32 %v4065, 1.0
      %v4361 = vsub.f32 %v4067, 1.0
      %v4362 = vsub.f32 %v4069, 1.0
      %v4363 = vsub.f32 %v4071, 1.0
      %v4364 = vsub.f32 %v4073, 1.0
      %v4365 = vsub.f32 %v4075, 1.0
      %v4366 = vsub.f32 %v4077, 1.0
      %v4367 = vsub.f32 %v4079, 1.0
      %v4368 = vsub.f32 %v4081, 1.0
      %v4369 = vsub.f32 %v4083, 1.0
      %v4370 = vsub.f32 %v4085, 1.0
      %v4371 = vsub.f32 %v4087, 1.0
      %v4372 = vsub.f32 %v4089, 1.0
      %v4373 = vsub.f32 %v4091, 1.0
      %v4374 = vsub.f32 %v4093, 1.0
      %v4375 = vsub.f32 %v4095, 1.0
      %v4376 = vsub.f32 %v4097, 1.0
      %v4377 = vsub.f32 %v4099, 1.0
      %v4378 = vsub.f32 %v4101, 1.0
      %v4379 = vsub.f32 %v4103, 1.0
      %v4380 = vsub.f32 %v4105, 1.0
      %v4381 = vsub.f32 %v4107, 1.0
      %v4382 = vsub.f32 %v4109, 1.0
      %v4383 = vsub.f32 %v4111, 1.0
      %v4384 = vsub.f32 %v4113, 1.0
      %v4385 = vsub.f32 %v4115, 1.0
      %v4386 = vsub.f32 %v4117, 1.0
      %v4387 = vsub.f32 %v4119, 1.0
      %v4388 = vsub.f32 %v4121, 1.0
      %v4389 = vsub.f32 %v4123, 1.0
      %v4390 = vsub.f32 %v4125, 1.0
      %v4391 = vsub.f32 %v4127, 1.0
      %v4392 = vsub.f32 %v4129, 1.0
      %v4393 = vsub.f32 %v4131, 1.0
      %v4394 = vsub.f32 %v4133, 1.0
      %v4395 = vsub.f32 %v4135, 1.0
      %v4396 = vsub.f32 %v4137, 1.0
      %v4397 = vsub.f32 %v4139, 1.0
      %v4398 = vsub.f32 %v4141, 1.0
      %v4399 = vsub.f32 %v4143, 1.0
      %v4400 = vsel %vm3120, %v2864, %v4144
      %v4401 = vsel %vm3121, %v2865, %v4145
      %v4402 = vsel %vm3122, %v2866, %v4146
      %v4403 = vsel %vm3123, %v2867, %v4147
      %v4404 = vsel %vm3124, %v2868, %v4148
      %v4405 = vsel %vm3125, %v2869, %v4149
      %v4406 = vsel %vm3126, %v2870, %v4150
      %v4407 = vsel %vm3127, %v2871, %v4151
      %v4408 = vsel %vm3128, %v2872, %v4152
      %v4409 = vsel %vm3129, %v2873, %v4153
      %v4410 = vsel %vm3130, %v2874, %v4154
      %v4411 = vsel %vm3131, %v2875, %v4155
      %v4412 = vsel %vm3132, %v2876, %v4156
      %v4413 = vsel %vm3133, %v2877, %v4157
      %v4414 = vsel %vm3134, %v2878, %v4158
      %v4415 = vsel %vm3135, %v2879, %v4159
      %v4416 = vsel %vm3136, %v2880, %v4160
      %v4417 = vsel %vm3137, %v2881, %v4161
      %v4418 = vsel %vm3138, %v2882, %v4162
      %v4419 = vsel %vm3139, %v2883, %v4163
      %v4420 = vsel %vm3140, %v2884, %v4164
      %v4421 = vsel %vm3141, %v2885, %v4165
      %v4422 = vsel %vm3142, %v2886, %v4166
      %v4423 = vsel %vm3143, %v2887, %v4167
      %v4424 = vsel %vm3144, %v2888, %v4168
      %v4425 = vsel %vm3145, %v2889, %v4169
      %v4426 = vsel %vm3146, %v2890, %v4170
      %v4427 = vsel %vm3147, %v2891, %v4171
      %v4428 = vsel %vm3148, %v2892, %v4172
      %v4429 = vsel %vm3149, %v2893, %v4173
      %v4430 = vsel %vm3150, %v2894, %v4174
      %v4431 = vsel %vm3151, %v2895, %v4175
      %v4432 = vsel %vm3152, %v2896, %v4176
      %v4433 = vsel %vm3153, %v2897, %v4177
      %v4434 = vsel %vm3154, %v2898, %v4178
      %v4435 = vsel %vm3155, %v2899, %v4179
      %v4436 = vsel %vm3156, %v2900, %v4180
      %v4437 = vsel %vm3157, %v2901, %v4181
      %v4438 = vsel %vm3158, %v2902, %v4182
      %v4439 = vsel %vm3159, %v2903, %v4183
      %v4440 = vsel %vm3160, %v2904, %v4184
      %v4441 = vsel %vm3161, %v2905, %v4185
      %v4442 = vsel %vm3162, %v2906, %v4186
      %v4443 = vsel %vm3163, %v2907, %v4187
      %v4444 = vsel %vm3164, %v2908, %v4188
      %v4445 = vsel %vm3165, %v2909, %v4189
      %v4446 = vsel %vm3166, %v2910, %v4190
      %v4447 = vsel %vm3167, %v2911, %v4191
      %v4448 = vsel %vm3168, %v2912, %v4192
      %v4449 = vsel %vm3169, %v2913, %v4193
      %v4450 = vsel %vm3170, %v2914, %v4194
      %v4451 = vsel %vm3171, %v2915, %v4195
      %v4452 = vsel %vm3172, %v2916, %v4196
      %v4453 = vsel %vm3173, %v2917, %v4197
      %v4454 = vsel %vm3174, %v2918, %v4198
      %v4455 = vsel %vm3175, %v2919, %v4199
      %v4456 = vsel %vm3176, %v2920, %v4200
      %v4457 = vsel %vm3177, %v2921, %v4201
      %v4458 = vsel %vm3178, %v2922, %v4202
      %v4459 = vsel %vm3179, %v2923, %v4203
      %v4460 = vsel %vm3180, %v2924, %v4204
      %v4461 = vsel %vm3181, %v2925, %v4205
      %v4462 = vsel %vm3182, %v2926, %v4206
      %v4463 = vsel %vm3183, %v2927, %v4207
      %v4464 = vsel %vm3184, %v2928, %v4208
      %v4465 = vsel %vm3185, %v2929, %v4209
      %v4466 = vsel %vm3186, %v2930, %v4210
      %v4467 = vsel %vm3187, %v2931, %v4211
      %v4468 = vsel %vm3188, %v2932, %v4212
      %v4469 = vsel %vm3189, %v2933, %v4213
      %v4470 = vsel %vm3190, %v2934, %v4214
      %v4471 = vsel %vm3191, %v2935, %v4215
      %v4472 = vsel %vm3192, %v2936, %v4216
      %v4473 = vsel %vm3193, %v2937, %v4217
      %v4474 = vsel %vm3194, %v2938, %v4218
      %v4475 = vsel %vm3195, %v2939, %v4219
      %v4476 = vsel %vm3196, %v2940, %v4220
      %v4477 = vsel %vm3197, %v2941, %v4221
      %v4478 = vsel %vm3198, %v2942, %v4222
      %v4479 = vsel %vm3199, %v2943, %v4223
      %v4480 = vsel %vm3200, %v2944, %v4224
      %v4481 = vsel %vm3201, %v2945, %v4225
      %v4482 = vsel %vm3202, %v2946, %v4226
      %v4483 = vsel %vm3203, %v2947, %v4227
      %v4484 = vsel %vm3204, %v2948, %v4228
      %v4485 = vsel %vm3205, %v2949, %v4229
      %v4486 = vsel %vm3206, %v2950, %v4230
      %v4487 = vsel %vm3207, %v2951, %v4231
      %v4488 = vsel %vm3208, %v2952, %v4232
      %v4489 = vsel %vm3209, %v2953, %v4233
      %v4490 = vsel %vm3210, %v2954, %v4234
      %v4491 = vsel %vm3211, %v2955, %v4235
      %v4492 = vsel %vm3212, %v2956, %v4236
      %v4493 = vsel %vm3213, %v2957, %v4237
      %v4494 = vsel %vm3214, %v2958, %v4238
      %v4495 = vsel %vm3215, %v2959, %v4239
      %v4496 = vsel %vm3216, %v2960, %v4240
      %v4497 = vsel %vm3217, %v2961, %v4241
      %v4498 = vsel %vm3218, %v2962, %v4242
      %v4499 = vsel %vm3219, %v2963, %v4243
      %v4500 = vsel %vm3220, %v2964, %v4244
      %v4501 = vsel %vm3221, %v2965, %v4245
      %v4502 = vsel %vm3222, %v2966, %v4246
      %v4503 = vsel %vm3223, %v2967, %v4247
      %v4504 = vsel %vm3224, %v2968, %v4248
      %v4505 = vsel %vm3225, %v2969, %v4249
      %v4506 = vsel %vm3226, %v2970, %v4250
      %v4507 = vsel %vm3227, %v2971, %v4251
      %v4508 = vsel %vm3228, %v2972, %v4252
      %v4509 = vsel %vm3229, %v2973, %v4253
      %v4510 = vsel %vm3230, %v2974, %v4254
      %v4511 = vsel %vm3231, %v2975, %v4255
      %v4512 = vsel %vm3232, %v2976, %v4256
      %v4513 = vsel %vm3233, %v2977, %v4257
      %v4514 = vsel %vm3234, %v2978, %v4258
      %v4515 = vsel %vm3235, %v2979, %v4259
      %v4516 = vsel %vm3236, %v2980, %v4260
      %v4517 = vsel %vm3237, %v2981, %v4261
      %v4518 = vsel %vm3238, %v2982, %v4262
      %v4519 = vsel %vm3239, %v2983, %v4263
      %v4520 = vsel %vm3240, %v2984, %v4264
      %v4521 = vsel %vm3241, %v2985, %v4265
      %v4522 = vsel %vm3242, %v2986, %v4266
      %v4523 = vsel %vm3243, %v2987, %v4267
      %v4524 = vsel %vm3244, %v2988, %v4268
      %v4525 = vsel %vm3245, %v2989, %v4269
      %v4526 = vsel %vm3246, %v2990, %v4270
      %v4527 = vsel %vm3247, %v2991, %v4271
      %v4528 = vsel %vm3248, %v2992, %v4272
      %v4529 = vsel %vm3249, %v2993, %v4273
      %v4530 = vsel %vm3250, %v2994, %v4274
      %v4531 = vsel %vm3251, %v2995, %v4275
      %v4532 = vsel %vm3252, %v2996, %v4276
      %v4533 = vsel %vm3253, %v2997, %v4277
      %v4534 = vsel %vm3254, %v2998, %v4278
      %v4535 = vsel %vm3255, %v2999, %v4279
      %v4536 = vsel %vm3256, %v3000, %v4280
      %v4537 = vsel %vm3257, %v3001, %v4281
      %v4538 = vsel %vm3258, %v3002, %v4282
      %v4539 = vsel %vm3259, %v3003, %v4283
      %v4540 = vsel %vm3260, %v3004, %v4284
      %v4541 = vsel %vm3261, %v3005, %v4285
      %v4542 = vsel %vm3262, %v3006, %v4286
      %v4543 = vsel %vm3263, %v3007, %v4287
      %v4544 = vsel %vm3264, %v3008, %v4288
      %v4545 = vsel %vm3265, %v3009, %v4289
      %v4546 = vsel %vm3266, %v3010, %v4290
      %v4547 = vsel %vm3267, %v3011, %v4291
      %v4548 = vsel %vm3268, %v3012, %v4292
      %v4549 = vsel %vm3269, %v3013, %v4293
      %v4550 = vsel %vm3270, %v3014, %v4294
      %v4551 = vsel %vm3271, %v3015, %v4295
      %v4552 = vsel %vm3272, %v3016, %v4296
      %v4553 = vsel %vm3273, %v3017, %v4297
      %v4554 = vsel %vm3274, %v3018, %v4298
      %v4555 = vsel %vm3275, %v3019, %v4299
      %v4556 = vsel %vm3276, %v3020, %v4300
      %v4557 = vsel %vm3277, %v3021, %v4301
      %v4558 = vsel %vm3278, %v3022, %v4302
      %v4559 = vsel %vm3279, %v3023, %v4303
      %v4560 = vsel %vm3280, %v3024, %v4304
      %v4561 = vsel %vm3281, %v3025, %v4305
      %v4562 = vsel %vm3282, %v3026, %v4306
      %v4563 = vsel %vm3283, %v3027, %v4307
      %v4564 = vsel %vm3284, %v3028, %v4308
      %v4565 = vsel %vm3285, %v3029, %v4309
      %v4566 = vsel %vm3286, %v3030, %v4310
      %v4567 = vsel %vm3287, %v3031, %v4311
      %v4568 = vsel %vm3288, %v3032, %v4312
      %v4569 = vsel %vm3289, %v3033, %v4313
      %v4570 = vsel %vm3290, %v3034, %v4314
      %v4571 = vsel %vm3291, %v3035, %v4315
      %v4572 = vsel %vm3292, %v3036, %v4316
      %v4573 = vsel %vm3293, %v3037, %v4317
      %v4574 = vsel %vm3294, %v3038, %v4318
      %v4575 = vsel %vm3295, %v3039, %v4319
      %v4576 = vsel %vm3296, %v3040, %v4320
      %v4577 = vsel %vm3297, %v3041, %v4321
      %v4578 = vsel %vm3298, %v3042, %v4322
      %v4579 = vsel %vm3299, %v3043, %v4323
      %v4580 = vsel %vm3300, %v3044, %v4324
      %v4581 = vsel %vm3301, %v3045, %v4325
      %v4582 = vsel %vm3302, %v3046, %v4326
      %v4583 = vsel %vm3303, %v3047, %v4327
      %v4584 = vsel %vm3304, %v3048, %v4328
      %v4585 = vsel %vm3305, %v3049, %v4329
      %v4586 = vsel %vm3306, %v3050, %v4330
      %v4587 = vsel %vm3307, %v3051, %v4331
      %v4588 = vsel %vm3308, %v3052, %v4332
      %v4589 = vsel %vm3309, %v3053, %v4333
      %v4590 = vsel %vm3310, %v3054, %v4334
      %v4591 = vsel %vm3311, %v3055, %v4335
      %v4592 = vsel %vm3312, %v3056, %v4336
      %v4593 = vsel %vm3313, %v3057, %v4337
      %v4594 = vsel %vm3314, %v3058, %v4338
      %v4595 = vsel %vm3315, %v3059, %v4339
      %v4596 = vsel %vm3316, %v3060, %v4340
      %v4597 = vsel %vm3317, %v3061, %v4341
      %v4598 = vsel %vm3318, %v3062, %v4342
      %v4599 = vsel %vm3319, %v3063, %v4343
      %v4600 = vsel %vm3320, %v3064, %v4344
      %v4601 = vsel %vm3321, %v3065, %v4345
      %v4602 = vsel %vm3322, %v3066, %v4346
      %v4603 = vsel %vm3323, %v3067, %v4347
      %v4604 = vsel %vm3324, %v3068, %v4348
      %v4605 = vsel %vm3325, %v3069, %v4349
      %v4606 = vsel %vm3326, %v3070, %v4350
      %v4607 = vsel %vm3327, %v3071, %v4351
      %v4608 = vsel %vm3328, %v3072, %v4352
      %v4609 = vsel %vm3329, %v3073, %v4353
      %v4610 = vsel %vm3330, %v3074, %v4354
      %v4611 = vsel %vm3331, %v3075, %v4355
      %v4612 = vsel %vm3332, %v3076, %v4356
      %v4613 = vsel %vm3333, %v3077, %v4357
      %v4614 = vsel %vm3334, %v3078, %v4358
      %v4615 = vsel %vm3335, %v3079, %v4359
      %v4616 = vsel %vm3336, %v3080, %v4360
      %v4617 = vsel %vm3337, %v3081, %v4361
      %v4618 = vsel %vm3338, %v3082, %v4362
      %v4619 = vsel %vm3339, %v3083, %v4363
      %v4620 = vsel %vm3340, %v3084, %v4364
      %v4621 = vsel %vm3341, %v3085, %v4365
      %v4622 = vsel %vm3342, %v3086, %v4366
      %v4623 = vsel %vm3343, %v3087, %v4367
      %v4624 = vsel %vm3344, %v3088, %v4368
      %v4625 = vsel %vm3345, %v3089, %v4369
      %v4626 = vsel %vm3346, %v3090, %v4370
      %v4627 = vsel %vm3347, %v3091, %v4371
      %v4628 = vsel %vm3348, %v3092, %v4372
      %v4629 = vsel %vm3349, %v3093, %v4373
      %v4630 = vsel %vm3350, %v3094, %v4374
      %v4631 = vsel %vm3351, %v3095, %v4375
      %v4632 = vsel %vm3352, %v3096, %v4376
      %v4633 = vsel %vm3353, %v3097, %v4377
      %v4634 = vsel %vm3354, %v3098, %v4378
      %v4635 = vsel %vm3355, %v3099, %v4379
      %v4636 = vsel %vm3356, %v3100, %v4380
      %v4637 = vsel %vm3357, %v3101, %v4381
      %v4638 = vsel %vm3358, %v3102, %v4382
      %v4639 = vsel %vm3359, %v3103, %v4383
      %v4640 = vsel %vm3360, %v3104, %v4384
      %v4641 = vsel %vm3361, %v3105, %v4385
      %v4642 = vsel %vm3362, %v3106, %v4386
      %v4643 = vsel %vm3363, %v3107, %v4387
      %v4644 = vsel %vm3364, %v3108, %v4388
      %v4645 = vsel %vm3365, %v3109, %v4389
      %v4646 = vsel %vm3366, %v3110, %v4390
      %v4647 = vsel %vm3367, %v3111, %v4391
      %v4648 = vsel %vm3368, %v3112, %v4392
      %v4649 = vsel %vm3369, %v3113, %v4393
      %v4650 = vsel %vm3370, %v3114, %v4394
      %v4651 = vsel %vm3371, %v3115, %v4395
      %v4652 = vsel %vm3372, %v3116, %v4396
      %v4653 = vsel %vm3373, %v3117, %v4397
      %v4654 = vsel %vm3374, %v3118, %v4398
      %v4655 = vsel %vm3375, %v3119, %v4399
      %v4852 = vperm.slane %v4400, 0
      %v4853 = vperm.slane %v4401, 0
      %v4854 = vperm.slane %v4402, 0
      %v4855 = vperm.slane %v4403, 0
      %v4856 = vperm.slane %v4404, 0
      %v4857 = vperm.slane %v4405, 0
      %v4858 = vperm.slane %v4406, 0
      %v4859 = vperm.slane %v4407, 0
      %v4860 = vperm.slane %v4408, 0
      %v4861 = vperm.slane %v4409, 0
      %v4862 = vperm.slane %v4410, 0
      %v4863 = vperm.slane %v4411, 0
      %v4864 = vperm.slane %v4412, 0
      %v4865 = vperm.slane %v4413, 0
      %v4866 = vperm.slane %v4416, 0
      %v4867 = vperm.slane %v4417, 0
      %v4868 = vperm.slane %v4418, 0
      %v4869 = vperm.slane %v4419, 0
      %v4870 = vperm.slane %v4420, 0
      %v4871 = vperm.slane %v4421, 0
      %v4872 = vperm.slane %v4422, 0
      %v4873 = vperm.slane %v4423, 0
      %v4874 = vperm.slane %v4424, 0
      %v4875 = vperm.slane %v4425, 0
      %v4876 = vperm.slane %v4426, 0
      %v4877 = vperm.slane %v4427, 0
      %v4878 = vperm.slane %v4428, 0
      %v4879 = vperm.slane %v4429, 0
      %v4880 = vperm.slane %v4432, 0
      %v4881 = vperm.slane %v4433, 0
      %v4882 = vperm.slane %v4434, 0
      %v4883 = vperm.slane %v4435, 0
      %v4884 = vperm.slane %v4436, 0
      %v4885 = vperm.slane %v4437, 0
      %v4886 = vperm.slane %v4438, 0
      %v4887 = vperm.slane %v4439, 0
      %v4888 = vperm.slane %v4440, 0
      %v4889 = vperm.slane %v4441, 0
      %v4890 = vperm.slane %v4442, 0
      %v4891 = vperm.slane %v4443, 0
      %v4892 = vperm.slane %v4444, 0
      %v4893 = vperm.slane %v4445, 0
      %v4894 = vperm.slane %v4448, 0
      %v4895 = vperm.slane %v4449, 0
      %v4896 = vperm.slane %v4450, 0
      %v4897 = vperm.slane %v4451, 0
      %v4898 = vperm.slane %v4452, 0
      %v4899 = vperm.slane %v4453, 0
      %v4900 = vperm.slane %v4454, 0
      %v4901 = vperm.slane %v4455, 0
      %v4902 = vperm.slane %v4456, 0
      %v4903 = vperm.slane %v4457, 0
      %v4904 = vperm.slane %v4458, 0
      %v4905 = vperm.slane %v4459, 0
      %v4906 = vperm.slane %v4460, 0
      %v4907 = vperm.slane %v4461, 0
      %v4908 = vperm.slane %v4464, 0
      %v4909 = vperm.slane %v4465, 0
      %v4910 = vperm.slane %v4466, 0
      %v4911 = vperm.slane %v4467, 0
      %v4912 = vperm.slane %v4468, 0
      %v4913 = vperm.slane %v4469, 0
      %v4914 = vperm.slane %v4470, 0
      %v4915 = vperm.slane %v4471, 0
      %v4916 = vperm.slane %v4472, 0
      %v4917 = vperm.slane %v4473, 0
      %v4918 = vperm.slane %v4474, 0
      %v4919 = vperm.slane %v4475, 0
      %v4920 = vperm.slane %v4476, 0
      %v4921 = vperm.slane %v4477, 0
      %v4922 = vperm.slane %v4480, 0
      %v4923 = vperm.slane %v4481, 0
      %v4924 = vperm.slane %v4482, 0
      %v4925 = vperm.slane %v4483, 0
      %v4926 = vperm.slane %v4484, 0
      %v4927 = vperm.slane %v4485, 0
      %v4928 = vperm.slane %v4486, 0
      %v4929 = vperm.slane %v4487, 0
      %v4930 = vperm.slane %v4488, 0
      %v4931 = vperm.slane %v4489, 0
      %v4932 = vperm.slane %v4490, 0
      %v4933 = vperm.slane %v4491, 0
      %v4934 = vperm.slane %v4492, 0
      %v4935 = vperm.slane %v4493, 0
      %v4936 = vperm.slane %v4496, 0
      %v4937 = vperm.slane %v4497, 0
      %v4938 = vperm.slane %v4498, 0
      %v4939 = vperm.slane %v4499, 0
      %v4940 = vperm.slane %v4500, 0
      %v4941 = vperm.slane %v4501, 0
      %v4942 = vperm.slane %v4502, 0
      %v4943 = vperm.slane %v4503, 0
      %v4944 = vperm.slane %v4504, 0
      %v4945 = vperm.slane %v4505, 0
      %v4946 = vperm.slane %v4506, 0
      %v4947 = vperm.slane %v4507, 0
      %v4948 = vperm.slane %v4508, 0
      %v4949 = vperm.slane %v4509, 0
      %v4950 = vperm.slane %v4512, 0
      %v4951 = vperm.slane %v4513, 0
      %v4952 = vperm.slane %v4514, 0
      %v4953 = vperm.slane %v4515, 0
      %v4954 = vperm.slane %v4516, 0
      %v4955 = vperm.slane %v4517, 0
      %v4956 = vperm.slane %v4518, 0
      %v4957 = vperm.slane %v4519, 0
      %v4958 = vperm.slane %v4520, 0
      %v4959 = vperm.slane %v4521, 0
      %v4960 = vperm.slane %v4522, 0
      %v4961 = vperm.slane %v4523, 0
      %v4962 = vperm.slane %v4524, 0
      %v4963 = vperm.slane %v4525, 0
      %v4964 = vperm.slane %v4528, 0
      %v4965 = vperm.slane %v4529, 0
      %v4966 = vperm.slane %v4530, 0
      %v4967 = vperm.slane %v4531, 0
      %v4968 = vperm.slane %v4532, 0
      %v4969 = vperm.slane %v4533, 0
      %v4970 = vperm.slane %v4534, 0
      %v4971 = vperm.slane %v4535, 0
      %v4972 = vperm.slane %v4536, 0
      %v4973 = vperm.slane %v4537, 0
      %v4974 = vperm.slane %v4538, 0
      %v4975 = vperm.slane %v4539, 0
      %v4976 = vperm.slane %v4540, 0
      %v4977 = vperm.slane %v4541, 0
      %v4978 = vperm.slane %v4544, 0
      %v4979 = vperm.slane %v4545, 0
      %v4980 = vperm.slane %v4546, 0
      %v4981 = vperm.slane %v4547, 0
      %v4982 = vperm.slane %v4548, 0
      %v4983 = vperm.slane %v4549, 0
      %v4984 = vperm.slane %v4550, 0
      %v4985 = vperm.slane %v4551, 0
      %v4986 = vperm.slane %v4552, 0
      %v4987 = vperm.slane %v4553, 0
      %v4988 = vperm.slane %v4554, 0
      %v4989 = vperm.slane %v4555, 0
      %v4990 = vperm.slane %v4556, 0
      %v4991 = vperm.slane %v4557, 0
      %v4992 = vperm.slane %v4560, 0
      %v4993 = vperm.slane %v4561, 0
      %v4994 = vperm.slane %v4562, 0
      %v4995 = vperm.slane %v4563, 0
      %v4996 = vperm.slane %v4564, 0
      %v4997 = vperm.slane %v4565, 0
      %v4998 = vperm.slane %v4566, 0
      %v4999 = vperm.slane %v4567, 0
      %v5000 = vperm.slane %v4568, 0
      %v5001 = vperm.slane %v4569, 0
      %v5002 = vperm.slane %v4570, 0
      %v5003 = vperm.slane %v4571, 0
      %v5004 = vperm.slane %v4572, 0
      %v5005 = vperm.slane %v4573, 0
      %v5006 = vperm.slane %v4576, 0
      %v5007 = vperm.slane %v4577, 0
      %v5008 = vperm.slane %v4578, 0
      %v5009 = vperm.slane %v4579, 0
      %v5010 = vperm.slane %v4580, 0
      %v5011 = vperm.slane %v4581, 0
      %v5012 = vperm.slane %v4582, 0
      %v5013 = vperm.slane %v4583, 0
      %v5014 = vperm.slane %v4584, 0
      %v5015 = vperm.slane %v4585, 0
      %v5016 = vperm.slane %v4586, 0
      %v5017 = vperm.slane %v4587, 0
      %v5018 = vperm.slane %v4588, 0
      %v5019 = vperm.slane %v4589, 0
      %v5020 = vperm.slane %v4592, 0
      %v5021 = vperm.slane %v4593, 0
      %v5022 = vperm.slane %v4594, 0
      %v5023 = vperm.slane %v4595, 0
      %v5024 = vperm.slane %v4596, 0
      %v5025 = vperm.slane %v4597, 0
      %v5026 = vperm.slane %v4598, 0
      %v5027 = vperm.slane %v4599, 0
      %v5028 = vperm.slane %v4600, 0
      %v5029 = vperm.slane %v4601, 0
      %v5030 = vperm.slane %v4602, 0
      %v5031 = vperm.slane %v4603, 0
      %v5032 = vperm.slane %v4604, 0
      %v5033 = vperm.slane %v4605, 0
      %v5034 = vperm.slane %v4608, 0
      %v5035 = vperm.slane %v4609, 0
      %v5036 = vperm.slane %v4610, 0
      %v5037 = vperm.slane %v4611, 0
      %v5038 = vperm.slane %v4612, 0
      %v5039 = vperm.slane %v4613, 0
      %v5040 = vperm.slane %v4614, 0
      %v5041 = vperm.slane %v4615, 0
      %v5042 = vperm.slane %v4616, 0
      %v5043 = vperm.slane %v4617, 0
      %v5044 = vperm.slane %v4618, 0
      %v5045 = vperm.slane %v4619, 0
      %v5046 = vperm.slane %v4620, 0
      %v5047 = vperm.slane %v4621, 0
      %vm5048 = vcmask 1041409
      %v5049 = vsel %vm5048, %v4853, %v4852
      %vm5050 = vcmask 1042434
      %v5051 = vsel %vm5050, %v4854, %v5049
      %vm5052 = vcmask 1043459
      %v5053 = vsel %vm5052, %v4855, %v5051
      %vm5054 = vcmask 1044484
      %v5055 = vsel %vm5054, %v4856, %v5053
      %vm5056 = vcmask 1045509
      %v5057 = vsel %vm5056, %v4857, %v5055
      %vm5058 = vcmask 1046534
      %v5059 = vsel %vm5058, %v4858, %v5057
      %vm5060 = vcmask 1047559
      %v5061 = vsel %vm5060, %v4859, %v5059
      %v5062 = vsel %vm5048, %v4861, %v4860
      %v5063 = vsel %vm5050, %v4862, %v5062
      %v5064 = vsel %vm5052, %v4863, %v5063
      %v5065 = vsel %vm5054, %v4864, %v5064
      %v5066 = vsel %vm5056, %v4865, %v5065
      %v5067 = vsel %vm5058, %v4866, %v5066
      %v5068 = vsel %vm5060, %v4867, %v5067
      %v5069 = vsel %vm5048, %v4869, %v4868
      %v5070 = vsel %vm5050, %v4870, %v5069
      %v5071 = vsel %vm5052, %v4871, %v5070
      %v5072 = vsel %vm5054, %v4872, %v5071
      %v5073 = vsel %vm5056, %v4873, %v5072
      %v5074 = vsel %vm5058, %v4874, %v5073
      %v5075 = vsel %vm5060, %v4875, %v5074
      %v5076 = vsel %vm5048, %v4877, %v4876
      %v5077 = vsel %vm5050, %v4878, %v5076
      %v5078 = vsel %vm5052, %v4879, %v5077
      %v5079 = vsel %vm5054, %v4880, %v5078
      %v5080 = vsel %vm5056, %v4881, %v5079
      %v5081 = vsel %vm5058, %v4882, %v5080
      %v5082 = vsel %vm5060, %v4883, %v5081
      %v5083 = vsel %vm5048, %v4885, %v4884
      %v5084 = vsel %vm5050, %v4886, %v5083
      %v5085 = vsel %vm5052, %v4887, %v5084
      %v5086 = vsel %vm5054, %v4888, %v5085
      %v5087 = vsel %vm5056, %v4889, %v5086
      %v5088 = vsel %vm5058, %v4890, %v5087
      %v5089 = vsel %vm5060, %v4891, %v5088
      %v5090 = vsel %vm5048, %v4893, %v4892
      %v5091 = vsel %vm5050, %v4894, %v5090
      %v5092 = vsel %vm5052, %v4895, %v5091
      %v5093 = vsel %vm5054, %v4896, %v5092
      %v5094 = vsel %vm5056, %v4897, %v5093
      %v5095 = vsel %vm5058, %v4898, %v5094
      %v5096 = vsel %vm5060, %v4899, %v5095
      %v5097 = vsel %vm5048, %v4901, %v4900
      %v5098 = vsel %vm5050, %v4902, %v5097
      %v5099 = vsel %vm5052, %v4903, %v5098
      %v5100 = vsel %vm5054, %v4904, %v5099
      %v5101 = vsel %vm5056, %v4905, %v5100
      %v5102 = vsel %vm5058, %v4906, %v5101
      %v5103 = vsel %vm5060, %v4907, %v5102
      %v5104 = vsel %vm5048, %v4909, %v4908
      %v5105 = vsel %vm5050, %v4910, %v5104
      %v5106 = vsel %vm5052, %v4911, %v5105
      %v5107 = vsel %vm5054, %v4912, %v5106
      %v5108 = vsel %vm5056, %v4913, %v5107
      %v5109 = vsel %vm5058, %v4914, %v5108
      %v5110 = vsel %vm5060, %v4915, %v5109
      %v5111 = vsel %vm5048, %v4917, %v4916
      %v5112 = vsel %vm5050, %v4918, %v5111
      %v5113 = vsel %vm5052, %v4919, %v5112
      %v5114 = vsel %vm5054, %v4920, %v5113
      %v5115 = vsel %vm5056, %v4921, %v5114
      %v5116 = vsel %vm5058, %v4922, %v5115
      %v5117 = vsel %vm5060, %v4923, %v5116
      %v5118 = vsel %vm5048, %v4925, %v4924
      %v5119 = vsel %vm5050, %v4926, %v5118
      %v5120 = vsel %vm5052, %v4927, %v5119
      %v5121 = vsel %vm5054, %v4928, %v5120
      %v5122 = vsel %vm5056, %v4929, %v5121
      %v5123 = vsel %vm5058, %v4930, %v5122
      %v5124 = vsel %vm5060, %v4931, %v5123
      %v5125 = vsel %vm5048, %v4933, %v4932
      %v5126 = vsel %vm5050, %v4934, %v5125
      %v5127 = vsel %vm5052, %v4935, %v5126
      %v5128 = vsel %vm5054, %v4936, %v5127
      %v5129 = vsel %vm5056, %v4937, %v5128
      %v5130 = vsel %vm5058, %v4938, %v5129
      %v5131 = vsel %vm5060, %v4939, %v5130
      %v5132 = vsel %vm5048, %v4941, %v4940
      %v5133 = vsel %vm5050, %v4942, %v5132
      %v5134 = vsel %vm5052, %v4943, %v5133
      %v5135 = vsel %vm5054, %v4944, %v5134
      %v5136 = vsel %vm5056, %v4945, %v5135
      %v5137 = vsel %vm5058, %v4946, %v5136
      %v5138 = vsel %vm5060, %v4947, %v5137
      %v5139 = vsel %vm5048, %v4949, %v4948
      %v5140 = vsel %vm5050, %v4950, %v5139
      %v5141 = vsel %vm5052, %v4951, %v5140
      %v5142 = vsel %vm5054, %v4952, %v5141
      %v5143 = vsel %vm5056, %v4953, %v5142
      %v5144 = vsel %vm5058, %v4954, %v5143
      %v5145 = vsel %vm5060, %v4955, %v5144
      %v5146 = vsel %vm5048, %v4957, %v4956
      %v5147 = vsel %vm5050, %v4958, %v5146
      %v5148 = vsel %vm5052, %v4959, %v5147
      %v5149 = vsel %vm5054, %v4960, %v5148
      %v5150 = vsel %vm5056, %v4961, %v5149
      %v5151 = vsel %vm5058, %v4962, %v5150
      %v5152 = vsel %vm5060, %v4963, %v5151
      %v5153 = vsel %vm5048, %v4965, %v4964
      %v5154 = vsel %vm5050, %v4966, %v5153
      %v5155 = vsel %vm5052, %v4967, %v5154
      %v5156 = vsel %vm5054, %v4968, %v5155
      %v5157 = vsel %vm5056, %v4969, %v5156
      %v5158 = vsel %vm5058, %v4970, %v5157
      %v5159 = vsel %vm5060, %v4971, %v5158
      %v5160 = vsel %vm5048, %v4973, %v4972
      %v5161 = vsel %vm5050, %v4974, %v5160
      %v5162 = vsel %vm5052, %v4975, %v5161
      %v5163 = vsel %vm5054, %v4976, %v5162
      %v5164 = vsel %vm5056, %v4977, %v5163
      %v5165 = vsel %vm5058, %v4978, %v5164
      %v5166 = vsel %vm5060, %v4979, %v5165
      %v5167 = vsel %vm5048, %v4981, %v4980
      %v5168 = vsel %vm5050, %v4982, %v5167
      %v5169 = vsel %vm5052, %v4983, %v5168
      %v5170 = vsel %vm5054, %v4984, %v5169
      %v5171 = vsel %vm5056, %v4985, %v5170
      %v5172 = vsel %vm5058, %v4986, %v5171
      %v5173 = vsel %vm5060, %v4987, %v5172
      %v5174 = vsel %vm5048, %v4989, %v4988
      %v5175 = vsel %vm5050, %v4990, %v5174
      %v5176 = vsel %vm5052, %v4991, %v5175
      %v5177 = vsel %vm5054, %v4992, %v5176
      %v5178 = vsel %vm5056, %v4993, %v5177
      %v5179 = vsel %vm5058, %v4994, %v5178
      %v5180 = vsel %vm5060, %v4995, %v5179
      %v5181 = vsel %vm5048, %v4997, %v4996
      %v5182 = vsel %vm5050, %v4998, %v5181
      %v5183 = vsel %vm5052, %v4999, %v5182
      %v5184 = vsel %vm5054, %v5000, %v5183
      %v5185 = vsel %vm5056, %v5001, %v5184
      %v5186 = vsel %vm5058, %v5002, %v5185
      %v5187 = vsel %vm5060, %v5003, %v5186
      %v5188 = vsel %vm5048, %v5005, %v5004
      %v5189 = vsel %vm5050, %v5006, %v5188
      %v5190 = vsel %vm5052, %v5007, %v5189
      %v5191 = vsel %vm5054, %v5008, %v5190
      %v5192 = vsel %vm5056, %v5009, %v5191
      %v5193 = vsel %vm5058, %v5010, %v5192
      %v5194 = vsel %vm5060, %v5011, %v5193
      %v5195 = vsel %vm5048, %v5013, %v5012
      %v5196 = vsel %vm5050, %v5014, %v5195
      %v5197 = vsel %vm5052, %v5015, %v5196
      %v5198 = vsel %vm5054, %v5016, %v5197
      %v5199 = vsel %vm5056, %v5017, %v5198
      %v5200 = vsel %vm5058, %v5018, %v5199
      %v5201 = vsel %vm5060, %v5019, %v5200
      %v5202 = vsel %vm5048, %v5021, %v5020
      %v5203 = vsel %vm5050, %v5022, %v5202
      %v5204 = vsel %vm5052, %v5023, %v5203
      %v5205 = vsel %vm5054, %v5024, %v5204
      %v5206 = vsel %vm5056, %v5025, %v5205
      %v5207 = vsel %vm5058, %v5026, %v5206
      %v5208 = vsel %vm5060, %v5027, %v5207
      %v5209 = vsel %vm5048, %v5029, %v5028
      %v5210 = vsel %vm5050, %v5030, %v5209
      %v5211 = vsel %vm5052, %v5031, %v5210
      %v5212 = vsel %vm5054, %v5032, %v5211
      %v5213 = vsel %vm5056, %v5033, %v5212
      %v5214 = vsel %vm5058, %v5034, %v5213
      %v5215 = vsel %vm5060, %v5035, %v5214
      %v5216 = vsel %vm5048, %v5037, %v5036
      %v5217 = vsel %vm5050, %v5038, %v5216
      %v5218 = vsel %vm5052, %v5039, %v5217
      %v5219 = vsel %vm5054, %v5040, %v5218
      %v5220 = vsel %vm5056, %v5041, %v5219
      %v5221 = vsel %vm5058, %v5042, %v5220
      %v5222 = vsel %vm5060, %v5043, %v5221
      %v5223 = vsel %vm5048, %v5045, %v5044
      %v5224 = vsel %vm5050, %v5046, %v5223
      %v5225 = vsel %vm5052, %v5047, %v5224
      %v5265 = vperm.slane %v4414, 0
      %v5266 = vperm.slane %v4430, 0
      %v5267 = vperm.slane %v4446, 0
      %v5268 = vperm.slane %v4462, 0
      %v5269 = vperm.slane %v4478, 0
      %v5270 = vperm.slane %v4494, 0
      %v5271 = vperm.slane %v4510, 0
      %v5272 = vperm.slane %v4526, 0
      %v5273 = vperm.slane %v4542, 0
      %v5274 = vperm.slane %v4558, 0
      %v5275 = vperm.slane %v4574, 0
      %v5276 = vperm.slane %v4590, 0
      %v5277 = vperm.slane %v4606, 0
      %v5278 = vperm.slane %v4622, 0
      %v5279 = vsel %vm5048, %v4854, %v4853
      %v5280 = vsel %vm5050, %v4855, %v5279
      %v5281 = vsel %vm5052, %v4856, %v5280
      %v5282 = vsel %vm5054, %v4857, %v5281
      %v5283 = vsel %vm5056, %v4858, %v5282
      %v5284 = vsel %vm5058, %v4859, %v5283
      %v5285 = vsel %vm5060, %v4860, %v5284
      %v5286 = vsel %vm5048, %v4862, %v4861
      %v5287 = vsel %vm5050, %v4863, %v5286
      %v5288 = vsel %vm5052, %v4864, %v5287
      %v5289 = vsel %vm5054, %v4865, %v5288
      %v5290 = vsel %vm5056, %v5265, %v5289
      %v5291 = vsel %vm5058, %v4867, %v5290
      %v5292 = vsel %vm5060, %v4868, %v5291
      %v5293 = vsel %vm5048, %v4870, %v4869
      %v5294 = vsel %vm5050, %v4871, %v5293
      %v5295 = vsel %vm5052, %v4872, %v5294
      %v5296 = vsel %vm5054, %v4873, %v5295
      %v5297 = vsel %vm5056, %v4874, %v5296
      %v5298 = vsel %vm5058, %v4875, %v5297
      %v5299 = vsel %vm5060, %v4876, %v5298
      %v5300 = vsel %vm5048, %v4878, %v4877
      %v5301 = vsel %vm5050, %v4879, %v5300
      %v5302 = vsel %vm5052, %v5266, %v5301
      %v5303 = vsel %vm5054, %v4881, %v5302
      %v5304 = vsel %vm5056, %v4882, %v5303
      %v5305 = vsel %vm5058, %v4883, %v5304
      %v5306 = vsel %vm5060, %v4884, %v5305
      %v5307 = vsel %vm5048, %v4886, %v4885
      %v5308 = vsel %vm5050, %v4887, %v5307
      %v5309 = vsel %vm5052, %v4888, %v5308
      %v5310 = vsel %vm5054, %v4889, %v5309
      %v5311 = vsel %vm5056, %v4890, %v5310
      %v5312 = vsel %vm5058, %v4891, %v5311
      %v5313 = vsel %vm5060, %v4892, %v5312
      %v5314 = vsel %vm5048, %v5267, %v4893
      %v5315 = vsel %vm5050, %v4895, %v5314
      %v5316 = vsel %vm5052, %v4896, %v5315
      %v5317 = vsel %vm5054, %v4897, %v5316
      %v5318 = vsel %vm5056, %v4898, %v5317
      %v5319 = vsel %vm5058, %v4899, %v5318
      %v5320 = vsel %vm5060, %v4900, %v5319
      %v5321 = vsel %vm5048, %v4902, %v4901
      %v5322 = vsel %vm5050, %v4903, %v5321
      %v5323 = vsel %vm5052, %v4904, %v5322
      %v5324 = vsel %vm5054, %v4905, %v5323
      %v5325 = vsel %vm5056, %v4906, %v5324
      %v5326 = vsel %vm5058, %v4907, %v5325
      %v5327 = vsel %vm5060, %v5268, %v5326
      %v5328 = vsel %vm5048, %v4910, %v4909
      %v5329 = vsel %vm5050, %v4911, %v5328
      %v5330 = vsel %vm5052, %v4912, %v5329
      %v5331 = vsel %vm5054, %v4913, %v5330
      %v5332 = vsel %vm5056, %v4914, %v5331
      %v5333 = vsel %vm5058, %v4915, %v5332
      %v5334 = vsel %vm5060, %v4916, %v5333
      %v5335 = vsel %vm5048, %v4918, %v4917
      %v5336 = vsel %vm5050, %v4919, %v5335
      %v5337 = vsel %vm5052, %v4920, %v5336
      %v5338 = vsel %vm5054, %v4921, %v5337
      %v5339 = vsel %vm5056, %v5269, %v5338
      %v5340 = vsel %vm5058, %v4923, %v5339
      %v5341 = vsel %vm5060, %v4924, %v5340
      %v5342 = vsel %vm5048, %v4926, %v4925
      %v5343 = vsel %vm5050, %v4927, %v5342
      %v5344 = vsel %vm5052, %v4928, %v5343
      %v5345 = vsel %vm5054, %v4929, %v5344
      %v5346 = vsel %vm5056, %v4930, %v5345
      %v5347 = vsel %vm5058, %v4931, %v5346
      %v5348 = vsel %vm5060, %v4932, %v5347
      %v5349 = vsel %vm5048, %v4934, %v4933
      %v5350 = vsel %vm5050, %v4935, %v5349
      %v5351 = vsel %vm5052, %v5270, %v5350
      %v5352 = vsel %vm5054, %v4937, %v5351
      %v5353 = vsel %vm5056, %v4938, %v5352
      %v5354 = vsel %vm5058, %v4939, %v5353
      %v5355 = vsel %vm5060, %v4940, %v5354
      %v5356 = vsel %vm5048, %v4942, %v4941
      %v5357 = vsel %vm5050, %v4943, %v5356
      %v5358 = vsel %vm5052, %v4944, %v5357
      %v5359 = vsel %vm5054, %v4945, %v5358
      %v5360 = vsel %vm5056, %v4946, %v5359
      %v5361 = vsel %vm5058, %v4947, %v5360
      %v5362 = vsel %vm5060, %v4948, %v5361
      %v5363 = vsel %vm5048, %v5271, %v4949
      %v5364 = vsel %vm5050, %v4951, %v5363
      %v5365 = vsel %vm5052, %v4952, %v5364
      %v5366 = vsel %vm5054, %v4953, %v5365
      %v5367 = vsel %vm5056, %v4954, %v5366
      %v5368 = vsel %vm5058, %v4955, %v5367
      %v5369 = vsel %vm5060, %v4956, %v5368
      %v5370 = vsel %vm5048, %v4958, %v4957
      %v5371 = vsel %vm5050, %v4959, %v5370
      %v5372 = vsel %vm5052, %v4960, %v5371
      %v5373 = vsel %vm5054, %v4961, %v5372
      %v5374 = vsel %vm5056, %v4962, %v5373
      %v5375 = vsel %vm5058, %v4963, %v5374
      %v5376 = vsel %vm5060, %v5272, %v5375
      %v5377 = vsel %vm5048, %v4966, %v4965
      %v5378 = vsel %vm5050, %v4967, %v5377
      %v5379 = vsel %vm5052, %v4968, %v5378
      %v5380 = vsel %vm5054, %v4969, %v5379
      %v5381 = vsel %vm5056, %v4970, %v5380
      %v5382 = vsel %vm5058, %v4971, %v5381
      %v5383 = vsel %vm5060, %v4972, %v5382
      %v5384 = vsel %vm5048, %v4974, %v4973
      %v5385 = vsel %vm5050, %v4975, %v5384
      %v5386 = vsel %vm5052, %v4976, %v5385
      %v5387 = vsel %vm5054, %v4977, %v5386
      %v5388 = vsel %vm5056, %v5273, %v5387
      %v5389 = vsel %vm5058, %v4979, %v5388
      %v5390 = vsel %vm5060, %v4980, %v5389
      %v5391 = vsel %vm5048, %v4982, %v4981
      %v5392 = vsel %vm5050, %v4983, %v5391
      %v5393 = vsel %vm5052, %v4984, %v5392
      %v5394 = vsel %vm5054, %v4985, %v5393
      %v5395 = vsel %vm5056, %v4986, %v5394
      %v5396 = vsel %vm5058, %v4987, %v5395
      %v5397 = vsel %vm5060, %v4988, %v5396
      %v5398 = vsel %vm5048, %v4990, %v4989
      %v5399 = vsel %vm5050, %v4991, %v5398
      %v5400 = vsel %vm5052, %v5274, %v5399
      %v5401 = vsel %vm5054, %v4993, %v5400
      %v5402 = vsel %vm5056, %v4994, %v5401
      %v5403 = vsel %vm5058, %v4995, %v5402
      %v5404 = vsel %vm5060, %v4996, %v5403
      %v5405 = vsel %vm5048, %v4998, %v4997
      %v5406 = vsel %vm5050, %v4999, %v5405
      %v5407 = vsel %vm5052, %v5000, %v5406
      %v5408 = vsel %vm5054, %v5001, %v5407
      %v5409 = vsel %vm5056, %v5002, %v5408
      %v5410 = vsel %vm5058, %v5003, %v5409
      %v5411 = vsel %vm5060, %v5004, %v5410
      %v5412 = vsel %vm5048, %v5275, %v5005
      %v5413 = vsel %vm5050, %v5007, %v5412
      %v5414 = vsel %vm5052, %v5008, %v5413
      %v5415 = vsel %vm5054, %v5009, %v5414
      %v5416 = vsel %vm5056, %v5010, %v5415
      %v5417 = vsel %vm5058, %v5011, %v5416
      %v5418 = vsel %vm5060, %v5012, %v5417
      %v5419 = vsel %vm5048, %v5014, %v5013
      %v5420 = vsel %vm5050, %v5015, %v5419
      %v5421 = vsel %vm5052, %v5016, %v5420
      %v5422 = vsel %vm5054, %v5017, %v5421
      %v5423 = vsel %vm5056, %v5018, %v5422
      %v5424 = vsel %vm5058, %v5019, %v5423
      %v5425 = vsel %vm5060, %v5276, %v5424
      %v5426 = vsel %vm5048, %v5022, %v5021
      %v5427 = vsel %vm5050, %v5023, %v5426
      %v5428 = vsel %vm5052, %v5024, %v5427
      %v5429 = vsel %vm5054, %v5025, %v5428
      %v5430 = vsel %vm5056, %v5026, %v5429
      %v5431 = vsel %vm5058, %v5027, %v5430
      %v5432 = vsel %vm5060, %v5028, %v5431
      %v5433 = vsel %vm5048, %v5030, %v5029
      %v5434 = vsel %vm5050, %v5031, %v5433
      %v5435 = vsel %vm5052, %v5032, %v5434
      %v5436 = vsel %vm5054, %v5033, %v5435
      %v5437 = vsel %vm5056, %v5277, %v5436
      %v5438 = vsel %vm5058, %v5035, %v5437
      %v5439 = vsel %vm5060, %v5036, %v5438
      %v5440 = vsel %vm5048, %v5038, %v5037
      %v5441 = vsel %vm5050, %v5039, %v5440
      %v5442 = vsel %vm5052, %v5040, %v5441
      %v5443 = vsel %vm5054, %v5041, %v5442
      %v5444 = vsel %vm5056, %v5042, %v5443
      %v5445 = vsel %vm5058, %v5043, %v5444
      %v5446 = vsel %vm5060, %v5044, %v5445
      %v5447 = vsel %vm5048, %v5046, %v5045
      %v5448 = vsel %vm5050, %v5047, %v5447
      %v5449 = vsel %vm5052, %v5278, %v5448
      %5450 = vrot.lane.b32.xlu0 %v5285, 32
      %v5451 = vpop.permute.xlu0 %5450
      %5452 = vrot.lane.b32.xlu0 %v5292, 32
      %v5453 = vpop.permute.xlu0 %5452
      %5454 = vrot.lane.b32.xlu0 %v5299, 32
      %v5455 = vpop.permute.xlu0 %5454
      %5456 = vrot.lane.b32.xlu0 %v5306, 32
      %v5457 = vpop.permute.xlu0 %5456
      %5458 = vrot.lane.b32.xlu0 %v5313, 32
      %v5459 = vpop.permute.xlu0 %5458
      %5460 = vrot.lane.b32.xlu0 %v5320, 32
      %v5461 = vpop.permute.xlu0 %5460
      %5462 = vrot.lane.b32.xlu0 %v5327, 32
      %v5463 = vpop.permute.xlu0 %5462
      %5464 = vrot.lane.b32.xlu0 %v5334, 32
      %v5465 = vpop.permute.xlu0 %5464
      %5466 = vrot.lane.b32.xlu0 %v5341, 32
      %v5467 = vpop.permute.xlu0 %5466
      %5468 = vrot.lane.b32.xlu0 %v5348, 32
      %v5469 = vpop.permute.xlu0 %5468
      %5470 = vrot.lane.b32.xlu0 %v5355, 32
      %v5471 = vpop.permute.xlu0 %5470
      %5472 = vrot.lane.b32.xlu0 %v5362, 32
      %v5473 = vpop.permute.xlu0 %5472
      %5474 = vrot.lane.b32.xlu0 %v5369, 32
      %v5475 = vpop.permute.xlu0 %5474
      %5476 = vrot.lane.b32.xlu0 %v5376, 32
      %v5477 = vpop.permute.xlu0 %5476
      %5478 = vrot.lane.b32.xlu0 %v5383, 32
      %v5479 = vpop.permute.xlu0 %5478
      %5480 = vrot.lane.b32.xlu0 %v5390, 32
      %v5481 = vpop.permute.xlu0 %5480
      %5482 = vrot.lane.b32.xlu0 %v5397, 32
      %v5483 = vpop.permute.xlu0 %5482
      %5484 = vrot.lane.b32.xlu0 %v5404, 32
      %v5485 = vpop.permute.xlu0 %5484
      %5486 = vrot.lane.b32.xlu0 %v5411, 32
      %v5487 = vpop.permute.xlu0 %5486
      %5488 = vrot.lane.b32.xlu0 %v5418, 32
      %v5489 = vpop.permute.xlu0 %5488
      %5490 = vrot.lane.b32.xlu0 %v5425, 32
      %v5491 = vpop.permute.xlu0 %5490
      %5492 = vrot.lane.b32.xlu0 %v5432, 32
      %v5493 = vpop.permute.xlu0 %5492
      %5494 = vrot.lane.b32.xlu0 %v5439, 32
      %v5495 = vpop.permute.xlu0 %5494
      %5496 = vrot.lane.b32.xlu0 %v5446, 32
      %v5497 = vpop.permute.xlu0 %5496
      %5498 = vrot.lane.b32.xlu0 %v5449, 32
      %v5499 = vpop.permute.xlu0 %5498
      %v5539 = vperm.slane %v4415, 0
      %v5540 = vperm.slane %v4431, 0
      %v5541 = vperm.slane %v4447, 0
      %v5542 = vperm.slane %v4463, 0
      %v5543 = vperm.slane %v4479, 0
      %v5544 = vperm.slane %v4495, 0
      %v5545 = vperm.slane %v4511, 0
      %v5546 = vperm.slane %v4527, 0
      %v5547 = vperm.slane %v4543, 0
      %v5548 = vperm.slane %v4559, 0
      %v5549 = vperm.slane %v4575, 0
      %v5550 = vperm.slane %v4591, 0
      %v5551 = vperm.slane %v4607, 0
      %v5552 = vperm.slane %v4623, 0
      %v5553 = vsel %vm5048, %v4855, %v4854
      %v5554 = vsel %vm5050, %v4856, %v5553
      %v5555 = vsel %vm5052, %v4857, %v5554
      %v5556 = vsel %vm5054, %v4858, %v5555
      %v5557 = vsel %vm5056, %v4859, %v5556
      %v5558 = vsel %vm5058, %v4860, %v5557
      %v5559 = vsel %vm5060, %v4861, %v5558
      %v5560 = vsel %vm5048, %v4863, %v4862
      %v5561 = vsel %vm5050, %v4864, %v5560
      %v5562 = vsel %vm5052, %v4865, %v5561
      %v5563 = vsel %vm5054, %v5265, %v5562
      %v5564 = vsel %vm5056, %v5539, %v5563
      %v5565 = vsel %vm5058, %v4868, %v5564
      %v5566 = vsel %vm5060, %v4869, %v5565
      %v5567 = vsel %vm5048, %v4871, %v4870
      %v5568 = vsel %vm5050, %v4872, %v5567
      %v5569 = vsel %vm5052, %v4873, %v5568
      %v5570 = vsel %vm5054, %v4874, %v5569
      %v5571 = vsel %vm5056, %v4875, %v5570
      %v5572 = vsel %vm5058, %v4876, %v5571
      %v5573 = vsel %vm5060, %v4877, %v5572
      %v5574 = vsel %vm5048, %v4879, %v4878
      %v5575 = vsel %vm5050, %v5266, %v5574
      %v5576 = vsel %vm5052, %v5540, %v5575
      %v5577 = vsel %vm5054, %v4882, %v5576
      %v5578 = vsel %vm5056, %v4883, %v5577
      %v5579 = vsel %vm5058, %v4884, %v5578
      %v5580 = vsel %vm5060, %v4885, %v5579
      %v5581 = vsel %vm5048, %v4887, %v4886
      %v5582 = vsel %vm5050, %v4888, %v5581
      %v5583 = vsel %vm5052, %v4889, %v5582
      %v5584 = vsel %vm5054, %v4890, %v5583
      %v5585 = vsel %vm5056, %v4891, %v5584
      %v5586 = vsel %vm5058, %v4892, %v5585
      %v5587 = vsel %vm5060, %v4893, %v5586
      %v5588 = vsel %vm5048, %v5541, %v5267
      %v5589 = vsel %vm5050, %v4896, %v5588
      %v5590 = vsel %vm5052, %v4897, %v5589
      %v5591 = vsel %vm5054, %v4898, %v5590
      %v5592 = vsel %vm5056, %v4899, %v5591
      %v5593 = vsel %vm5058, %v4900, %v5592
      %v5594 = vsel %vm5060, %v4901, %v5593
      %v5595 = vsel %vm5048, %v4903, %v4902
      %v5596 = vsel %vm5050, %v4904, %v5595
      %v5597 = vsel %vm5052, %v4905, %v5596
      %v5598 = vsel %vm5054, %v4906, %v5597
      %v5599 = vsel %vm5056, %v4907, %v5598
      %v5600 = vsel %vm5058, %v5268, %v5599
      %v5601 = vsel %vm5060, %v5542, %v5600
      %v5602 = vsel %vm5048, %v4911, %v4910
      %v5603 = vsel %vm5050, %v4912, %v5602
      %v5604 = vsel %vm5052, %v4913, %v5603
      %v5605 = vsel %vm5054, %v4914, %v5604
      %v5606 = vsel %vm5056, %v4915, %v5605
      %v5607 = vsel %vm5058, %v4916, %v5606
      %v5608 = vsel %vm5060, %v4917, %v5607
      %v5609 = vsel %vm5048, %v4919, %v4918
      %v5610 = vsel %vm5050, %v4920, %v5609
      %v5611 = vsel %vm5052, %v4921, %v5610
      %v5612 = vsel %vm5054, %v5269, %v5611
      %v5613 = vsel %vm5056, %v5543, %v5612
      %v5614 = vsel %vm5058, %v4924, %v5613
      %v5615 = vsel %vm5060, %v4925, %v5614
      %v5616 = vsel %vm5048, %v4927, %v4926
      %v5617 = vsel %vm5050, %v4928, %v5616
      %v5618 = vsel %vm5052, %v4929, %v5617
      %v5619 = vsel %vm5054, %v4930, %v5618
      %v5620 = vsel %vm5056, %v4931, %v5619
      %v5621 = vsel %vm5058, %v4932, %v5620
      %v5622 = vsel %vm5060, %v4933, %v5621
      %v5623 = vsel %vm5048, %v4935, %v4934
      %v5624 = vsel %vm5050, %v5270, %v5623
      %v5625 = vsel %vm5052, %v5544, %v5624
      %v5626 = vsel %vm5054, %v4938, %v5625
      %v5627 = vsel %vm5056, %v4939, %v5626
      %v5628 = vsel %vm5058, %v4940, %v5627
      %v5629 = vsel %vm5060, %v4941, %v5628
      %v5630 = vsel %vm5048, %v4943, %v4942
      %v5631 = vsel %vm5050, %v4944, %v5630
      %v5632 = vsel %vm5052, %v4945, %v5631
      %v5633 = vsel %vm5054, %v4946, %v5632
      %v5634 = vsel %vm5056, %v4947, %v5633
      %v5635 = vsel %vm5058, %v4948, %v5634
      %v5636 = vsel %vm5060, %v4949, %v5635
      %v5637 = vsel %vm5048, %v5545, %v5271
      %v5638 = vsel %vm5050, %v4952, %v5637
      %v5639 = vsel %vm5052, %v4953, %v5638
      %v5640 = vsel %vm5054, %v4954, %v5639
      %v5641 = vsel %vm5056, %v4955, %v5640
      %v5642 = vsel %vm5058, %v4956, %v5641
      %v5643 = vsel %vm5060, %v4957, %v5642
      %v5644 = vsel %vm5048, %v4959, %v4958
      %v5645 = vsel %vm5050, %v4960, %v5644
      %v5646 = vsel %vm5052, %v4961, %v5645
      %v5647 = vsel %vm5054, %v4962, %v5646
      %v5648 = vsel %vm5056, %v4963, %v5647
      %v5649 = vsel %vm5058, %v5272, %v5648
      %v5650 = vsel %vm5060, %v5546, %v5649
      %v5651 = vsel %vm5048, %v4967, %v4966
      %v5652 = vsel %vm5050, %v4968, %v5651
      %v5653 = vsel %vm5052, %v4969, %v5652
      %v5654 = vsel %vm5054, %v4970, %v5653
      %v5655 = vsel %vm5056, %v4971, %v5654
      %v5656 = vsel %vm5058, %v4972, %v5655
      %v5657 = vsel %vm5060, %v4973, %v5656
      %v5658 = vsel %vm5048, %v4975, %v4974
      %v5659 = vsel %vm5050, %v4976, %v5658
      %v5660 = vsel %vm5052, %v4977, %v5659
      %v5661 = vsel %vm5054, %v5273, %v5660
      %v5662 = vsel %vm5056, %v5547, %v5661
      %v5663 = vsel %vm5058, %v4980, %v5662
      %v5664 = vsel %vm5060, %v4981, %v5663
      %v5665 = vsel %vm5048, %v4983, %v4982
      %v5666 = vsel %vm5050, %v4984, %v5665
      %v5667 = vsel %vm5052, %v4985, %v5666
      %v5668 = vsel %vm5054, %v4986, %v5667
      %v5669 = vsel %vm5056, %v4987, %v5668
      %v5670 = vsel %vm5058, %v4988, %v5669
      %v5671 = vsel %vm5060, %v4989, %v5670
      %v5672 = vsel %vm5048, %v4991, %v4990
      %v5673 = vsel %vm5050, %v5274, %v5672
      %v5674 = vsel %vm5052, %v5548, %v5673
      %v5675 = vsel %vm5054, %v4994, %v5674
      %v5676 = vsel %vm5056, %v4995, %v5675
      %v5677 = vsel %vm5058, %v4996, %v5676
      %v5678 = vsel %vm5060, %v4997, %v5677
      %v5679 = vsel %vm5048, %v4999, %v4998
      %v5680 = vsel %vm5050, %v5000, %v5679
      %v5681 = vsel %vm5052, %v5001, %v5680
      %v5682 = vsel %vm5054, %v5002, %v5681
      %v5683 = vsel %vm5056, %v5003, %v5682
      %v5684 = vsel %vm5058, %v5004, %v5683
      %v5685 = vsel %vm5060, %v5005, %v5684
      %v5686 = vsel %vm5048, %v5549, %v5275
      %v5687 = vsel %vm5050, %v5008, %v5686
      %v5688 = vsel %vm5052, %v5009, %v5687
      %v5689 = vsel %vm5054, %v5010, %v5688
      %v5690 = vsel %vm5056, %v5011, %v5689
      %v5691 = vsel %vm5058, %v5012, %v5690
      %v5692 = vsel %vm5060, %v5013, %v5691
      %v5693 = vsel %vm5048, %v5015, %v5014
      %v5694 = vsel %vm5050, %v5016, %v5693
      %v5695 = vsel %vm5052, %v5017, %v5694
      %v5696 = vsel %vm5054, %v5018, %v5695
      %v5697 = vsel %vm5056, %v5019, %v5696
      %v5698 = vsel %vm5058, %v5276, %v5697
      %v5699 = vsel %vm5060, %v5550, %v5698
      %v5700 = vsel %vm5048, %v5023, %v5022
      %v5701 = vsel %vm5050, %v5024, %v5700
      %v5702 = vsel %vm5052, %v5025, %v5701
      %v5703 = vsel %vm5054, %v5026, %v5702
      %v5704 = vsel %vm5056, %v5027, %v5703
      %v5705 = vsel %vm5058, %v5028, %v5704
      %v5706 = vsel %vm5060, %v5029, %v5705
      %v5707 = vsel %vm5048, %v5031, %v5030
      %v5708 = vsel %vm5050, %v5032, %v5707
      %v5709 = vsel %vm5052, %v5033, %v5708
      %v5710 = vsel %vm5054, %v5277, %v5709
      %v5711 = vsel %vm5056, %v5551, %v5710
      %v5712 = vsel %vm5058, %v5036, %v5711
      %v5713 = vsel %vm5060, %v5037, %v5712
      %v5714 = vsel %vm5048, %v5039, %v5038
      %v5715 = vsel %vm5050, %v5040, %v5714
      %v5716 = vsel %vm5052, %v5041, %v5715
      %v5717 = vsel %vm5054, %v5042, %v5716
      %v5718 = vsel %vm5056, %v5043, %v5717
      %v5719 = vsel %vm5058, %v5044, %v5718
      %v5720 = vsel %vm5060, %v5045, %v5719
      %v5721 = vsel %vm5048, %v5047, %v5046
      %v5722 = vsel %vm5050, %v5278, %v5721
      %v5723 = vsel %vm5052, %v5552, %v5722
      %5724 = vrot.lane.b32.xlu0 %v5559, 64
      %v5725 = vpop.permute.xlu0 %5724
      %5726 = vrot.lane.b32.xlu0 %v5566, 64
      %v5727 = vpop.permute.xlu0 %5726
      %5728 = vrot.lane.b32.xlu0 %v5573, 64
      %v5729 = vpop.permute.xlu0 %5728
      %5730 = vrot.lane.b32.xlu0 %v5580, 64
      %v5731 = vpop.permute.xlu0 %5730
      %5732 = vrot.lane.b32.xlu0 %v5587, 64
      %v5733 = vpop.permute.xlu0 %5732
      %5734 = vrot.lane.b32.xlu0 %v5594, 64
      %v5735 = vpop.permute.xlu0 %5734
      %5736 = vrot.lane.b32.xlu0 %v5601, 64
      %v5737 = vpop.permute.xlu0 %5736
      %5738 = vrot.lane.b32.xlu0 %v5608, 64
      %v5739 = vpop.permute.xlu0 %5738
      %5740 = vrot.lane.b32.xlu0 %v5615, 64
      %v5741 = vpop.permute.xlu0 %5740
      %5742 = vrot.lane.b32.xlu0 %v5622, 64
      %v5743 = vpop.permute.xlu0 %5742
      %5744 = vrot.lane.b32.xlu0 %v5629, 64
      %v5745 = vpop.permute.xlu0 %5744
      %5746 = vrot.lane.b32.xlu0 %v5636, 64
      %v5747 = vpop.permute.xlu0 %5746
      %5748 = vrot.lane.b32.xlu0 %v5643, 64
      %v5749 = vpop.permute.xlu0 %5748
      %5750 = vrot.lane.b32.xlu0 %v5650, 64
      %v5751 = vpop.permute.xlu0 %5750
      %5752 = vrot.lane.b32.xlu0 %v5657, 64
      %v5753 = vpop.permute.xlu0 %5752
      %5754 = vrot.lane.b32.xlu0 %v5664, 64
      %v5755 = vpop.permute.xlu0 %5754
      %5756 = vrot.lane.b32.xlu0 %v5671, 64
      %v5757 = vpop.permute.xlu0 %5756
      %5758 = vrot.lane.b32.xlu0 %v5678, 64
      %v5759 = vpop.permute.xlu0 %5758
      %5760 = vrot.lane.b32.xlu0 %v5685, 64
      %v5761 = vpop.permute.xlu0 %5760
      %5762 = vrot.lane.b32.xlu0 %v5692, 64
      %v5763 = vpop.permute.xlu0 %5762
      %5764 = vrot.lane.b32.xlu0 %v5699, 64
      %v5765 = vpop.permute.xlu0 %5764
      %5766 = vrot.lane.b32.xlu0 %v5706, 64
      %v5767 = vpop.permute.xlu0 %5766
      %5768 = vrot.lane.b32.xlu0 %v5713, 64
      %v5769 = vpop.permute.xlu0 %5768
      %5770 = vrot.lane.b32.xlu0 %v5720, 64
      %v5771 = vpop.permute.xlu0 %5770
      %5772 = vrot.lane.b32.xlu0 %v5723, 64
      %v5773 = vpop.permute.xlu0 %5772
      %v5813 = vperm.slane %v4624, 0
      %v5814 = vperm.slane %v4625, 0
      %v5815 = vperm.slane %v4626, 0
      %v5816 = vperm.slane %v4627, 0
      %v5817 = vperm.slane %v4628, 0
      %v5818 = vperm.slane %v4629, 0
      %v5819 = vperm.slane %v4630, 0
      %v5820 = vperm.slane %v4631, 0
      %v5821 = vperm.slane %v4632, 0
      %v5822 = vperm.slane %v4633, 0
      %v5823 = vperm.slane %v4634, 0
      %v5824 = vperm.slane %v4635, 0
      %v5825 = vperm.slane %v4636, 0
      %v5826 = vperm.slane %v4637, 0
      %v5827 = vsel %vm5048, %v4867, %v4866
      %v5828 = vsel %vm5050, %v4868, %v5827
      %v5829 = vsel %vm5052, %v4869, %v5828
      %v5830 = vsel %vm5054, %v4870, %v5829
      %v5831 = vsel %vm5056, %v4871, %v5830
      %v5832 = vsel %vm5058, %v4872, %v5831
      %v5833 = vsel %vm5060, %v4873, %v5832
      %v5834 = vsel %vm5048, %v4875, %v4874
      %v5835 = vsel %vm5050, %v4876, %v5834
      %v5836 = vsel %vm5052, %v4877, %v5835
      %v5837 = vsel %vm5054, %v4878, %v5836
      %v5838 = vsel %vm5056, %v4879, %v5837
      %v5839 = vsel %vm5058, %v4880, %v5838
      %v5840 = vsel %vm5060, %v4881, %v5839
      %v5841 = vsel %vm5048, %v4883, %v4882
      %v5842 = vsel %vm5050, %v4884, %v5841
      %v5843 = vsel %vm5052, %v4885, %v5842
      %v5844 = vsel %vm5054, %v4886, %v5843
      %v5845 = vsel %vm5056, %v4887, %v5844
      %v5846 = vsel %vm5058, %v4888, %v5845
      %v5847 = vsel %vm5060, %v4889, %v5846
      %v5848 = vsel %vm5048, %v4891, %v4890
      %v5849 = vsel %vm5050, %v4892, %v5848
      %v5850 = vsel %vm5052, %v4893, %v5849
      %v5851 = vsel %vm5054, %v4894, %v5850
      %v5852 = vsel %vm5056, %v4895, %v5851
      %v5853 = vsel %vm5058, %v4896, %v5852
      %v5854 = vsel %vm5060, %v4897, %v5853
      %v5855 = vsel %vm5048, %v4899, %v4898
      %v5856 = vsel %vm5050, %v4900, %v5855
      %v5857 = vsel %vm5052, %v4901, %v5856
      %v5858 = vsel %vm5054, %v4902, %v5857
      %v5859 = vsel %vm5056, %v4903, %v5858
      %v5860 = vsel %vm5058, %v4904, %v5859
      %v5861 = vsel %vm5060, %v4905, %v5860
      %v5862 = vsel %vm5048, %v4907, %v4906
      %v5863 = vsel %vm5050, %v4908, %v5862
      %v5864 = vsel %vm5052, %v4909, %v5863
      %v5865 = vsel %vm5054, %v4910, %v5864
      %v5866 = vsel %vm5056, %v4911, %v5865
      %v5867 = vsel %vm5058, %v4912, %v5866
      %v5868 = vsel %vm5060, %v4913, %v5867
      %v5869 = vsel %vm5048, %v4915, %v4914
      %v5870 = vsel %vm5050, %v4916, %v5869
      %v5871 = vsel %vm5052, %v4917, %v5870
      %v5872 = vsel %vm5054, %v4918, %v5871
      %v5873 = vsel %vm5056, %v4919, %v5872
      %v5874 = vsel %vm5058, %v4920, %v5873
      %v5875 = vsel %vm5060, %v4921, %v5874
      %v5876 = vsel %vm5048, %v4923, %v4922
      %v5877 = vsel %vm5050, %v4924, %v5876
      %v5878 = vsel %vm5052, %v4925, %v5877
      %v5879 = vsel %vm5054, %v4926, %v5878
      %v5880 = vsel %vm5056, %v4927, %v5879
      %v5881 = vsel %vm5058, %v4928, %v5880
      %v5882 = vsel %vm5060, %v4929, %v5881
      %v5883 = vsel %vm5048, %v4931, %v4930
      %v5884 = vsel %vm5050, %v4932, %v5883
      %v5885 = vsel %vm5052, %v4933, %v5884
      %v5886 = vsel %vm5054, %v4934, %v5885
      %v5887 = vsel %vm5056, %v4935, %v5886
      %v5888 = vsel %vm5058, %v4936, %v5887
      %v5889 = vsel %vm5060, %v4937, %v5888
      %v5890 = vsel %vm5048, %v4939, %v4938
      %v5891 = vsel %vm5050, %v4940, %v5890
      %v5892 = vsel %vm5052, %v4941, %v5891
      %v5893 = vsel %vm5054, %v4942, %v5892
      %v5894 = vsel %vm5056, %v4943, %v5893
      %v5895 = vsel %vm5058, %v4944, %v5894
      %v5896 = vsel %vm5060, %v4945, %v5895
      %v5897 = vsel %vm5048, %v4947, %v4946
      %v5898 = vsel %vm5050, %v4948, %v5897
      %v5899 = vsel %vm5052, %v4949, %v5898
      %v5900 = vsel %vm5054, %v4950, %v5899
      %v5901 = vsel %vm5056, %v4951, %v5900
      %v5902 = vsel %vm5058, %v4952, %v5901
      %v5903 = vsel %vm5060, %v4953, %v5902
      %v5904 = vsel %vm5048, %v4955, %v4954
      %v5905 = vsel %vm5050, %v4956, %v5904
      %v5906 = vsel %vm5052, %v4957, %v5905
      %v5907 = vsel %vm5054, %v4958, %v5906
      %v5908 = vsel %vm5056, %v4959, %v5907
      %v5909 = vsel %vm5058, %v4960, %v5908
      %v5910 = vsel %vm5060, %v4961, %v5909
      %v5911 = vsel %vm5048, %v4963, %v4962
      %v5912 = vsel %vm5050, %v4964, %v5911
      %v5913 = vsel %vm5052, %v4965, %v5912
      %v5914 = vsel %vm5054, %v4966, %v5913
      %v5915 = vsel %vm5056, %v4967, %v5914
      %v5916 = vsel %vm5058, %v4968, %v5915
      %v5917 = vsel %vm5060, %v4969, %v5916
      %v5918 = vsel %vm5048, %v4971, %v4970
      %v5919 = vsel %vm5050, %v4972, %v5918
      %v5920 = vsel %vm5052, %v4973, %v5919
      %v5921 = vsel %vm5054, %v4974, %v5920
      %v5922 = vsel %vm5056, %v4975, %v5921
      %v5923 = vsel %vm5058, %v4976, %v5922
      %v5924 = vsel %vm5060, %v4977, %v5923
      %v5925 = vsel %vm5048, %v4979, %v4978
      %v5926 = vsel %vm5050, %v4980, %v5925
      %v5927 = vsel %vm5052, %v4981, %v5926
      %v5928 = vsel %vm5054, %v4982, %v5927
      %v5929 = vsel %vm5056, %v4983, %v5928
      %v5930 = vsel %vm5058, %v4984, %v5929
      %v5931 = vsel %vm5060, %v4985, %v5930
      %v5932 = vsel %vm5048, %v4987, %v4986
      %v5933 = vsel %vm5050, %v4988, %v5932
      %v5934 = vsel %vm5052, %v4989, %v5933
      %v5935 = vsel %vm5054, %v4990, %v5934
      %v5936 = vsel %vm5056, %v4991, %v5935
      %v5937 = vsel %vm5058, %v4992, %v5936
      %v5938 = vsel %vm5060, %v4993, %v5937
      %v5939 = vsel %vm5048, %v4995, %v4994
      %v5940 = vsel %vm5050, %v4996, %v5939
      %v5941 = vsel %vm5052, %v4997, %v5940
      %v5942 = vsel %vm5054, %v4998, %v5941
      %v5943 = vsel %vm5056, %v4999, %v5942
      %v5944 = vsel %vm5058, %v5000, %v5943
      %v5945 = vsel %vm5060, %v5001, %v5944
      %v5946 = vsel %vm5048, %v5003, %v5002
      %v5947 = vsel %vm5050, %v5004, %v5946
      %v5948 = vsel %vm5052, %v5005, %v5947
      %v5949 = vsel %vm5054, %v5006, %v5948
      %v5950 = vsel %vm5056, %v5007, %v5949
      %v5951 = vsel %vm5058, %v5008, %v5950
      %v5952 = vsel %vm5060, %v5009, %v5951
      %v5953 = vsel %vm5048, %v5011, %v5010
      %v5954 = vsel %vm5050, %v5012, %v5953
      %v5955 = vsel %vm5052, %v5013, %v5954
      %v5956 = vsel %vm5054, %v5014, %v5955
      %v5957 = vsel %vm5056, %v5015, %v5956
      %v5958 = vsel %vm5058, %v5016, %v5957
      %v5959 = vsel %vm5060, %v5017, %v5958
      %v5960 = vsel %vm5048, %v5019, %v5018
      %v5961 = vsel %vm5050, %v5020, %v5960
      %v5962 = vsel %vm5052, %v5021, %v5961
      %v5963 = vsel %vm5054, %v5022, %v5962
      %v5964 = vsel %vm5056, %v5023, %v5963
      %v5965 = vsel %vm5058, %v5024, %v5964
      %v5966 = vsel %vm5060, %v5025, %v5965
      %v5967 = vsel %vm5048, %v5027, %v5026
      %v5968 = vsel %vm5050, %v5028, %v5967
      %v5969 = vsel %vm5052, %v5029, %v5968
      %v5970 = vsel %vm5054, %v5030, %v5969
      %v5971 = vsel %vm5056, %v5031, %v5970
      %v5972 = vsel %vm5058, %v5032, %v5971
      %v5973 = vsel %vm5060, %v5033, %v5972
      %v5974 = vsel %vm5048, %v5035, %v5034
      %v5975 = vsel %vm5050, %v5036, %v5974
      %v5976 = vsel %vm5052, %v5037, %v5975
      %v5977 = vsel %vm5054, %v5038, %v5976
      %v5978 = vsel %vm5056, %v5039, %v5977
      %v5979 = vsel %vm5058, %v5040, %v5978
      %v5980 = vsel %vm5060, %v5041, %v5979
      %v5981 = vsel %vm5048, %v5043, %v5042
      %v5982 = vsel %vm5050, %v5044, %v5981
      %v5983 = vsel %vm5052, %v5045, %v5982
      %v5984 = vsel %vm5054, %v5046, %v5983
      %v5985 = vsel %vm5056, %v5047, %v5984
      %v5986 = vsel %vm5058, %v5813, %v5985
      %v5987 = vsel %vm5060, %v5814, %v5986
      %v5988 = vsel %vm5048, %v5816, %v5815
      %v5989 = vsel %vm5050, %v5817, %v5988
      %v5990 = vsel %vm5052, %v5818, %v5989
      %v5991 = vsel %vm5054, %v5819, %v5990
      %v5992 = vsel %vm5056, %v5820, %v5991
      %v5993 = vsel %vm5058, %v5821, %v5992
      %v5994 = vsel %vm5060, %v5822, %v5993
      %v5995 = vsel %vm5048, %v5824, %v5823
      %v5996 = vsel %vm5050, %v5825, %v5995
      %v5997 = vsel %vm5052, %v5826, %v5996
      %5998 = vrot.lane.b32.xlu0 %v5833, 96
      %v5999 = vpop.permute.xlu0 %5998
      %6000 = vrot.lane.b32.xlu0 %v5840, 96
      %v6001 = vpop.permute.xlu0 %6000
      %6002 = vrot.lane.b32.xlu0 %v5847, 96
      %v6003 = vpop.permute.xlu0 %6002
      %6004 = vrot.lane.b32.xlu0 %v5854, 96
      %v6005 = vpop.permute.xlu0 %6004
      %6006 = vrot.lane.b32.xlu0 %v5861, 96
      %v6007 = vpop.permute.xlu0 %6006
      %6008 = vrot.lane.b32.xlu0 %v5868, 96
      %v6009 = vpop.permute.xlu0 %6008
      %6010 = vrot.lane.b32.xlu0 %v5875, 96
      %v6011 = vpop.permute.xlu0 %6010
      %6012 = vrot.lane.b32.xlu0 %v5882, 96
      %v6013 = vpop.permute.xlu0 %6012
      %6014 = vrot.lane.b32.xlu0 %v5889, 96
      %v6015 = vpop.permute.xlu0 %6014
      %6016 = vrot.lane.b32.xlu0 %v5896, 96
      %v6017 = vpop.permute.xlu0 %6016
      %6018 = vrot.lane.b32.xlu0 %v5903, 96
      %v6019 = vpop.permute.xlu0 %6018
      %6020 = vrot.lane.b32.xlu0 %v5910, 96
      %v6021 = vpop.permute.xlu0 %6020
      %6022 = vrot.lane.b32.xlu0 %v5917, 96
      %v6023 = vpop.permute.xlu0 %6022
      %6024 = vrot.lane.b32.xlu0 %v5924, 96
      %v6025 = vpop.permute.xlu0 %6024
      %6026 = vrot.lane.b32.xlu0 %v5931, 96
      %v6027 = vpop.permute.xlu0 %6026
      %6028 = vrot.lane.b32.xlu0 %v5938, 96
      %v6029 = vpop.permute.xlu0 %6028
      %6030 = vrot.lane.b32.xlu0 %v5945, 96
      %v6031 = vpop.permute.xlu0 %6030
      %6032 = vrot.lane.b32.xlu0 %v5952, 96
      %v6033 = vpop.permute.xlu0 %6032
      %6034 = vrot.lane.b32.xlu0 %v5959, 96
      %v6035 = vpop.permute.xlu0 %6034
      %6036 = vrot.lane.b32.xlu0 %v5966, 96
      %v6037 = vpop.permute.xlu0 %6036
      %6038 = vrot.lane.b32.xlu0 %v5973, 96
      %v6039 = vpop.permute.xlu0 %6038
      %6040 = vrot.lane.b32.xlu0 %v5980, 96
      %v6041 = vpop.permute.xlu0 %6040
      %6042 = vrot.lane.b32.xlu0 %v5987, 96
      %v6043 = vpop.permute.xlu0 %6042
      %6044 = vrot.lane.b32.xlu0 %v5994, 96
      %v6045 = vpop.permute.xlu0 %6044
      %6046 = vrot.lane.b32.xlu0 %v5997, 96
      %v6047 = vpop.permute.xlu0 %6046
      %v6074 = vperm.slane %v4638, 0
      %v6075 = vsel %vm5048, %v4868, %v4867
      %v6076 = vsel %vm5050, %v4869, %v6075
      %v6077 = vsel %vm5052, %v4870, %v6076
      %v6078 = vsel %vm5054, %v4871, %v6077
      %v6079 = vsel %vm5056, %v4872, %v6078
      %v6080 = vsel %vm5058, %v4873, %v6079
      %v6081 = vsel %vm5060, %v4874, %v6080
      %v6082 = vsel %vm5048, %v4876, %v4875
      %v6083 = vsel %vm5050, %v4877, %v6082
      %v6084 = vsel %vm5052, %v4878, %v6083
      %v6085 = vsel %vm5054, %v4879, %v6084
      %v6086 = vsel %vm5056, %v5266, %v6085
      %v6087 = vsel %vm5058, %v4881, %v6086
      %v6088 = vsel %vm5060, %v4882, %v6087
      %v6089 = vsel %vm5048, %v4884, %v4883
      %v6090 = vsel %vm5050, %v4885, %v6089
      %v6091 = vsel %vm5052, %v4886, %v6090
      %v6092 = vsel %vm5054, %v4887, %v6091
      %v6093 = vsel %vm5056, %v4888, %v6092
      %v6094 = vsel %vm5058, %v4889, %v6093
      %v6095 = vsel %vm5060, %v4890, %v6094
      %v6096 = vsel %vm5048, %v4892, %v4891
      %v6097 = vsel %vm5050, %v4893, %v6096
      %v6098 = vsel %vm5052, %v5267, %v6097
      %v6099 = vsel %vm5054, %v4895, %v6098
      %v6100 = vsel %vm5056, %v4896, %v6099
      %v6101 = vsel %vm5058, %v4897, %v6100
      %v6102 = vsel %vm5060, %v4898, %v6101
      %v6103 = vsel %vm5048, %v4900, %v4899
      %v6104 = vsel %vm5050, %v4901, %v6103
      %v6105 = vsel %vm5052, %v4902, %v6104
      %v6106 = vsel %vm5054, %v4903, %v6105
      %v6107 = vsel %vm5056, %v4904, %v6106
      %v6108 = vsel %vm5058, %v4905, %v6107
      %v6109 = vsel %vm5060, %v4906, %v6108
      %v6110 = vsel %vm5048, %v5268, %v4907
      %v6111 = vsel %vm5050, %v4909, %v6110
      %v6112 = vsel %vm5052, %v4910, %v6111
      %v6113 = vsel %vm5054, %v4911, %v6112
      %v6114 = vsel %vm5056, %v4912, %v6113
      %v6115 = vsel %vm5058, %v4913, %v6114
      %v6116 = vsel %vm5060, %v4914, %v6115
      %v6117 = vsel %vm5048, %v4916, %v4915
      %v6118 = vsel %vm5050, %v4917, %v6117
      %v6119 = vsel %vm5052, %v4918, %v6118
      %v6120 = vsel %vm5054, %v4919, %v6119
      %v6121 = vsel %vm5056, %v4920, %v6120
      %v6122 = vsel %vm5058, %v4921, %v6121
      %v6123 = vsel %vm5060, %v5269, %v6122
      %v6124 = vsel %vm5048, %v4924, %v4923
      %v6125 = vsel %vm5050, %v4925, %v6124
      %v6126 = vsel %vm5052, %v4926, %v6125
      %v6127 = vsel %vm5054, %v4927, %v6126
      %v6128 = vsel %vm5056, %v4928, %v6127
      %v6129 = vsel %vm5058, %v4929, %v6128
      %v6130 = vsel %vm5060, %v4930, %v6129
      %v6131 = vsel %vm5048, %v4932, %v4931
      %v6132 = vsel %vm5050, %v4933, %v6131
      %v6133 = vsel %vm5052, %v4934, %v6132
      %v6134 = vsel %vm5054, %v4935, %v6133
      %v6135 = vsel %vm5056, %v5270, %v6134
      %v6136 = vsel %vm5058, %v4937, %v6135
      %v6137 = vsel %vm5060, %v4938, %v6136
      %v6138 = vsel %vm5048, %v4940, %v4939
      %v6139 = vsel %vm5050, %v4941, %v6138
      %v6140 = vsel %vm5052, %v4942, %v6139
      %v6141 = vsel %vm5054, %v4943, %v6140
      %v6142 = vsel %vm5056, %v4944, %v6141
      %v6143 = vsel %vm5058, %v4945, %v6142
      %v6144 = vsel %vm5060, %v4946, %v6143
      %v6145 = vsel %vm5048, %v4948, %v4947
      %v6146 = vsel %vm5050, %v4949, %v6145
      %v6147 = vsel %vm5052, %v5271, %v6146
      %v6148 = vsel %vm5054, %v4951, %v6147
      %v6149 = vsel %vm5056, %v4952, %v6148
      %v6150 = vsel %vm5058, %v4953, %v6149
      %v6151 = vsel %vm5060, %v4954, %v6150
      %v6152 = vsel %vm5048, %v4956, %v4955
      %v6153 = vsel %vm5050, %v4957, %v6152
      %v6154 = vsel %vm5052, %v4958, %v6153
      %v6155 = vsel %vm5054, %v4959, %v6154
      %v6156 = vsel %vm5056, %v4960, %v6155
      %v6157 = vsel %vm5058, %v4961, %v6156
      %v6158 = vsel %vm5060, %v4962, %v6157
      %v6159 = vsel %vm5048, %v5272, %v4963
      %v6160 = vsel %vm5050, %v4965, %v6159
      %v6161 = vsel %vm5052, %v4966, %v6160
      %v6162 = vsel %vm5054, %v4967, %v6161
      %v6163 = vsel %vm5056, %v4968, %v6162
      %v6164 = vsel %vm5058, %v4969, %v6163
      %v6165 = vsel %vm5060, %v4970, %v6164
      %v6166 = vsel %vm5048, %v4972, %v4971
      %v6167 = vsel %vm5050, %v4973, %v6166
      %v6168 = vsel %vm5052, %v4974, %v6167
      %v6169 = vsel %vm5054, %v4975, %v6168
      %v6170 = vsel %vm5056, %v4976, %v6169
      %v6171 = vsel %vm5058, %v4977, %v6170
      %v6172 = vsel %vm5060, %v5273, %v6171
      %v6173 = vsel %vm5048, %v4980, %v4979
      %v6174 = vsel %vm5050, %v4981, %v6173
      %v6175 = vsel %vm5052, %v4982, %v6174
      %v6176 = vsel %vm5054, %v4983, %v6175
      %v6177 = vsel %vm5056, %v4984, %v6176
      %v6178 = vsel %vm5058, %v4985, %v6177
      %v6179 = vsel %vm5060, %v4986, %v6178
      %v6180 = vsel %vm5048, %v4988, %v4987
      %v6181 = vsel %vm5050, %v4989, %v6180
      %v6182 = vsel %vm5052, %v4990, %v6181
      %v6183 = vsel %vm5054, %v4991, %v6182
      %v6184 = vsel %vm5056, %v5274, %v6183
      %v6185 = vsel %vm5058, %v4993, %v6184
      %v6186 = vsel %vm5060, %v4994, %v6185
      %v6187 = vsel %vm5048, %v4996, %v4995
      %v6188 = vsel %vm5050, %v4997, %v6187
      %v6189 = vsel %vm5052, %v4998, %v6188
      %v6190 = vsel %vm5054, %v4999, %v6189
      %v6191 = vsel %vm5056, %v5000, %v6190
      %v6192 = vsel %vm5058, %v5001, %v6191
      %v6193 = vsel %vm5060, %v5002, %v6192
      %v6194 = vsel %vm5048, %v5004, %v5003
      %v6195 = vsel %vm5050, %v5005, %v6194
      %v6196 = vsel %vm5052, %v5275, %v6195
      %v6197 = vsel %vm5054, %v5007, %v6196
      %v6198 = vsel %vm5056, %v5008, %v6197
      %v6199 = vsel %vm5058, %v5009, %v6198
      %v6200 = vsel %vm5060, %v5010, %v6199
      %v6201 = vsel %vm5048, %v5012, %v5011
      %v6202 = vsel %vm5050, %v5013, %v6201
      %v6203 = vsel %vm5052, %v5014, %v6202
      %v6204 = vsel %vm5054, %v5015, %v6203
      %v6205 = vsel %vm5056, %v5016, %v6204
      %v6206 = vsel %vm5058, %v5017, %v6205
      %v6207 = vsel %vm5060, %v5018, %v6206
      %v6208 = vsel %vm5048, %v5276, %v5019
      %v6209 = vsel %vm5050, %v5021, %v6208
      %v6210 = vsel %vm5052, %v5022, %v6209
      %v6211 = vsel %vm5054, %v5023, %v6210
      %v6212 = vsel %vm5056, %v5024, %v6211
      %v6213 = vsel %vm5058, %v5025, %v6212
      %v6214 = vsel %vm5060, %v5026, %v6213
      %v6215 = vsel %vm5048, %v5028, %v5027
      %v6216 = vsel %vm5050, %v5029, %v6215
      %v6217 = vsel %vm5052, %v5030, %v6216
      %v6218 = vsel %vm5054, %v5031, %v6217
      %v6219 = vsel %vm5056, %v5032, %v6218
      %v6220 = vsel %vm5058, %v5033, %v6219
      %v6221 = vsel %vm5060, %v5277, %v6220
      %v6222 = vsel %vm5048, %v5036, %v5035
      %v6223 = vsel %vm5050, %v5037, %v6222
      %v6224 = vsel %vm5052, %v5038, %v6223
      %v6225 = vsel %vm5054, %v5039, %v6224
      %v6226 = vsel %vm5056, %v5040, %v6225
      %v6227 = vsel %vm5058, %v5041, %v6226
      %v6228 = vsel %vm5060, %v5042, %v6227
      %v6229 = vsel %vm5048, %v5044, %v5043
      %v6230 = vsel %vm5050, %v5045, %v6229
      %v6231 = vsel %vm5052, %v5046, %v6230
      %v6232 = vsel %vm5054, %v5047, %v6231
      %v6233 = vsel %vm5056, %v5278, %v6232
      %v6234 = vsel %vm5058, %v5814, %v6233
      %v6235 = vsel %vm5060, %v5815, %v6234
      %v6236 = vsel %vm5048, %v5817, %v5816
      %v6237 = vsel %vm5050, %v5818, %v6236
      %v6238 = vsel %vm5052, %v5819, %v6237
      %v6239 = vsel %vm5054, %v5820, %v6238
      %v6240 = vsel %vm5056, %v5821, %v6239
      %v6241 = vsel %vm5058, %v5822, %v6240
      %v6242 = vsel %vm5060, %v5823, %v6241
      %v6243 = vsel %vm5048, %v5825, %v5824
      %v6244 = vsel %vm5050, %v5826, %v6243
      %v6245 = vsel %vm5052, %v6074, %v6244
      %v6272 = vperm.slane %v4639, 0
      %v6273 = vsel %vm5054, %v5266, %v5078
      %v6274 = vsel %vm5056, %v5540, %v6273
      %v6275 = vsel %vm5058, %v4882, %v6274
      %v6276 = vsel %vm5060, %v4883, %v6275
      %v6277 = vsel %vm5050, %v5267, %v5090
      %v6278 = vsel %vm5052, %v5541, %v6277
      %v6279 = vsel %vm5054, %v4896, %v6278
      %v6280 = vsel %vm5056, %v4897, %v6279
      %v6281 = vsel %vm5058, %v4898, %v6280
      %v6282 = vsel %vm5060, %v4899, %v6281
      %v6283 = vsel %vm5048, %v5542, %v5268
      %v6284 = vsel %vm5050, %v4910, %v6283
      %v6285 = vsel %vm5052, %v4911, %v6284
      %v6286 = vsel %vm5054, %v4912, %v6285
      %v6287 = vsel %vm5056, %v4913, %v6286
      %v6288 = vsel %vm5058, %v4914, %v6287
      %v6289 = vsel %vm5060, %v4915, %v6288
      %v6290 = vsel %vm5058, %v5269, %v5115
      %v6291 = vsel %vm5060, %v5543, %v6290
      %v6292 = vsel %vm5054, %v5270, %v5127
      %v6293 = vsel %vm5056, %v5544, %v6292
      %v6294 = vsel %vm5058, %v4938, %v6293
      %v6295 = vsel %vm5060, %v4939, %v6294
      %v6296 = vsel %vm5050, %v5271, %v5139
      %v6297 = vsel %vm5052, %v5545, %v6296
      %v6298 = vsel %vm5054, %v4952, %v6297
      %v6299 = vsel %vm5056, %v4953, %v6298
      %v6300 = vsel %vm5058, %v4954, %v6299
      %v6301 = vsel %vm5060, %v4955, %v6300
      %v6302 = vsel %vm5048, %v5546, %v5272
      %v6303 = vsel %vm5050, %v4966, %v6302
      %v6304 = vsel %vm5052, %v4967, %v6303
      %v6305 = vsel %vm5054, %v4968, %v6304
      %v6306 = vsel %vm5056, %v4969, %v6305
      %v6307 = vsel %vm5058, %v4970, %v6306
      %v6308 = vsel %vm5060, %v4971, %v6307
      %v6309 = vsel %vm5058, %v5273, %v5164
      %v6310 = vsel %vm5060, %v5547, %v6309
      %v6311 = vsel %vm5054, %v5274, %v5176
      %v6312 = vsel %vm5056, %v5548, %v6311
      %v6313 = vsel %vm5058, %v4994, %v6312
      %v6314 = vsel %vm5060, %v4995, %v6313
      %v6315 = vsel %vm5050, %v5275, %v5188
      %v6316 = vsel %vm5052, %v5549, %v6315
      %v6317 = vsel %vm5054, %v5008, %v6316
      %v6318 = vsel %vm5056, %v5009, %v6317
      %v6319 = vsel %vm5058, %v5010, %v6318
      %v6320 = vsel %vm5060, %v5011, %v6319
      %v6321 = vsel %vm5048, %v5550, %v5276
      %v6322 = vsel %vm5050, %v5022, %v6321
      %v6323 = vsel %vm5052, %v5023, %v6322
      %v6324 = vsel %vm5054, %v5024, %v6323
      %v6325 = vsel %vm5056, %v5025, %v6324
      %v6326 = vsel %vm5058, %v5026, %v6325
      %v6327 = vsel %vm5060, %v5027, %v6326
      %v6328 = vsel %vm5058, %v5277, %v5213
      %v6329 = vsel %vm5060, %v5551, %v6328
      %v6330 = vsel %vm5054, %v5278, %v5225
      %v6331 = vsel %vm5056, %v5552, %v6330
      %v6332 = vsel %vm5058, %v5815, %v6331
      %v6333 = vsel %vm5060, %v5816, %v6332
      %v6334 = vsel %vm5048, %v5818, %v5817
      %v6335 = vsel %vm5050, %v5819, %v6334
      %v6336 = vsel %vm5052, %v5820, %v6335
      %v6337 = vsel %vm5054, %v5821, %v6336
      %v6338 = vsel %vm5056, %v5822, %v6337
      %v6339 = vsel %vm5058, %v5823, %v6338
      %v6340 = vsel %vm5060, %v5824, %v6339
      %v6341 = vsel %vm5048, %v5826, %v5825
      %v6342 = vsel %vm5050, %v6074, %v6341
      %v6343 = vsel %vm5052, %v6272, %v6342
      %6344 = vrot.lane.b32.xlu0 %v5075, 32
      %v6345 = vpop.permute.xlu0 %6344
      %6346 = vrot.lane.b32.xlu0 %v6276, 32
      %v6347 = vpop.permute.xlu0 %6346
      %6348 = vrot.lane.b32.xlu0 %v5089, 32
      %v6349 = vpop.permute.xlu0 %6348
      %6350 = vrot.lane.b32.xlu0 %v6282, 32
      %v6351 = vpop.permute.xlu0 %6350
      %6352 = vrot.lane.b32.xlu0 %v5103, 32
      %v6353 = vpop.permute.xlu0 %6352
      %6354 = vrot.lane.b32.xlu0 %v6289, 32
      %v6355 = vpop.permute.xlu0 %6354
      %6356 = vrot.lane.b32.xlu0 %v6291, 32
      %v6357 = vpop.permute.xlu0 %6356
      %6358 = vrot.lane.b32.xlu0 %v5124, 32
      %v6359 = vpop.permute.xlu0 %6358
      %6360 = vrot.lane.b32.xlu0 %v6295, 32
      %v6361 = vpop.permute.xlu0 %6360
      %6362 = vrot.lane.b32.xlu0 %v5138, 32
      %v6363 = vpop.permute.xlu0 %6362
      %6364 = vrot.lane.b32.xlu0 %v6301, 32
      %v6365 = vpop.permute.xlu0 %6364
      %6366 = vrot.lane.b32.xlu0 %v5152, 32
      %v6367 = vpop.permute.xlu0 %6366
      %6368 = vrot.lane.b32.xlu0 %v6308, 32
      %v6369 = vpop.permute.xlu0 %6368
      %6370 = vrot.lane.b32.xlu0 %v6310, 32
      %v6371 = vpop.permute.xlu0 %6370
      %6372 = vrot.lane.b32.xlu0 %v5173, 32
      %v6373 = vpop.permute.xlu0 %6372
      %6374 = vrot.lane.b32.xlu0 %v6314, 32
      %v6375 = vpop.permute.xlu0 %6374
      %6376 = vrot.lane.b32.xlu0 %v5187, 32
      %v6377 = vpop.permute.xlu0 %6376
      %6378 = vrot.lane.b32.xlu0 %v6320, 32
      %v6379 = vpop.permute.xlu0 %6378
      %6380 = vrot.lane.b32.xlu0 %v5201, 32
      %v6381 = vpop.permute.xlu0 %6380
      %6382 = vrot.lane.b32.xlu0 %v6327, 32
      %v6383 = vpop.permute.xlu0 %6382
      %6384 = vrot.lane.b32.xlu0 %v6329, 32
      %v6385 = vpop.permute.xlu0 %6384
      %6386 = vrot.lane.b32.xlu0 %v5222, 32
      %v6387 = vpop.permute.xlu0 %6386
      %6388 = vrot.lane.b32.xlu0 %v6333, 32
      %v6389 = vpop.permute.xlu0 %6388
      %6390 = vrot.lane.b32.xlu0 %v6340, 32
      %v6391 = vpop.permute.xlu0 %6390
      %6392 = vrot.lane.b32.xlu0 %v6343, 32
      %v6393 = vpop.permute.xlu0 %6392
      %v6433 = vperm.slane %v4640, 0
      %v6434 = vperm.slane %v4641, 0
      %v6435 = vperm.slane %v4642, 0
      %v6436 = vperm.slane %v4643, 0
      %v6437 = vperm.slane %v4644, 0
      %v6438 = vperm.slane %v4645, 0
      %v6439 = vperm.slane %v4646, 0
      %v6440 = vperm.slane %v4647, 0
      %v6441 = vperm.slane %v4648, 0
      %v6442 = vperm.slane %v4649, 0
      %v6443 = vperm.slane %v4650, 0
      %v6444 = vperm.slane %v4651, 0
      %v6445 = vperm.slane %v4652, 0
      %v6446 = vperm.slane %v4653, 0
      %v6447 = vsel %vm5048, %v4881, %v4880
      %v6448 = vsel %vm5050, %v4882, %v6447
      %v6449 = vsel %vm5052, %v4883, %v6448
      %v6450 = vsel %vm5054, %v4884, %v6449
      %v6451 = vsel %vm5056, %v4885, %v6450
      %v6452 = vsel %vm5058, %v4886, %v6451
      %v6453 = vsel %vm5060, %v4887, %v6452
      %v6454 = vsel %vm5048, %v4889, %v4888
      %v6455 = vsel %vm5050, %v4890, %v6454
      %v6456 = vsel %vm5052, %v4891, %v6455
      %v6457 = vsel %vm5054, %v4892, %v6456
      %v6458 = vsel %vm5056, %v4893, %v6457
      %v6459 = vsel %vm5058, %v4894, %v6458
      %v6460 = vsel %vm5060, %v4895, %v6459
      %v6461 = vsel %vm5048, %v4897, %v4896
      %v6462 = vsel %vm5050, %v4898, %v6461
      %v6463 = vsel %vm5052, %v4899, %v6462
      %v6464 = vsel %vm5054, %v4900, %v6463
      %v6465 = vsel %vm5056, %v4901, %v6464
      %v6466 = vsel %vm5058, %v4902, %v6465
      %v6467 = vsel %vm5060, %v4903, %v6466
      %v6468 = vsel %vm5048, %v4905, %v4904
      %v6469 = vsel %vm5050, %v4906, %v6468
      %v6470 = vsel %vm5052, %v4907, %v6469
      %v6471 = vsel %vm5054, %v4908, %v6470
      %v6472 = vsel %vm5056, %v4909, %v6471
      %v6473 = vsel %vm5058, %v4910, %v6472
      %v6474 = vsel %vm5060, %v4911, %v6473
      %v6475 = vsel %vm5048, %v4913, %v4912
      %v6476 = vsel %vm5050, %v4914, %v6475
      %v6477 = vsel %vm5052, %v4915, %v6476
      %v6478 = vsel %vm5054, %v4916, %v6477
      %v6479 = vsel %vm5056, %v4917, %v6478
      %v6480 = vsel %vm5058, %v4918, %v6479
      %v6481 = vsel %vm5060, %v4919, %v6480
      %v6482 = vsel %vm5048, %v4921, %v4920
      %v6483 = vsel %vm5050, %v4922, %v6482
      %v6484 = vsel %vm5052, %v4923, %v6483
      %v6485 = vsel %vm5054, %v4924, %v6484
      %v6486 = vsel %vm5056, %v4925, %v6485
      %v6487 = vsel %vm5058, %v4926, %v6486
      %v6488 = vsel %vm5060, %v4927, %v6487
      %v6489 = vsel %vm5048, %v4929, %v4928
      %v6490 = vsel %vm5050, %v4930, %v6489
      %v6491 = vsel %vm5052, %v4931, %v6490
      %v6492 = vsel %vm5054, %v4932, %v6491
      %v6493 = vsel %vm5056, %v4933, %v6492
      %v6494 = vsel %vm5058, %v4934, %v6493
      %v6495 = vsel %vm5060, %v4935, %v6494
      %v6496 = vsel %vm5048, %v4937, %v4936
      %v6497 = vsel %vm5050, %v4938, %v6496
      %v6498 = vsel %vm5052, %v4939, %v6497
      %v6499 = vsel %vm5054, %v4940, %v6498
      %v6500 = vsel %vm5056, %v4941, %v6499
      %v6501 = vsel %vm5058, %v4942, %v6500
      %v6502 = vsel %vm5060, %v4943, %v6501
      %v6503 = vsel %vm5048, %v4945, %v4944
      %v6504 = vsel %vm5050, %v4946, %v6503
      %v6505 = vsel %vm5052, %v4947, %v6504
      %v6506 = vsel %vm5054, %v4948, %v6505
      %v6507 = vsel %vm5056, %v4949, %v6506
      %v6508 = vsel %vm5058, %v4950, %v6507
      %v6509 = vsel %vm5060, %v4951, %v6508
      %v6510 = vsel %vm5048, %v4953, %v4952
      %v6511 = vsel %vm5050, %v4954, %v6510
      %v6512 = vsel %vm5052, %v4955, %v6511
      %v6513 = vsel %vm5054, %v4956, %v6512
      %v6514 = vsel %vm5056, %v4957, %v6513
      %v6515 = vsel %vm5058, %v4958, %v6514
      %v6516 = vsel %vm5060, %v4959, %v6515
      %v6517 = vsel %vm5048, %v4961, %v4960
      %v6518 = vsel %vm5050, %v4962, %v6517
      %v6519 = vsel %vm5052, %v4963, %v6518
      %v6520 = vsel %vm5054, %v4964, %v6519
      %v6521 = vsel %vm5056, %v4965, %v6520
      %v6522 = vsel %vm5058, %v4966, %v6521
      %v6523 = vsel %vm5060, %v4967, %v6522
      %v6524 = vsel %vm5048, %v4969, %v4968
      %v6525 = vsel %vm5050, %v4970, %v6524
      %v6526 = vsel %vm5052, %v4971, %v6525
      %v6527 = vsel %vm5054, %v4972, %v6526
      %v6528 = vsel %vm5056, %v4973, %v6527
      %v6529 = vsel %vm5058, %v4974, %v6528
      %v6530 = vsel %vm5060, %v4975, %v6529
      %v6531 = vsel %vm5048, %v4977, %v4976
      %v6532 = vsel %vm5050, %v4978, %v6531
      %v6533 = vsel %vm5052, %v4979, %v6532
      %v6534 = vsel %vm5054, %v4980, %v6533
      %v6535 = vsel %vm5056, %v4981, %v6534
      %v6536 = vsel %vm5058, %v4982, %v6535
      %v6537 = vsel %vm5060, %v4983, %v6536
      %v6538 = vsel %vm5048, %v4985, %v4984
      %v6539 = vsel %vm5050, %v4986, %v6538
      %v6540 = vsel %vm5052, %v4987, %v6539
      %v6541 = vsel %vm5054, %v4988, %v6540
      %v6542 = vsel %vm5056, %v4989, %v6541
      %v6543 = vsel %vm5058, %v4990, %v6542
      %v6544 = vsel %vm5060, %v4991, %v6543
      %v6545 = vsel %vm5048, %v4993, %v4992
      %v6546 = vsel %vm5050, %v4994, %v6545
      %v6547 = vsel %vm5052, %v4995, %v6546
      %v6548 = vsel %vm5054, %v4996, %v6547
      %v6549 = vsel %vm5056, %v4997, %v6548
      %v6550 = vsel %vm5058, %v4998, %v6549
      %v6551 = vsel %vm5060, %v4999, %v6550
      %v6552 = vsel %vm5048, %v5001, %v5000
      %v6553 = vsel %vm5050, %v5002, %v6552
      %v6554 = vsel %vm5052, %v5003, %v6553
      %v6555 = vsel %vm5054, %v5004, %v6554
      %v6556 = vsel %vm5056, %v5005, %v6555
      %v6557 = vsel %vm5058, %v5006, %v6556
      %v6558 = vsel %vm5060, %v5007, %v6557
      %v6559 = vsel %vm5048, %v5009, %v5008
      %v6560 = vsel %vm5050, %v5010, %v6559
      %v6561 = vsel %vm5052, %v5011, %v6560
      %v6562 = vsel %vm5054, %v5012, %v6561
      %v6563 = vsel %vm5056, %v5013, %v6562
      %v6564 = vsel %vm5058, %v5014, %v6563
      %v6565 = vsel %vm5060, %v5015, %v6564
      %v6566 = vsel %vm5048, %v5017, %v5016
      %v6567 = vsel %vm5050, %v5018, %v6566
      %v6568 = vsel %vm5052, %v5019, %v6567
      %v6569 = vsel %vm5054, %v5020, %v6568
      %v6570 = vsel %vm5056, %v5021, %v6569
      %v6571 = vsel %vm5058, %v5022, %v6570
      %v6572 = vsel %vm5060, %v5023, %v6571
      %v6573 = vsel %vm5048, %v5025, %v5024
      %v6574 = vsel %vm5050, %v5026, %v6573
      %v6575 = vsel %vm5052, %v5027, %v6574
      %v6576 = vsel %vm5054, %v5028, %v6575
      %v6577 = vsel %vm5056, %v5029, %v6576
      %v6578 = vsel %vm5058, %v5030, %v6577
      %v6579 = vsel %vm5060, %v5031, %v6578
      %v6580 = vsel %vm5048, %v5033, %v5032
      %v6581 = vsel %vm5050, %v5034, %v6580
      %v6582 = vsel %vm5052, %v5035, %v6581
      %v6583 = vsel %vm5054, %v5036, %v6582
      %v6584 = vsel %vm5056, %v5037, %v6583
      %v6585 = vsel %vm5058, %v5038, %v6584
      %v6586 = vsel %vm5060, %v5039, %v6585
      %v6587 = vsel %vm5048, %v5041, %v5040
      %v6588 = vsel %vm5050, %v5042, %v6587
      %v6589 = vsel %vm5052, %v5043, %v6588
      %v6590 = vsel %vm5054, %v5044, %v6589
      %v6591 = vsel %vm5056, %v5045, %v6590
      %v6592 = vsel %vm5058, %v5046, %v6591
      %v6593 = vsel %vm5060, %v5047, %v6592
      %v6594 = vsel %vm5048, %v5814, %v5813
      %v6595 = vsel %vm5050, %v5815, %v6594
      %v6596 = vsel %vm5052, %v5816, %v6595
      %v6597 = vsel %vm5054, %v5817, %v6596
      %v6598 = vsel %vm5056, %v5818, %v6597
      %v6599 = vsel %vm5058, %v5819, %v6598
      %v6600 = vsel %vm5060, %v5820, %v6599
      %v6601 = vsel %vm5048, %v5822, %v5821
      %v6602 = vsel %vm5050, %v5823, %v6601
      %v6603 = vsel %vm5052, %v5824, %v6602
      %v6604 = vsel %vm5054, %v5825, %v6603
      %v6605 = vsel %vm5056, %v5826, %v6604
      %v6606 = vsel %vm5058, %v6433, %v6605
      %v6607 = vsel %vm5060, %v6434, %v6606
      %v6608 = vsel %vm5048, %v6436, %v6435
      %v6609 = vsel %vm5050, %v6437, %v6608
      %v6610 = vsel %vm5052, %v6438, %v6609
      %v6611 = vsel %vm5054, %v6439, %v6610
      %v6612 = vsel %vm5056, %v6440, %v6611
      %v6613 = vsel %vm5058, %v6441, %v6612
      %v6614 = vsel %vm5060, %v6442, %v6613
      %v6615 = vsel %vm5048, %v6444, %v6443
      %v6616 = vsel %vm5050, %v6445, %v6615
      %v6617 = vsel %vm5052, %v6446, %v6616
      %6618 = vrot.lane.b32.xlu0 %v6453, 64
      %v6619 = vpop.permute.xlu0 %6618
      %6620 = vrot.lane.b32.xlu0 %v6460, 64
      %v6621 = vpop.permute.xlu0 %6620
      %6622 = vrot.lane.b32.xlu0 %v6467, 64
      %v6623 = vpop.permute.xlu0 %6622
      %6624 = vrot.lane.b32.xlu0 %v6474, 64
      %v6625 = vpop.permute.xlu0 %6624
      %6626 = vrot.lane.b32.xlu0 %v6481, 64
      %v6627 = vpop.permute.xlu0 %6626
      %6628 = vrot.lane.b32.xlu0 %v6488, 64
      %v6629 = vpop.permute.xlu0 %6628
      %6630 = vrot.lane.b32.xlu0 %v6495, 64
      %v6631 = vpop.permute.xlu0 %6630
      %6632 = vrot.lane.b32.xlu0 %v6502, 64
      %v6633 = vpop.permute.xlu0 %6632
      %6634 = vrot.lane.b32.xlu0 %v6509, 64
      %v6635 = vpop.permute.xlu0 %6634
      %6636 = vrot.lane.b32.xlu0 %v6516, 64
      %v6637 = vpop.permute.xlu0 %6636
      %6638 = vrot.lane.b32.xlu0 %v6523, 64
      %v6639 = vpop.permute.xlu0 %6638
      %6640 = vrot.lane.b32.xlu0 %v6530, 64
      %v6641 = vpop.permute.xlu0 %6640
      %6642 = vrot.lane.b32.xlu0 %v6537, 64
      %v6643 = vpop.permute.xlu0 %6642
      %6644 = vrot.lane.b32.xlu0 %v6544, 64
      %v6645 = vpop.permute.xlu0 %6644
      %6646 = vrot.lane.b32.xlu0 %v6551, 64
      %v6647 = vpop.permute.xlu0 %6646
      %6648 = vrot.lane.b32.xlu0 %v6558, 64
      %v6649 = vpop.permute.xlu0 %6648
      %6650 = vrot.lane.b32.xlu0 %v6565, 64
      %v6651 = vpop.permute.xlu0 %6650
      %6652 = vrot.lane.b32.xlu0 %v6572, 64
      %v6653 = vpop.permute.xlu0 %6652
      %6654 = vrot.lane.b32.xlu0 %v6579, 64
      %v6655 = vpop.permute.xlu0 %6654
      %6656 = vrot.lane.b32.xlu0 %v6586, 64
      %v6657 = vpop.permute.xlu0 %6656
      %6658 = vrot.lane.b32.xlu0 %v6593, 64
      %v6659 = vpop.permute.xlu0 %6658
      %6660 = vrot.lane.b32.xlu0 %v6600, 64
      %v6661 = vpop.permute.xlu0 %6660
      %6662 = vrot.lane.b32.xlu0 %v6607, 64
      %v6663 = vpop.permute.xlu0 %6662
      %6664 = vrot.lane.b32.xlu0 %v6614, 64
      %v6665 = vpop.permute.xlu0 %6664
      %6666 = vrot.lane.b32.xlu0 %v6617, 64
      %v6667 = vpop.permute.xlu0 %6666
      %v6694 = vperm.slane %v4654, 0
      %v6695 = vsel %vm5048, %v4882, %v4881
      %v6696 = vsel %vm5050, %v4883, %v6695
      %v6697 = vsel %vm5052, %v4884, %v6696
      %v6698 = vsel %vm5054, %v4885, %v6697
      %v6699 = vsel %vm5056, %v4886, %v6698
      %v6700 = vsel %vm5058, %v4887, %v6699
      %v6701 = vsel %vm5060, %v4888, %v6700
      %v6702 = vsel %vm5048, %v4890, %v4889
      %v6703 = vsel %vm5050, %v4891, %v6702
      %v6704 = vsel %vm5052, %v4892, %v6703
      %v6705 = vsel %vm5054, %v4893, %v6704
      %v6706 = vsel %vm5056, %v5267, %v6705
      %v6707 = vsel %vm5058, %v4895, %v6706
      %v6708 = vsel %vm5060, %v4896, %v6707
      %v6709 = vsel %vm5048, %v4898, %v4897
      %v6710 = vsel %vm5050, %v4899, %v6709
      %v6711 = vsel %vm5052, %v4900, %v6710
      %v6712 = vsel %vm5054, %v4901, %v6711
      %v6713 = vsel %vm5056, %v4902, %v6712
      %v6714 = vsel %vm5058, %v4903, %v6713
      %v6715 = vsel %vm5060, %v4904, %v6714
      %v6716 = vsel %vm5048, %v4906, %v4905
      %v6717 = vsel %vm5050, %v4907, %v6716
      %v6718 = vsel %vm5052, %v5268, %v6717
      %v6719 = vsel %vm5054, %v4909, %v6718
      %v6720 = vsel %vm5056, %v4910, %v6719
      %v6721 = vsel %vm5058, %v4911, %v6720
      %v6722 = vsel %vm5060, %v4912, %v6721
      %v6723 = vsel %vm5048, %v4914, %v4913
      %v6724 = vsel %vm5050, %v4915, %v6723
      %v6725 = vsel %vm5052, %v4916, %v6724
      %v6726 = vsel %vm5054, %v4917, %v6725
      %v6727 = vsel %vm5056, %v4918, %v6726
      %v6728 = vsel %vm5058, %v4919, %v6727
      %v6729 = vsel %vm5060, %v4920, %v6728
      %v6730 = vsel %vm5048, %v5269, %v4921
      %v6731 = vsel %vm5050, %v4923, %v6730
      %v6732 = vsel %vm5052, %v4924, %v6731
      %v6733 = vsel %vm5054, %v4925, %v6732
      %v6734 = vsel %vm5056, %v4926, %v6733
      %v6735 = vsel %vm5058, %v4927, %v6734
      %v6736 = vsel %vm5060, %v4928, %v6735
      %v6737 = vsel %vm5048, %v4930, %v4929
      %v6738 = vsel %vm5050, %v4931, %v6737
      %v6739 = vsel %vm5052, %v4932, %v6738
      %v6740 = vsel %vm5054, %v4933, %v6739
      %v6741 = vsel %vm5056, %v4934, %v6740
      %v6742 = vsel %vm5058, %v4935, %v6741
      %v6743 = vsel %vm5060, %v5270, %v6742
      %v6744 = vsel %vm5048, %v4938, %v4937
      %v6745 = vsel %vm5050, %v4939, %v6744
      %v6746 = vsel %vm5052, %v4940, %v6745
      %v6747 = vsel %vm5054, %v4941, %v6746
      %v6748 = vsel %vm5056, %v4942, %v6747
      %v6749 = vsel %vm5058, %v4943, %v6748
      %v6750 = vsel %vm5060, %v4944, %v6749
      %v6751 = vsel %vm5048, %v4946, %v4945
      %v6752 = vsel %vm5050, %v4947, %v6751
      %v6753 = vsel %vm5052, %v4948, %v6752
      %v6754 = vsel %vm5054, %v4949, %v6753
      %v6755 = vsel %vm5056, %v5271, %v6754
      %v6756 = vsel %vm5058, %v4951, %v6755
      %v6757 = vsel %vm5060, %v4952, %v6756
      %v6758 = vsel %vm5048, %v4954, %v4953
      %v6759 = vsel %vm5050, %v4955, %v6758
      %v6760 = vsel %vm5052, %v4956, %v6759
      %v6761 = vsel %vm5054, %v4957, %v6760
      %v6762 = vsel %vm5056, %v4958, %v6761
      %v6763 = vsel %vm5058, %v4959, %v6762
      %v6764 = vsel %vm5060, %v4960, %v6763
      %v6765 = vsel %vm5048, %v4962, %v4961
      %v6766 = vsel %vm5050, %v4963, %v6765
      %v6767 = vsel %vm5052, %v5272, %v6766
      %v6768 = vsel %vm5054, %v4965, %v6767
      %v6769 = vsel %vm5056, %v4966, %v6768
      %v6770 = vsel %vm5058, %v4967, %v6769
      %v6771 = vsel %vm5060, %v4968, %v6770
      %v6772 = vsel %vm5048, %v4970, %v4969
      %v6773 = vsel %vm5050, %v4971, %v6772
      %v6774 = vsel %vm5052, %v4972, %v6773
      %v6775 = vsel %vm5054, %v4973, %v6774
      %v6776 = vsel %vm5056, %v4974, %v6775
      %v6777 = vsel %vm5058, %v4975, %v6776
      %v6778 = vsel %vm5060, %v4976, %v6777
      %v6779 = vsel %vm5048, %v5273, %v4977
      %v6780 = vsel %vm5050, %v4979, %v6779
      %v6781 = vsel %vm5052, %v4980, %v6780
      %v6782 = vsel %vm5054, %v4981, %v6781
      %v6783 = vsel %vm5056, %v4982, %v6782
      %v6784 = vsel %vm5058, %v4983, %v6783
      %v6785 = vsel %vm5060, %v4984, %v6784
      %v6786 = vsel %vm5048, %v4986, %v4985
      %v6787 = vsel %vm5050, %v4987, %v6786
      %v6788 = vsel %vm5052, %v4988, %v6787
      %v6789 = vsel %vm5054, %v4989, %v6788
      %v6790 = vsel %vm5056, %v4990, %v6789
      %v6791 = vsel %vm5058, %v4991, %v6790
      %v6792 = vsel %vm5060, %v5274, %v6791
      %v6793 = vsel %vm5048, %v4994, %v4993
      %v6794 = vsel %vm5050, %v4995, %v6793
      %v6795 = vsel %vm5052, %v4996, %v6794
      %v6796 = vsel %vm5054, %v4997, %v6795
      %v6797 = vsel %vm5056, %v4998, %v6796
      %v6798 = vsel %vm5058, %v4999, %v6797
      %v6799 = vsel %vm5060, %v5000, %v6798
      %v6800 = vsel %vm5048, %v5002, %v5001
      %v6801 = vsel %vm5050, %v5003, %v6800
      %v6802 = vsel %vm5052, %v5004, %v6801
      %v6803 = vsel %vm5054, %v5005, %v6802
      %v6804 = vsel %vm5056, %v5275, %v6803
      %v6805 = vsel %vm5058, %v5007, %v6804
      %v6806 = vsel %vm5060, %v5008, %v6805
      %v6807 = vsel %vm5048, %v5010, %v5009
      %v6808 = vsel %vm5050, %v5011, %v6807
      %v6809 = vsel %vm5052, %v5012, %v6808
      %v6810 = vsel %vm5054, %v5013, %v6809
      %v6811 = vsel %vm5056, %v5014, %v6810
      %v6812 = vsel %vm5058, %v5015, %v6811
      %v6813 = vsel %vm5060, %v5016, %v6812
      %v6814 = vsel %vm5048, %v5018, %v5017
      %v6815 = vsel %vm5050, %v5019, %v6814
      %v6816 = vsel %vm5052, %v5276, %v6815
      %v6817 = vsel %vm5054, %v5021, %v6816
      %v6818 = vsel %vm5056, %v5022, %v6817
      %v6819 = vsel %vm5058, %v5023, %v6818
      %v6820 = vsel %vm5060, %v5024, %v6819
      %v6821 = vsel %vm5048, %v5026, %v5025
      %v6822 = vsel %vm5050, %v5027, %v6821
      %v6823 = vsel %vm5052, %v5028, %v6822
      %v6824 = vsel %vm5054, %v5029, %v6823
      %v6825 = vsel %vm5056, %v5030, %v6824
      %v6826 = vsel %vm5058, %v5031, %v6825
      %v6827 = vsel %vm5060, %v5032, %v6826
      %v6828 = vsel %vm5048, %v5277, %v5033
      %v6829 = vsel %vm5050, %v5035, %v6828
      %v6830 = vsel %vm5052, %v5036, %v6829
      %v6831 = vsel %vm5054, %v5037, %v6830
      %v6832 = vsel %vm5056, %v5038, %v6831
      %v6833 = vsel %vm5058, %v5039, %v6832
      %v6834 = vsel %vm5060, %v5040, %v6833
      %v6835 = vsel %vm5048, %v5042, %v5041
      %v6836 = vsel %vm5050, %v5043, %v6835
      %v6837 = vsel %vm5052, %v5044, %v6836
      %v6838 = vsel %vm5054, %v5045, %v6837
      %v6839 = vsel %vm5056, %v5046, %v6838
      %v6840 = vsel %vm5058, %v5047, %v6839
      %v6841 = vsel %vm5060, %v5278, %v6840
      %v6842 = vsel %vm5048, %v5815, %v5814
      %v6843 = vsel %vm5050, %v5816, %v6842
      %v6844 = vsel %vm5052, %v5817, %v6843
      %v6845 = vsel %vm5054, %v5818, %v6844
      %v6846 = vsel %vm5056, %v5819, %v6845
      %v6847 = vsel %vm5058, %v5820, %v6846
      %v6848 = vsel %vm5060, %v5821, %v6847
      %v6849 = vsel %vm5048, %v5823, %v5822
      %v6850 = vsel %vm5050, %v5824, %v6849
      %v6851 = vsel %vm5052, %v5825, %v6850
      %v6852 = vsel %vm5054, %v5826, %v6851
      %v6853 = vsel %vm5056, %v6074, %v6852
      %v6854 = vsel %vm5058, %v6434, %v6853
      %v6855 = vsel %vm5060, %v6435, %v6854
      %v6856 = vsel %vm5048, %v6437, %v6436
      %v6857 = vsel %vm5050, %v6438, %v6856
      %v6858 = vsel %vm5052, %v6439, %v6857
      %v6859 = vsel %vm5054, %v6440, %v6858
      %v6860 = vsel %vm5056, %v6441, %v6859
      %v6861 = vsel %vm5058, %v6442, %v6860
      %v6862 = vsel %vm5060, %v6443, %v6861
      %v6863 = vsel %vm5048, %v6445, %v6444
      %v6864 = vsel %vm5050, %v6446, %v6863
      %v6865 = vsel %vm5052, %v6694, %v6864
      %6866 = vrot.lane.b32.xlu0 %v6701, 96
      %v6867 = vpop.permute.xlu0 %6866
      %6868 = vrot.lane.b32.xlu0 %v6708, 96
      %v6869 = vpop.permute.xlu0 %6868
      %6870 = vrot.lane.b32.xlu0 %v6715, 96
      %v6871 = vpop.permute.xlu0 %6870
      %6872 = vrot.lane.b32.xlu0 %v6722, 96
      %v6873 = vpop.permute.xlu0 %6872
      %6874 = vrot.lane.b32.xlu0 %v6729, 96
      %v6875 = vpop.permute.xlu0 %6874
      %6876 = vrot.lane.b32.xlu0 %v6736, 96
      %v6877 = vpop.permute.xlu0 %6876
      %6878 = vrot.lane.b32.xlu0 %v6743, 96
      %v6879 = vpop.permute.xlu0 %6878
      %6880 = vrot.lane.b32.xlu0 %v6750, 96
      %v6881 = vpop.permute.xlu0 %6880
      %6882 = vrot.lane.b32.xlu0 %v6757, 96
      %v6883 = vpop.permute.xlu0 %6882
      %6884 = vrot.lane.b32.xlu0 %v6764, 96
      %v6885 = vpop.permute.xlu0 %6884
      %6886 = vrot.lane.b32.xlu0 %v6771, 96
      %v6887 = vpop.permute.xlu0 %6886
      %6888 = vrot.lane.b32.xlu0 %v6778, 96
      %v6889 = vpop.permute.xlu0 %6888
      %6890 = vrot.lane.b32.xlu0 %v6785, 96
      %v6891 = vpop.permute.xlu0 %6890
      %6892 = vrot.lane.b32.xlu0 %v6792, 96
      %v6893 = vpop.permute.xlu0 %6892
      %6894 = vrot.lane.b32.xlu0 %v6799, 96
      %v6895 = vpop.permute.xlu0 %6894
      %6896 = vrot.lane.b32.xlu0 %v6806, 96
      %v6897 = vpop.permute.xlu0 %6896
      %6898 = vrot.lane.b32.xlu0 %v6813, 96
      %v6899 = vpop.permute.xlu0 %6898
      %6900 = vrot.lane.b32.xlu0 %v6820, 96
      %v6901 = vpop.permute.xlu0 %6900
      %6902 = vrot.lane.b32.xlu0 %v6827, 96
      %v6903 = vpop.permute.xlu0 %6902
      %6904 = vrot.lane.b32.xlu0 %v6834, 96
      %v6905 = vpop.permute.xlu0 %6904
      %6906 = vrot.lane.b32.xlu0 %v6841, 96
      %v6907 = vpop.permute.xlu0 %6906
      %6908 = vrot.lane.b32.xlu0 %v6848, 96
      %v6909 = vpop.permute.xlu0 %6908
      %6910 = vrot.lane.b32.xlu0 %v6855, 96
      %v6911 = vpop.permute.xlu0 %6910
      %6912 = vrot.lane.b32.xlu0 %v6862, 96
      %v6913 = vpop.permute.xlu0 %6912
      %6914 = vrot.lane.b32.xlu0 %v6865, 96
      %v6915 = vpop.permute.xlu0 %6914
      %v6942 = vperm.slane %v4655, 0
      %v6943 = vsel %vm5054, %v5267, %v5850
      %v6944 = vsel %vm5056, %v5541, %v6943
      %v6945 = vsel %vm5058, %v4896, %v6944
      %v6946 = vsel %vm5060, %v4897, %v6945
      %v6947 = vsel %vm5050, %v5268, %v5862
      %v6948 = vsel %vm5052, %v5542, %v6947
      %v6949 = vsel %vm5054, %v4910, %v6948
      %v6950 = vsel %vm5056, %v4911, %v6949
      %v6951 = vsel %vm5058, %v4912, %v6950
      %v6952 = vsel %vm5060, %v4913, %v6951
      %v6953 = vsel %vm5048, %v5543, %v5269
      %v6954 = vsel %vm5050, %v4924, %v6953
      %v6955 = vsel %vm5052, %v4925, %v6954
      %v6956 = vsel %vm5054, %v4926, %v6955
      %v6957 = vsel %vm5056, %v4927, %v6956
      %v6958 = vsel %vm5058, %v4928, %v6957
      %v6959 = vsel %vm5060, %v4929, %v6958
      %v6960 = vsel %vm5058, %v5270, %v5887
      %v6961 = vsel %vm5060, %v5544, %v6960
      %v6962 = vsel %vm5054, %v5271, %v5899
      %v6963 = vsel %vm5056, %v5545, %v6962
      %v6964 = vsel %vm5058, %v4952, %v6963
      %v6965 = vsel %vm5060, %v4953, %v6964
      %v6966 = vsel %vm5050, %v5272, %v5911
      %v6967 = vsel %vm5052, %v5546, %v6966
      %v6968 = vsel %vm5054, %v4966, %v6967
      %v6969 = vsel %vm5056, %v4967, %v6968
      %v6970 = vsel %vm5058, %v4968, %v6969
      %v6971 = vsel %vm5060, %v4969, %v6970
      %v6972 = vsel %vm5048, %v5547, %v5273
      %v6973 = vsel %vm5050, %v4980, %v6972
      %v6974 = vsel %vm5052, %v4981, %v6973
      %v6975 = vsel %vm5054, %v4982, %v6974
      %v6976 = vsel %vm5056, %v4983, %v6975
      %v6977 = vsel %vm5058, %v4984, %v6976
      %v6978 = vsel %vm5060, %v4985, %v6977
      %v6979 = vsel %vm5058, %v5274, %v5936
      %v6980 = vsel %vm5060, %v5548, %v6979
      %v6981 = vsel %vm5054, %v5275, %v5948
      %v6982 = vsel %vm5056, %v5549, %v6981
      %v6983 = vsel %vm5058, %v5008, %v6982
      %v6984 = vsel %vm5060, %v5009, %v6983
      %v6985 = vsel %vm5050, %v5276, %v5960
      %v6986 = vsel %vm5052, %v5550, %v6985
      %v6987 = vsel %vm5054, %v5022, %v6986
      %v6988 = vsel %vm5056, %v5023, %v6987
      %v6989 = vsel %vm5058, %v5024, %v6988
      %v6990 = vsel %vm5060, %v5025, %v6989
      %v6991 = vsel %vm5048, %v5551, %v5277
      %v6992 = vsel %vm5050, %v5036, %v6991
      %v6993 = vsel %vm5052, %v5037, %v6992
      %v6994 = vsel %vm5054, %v5038, %v6993
      %v6995 = vsel %vm5056, %v5039, %v6994
      %v6996 = vsel %vm5058, %v5040, %v6995
      %v6997 = vsel %vm5060, %v5041, %v6996
      %v6998 = vsel %vm5058, %v5278, %v5985
      %v6999 = vsel %vm5060, %v5552, %v6998
      %v7000 = vsel %vm5054, %v6074, %v5997
      %v7001 = vsel %vm5056, %v6272, %v7000
      %v7002 = vsel %vm5058, %v6435, %v7001
      %v7003 = vsel %vm5060, %v6436, %v7002
      %v7004 = vsel %vm5048, %v6438, %v6437
      %v7005 = vsel %vm5050, %v6439, %v7004
      %v7006 = vsel %vm5052, %v6440, %v7005
      %v7007 = vsel %vm5054, %v6441, %v7006
      %v7008 = vsel %vm5056, %v6442, %v7007
      %v7009 = vsel %vm5058, %v6443, %v7008
      %v7010 = vsel %vm5060, %v6444, %v7009
      %v7011 = vsel %vm5048, %v6446, %v6445
      %v7012 = vsel %vm5050, %v6694, %v7011
      %v7013 = vsel %vm5052, %v6942, %v7012
      %vm7039 = vcmask 261120
      %v7040 = vsel %vm7039, %v5061, %v5451
      %v7041 = vsel %vm7039, %v5068, %v5453
      %v7042 = vsel %vm7039, %v5075, %v5455
      %v7043 = vsel %vm7039, %v5082, %v5457
      %v7044 = vsel %vm7039, %v5089, %v5459
      %v7045 = vsel %vm7039, %v5096, %v5461
      %v7046 = vsel %vm7039, %v5103, %v5463
      %v7047 = vsel %vm7039, %v5110, %v5465
      %v7048 = vsel %vm7039, %v5117, %v5467
      %v7049 = vsel %vm7039, %v5124, %v5469
      %v7050 = vsel %vm7039, %v5131, %v5471
      %v7051 = vsel %vm7039, %v5138, %v5473
      %v7052 = vsel %vm7039, %v5145, %v5475
      %v7053 = vsel %vm7039, %v5152, %v5477
      %v7054 = vsel %vm7039, %v5159, %v5479
      %v7055 = vsel %vm7039, %v5166, %v5481
      %v7056 = vsel %vm7039, %v5173, %v5483
      %v7057 = vsel %vm7039, %v5180, %v5485
      %v7058 = vsel %vm7039, %v5187, %v5487
      %v7059 = vsel %vm7039, %v5194, %v5489
      %v7060 = vsel %vm7039, %v5201, %v5491
      %v7061 = vsel %vm7039, %v5208, %v5493
      %v7062 = vsel %vm7039, %v5215, %v5495
      %v7063 = vsel %vm7039, %v5222, %v5497
      %v7064 = vsel %vm7039, %v5225, %v5499
      %vm7065 = vcmask 523264
      %v7066 = vsel %vm7065, %v7040, %v5725
      %v7067 = vsel %vm7065, %v7041, %v5727
      %v7068 = vsel %vm7065, %v7042, %v5729
      %v7069 = vsel %vm7065, %v7043, %v5731
      %v7070 = vsel %vm7065, %v7044, %v5733
      %v7071 = vsel %vm7065, %v7045, %v5735
      %v7072 = vsel %vm7065, %v7046, %v5737
      %v7073 = vsel %vm7065, %v7047, %v5739
      %v7074 = vsel %vm7065, %v7048, %v5741
      %v7075 = vsel %vm7065, %v7049, %v5743
      %v7076 = vsel %vm7065, %v7050, %v5745
      %v7077 = vsel %vm7065, %v7051, %v5747
      %v7078 = vsel %vm7065, %v7052, %v5749
      %v7079 = vsel %vm7065, %v7053, %v5751
      %v7080 = vsel %vm7065, %v7054, %v5753
      %v7081 = vsel %vm7065, %v7055, %v5755
      %v7082 = vsel %vm7065, %v7056, %v5757
      %v7083 = vsel %vm7065, %v7057, %v5759
      %v7084 = vsel %vm7065, %v7058, %v5761
      %v7085 = vsel %vm7065, %v7059, %v5763
      %v7086 = vsel %vm7065, %v7060, %v5765
      %v7087 = vsel %vm7065, %v7061, %v5767
      %v7088 = vsel %vm7065, %v7062, %v5769
      %v7089 = vsel %vm7065, %v7063, %v5771
      %v7090 = vsel %vm7065, %v7064, %v5773
      %vm7091 = vcmask 785408
      %v7092 = vsel %vm7091, %v7066, %v5999
      %v7093 = vsel %vm7091, %v7067, %v6001
      %v7094 = vsel %vm7091, %v7068, %v6003
      %v7095 = vsel %vm7091, %v7069, %v6005
      %v7096 = vsel %vm7091, %v7070, %v6007
      %v7097 = vsel %vm7091, %v7071, %v6009
      %v7098 = vsel %vm7091, %v7072, %v6011
      %v7099 = vsel %vm7091, %v7073, %v6013
      %v7100 = vsel %vm7091, %v7074, %v6015
      %v7101 = vsel %vm7091, %v7075, %v6017
      %v7102 = vsel %vm7091, %v7076, %v6019
      %v7103 = vsel %vm7091, %v7077, %v6021
      %v7104 = vsel %vm7091, %v7078, %v6023
      %v7105 = vsel %vm7091, %v7079, %v6025
      %v7106 = vsel %vm7091, %v7080, %v6027
      %v7107 = vsel %vm7091, %v7081, %v6029
      %v7108 = vsel %vm7091, %v7082, %v6031
      %v7109 = vsel %vm7091, %v7083, %v6033
      %v7110 = vsel %vm7091, %v7084, %v6035
      %v7111 = vsel %vm7091, %v7085, %v6037
      %v7112 = vsel %vm7091, %v7086, %v6039
      %v7113 = vsel %vm7091, %v7087, %v6041
      %v7114 = vsel %vm7091, %v7088, %v6043
      %v7115 = vsel %vm7091, %v7089, %v6045
      %v7116 = vsel %vm7091, %v7090, %v6047
      %v7117 = vsel %vm7039, %v6081, %v6345
      %v7118 = vsel %vm7039, %v6088, %v6347
      %v7119 = vsel %vm7039, %v6095, %v6349
      %v7120 = vsel %vm7039, %v6102, %v6351
      %v7121 = vsel %vm7039, %v6109, %v6353
      %v7122 = vsel %vm7039, %v6116, %v6355
      %v7123 = vsel %vm7039, %v6123, %v6357
      %v7124 = vsel %vm7039, %v6130, %v6359
      %v7125 = vsel %vm7039, %v6137, %v6361
      %v7126 = vsel %vm7039, %v6144, %v6363
      %v7127 = vsel %vm7039, %v6151, %v6365
      %v7128 = vsel %vm7039, %v6158, %v6367
      %v7129 = vsel %vm7039, %v6165, %v6369
      %v7130 = vsel %vm7039, %v6172, %v6371
      %v7131 = vsel %vm7039, %v6179, %v6373
      %v7132 = vsel %vm7039, %v6186, %v6375
      %v7133 = vsel %vm7039, %v6193, %v6377
      %v7134 = vsel %vm7039, %v6200, %v6379
      %v7135 = vsel %vm7039, %v6207, %v6381
      %v7136 = vsel %vm7039, %v6214, %v6383
      %v7137 = vsel %vm7039, %v6221, %v6385
      %v7138 = vsel %vm7039, %v6228, %v6387
      %v7139 = vsel %vm7039, %v6235, %v6389
      %v7140 = vsel %vm7039, %v6242, %v6391
      %v7141 = vsel %vm7039, %v6245, %v6393
      %v7142 = vsel %vm7065, %v7117, %v6619
      %v7143 = vsel %vm7065, %v7118, %v6621
      %v7144 = vsel %vm7065, %v7119, %v6623
      %v7145 = vsel %vm7065, %v7120, %v6625
      %v7146 = vsel %vm7065, %v7121, %v6627
      %v7147 = vsel %vm7065, %v7122, %v6629
      %v7148 = vsel %vm7065, %v7123, %v6631
      %v7149 = vsel %vm7065, %v7124, %v6633
      %v7150 = vsel %vm7065, %v7125, %v6635
      %v7151 = vsel %vm7065, %v7126, %v6637
      %v7152 = vsel %vm7065, %v7127, %v6639
      %v7153 = vsel %vm7065, %v7128, %v6641
      %v7154 = vsel %vm7065, %v7129, %v6643
      %v7155 = vsel %vm7065, %v7130, %v6645
      %v7156 = vsel %vm7065, %v7131, %v6647
      %v7157 = vsel %vm7065, %v7132, %v6649
      %v7158 = vsel %vm7065, %v7133, %v6651
      %v7159 = vsel %vm7065, %v7134, %v6653
      %v7160 = vsel %vm7065, %v7135, %v6655
      %v7161 = vsel %vm7065, %v7136, %v6657
      %v7162 = vsel %vm7065, %v7137, %v6659
      %v7163 = vsel %vm7065, %v7138, %v6661
      %v7164 = vsel %vm7065, %v7139, %v6663
      %v7165 = vsel %vm7065, %v7140, %v6665
      %v7166 = vsel %vm7065, %v7141, %v6667
      %v7167 = vsel %vm7091, %v7142, %v6867
      %v7168 = vsel %vm7091, %v7143, %v6869
      %v7169 = vsel %vm7091, %v7144, %v6871
      %v7170 = vsel %vm7091, %v7145, %v6873
      %v7171 = vsel %vm7091, %v7146, %v6875
      %v7172 = vsel %vm7091, %v7147, %v6877
      %v7173 = vsel %vm7091, %v7148, %v6879
      %v7174 = vsel %vm7091, %v7149, %v6881
      %v7175 = vsel %vm7091, %v7150, %v6883
      %v7176 = vsel %vm7091, %v7151, %v6885
      %v7177 = vsel %vm7091, %v7152, %v6887
      %v7178 = vsel %vm7091, %v7153, %v6889
      %v7179 = vsel %vm7091, %v7154, %v6891
      %v7180 = vsel %vm7091, %v7155, %v6893
      %v7181 = vsel %vm7091, %v7156, %v6895
      %v7182 = vsel %vm7091, %v7157, %v6897
      %v7183 = vsel %vm7091, %v7158, %v6899
      %v7184 = vsel %vm7091, %v7159, %v6901
      %v7185 = vsel %vm7091, %v7160, %v6903
      %v7186 = vsel %vm7091, %v7161, %v6905
      %v7187 = vsel %vm7091, %v7162, %v6907
      %v7188 = vsel %vm7091, %v7163, %v6909
      %v7189 = vsel %vm7091, %v7164, %v6911
      %v7190 = vsel %vm7091, %v7165, %v6913
      %v7191 = vsel %vm7091, %v7166, %v6915
      %v7192 = vpack.c.bf16 %v7093, %v7092
      %v7193 = vpack.c.bf16 %v7168, %v7167
      %v7194 = vpack.c.bf16 %v6946, %v5847
      %v7195 = vpack.c.bf16 %v7095, %v7094
      %v7196 = vpack.c.bf16 %v7170, %v7169
      %v7197 = vpack.c.bf16 %v6952, %v5861
      %v7198 = vpack.c.bf16 %v7097, %v7096
      %v7199 = vpack.c.bf16 %v7172, %v7171
      %v7200 = vpack.c.bf16 %v6959, %v5875
      %v7201 = vpack.c.bf16 %v7099, %v7098
      %v7202 = vpack.c.bf16 %v7174, %v7173
      %v7203 = vpack.c.bf16 %v5896, %v6961
      %v7204 = vpack.c.bf16 %v7101, %v7100
      %v7205 = vpack.c.bf16 %v7176, %v7175
      %v7206 = vpack.c.bf16 %v5910, %v6965
      %v7207 = vpack.c.bf16 %v7103, %v7102
      %v7208 = vpack.c.bf16 %v7178, %v7177
      %v7209 = vpack.c.bf16 %v5924, %v6971
      %v7210 = vpack.c.bf16 %v7105, %v7104
      %v7211 = vpack.c.bf16 %v7180, %v7179
      %v7212 = vpack.c.bf16 %v6980, %v6978
      %v7213 = vpack.c.bf16 %v7107, %v7106
      %v7214 = vpack.c.bf16 %v7182, %v7181
      %v7215 = vpack.c.bf16 %v6984, %v5945
      %v7216 = vpack.c.bf16 %v7109, %v7108
      %v7217 = vpack.c.bf16 %v7184, %v7183
      %v7218 = vpack.c.bf16 %v6990, %v5959
      %v7219 = vpack.c.bf16 %v7111, %v7110
      %v7220 = vpack.c.bf16 %v7186, %v7185
      %v7221 = vpack.c.bf16 %v6997, %v5973
      %v7222 = vpack.c.bf16 %v7113, %v7112
      %v7223 = vpack.c.bf16 %v7188, %v7187
      %v7224 = vpack.c.bf16 %v5994, %v6999
      %v7225 = vpack.c.bf16 %v7115, %v7114
      %v7226 = vpack.c.bf16 %v7190, %v7189
      %v7227 = vpack.c.bf16 %v7010, %v7003
      %v7228 = vpack.c.bf16 %v7116, %v7116
      %v7229 = vpack.c.bf16 %v7191, %v7191
      %v7230 = vpack.c.bf16 %v7013, %v7013
      %v7231 = vld [vmem:[%s3] sm:$0xf]
      %v7232 = vld [vmem:[%s3 + $0x4] sm:$0xf]
      %v7233 = vld [vmem:[%s3 + $0x8] sm:$0xf]
      %v7234 = vld [vmem:[%s3 + $0xc] sm:$0xf]
      %v7235 = vld [vmem:[%s3 + $0x10] sm:$0xf]
      %v7236 = vld [vmem:[%s3 + $0x14] sm:$0xf]
      %v7237 = vld [vmem:[%s3 + $0x18] sm:$0xf]
      %v7238 = vld [vmem:[%s3 + $0x1c] sm:$0xf]
      %v7239 = vld [vmem:[%s3 + $0x20] sm:$0xf]
      %v7240 = vld [vmem:[%s3 + $0x24] sm:$0xf]
      %v7241 = vld [vmem:[%s3 + $0x28] sm:$0xf]
      %v7242 = vld [vmem:[%s3 + $0x2c] sm:$0xf]
      %v7243 = vld [vmem:[%s3 + $0x30] sm:$0xf]
      %v7244 = vld [vmem:[%s3 + $0x34] sm:$0xf]
      %v7245 = vld [vmem:[%s3 + $0x38] sm:$0xf]
      %v7246 = vld [vmem:[%s3 + $0x3c] sm:$0xf]
      %v7247 = vld [vmem:[%s3 + $0x40] sm:$0xf]
      %v7248 = vld [vmem:[%s3 + $0x44] sm:$0xf]
      %v7249 = vld [vmem:[%s3 + $0x48] sm:$0xf]
      %v7250 = vld [vmem:[%s3 + $0x4c] sm:$0xf]
      %v7251 = vld [vmem:[%s3 + $0x50] sm:$0xf]
      %v7252 = vld [vmem:[%s3 + $0x54] sm:$0xf]
      %v7253 = vld [vmem:[%s3 + $0x58] sm:$0xf]
      %v7254 = vld [vmem:[%s3 + $0x5c] sm:$0xf]
      %v7255 = vld [vmem:[%s3 + $0x60] sm:$0xf]
      %v7256 = vld [vmem:[%s3 + $0x64] sm:$0xf]
      %v7257 = vld [vmem:[%s3 + $0x68] sm:$0xf]
      %v7258 = vld [vmem:[%s3 + $0x6c] sm:$0xf]
      %v7259 = vld [vmem:[%s3 + $0x70] sm:$0xf]
      %v7260 = vld [vmem:[%s3 + $0x74] sm:$0xf]
      %v7261 = vld [vmem:[%s3 + $0x78] sm:$0xf]
      %v7262 = vld [vmem:[%s3 + $0x7c] sm:$0xf]
      %v7263 = vld [vmem:[%s3 + $0x80] sm:$0xf]
      %v7264 = vld [vmem:[%s3 + $0x84] sm:$0xf]
      %v7265 = vld [vmem:[%s3 + $0x88] sm:$0xf]
      %v7266 = vld [vmem:[%s3 + $0x8c] sm:$0xf]
      %v7303 = vunpack.c.l.b16 %v7231
      %v7304 = vunpack.c.l.b16 %v7232
      %v7305 = vunpack.c.l.b16 %v7233
      %v7306 = vunpack.c.l.b16 %v7234
      %v7307 = vunpack.c.l.b16 %v7235
      %v7308 = vunpack.c.l.b16 %v7236
      %v7309 = vunpack.c.l.b16 %v7237
      %v7310 = vunpack.c.l.b16 %v7238
      %v7311 = vunpack.c.l.b16 %v7239
      %v7312 = vunpack.c.l.b16 %v7240
      %v7313 = vunpack.c.l.b16 %v7241
      %v7314 = vunpack.c.l.b16 %v7242
      %v7315 = vunpack.c.l.b16 %v7243
      %v7316 = vunpack.c.l.b16 %v7244
      %v7317 = vunpack.c.l.b16 %v7245
      %v7318 = vunpack.c.l.b16 %v7246
      %v7319 = vunpack.c.l.b16 %v7247
      %v7320 = vunpack.c.l.b16 %v7248
      %v7321 = vunpack.c.l.b16 %v7249
      %v7322 = vunpack.c.l.b16 %v7250
      %v7323 = vunpack.c.l.b16 %v7251
      %v7324 = vunpack.c.l.b16 %v7252
      %v7325 = vunpack.c.l.b16 %v7253
      %v7326 = vunpack.c.l.b16 %v7254
      %v7327 = vunpack.c.l.b16 %v7255
      %v7328 = vunpack.c.l.b16 %v7256
      %v7329 = vunpack.c.l.b16 %v7257
      %v7330 = vunpack.c.l.b16 %v7258
      %v7331 = vunpack.c.l.b16 %v7259
      %v7332 = vunpack.c.l.b16 %v7260
      %v7333 = vunpack.c.l.b16 %v7261
      %v7334 = vunpack.c.l.b16 %v7262
      %v7335 = vunpack.c.l.b16 %v7263
      %v7336 = vunpack.c.l.b16 %v7264
      %v7337 = vunpack.c.l.b16 %v7265
      %v7338 = vunpack.c.l.b16 %v7266
      %v7339 = vpack.c.b16 %v7304, %v7303
      %v7340 = vpack.c.b16 %v7306, %v7305
      %v7341 = vpack.c.b16 %v7308, %v7307
      %v7342 = vpack.c.b16 %v7310, %v7309
      %v7343 = vpack.c.b16 %v7312, %v7311
      %v7344 = vpack.c.b16 %v7314, %v7313
      %v7345 = vpack.c.b16 %v7316, %v7315
      %v7346 = vpack.c.b16 %v7318, %v7317
      %v7347 = vpack.c.b16 %v7320, %v7319
      %v7348 = vpack.c.b16 %v7322, %v7321
      %v7349 = vpack.c.b16 %v7324, %v7323
      %v7350 = vpack.c.b16 %v7326, %v7325
      %v7351 = vpack.c.b16 %v7328, %v7327
      %v7352 = vpack.c.b16 %v7330, %v7329
      %v7353 = vpack.c.b16 %v7332, %v7331
      %v7354 = vpack.c.b16 %v7334, %v7333
      %v7355 = vpack.c.b16 %v7336, %v7335
      %v7356 = vpack.c.b16 %v7338, %v7337
      %v7376 = vsel %vm7039, %v7194, 0
      %v7379 = vsel %vm7039, %v7197, 0
      %v7382 = vsel %vm7039, %v7200, 0
      %v7385 = vsel %vm7039, %v7203, 0
      %v7388 = vsel %vm7039, %v7206, 0
      %v7391 = vsel %vm7039, %v7209, 0
      %v7394 = vsel %vm7039, %v7212, 0
      %v7397 = vsel %vm7039, %v7215, 0
      %v7400 = vsel %vm7039, %v7218, 0
      %v7403 = vsel %vm7039, %v7221, 0
      %v7406 = vsel %vm7039, %v7224, 0
      %v7409 = vsel %vm7039, %v7227, 0
      %v7412 = vsel %vm7039, %v7230, 0
      %7414 = vmatpush.bf16.msra.mxu0 %v7346
      %7415 = vmatpush.bf16.msra.mxu0 %v7345
      %7416 = vmatpush.bf16.msra.mxu0 %v7344
      %7417 = vmatpush.bf16.msra.mxu0 %v7343
      %7418 = vmatpush.bf16.msra.mxu0 %v7342
      %7419 = vmatpush.bf16.msra.mxu0 %v7341
      %7420 = vmatpush.bf16.msra.mxu0 %v7340
      %7421 = vmatpush.bf16.msra.mxu0 %v7339
      %7422 = vmatmul.bf16.gmra.mxu0 %v7192
      %v7423 = vpop.f32.mrf.mxu0
      %v7424 = vadd.f32 0.0, %v7423
      %v7425 = vpop.f32.mrf.mxu0
      %v7426 = vadd.f32 0.0, %v7425
      %7427 = vmatmul.bf16.gmra.mxu0 %v7195
      %v7428 = vpop.f32.mrf.mxu0
      %v7429 = vadd.f32 0.0, %v7428
      %v7430 = vpop.f32.mrf.mxu0
      %v7431 = vadd.f32 0.0, %v7430
      %7432 = vmatmul.bf16.gmra.mxu0 %v7198
      %v7433 = vpop.f32.mrf.mxu0
      %v7434 = vadd.f32 0.0, %v7433
      %v7435 = vpop.f32.mrf.mxu0
      %v7436 = vadd.f32 0.0, %v7435
      %7437 = vmatmul.bf16.gmra.mxu0 %v7201
      %v7438 = vpop.f32.mrf.mxu0
      %v7439 = vadd.f32 0.0, %v7438
      %v7440 = vpop.f32.mrf.mxu0
      %v7441 = vadd.f32 0.0, %v7440
      %7442 = vmatmul.bf16.gmra.mxu0 %v7204
      %v7443 = vpop.f32.mrf.mxu0
      %v7444 = vadd.f32 0.0, %v7443
      %v7445 = vpop.f32.mrf.mxu0
      %v7446 = vadd.f32 0.0, %v7445
      %7447 = vmatmul.bf16.gmra.mxu0 %v7207
      %v7448 = vpop.f32.mrf.mxu0
      %v7449 = vadd.f32 0.0, %v7448
      %v7450 = vpop.f32.mrf.mxu0
      %v7451 = vadd.f32 0.0, %v7450
      %7452 = vmatmul.bf16.gmra.mxu0 %v7210
      %v7453 = vpop.f32.mrf.mxu0
      %v7454 = vadd.f32 0.0, %v7453
      %v7455 = vpop.f32.mrf.mxu0
      %v7456 = vadd.f32 0.0, %v7455
      %7457 = vmatmul.bf16.gmra.mxu0 %v7213
      %v7458 = vpop.f32.mrf.mxu0
      %v7459 = vadd.f32 0.0, %v7458
      %v7460 = vpop.f32.mrf.mxu0
      %v7461 = vadd.f32 0.0, %v7460
      %7462 = vmatmul.bf16.gmra.mxu0 %v7216
      %v7463 = vpop.f32.mrf.mxu0
      %v7464 = vadd.f32 0.0, %v7463
      %v7465 = vpop.f32.mrf.mxu0
      %v7466 = vadd.f32 0.0, %v7465
      %7467 = vmatmul.bf16.gmra.mxu0 %v7219
      %v7468 = vpop.f32.mrf.mxu0
      %v7469 = vadd.f32 0.0, %v7468
      %v7470 = vpop.f32.mrf.mxu0
      %v7471 = vadd.f32 0.0, %v7470
      %7472 = vmatmul.bf16.gmra.mxu0 %v7222
      %v7473 = vpop.f32.mrf.mxu0
      %v7474 = vadd.f32 0.0, %v7473
      %v7475 = vpop.f32.mrf.mxu0
      %v7476 = vadd.f32 0.0, %v7475
      %7477 = vmatmul.bf16.gmra.mxu0 %v7225
      %v7478 = vpop.f32.mrf.mxu0
      %v7479 = vadd.f32 0.0, %v7478
      %v7480 = vpop.f32.mrf.mxu0
      %v7481 = vadd.f32 0.0, %v7480
      %7482 = vmatmul.bf16.gmra.mxu0 %v7228
      %v7483 = vpop.f32.mrf.mxu0
      %v7484 = vadd.f32 0.0, %v7483
      %v7485 = vpop.f32.mrf.mxu0
      %7486 = vdwg.mxu0
      %7487 = vmatpush.bf16.msra.mxu0 %v7354
      %7488 = vmatpush.bf16.msra.mxu0 %v7353
      %7489 = vmatpush.bf16.msra.mxu0 %v7352
      %7490 = vmatpush.bf16.msra.mxu0 %v7351
      %7491 = vmatpush.bf16.msra.mxu0 %v7350
      %7492 = vmatpush.bf16.msra.mxu0 %v7349
      %7493 = vmatpush.bf16.msra.mxu0 %v7348
      %7494 = vmatpush.bf16.msra.mxu0 %v7347
      %7495 = vmatmul.bf16.gmra.mxu0 %v7193
      %v7496 = vpop.f32.mrf.mxu0
      %v7497 = vadd.f32 %v7424, %v7496
      %v7498 = vpop.f32.mrf.mxu0
      %v7499 = vadd.f32 %v7426, %v7498
      %7500 = vmatmul.bf16.gmra.mxu0 %v7196
      %v7501 = vpop.f32.mrf.mxu0
      %v7502 = vadd.f32 %v7429, %v7501
      %v7503 = vpop.f32.mrf.mxu0
      %v7504 = vadd.f32 %v7431, %v7503
      %7505 = vmatmul.bf16.gmra.mxu0 %v7199
      %v7506 = vpop.f32.mrf.mxu0
      %v7507 = vadd.f32 %v7434, %v7506
      %v7508 = vpop.f32.mrf.mxu0
      %v7509 = vadd.f32 %v7436, %v7508
      %7510 = vmatmul.bf16.gmra.mxu0 %v7202
      %v7511 = vpop.f32.mrf.mxu0
      %v7512 = vadd.f32 %v7439, %v7511
      %v7513 = vpop.f32.mrf.mxu0
      %v7514 = vadd.f32 %v7441, %v7513
      %7515 = vmatmul.bf16.gmra.mxu0 %v7205
      %v7516 = vpop.f32.mrf.mxu0
      %v7517 = vadd.f32 %v7444, %v7516
      %v7518 = vpop.f32.mrf.mxu0
      %v7519 = vadd.f32 %v7446, %v7518
      %7520 = vmatmul.bf16.gmra.mxu0 %v7208
      %v7521 = vpop.f32.mrf.mxu0
      %v7522 = vadd.f32 %v7449, %v7521
      %v7523 = vpop.f32.mrf.mxu0
      %v7524 = vadd.f32 %v7451, %v7523
      %7525 = vmatmul.bf16.gmra.mxu0 %v7211
      %v7526 = vpop.f32.mrf.mxu0
      %v7527 = vadd.f32 %v7454, %v7526
      %v7528 = vpop.f32.mrf.mxu0
      %v7529 = vadd.f32 %v7456, %v7528
      %7530 = vmatmul.bf16.gmra.mxu0 %v7214
      %v7531 = vpop.f32.mrf.mxu0
      %v7532 = vadd.f32 %v7459, %v7531
      %v7533 = vpop.f32.mrf.mxu0
      %v7534 = vadd.f32 %v7461, %v7533
      %7535 = vmatmul.bf16.gmra.mxu0 %v7217
      %v7536 = vpop.f32.mrf.mxu0
      %v7537 = vadd.f32 %v7464, %v7536
      %v7538 = vpop.f32.mrf.mxu0
      %v7539 = vadd.f32 %v7466, %v7538
      %7540 = vmatmul.bf16.gmra.mxu0 %v7220
      %v7541 = vpop.f32.mrf.mxu0
      %v7542 = vadd.f32 %v7469, %v7541
      %v7543 = vpop.f32.mrf.mxu0
      %v7544 = vadd.f32 %v7471, %v7543
      %7545 = vmatmul.bf16.gmra.mxu0 %v7223
      %v7546 = vpop.f32.mrf.mxu0
      %v7547 = vadd.f32 %v7474, %v7546
      %v7548 = vpop.f32.mrf.mxu0
      %v7549 = vadd.f32 %v7476, %v7548
      %7550 = vmatmul.bf16.gmra.mxu0 %v7226
      %v7551 = vpop.f32.mrf.mxu0
      %v7552 = vadd.f32 %v7479, %v7551
      %v7553 = vpop.f32.mrf.mxu0
      %v7554 = vadd.f32 %v7481, %v7553
      %7555 = vmatmul.bf16.gmra.mxu0 %v7229
      %v7556 = vpop.f32.mrf.mxu0
      %v7557 = vadd.f32 %v7484, %v7556
      %v7558 = vpop.f32.mrf.mxu0
      %7559 = vdwg.mxu0
      %7560 = vmatpush.bf16.msra.mxu0 0
      %7561 = vmatpush.bf16.msra.mxu0 0
      %7562 = vmatpush.bf16.msra.mxu0 0
      %7563 = vmatpush.bf16.msra.mxu0 0
      %7564 = vmatpush.bf16.msra.mxu0 0
      %7565 = vmatpush.bf16.msra.mxu0 0
      %7566 = vmatpush.bf16.msra.mxu0 %v7356
      %7567 = vmatpush.bf16.msra.mxu0 %v7355
      %7568 = vmatmul.bf16.gmra.mxu0 %v7376
      %v7569 = vpop.f32.mrf.mxu0
      %v7570 = vadd.f32 %v7497, %v7569
      %v7571 = vpop.f32.mrf.mxu0
      %v7572 = vadd.f32 %v7499, %v7571
      %7573 = vmatmul.bf16.gmra.mxu0 %v7379
      %v7574 = vpop.f32.mrf.mxu0
      %v7575 = vadd.f32 %v7502, %v7574
      %v7576 = vpop.f32.mrf.mxu0
      %v7577 = vadd.f32 %v7504, %v7576
      %7578 = vmatmul.bf16.gmra.mxu0 %v7382
      %v7579 = vpop.f32.mrf.mxu0
      %v7580 = vadd.f32 %v7507, %v7579
      %v7581 = vpop.f32.mrf.mxu0
      %v7582 = vadd.f32 %v7509, %v7581
      %7583 = vmatmul.bf16.gmra.mxu0 %v7385
      %v7584 = vpop.f32.mrf.mxu0
      %v7585 = vadd.f32 %v7512, %v7584
      %v7586 = vpop.f32.mrf.mxu0
      %v7587 = vadd.f32 %v7514, %v7586
      %7588 = vmatmul.bf16.gmra.mxu0 %v7388
      %v7589 = vpop.f32.mrf.mxu0
      %v7590 = vadd.f32 %v7517, %v7589
      %v7591 = vpop.f32.mrf.mxu0
      %v7592 = vadd.f32 %v7519, %v7591
      %7593 = vmatmul.bf16.gmra.mxu0 %v7391
      %v7594 = vpop.f32.mrf.mxu0
      %v7595 = vadd.f32 %v7522, %v7594
      %v7596 = vpop.f32.mrf.mxu0
      %v7597 = vadd.f32 %v7524, %v7596
      %7598 = vmatmul.bf16.gmra.mxu0 %v7394
      %v7599 = vpop.f32.mrf.mxu0
      %v7600 = vadd.f32 %v7527, %v7599
      %v7601 = vpop.f32.mrf.mxu0
      %v7602 = vadd.f32 %v7529, %v7601
      %7603 = vmatmul.bf16.gmra.mxu0 %v7397
      %v7604 = vpop.f32.mrf.mxu0
      %v7605 = vadd.f32 %v7532, %v7604
      %v7606 = vpop.f32.mrf.mxu0
      %v7607 = vadd.f32 %v7534, %v7606
      %7608 = vmatmul.bf16.gmra.mxu0 %v7400
      %v7609 = vpop.f32.mrf.mxu0
      %v7610 = vadd.f32 %v7537, %v7609
      %v7611 = vpop.f32.mrf.mxu0
      %v7612 = vadd.f32 %v7539, %v7611
      %7613 = vmatmul.bf16.gmra.mxu0 %v7403
      %v7614 = vpop.f32.mrf.mxu0
      %v7615 = vadd.f32 %v7542, %v7614
      %v7616 = vpop.f32.mrf.mxu0
      %v7617 = vadd.f32 %v7544, %v7616
      %7618 = vmatmul.bf16.gmra.mxu0 %v7406
      %v7619 = vpop.f32.mrf.mxu0
      %v7620 = vadd.f32 %v7547, %v7619
      %v7621 = vpop.f32.mrf.mxu0
      %v7622 = vadd.f32 %v7549, %v7621
      %7623 = vmatmul.bf16.gmra.mxu0 %v7409
      %v7624 = vpop.f32.mrf.mxu0
      %v7625 = vadd.f32 %v7552, %v7624
      %v7626 = vpop.f32.mrf.mxu0
      %v7627 = vadd.f32 %v7554, %v7626
      %7628 = vmatmul.bf16.gmra.mxu0 %v7412
      %v7629 = vpop.f32.mrf.mxu0
      %v7630 = vadd.f32 %v7557, %v7629
      %v7631 = vpop.f32.mrf.mxu0
      %7632 = vdwg.mxu0
      %v7658 = vrot.slane %v7570, 2
      %v7659 = vrot.slane %v7570, 4
      %v7660 = vrot.slane %v7570, 6
      %v7661 = vrot.slane %v7572, 2
      %v7662 = vrot.slane %v7572, 4
      %v7663 = vrot.slane %v7572, 6
      %v7664 = vrot.slane %v7575, 2
      %v7665 = vrot.slane %v7575, 4
      %v7666 = vrot.slane %v7575, 6
      %v7667 = vrot.slane %v7577, 2
      %v7668 = vrot.slane %v7577, 4
      %v7669 = vrot.slane %v7577, 6
      %v7670 = vrot.slane %v7580, 2
      %v7671 = vrot.slane %v7580, 4
      %v7672 = vrot.slane %v7580, 6
      %v7673 = vrot.slane %v7582, 2
      %v7674 = vrot.slane %v7582, 4
      %v7675 = vrot.slane %v7582, 6
      %v7676 = vrot.slane %v7585, 2
      %v7677 = vrot.slane %v7585, 4
      %v7678 = vrot.slane %v7585, 6
      %v7679 = vrot.slane %v7587, 2
      %v7680 = vrot.slane %v7587, 4
      %v7681 = vrot.slane %v7587, 6
      %v7682 = vrot.slane %v7590, 2
      %v7683 = vrot.slane %v7590, 4
      %v7684 = vrot.slane %v7590, 6
      %v7685 = vrot.slane %v7592, 2
      %v7686 = vrot.slane %v7592, 4
      %v7687 = vrot.slane %v7592, 6
      %v7688 = vrot.slane %v7595, 2
      %v7689 = vrot.slane %v7595, 4
      %v7690 = vrot.slane %v7595, 6
      %v7691 = vrot.slane %v7597, 2
      %v7692 = vrot.slane %v7597, 4
      %v7693 = vrot.slane %v7597, 6
      %v7694 = vrot.slane %v7600, 2
      %v7695 = vrot.slane %v7600, 4
      %v7696 = vrot.slane %v7600, 6
      %v7697 = vrot.slane %v7602, 2
      %v7698 = vrot.slane %v7602, 4
      %v7699 = vrot.slane %v7602, 6
      %v7700 = vrot.slane %v7605, 2
      %v7701 = vrot.slane %v7605, 4
      %v7702 = vrot.slane %v7605, 6
      %v7703 = vrot.slane %v7607, 2
      %v7704 = vrot.slane %v7607, 4
      %v7705 = vrot.slane %v7607, 6
      %v7706 = vrot.slane %v7610, 2
      %v7707 = vrot.slane %v7610, 4
      %v7708 = vrot.slane %v7610, 6
      %v7709 = vrot.slane %v7612, 2
      %v7710 = vrot.slane %v7612, 4
      %v7711 = vrot.slane %v7612, 6
      %v7712 = vrot.slane %v7615, 2
      %v7713 = vrot.slane %v7615, 4
      %v7714 = vrot.slane %v7615, 6
      %v7715 = vrot.slane %v7617, 2
      %v7716 = vrot.slane %v7617, 4
      %v7717 = vrot.slane %v7617, 6
      %v7718 = vrot.slane %v7620, 2
      %v7719 = vrot.slane %v7620, 4
      %v7720 = vrot.slane %v7620, 6
      %v7721 = vrot.slane %v7622, 2
      %v7722 = vrot.slane %v7622, 4
      %v7723 = vrot.slane %v7622, 6
      %v7724 = vrot.slane %v7625, 2
      %v7725 = vrot.slane %v7625, 4
      %v7726 = vrot.slane %v7625, 6
      %v7727 = vrot.slane %v7627, 2
      %v7728 = vrot.slane %v7627, 4
      %v7729 = vrot.slane %v7627, 6
      %v7730 = vrot.slane %v7630, 2
      %v7804 = vmax.f32 %v7570, %v7663
      %v7805 = vmax.f32 %v7658, %v7575
      %v7806 = vmax.f32 %v7659, %v7664
      %v7807 = vmax.f32 %v7660, %v7665
      %v7808 = vmax.f32 %v7572, %v7666
      %v7809 = vmax.f32 %v7661, %v7577
      %v7810 = vmax.f32 %v7662, %v7667
      %v7811 = vmax.f32 %v7668, %v7673
      %v7812 = vmax.f32 %v7669, %v7674
      %v7813 = vmax.f32 %v7580, %v7675
      %v7814 = vmax.f32 %v7670, %v7585
      %v7815 = vmax.f32 %v7671, %v7676
      %v7816 = vmax.f32 %v7672, %v7677
      %v7817 = vmax.f32 %v7582, %v7678
      %v7818 = vmax.f32 %v7587, %v7684
      %v7819 = vmax.f32 %v7679, %v7592
      %v7820 = vmax.f32 %v7680, %v7685
      %v7821 = vmax.f32 %v7681, %v7686
      %v7822 = vmax.f32 %v7590, %v7687
      %v7823 = vmax.f32 %v7682, %v7595
      %v7824 = vmax.f32 %v7683, %v7688
      %v7825 = vmax.f32 %v7689, %v7694
      %v7826 = vmax.f32 %v7690, %v7695
      %v7827 = vmax.f32 %v7597, %v7696
      %v7828 = vmax.f32 %v7691, %v7602
      %v7829 = vmax.f32 %v7692, %v7697
      %v7830 = vmax.f32 %v7693, %v7698
      %v7831 = vmax.f32 %v7600, %v7699
      %v7832 = vmax.f32 %v7605, %v7705
      %v7833 = vmax.f32 %v7700, %v7610
      %v7834 = vmax.f32 %v7701, %v7706
      %v7835 = vmax.f32 %v7702, %v7707
      %v7836 = vmax.f32 %v7607, %v7708
      %v7837 = vmax.f32 %v7703, %v7612
      %v7838 = vmax.f32 %v7704, %v7709
      %v7839 = vmax.f32 %v7710, %v7715
      %v7840 = vmax.f32 %v7711, %v7716
      %v7841 = vmax.f32 %v7615, %v7717
      %v7842 = vmax.f32 %v7712, %v7620
      %v7843 = vmax.f32 %v7713, %v7718
      %v7844 = vmax.f32 %v7714, %v7719
      %v7845 = vmax.f32 %v7617, %v7720
      %v7846 = vmax.f32 %v7622, %v7726
      %v7847 = vmax.f32 %v7721, %v7627
      %v7848 = vmax.f32 %v7722, %v7727
      %v7849 = vmax.f32 %v7723, %v7728
      %v7850 = vmax.f32 %v7625, %v7729
      %v7851 = vmax.f32 %v7724, %v7630
      %v7852 = vmax.f32 %v7725, %v7730
      %v7902 = vrot.slane %v7804, 7
      %v7903 = vrot.slane %v7902, 2
      %v7904 = vrot.slane %v7805, 7
      %v7905 = vrot.slane %v7904, 2
      %v7906 = vrot.slane %v7806, 7
      %v7907 = vrot.slane %v7906, 2
      %v7908 = vrot.slane %v7807, 7
      %v7909 = vrot.slane %v7908, 2
      %v7910 = vrot.slane %v7808, 7
      %v7911 = vrot.slane %v7910, 2
      %v7912 = vrot.slane %v7809, 7
      %v7913 = vrot.slane %v7912, 2
      %v7914 = vrot.slane %v7810, 7
      %v7915 = vrot.slane %v7914, 2
      %v7916 = vrot.slane %v7811, 7
      %v7917 = vrot.slane %v7916, 2
      %v7918 = vrot.slane %v7812, 7
      %v7919 = vrot.slane %v7918, 2
      %v7920 = vrot.slane %v7813, 7
      %v7921 = vrot.slane %v7920, 2
      %v7922 = vrot.slane %v7814, 7
      %v7923 = vrot.slane %v7922, 2
      %v7924 = vrot.slane %v7815, 7
      %v7925 = vrot.slane %v7924, 2
      %v7926 = vrot.slane %v7816, 7
      %v7927 = vrot.slane %v7926, 2
      %v7928 = vrot.slane %v7817, 7
      %v7929 = vrot.slane %v7928, 2
      %v7930 = vrot.slane %v7818, 7
      %v7931 = vrot.slane %v7930, 2
      %v7932 = vrot.slane %v7819, 7
      %v7933 = vrot.slane %v7932, 2
      %v7934 = vrot.slane %v7820, 7
      %v7935 = vrot.slane %v7934, 2
      %v7936 = vrot.slane %v7821, 7
      %v7937 = vrot.slane %v7936, 2
      %v7938 = vrot.slane %v7822, 7
      %v7939 = vrot.slane %v7938, 2
      %v7940 = vrot.slane %v7823, 7
      %v7941 = vrot.slane %v7940, 2
      %v7942 = vrot.slane %v7824, 7
      %v7943 = vrot.slane %v7942, 2
      %v7944 = vrot.slane %v7825, 7
      %v7945 = vrot.slane %v7944, 2
      %v7946 = vrot.slane %v7826, 7
      %v7947 = vrot.slane %v7946, 2
      %v7948 = vrot.slane %v7827, 7
      %v7949 = vrot.slane %v7948, 2
      %v7950 = vrot.slane %v7828, 7
      %v7951 = vrot.slane %v7950, 2
      %v7952 = vrot.slane %v7829, 7
      %v7953 = vrot.slane %v7952, 2
      %v7954 = vrot.slane %v7830, 7
      %v7955 = vrot.slane %v7954, 2
      %v7956 = vrot.slane %v7831, 7
      %v7957 = vrot.slane %v7956, 2
      %v7958 = vrot.slane %v7832, 7
      %v7959 = vrot.slane %v7958, 2
      %v7960 = vrot.slane %v7833, 7
      %v7961 = vrot.slane %v7960, 2
      %v7962 = vrot.slane %v7834, 7
      %v7963 = vrot.slane %v7962, 2
      %v7964 = vrot.slane %v7835, 7
      %v7965 = vrot.slane %v7964, 2
      %v7966 = vrot.slane %v7836, 7
      %v7967 = vrot.slane %v7966, 2
      %v7968 = vrot.slane %v7837, 7
      %v7969 = vrot.slane %v7968, 2
      %v7970 = vrot.slane %v7838, 7
      %v7971 = vrot.slane %v7970, 2
      %v7972 = vrot.slane %v7839, 7
      %v7973 = vrot.slane %v7972, 2
      %v7974 = vrot.slane %v7840, 7
      %v7975 = vrot.slane %v7974, 2
      %v7976 = vrot.slane %v7841, 7
      %v7977 = vrot.slane %v7976, 2
      %v7978 = vrot.slane %v7842, 7
      %v7979 = vrot.slane %v7978, 2
      %v7980 = vrot.slane %v7843, 7
      %v7981 = vrot.slane %v7980, 2
      %v7982 = vrot.slane %v7844, 7
      %v7983 = vrot.slane %v7982, 2
      %v7984 = vrot.slane %v7845, 7
      %v7985 = vrot.slane %v7984, 2
      %v7986 = vrot.slane %v7846, 7
      %v7987 = vrot.slane %v7986, 2
      %v7988 = vrot.slane %v7847, 7
      %v7989 = vrot.slane %v7988, 2
      %v7990 = vrot.slane %v7848, 7
      %v7991 = vrot.slane %v7990, 2
      %v7992 = vrot.slane %v7849, 7
      %v7993 = vrot.slane %v7992, 2
      %v7994 = vrot.slane %v7850, 7
      %v7995 = vrot.slane %v7994, 2
      %v7996 = vrot.slane %v7851, 7
      %v7997 = vrot.slane %v7996, 2
      %v7998 = vrot.slane %v7852, 7
      %v7999 = vrot.slane %v7998, 2
      %v8049 = vmax.f32 %v7804, %v7903
      %v8050 = vmax.f32 %v7805, %v7905
      %v8051 = vmax.f32 %v7806, %v7907
      %v8052 = vmax.f32 %v7807, %v7909
      %v8053 = vmax.f32 %v7808, %v7911
      %v8054 = vmax.f32 %v7809, %v7913
      %v8055 = vmax.f32 %v7810, %v7915
      %v8056 = vmax.f32 %v7811, %v7917
      %v8057 = vmax.f32 %v7812, %v7919
      %v8058 = vmax.f32 %v7813, %v7921
      %v8059 = vmax.f32 %v7814, %v7923
      %v8060 = vmax.f32 %v7815, %v7925
      %v8061 = vmax.f32 %v7816, %v7927
      %v8062 = vmax.f32 %v7817, %v7929
      %v8063 = vmax.f32 %v7818, %v7931
      %v8064 = vmax.f32 %v7819, %v7933
      %v8065 = vmax.f32 %v7820, %v7935
      %v8066 = vmax.f32 %v7821, %v7937
      %v8067 = vmax.f32 %v7822, %v7939
      %v8068 = vmax.f32 %v7823, %v7941
      %v8069 = vmax.f32 %v7824, %v7943
      %v8070 = vmax.f32 %v7825, %v7945
      %v8071 = vmax.f32 %v7826, %v7947
      %v8072 = vmax.f32 %v7827, %v7949
      %v8073 = vmax.f32 %v7828, %v7951
      %v8074 = vmax.f32 %v7829, %v7953
      %v8075 = vmax.f32 %v7830, %v7955
      %v8076 = vmax.f32 %v7831, %v7957
      %v8077 = vmax.f32 %v7832, %v7959
      %v8078 = vmax.f32 %v7833, %v7961
      %v8079 = vmax.f32 %v7834, %v7963
      %v8080 = vmax.f32 %v7835, %v7965
      %v8081 = vmax.f32 %v7836, %v7967
      %v8082 = vmax.f32 %v7837, %v7969
      %v8083 = vmax.f32 %v7838, %v7971
      %v8084 = vmax.f32 %v7839, %v7973
      %v8085 = vmax.f32 %v7840, %v7975
      %v8086 = vmax.f32 %v7841, %v7977
      %v8087 = vmax.f32 %v7842, %v7979
      %v8088 = vmax.f32 %v7843, %v7981
      %v8089 = vmax.f32 %v7844, %v7983
      %v8090 = vmax.f32 %v7845, %v7985
      %v8091 = vmax.f32 %v7846, %v7987
      %v8092 = vmax.f32 %v7847, %v7989
      %v8093 = vmax.f32 %v7848, %v7991
      %v8094 = vmax.f32 %v7849, %v7993
      %v8095 = vmax.f32 %v7850, %v7995
      %v8096 = vmax.f32 %v7851, %v7997
      %v8097 = vmax.f32 %v7852, %v7999
      %v8098 = vld [vmem:[%s4] sm:$0x1]
      %v8100 = vperm.slane %v8098, 0
      %v8101 = vrot.slane %v8100, 2
      %v8102 = vrot.slane %v8100, 4
      %v8103 = vrot.slane %v8100, 6
      %v8104 = vrot.slane %v8100, 1
      %v8105 = vrot.slane %v8101, 1
      %v8106 = vrot.slane %v8102, 1
      %v8114 = vadd.f32 %v8049, %v8100
      %v8115 = vadd.f32 %v8050, %v8104
      %v8116 = vadd.f32 %v8051, %v8101
      %v8117 = vadd.f32 %v8052, %v8105
      %v8118 = vadd.f32 %v8053, %v8102
      %v8119 = vadd.f32 %v8054, %v8106
      %v8120 = vadd.f32 %v8055, %v8103
      %v8121 = vadd.f32 %v8056, %v8100
      %v8122 = vadd.f32 %v8057, %v8104
      %v8123 = vadd.f32 %v8058, %v8101
      %v8124 = vadd.f32 %v8059, %v8105
      %v8125 = vadd.f32 %v8060, %v8102
      %v8126 = vadd.f32 %v8061, %v8106
      %v8127 = vadd.f32 %v8062, %v8103
      %v8128 = vadd.f32 %v8063, %v8100
      %v8129 = vadd.f32 %v8064, %v8104
      %v8130 = vadd.f32 %v8065, %v8101
      %v8131 = vadd.f32 %v8066, %v8105
      %v8132 = vadd.f32 %v8067, %v8102
      %v8133 = vadd.f32 %v8068, %v8106
      %v8134 = vadd.f32 %v8069, %v8103
      %v8135 = vadd.f32 %v8070, %v8100
      %v8136 = vadd.f32 %v8071, %v8104
      %v8137 = vadd.f32 %v8072, %v8101
      %v8138 = vadd.f32 %v8073, %v8105
      %v8139 = vadd.f32 %v8074, %v8102
      %v8140 = vadd.f32 %v8075, %v8106
      %v8141 = vadd.f32 %v8076, %v8103
      %v8142 = vadd.f32 %v8077, %v8100
      %v8143 = vadd.f32 %v8078, %v8104
      %v8144 = vadd.f32 %v8079, %v8101
      %v8145 = vadd.f32 %v8080, %v8105
      %v8146 = vadd.f32 %v8081, %v8102
      %v8147 = vadd.f32 %v8082, %v8106
      %v8148 = vadd.f32 %v8083, %v8103
      %v8149 = vadd.f32 %v8084, %v8100
      %v8150 = vadd.f32 %v8085, %v8104
      %v8151 = vadd.f32 %v8086, %v8101
      %v8152 = vadd.f32 %v8087, %v8105
      %v8153 = vadd.f32 %v8088, %v8102
      %v8154 = vadd.f32 %v8089, %v8106
      %v8155 = vadd.f32 %v8090, %v8103
      %v8156 = vadd.f32 %v8091, %v8100
      %v8157 = vadd.f32 %v8092, %v8104
      %v8158 = vadd.f32 %v8093, %v8101
      %v8159 = vadd.f32 %v8094, %v8105
      %v8160 = vadd.f32 %v8095, %v8102
      %v8161 = vadd.f32 %v8096, %v8106
      %v8162 = vadd.f32 %v8097, %v8103
      %vm8163 = vcmp.gt.f32.partialorder %v8114, 0.0
      %vm8164 = vcmp.gt.f32.partialorder %v8115, 0.0
      %vm8165 = vcmp.gt.f32.partialorder %v8116, 0.0
      %vm8166 = vcmp.gt.f32.partialorder %v8117, 0.0
      %vm8167 = vcmp.gt.f32.partialorder %v8118, 0.0
      %vm8168 = vcmp.gt.f32.partialorder %v8119, 0.0
      %vm8169 = vcmp.gt.f32.partialorder %v8120, 0.0
      %vm8170 = vcmp.gt.f32.partialorder %v8121, 0.0
      %vm8171 = vcmp.gt.f32.partialorder %v8122, 0.0
      %vm8172 = vcmp.gt.f32.partialorder %v8123, 0.0
      %vm8173 = vcmp.gt.f32.partialorder %v8124, 0.0
      %vm8174 = vcmp.gt.f32.partialorder %v8125, 0.0
      %vm8175 = vcmp.gt.f32.partialorder %v8126, 0.0
      %vm8176 = vcmp.gt.f32.partialorder %v8127, 0.0
      %vm8177 = vcmp.gt.f32.partialorder %v8128, 0.0
      %vm8178 = vcmp.gt.f32.partialorder %v8129, 0.0
      %vm8179 = vcmp.gt.f32.partialorder %v8130, 0.0
      %vm8180 = vcmp.gt.f32.partialorder %v8131, 0.0
      %vm8181 = vcmp.gt.f32.partialorder %v8132, 0.0
      %vm8182 = vcmp.gt.f32.partialorder %v8133, 0.0
      %vm8183 = vcmp.gt.f32.partialorder %v8134, 0.0
      %vm8184 = vcmp.gt.f32.partialorder %v8135, 0.0
      %vm8185 = vcmp.gt.f32.partialorder %v8136, 0.0
      %vm8186 = vcmp.gt.f32.partialorder %v8137, 0.0
      %vm8187 = vcmp.gt.f32.partialorder %v8138, 0.0
      %vm8188 = vcmp.gt.f32.partialorder %v8139, 0.0
      %vm8189 = vcmp.gt.f32.partialorder %v8140, 0.0
      %vm8190 = vcmp.gt.f32.partialorder %v8141, 0.0
      %vm8191 = vcmp.gt.f32.partialorder %v8142, 0.0
      %vm8192 = vcmp.gt.f32.partialorder %v8143, 0.0
      %vm8193 = vcmp.gt.f32.partialorder %v8144, 0.0
      %vm8194 = vcmp.gt.f32.partialorder %v8145, 0.0
      %vm8195 = vcmp.gt.f32.partialorder %v8146, 0.0
      %vm8196 = vcmp.gt.f32.partialorder %v8147, 0.0
      %vm8197 = vcmp.gt.f32.partialorder %v8148, 0.0
      %vm8198 = vcmp.gt.f32.partialorder %v8149, 0.0
      %vm8199 = vcmp.gt.f32.partialorder %v8150, 0.0
      %vm8200 = vcmp.gt.f32.partialorder %v8151, 0.0
      %vm8201 = vcmp.gt.f32.partialorder %v8152, 0.0
      %vm8202 = vcmp.gt.f32.partialorder %v8153, 0.0
      %vm8203 = vcmp.gt.f32.partialorder %v8154, 0.0
      %vm8204 = vcmp.gt.f32.partialorder %v8155, 0.0
      %vm8205 = vcmp.gt.f32.partialorder %v8156, 0.0
      %vm8206 = vcmp.gt.f32.partialorder %v8157, 0.0
      %vm8207 = vcmp.gt.f32.partialorder %v8158, 0.0
      %vm8208 = vcmp.gt.f32.partialorder %v8159, 0.0
      %vm8209 = vcmp.gt.f32.partialorder %v8160, 0.0
      %vm8210 = vcmp.gt.f32.partialorder %v8161, 0.0
      %vm8211 = vcmp.gt.f32.partialorder %v8162, 0.0
      %v8212 = vmin.f32 %v8114, 0.0
      %v8213 = vmin.f32 %v8115, 0.0
      %v8214 = vmin.f32 %v8116, 0.0
      %v8215 = vmin.f32 %v8117, 0.0
      %v8216 = vmin.f32 %v8118, 0.0
      %v8217 = vmin.f32 %v8119, 0.0
      %v8218 = vmin.f32 %v8120, 0.0
      %v8219 = vmin.f32 %v8121, 0.0
      %v8220 = vmin.f32 %v8122, 0.0
      %v8221 = vmin.f32 %v8123, 0.0
      %v8222 = vmin.f32 %v8124, 0.0
      %v8223 = vmin.f32 %v8125, 0.0
      %v8224 = vmin.f32 %v8126, 0.0
      %v8225 = vmin.f32 %v8127, 0.0
      %v8226 = vmin.f32 %v8128, 0.0
      %v8227 = vmin.f32 %v8129, 0.0
      %v8228 = vmin.f32 %v8130, 0.0
      %v8229 = vmin.f32 %v8131, 0.0
      %v8230 = vmin.f32 %v8132, 0.0
      %v8231 = vmin.f32 %v8133, 0.0
      %v8232 = vmin.f32 %v8134, 0.0
      %v8233 = vmin.f32 %v8135, 0.0
      %v8234 = vmin.f32 %v8136, 0.0
      %v8235 = vmin.f32 %v8137, 0.0
      %v8236 = vmin.f32 %v8138, 0.0
      %v8237 = vmin.f32 %v8139, 0.0
      %v8238 = vmin.f32 %v8140, 0.0
      %v8239 = vmin.f32 %v8141, 0.0
      %v8240 = vmin.f32 %v8142, 0.0
      %v8241 = vmin.f32 %v8143, 0.0
      %v8242 = vmin.f32 %v8144, 0.0
      %v8243 = vmin.f32 %v8145, 0.0
      %v8244 = vmin.f32 %v8146, 0.0
      %v8245 = vmin.f32 %v8147, 0.0
      %v8246 = vmin.f32 %v8148, 0.0
      %v8247 = vmin.f32 %v8149, 0.0
      %v8248 = vmin.f32 %v8150, 0.0
      %v8249 = vmin.f32 %v8151, 0.0
      %v8250 = vmin.f32 %v8152, 0.0
      %v8251 = vmin.f32 %v8153, 0.0
      %v8252 = vmin.f32 %v8154, 0.0
      %v8253 = vmin.f32 %v8155, 0.0
      %v8254 = vmin.f32 %v8156, 0.0
      %v8255 = vmin.f32 %v8157, 0.0
      %v8256 = vmin.f32 %v8158, 0.0
      %v8257 = vmin.f32 %v8159, 0.0
      %v8258 = vmin.f32 %v8160, 0.0
      %v8259 = vmin.f32 %v8161, 0.0
      %v8260 = vmin.f32 %v8162, 0.0
      %v8261 = vmul.f32 %v8212, 1.442695
      %v8262 = vpow.pop %v8261
      %v8263 = vmul.f32 %v8213, 1.442695
      %v8264 = vpow.pop %v8263
      %v8265 = vmul.f32 %v8214, 1.442695
      %v8266 = vpow.pop %v8265
      %v8267 = vmul.f32 %v8215, 1.442695
      %v8268 = vpow.pop %v8267
      %v8269 = vmul.f32 %v8216, 1.442695
      %v8270 = vpow.pop %v8269
      %v8271 = vmul.f32 %v8217, 1.442695
      %v8272 = vpow.pop %v8271
      %v8273 = vmul.f32 %v8218, 1.442695
      %v8274 = vpow.pop %v8273
      %v8275 = vmul.f32 %v8219, 1.442695
      %v8276 = vpow.pop %v8275
      %v8277 = vmul.f32 %v8220, 1.442695
      %v8278 = vpow.pop %v8277
      %v8279 = vmul.f32 %v8221, 1.442695
      %v8280 = vpow.pop %v8279
      %v8281 = vmul.f32 %v8222, 1.442695
      %v8282 = vpow.pop %v8281
      %v8283 = vmul.f32 %v8223, 1.442695
      %v8284 = vpow.pop %v8283
      %v8285 = vmul.f32 %v8224, 1.442695
      %v8286 = vpow.pop %v8285
      %v8287 = vmul.f32 %v8225, 1.442695
      %v8288 = vpow.pop %v8287
      %v8289 = vmul.f32 %v8226, 1.442695
      %v8290 = vpow.pop %v8289
      %v8291 = vmul.f32 %v8227, 1.442695
      %v8292 = vpow.pop %v8291
      %v8293 = vmul.f32 %v8228, 1.442695
      %v8294 = vpow.pop %v8293
      %v8295 = vmul.f32 %v8229, 1.442695
      %v8296 = vpow.pop %v8295
      %v8297 = vmul.f32 %v8230, 1.442695
      %v8298 = vpow.pop %v8297
      %v8299 = vmul.f32 %v8231, 1.442695
      %v8300 = vpow.pop %v8299
      %v8301 = vmul.f32 %v8232, 1.442695
      %v8302 = vpow.pop %v8301
      %v8303 = vmul.f32 %v8233, 1.442695
      %v8304 = vpow.pop %v8303
      %v8305 = vmul.f32 %v8234, 1.442695
      %v8306 = vpow.pop %v8305
      %v8307 = vmul.f32 %v8235, 1.442695
      %v8308 = vpow.pop %v8307
      %v8309 = vmul.f32 %v8236, 1.442695
      %v8310 = vpow.pop %v8309
      %v8311 = vmul.f32 %v8237, 1.442695
      %v8312 = vpow.pop %v8311
      %v8313 = vmul.f32 %v8238, 1.442695
      %v8314 = vpow.pop %v8313
      %v8315 = vmul.f32 %v8239, 1.442695
      %v8316 = vpow.pop %v8315
      %v8317 = vmul.f32 %v8240, 1.442695
      %v8318 = vpow.pop %v8317
      %v8319 = vmul.f32 %v8241, 1.442695
      %v8320 = vpow.pop %v8319
      %v8321 = vmul.f32 %v8242, 1.442695
      %v8322 = vpow.pop %v8321
      %v8323 = vmul.f32 %v8243, 1.442695
      %v8324 = vpow.pop %v8323
      %v8325 = vmul.f32 %v8244, 1.442695
      %v8326 = vpow.pop %v8325
      %v8327 = vmul.f32 %v8245, 1.442695
      %v8328 = vpow.pop %v8327
      %v8329 = vmul.f32 %v8246, 1.442695
      %v8330 = vpow.pop %v8329
      %v8331 = vmul.f32 %v8247, 1.442695
      %v8332 = vpow.pop %v8331
      %v8333 = vmul.f32 %v8248, 1.442695
      %v8334 = vpow.pop %v8333
      %v8335 = vmul.f32 %v8249, 1.442695
      %v8336 = vpow.pop %v8335
      %v8337 = vmul.f32 %v8250, 1.442695
      %v8338 = vpow.pop %v8337
      %v8339 = vmul.f32 %v8251, 1.442695
      %v8340 = vpow.pop %v8339
      %v8341 = vmul.f32 %v8252, 1.442695
      %v8342 = vpow.pop %v8341
      %v8343 = vmul.f32 %v8253, 1.442695
      %v8344 = vpow.pop %v8343
      %v8345 = vmul.f32 %v8254, 1.442695
      %v8346 = vpow.pop %v8345
      %v8347 = vmul.f32 %v8255, 1.442695
      %v8348 = vpow.pop %v8347
      %v8349 = vmul.f32 %v8256, 1.442695
      %v8350 = vpow.pop %v8349
      %v8351 = vmul.f32 %v8257, 1.442695
      %v8352 = vpow.pop %v8351
      %v8353 = vmul.f32 %v8258, 1.442695
      %v8354 = vpow.pop %v8353
      %v8355 = vmul.f32 %v8259, 1.442695
      %v8356 = vpow.pop %v8355
      %v8357 = vmul.f32 %v8260, 1.442695
      %v8358 = vpow.pop %v8357
      %v8359 = vsub.f32 %v8262, 1.0
      %v8360 = vsub.f32 %v8264, 1.0
      %v8361 = vsub.f32 %v8266, 1.0
      %v8362 = vsub.f32 %v8268, 1.0
      %v8363 = vsub.f32 %v8270, 1.0
      %v8364 = vsub.f32 %v8272, 1.0
      %v8365 = vsub.f32 %v8274, 1.0
      %v8366 = vsub.f32 %v8276, 1.0
      %v8367 = vsub.f32 %v8278, 1.0
      %v8368 = vsub.f32 %v8280, 1.0
      %v8369 = vsub.f32 %v8282, 1.0
      %v8370 = vsub.f32 %v8284, 1.0
      %v8371 = vsub.f32 %v8286, 1.0
      %v8372 = vsub.f32 %v8288, 1.0
      %v8373 = vsub.f32 %v8290, 1.0
      %v8374 = vsub.f32 %v8292, 1.0
      %v8375 = vsub.f32 %v8294, 1.0
      %v8376 = vsub.f32 %v8296, 1.0
      %v8377 = vsub.f32 %v8298, 1.0
      %v8378 = vsub.f32 %v8300, 1.0
      %v8379 = vsub.f32 %v8302, 1.0
      %v8380 = vsub.f32 %v8304, 1.0
      %v8381 = vsub.f32 %v8306, 1.0
      %v8382 = vsub.f32 %v8308, 1.0
      %v8383 = vsub.f32 %v8310, 1.0
      %v8384 = vsub.f32 %v8312, 1.0
      %v8385 = vsub.f32 %v8314, 1.0
      %v8386 = vsub.f32 %v8316, 1.0
      %v8387 = vsub.f32 %v8318, 1.0
      %v8388 = vsub.f32 %v8320, 1.0
      %v8389 = vsub.f32 %v8322, 1.0
      %v8390 = vsub.f32 %v8324, 1.0
      %v8391 = vsub.f32 %v8326, 1.0
      %v8392 = vsub.f32 %v8328, 1.0
      %v8393 = vsub.f32 %v8330, 1.0
      %v8394 = vsub.f32 %v8332, 1.0
      %v8395 = vsub.f32 %v8334, 1.0
      %v8396 = vsub.f32 %v8336, 1.0
      %v8397 = vsub.f32 %v8338, 1.0
      %v8398 = vsub.f32 %v8340, 1.0
      %v8399 = vsub.f32 %v8342, 1.0
      %v8400 = vsub.f32 %v8344, 1.0
      %v8401 = vsub.f32 %v8346, 1.0
      %v8402 = vsub.f32 %v8348, 1.0
      %v8403 = vsub.f32 %v8350, 1.0
      %v8404 = vsub.f32 %v8352, 1.0
      %v8405 = vsub.f32 %v8354, 1.0
      %v8406 = vsub.f32 %v8356, 1.0
      %v8407 = vsub.f32 %v8358, 1.0
      %v8408 = vsel %vm8163, %v8114, %v8359
      %v8409 = vsel %vm8164, %v8115, %v8360
      %v8410 = vsel %vm8165, %v8116, %v8361
      %v8411 = vsel %vm8166, %v8117, %v8362
      %v8412 = vsel %vm8167, %v8118, %v8363
      %v8413 = vsel %vm8168, %v8119, %v8364
      %v8414 = vsel %vm8169, %v8120, %v8365
      %v8415 = vsel %vm8170, %v8121, %v8366
      %v8416 = vsel %vm8171, %v8122, %v8367
      %v8417 = vsel %vm8172, %v8123, %v8368
      %v8418 = vsel %vm8173, %v8124, %v8369
      %v8419 = vsel %vm8174, %v8125, %v8370
      %v8420 = vsel %vm8175, %v8126, %v8371
      %v8421 = vsel %vm8176, %v8127, %v8372
      %v8422 = vsel %vm8177, %v8128, %v8373
      %v8423 = vsel %vm8178, %v8129, %v8374
      %v8424 = vsel %vm8179, %v8130, %v8375
      %v8425 = vsel %vm8180, %v8131, %v8376
      %v8426 = vsel %vm8181, %v8132, %v8377
      %v8427 = vsel %vm8182, %v8133, %v8378
      %v8428 = vsel %vm8183, %v8134, %v8379
      %v8429 = vsel %vm8184, %v8135, %v8380
      %v8430 = vsel %vm8185, %v8136, %v8381
      %v8431 = vsel %vm8186, %v8137, %v8382
      %v8432 = vsel %vm8187, %v8138, %v8383
      %v8433 = vsel %vm8188, %v8139, %v8384
      %v8434 = vsel %vm8189, %v8140, %v8385
      %v8435 = vsel %vm8190, %v8141, %v8386
      %v8436 = vsel %vm8191, %v8142, %v8387
      %v8437 = vsel %vm8192, %v8143, %v8388
      %v8438 = vsel %vm8193, %v8144, %v8389
      %v8439 = vsel %vm8194, %v8145, %v8390
      %v8440 = vsel %vm8195, %v8146, %v8391
      %v8441 = vsel %vm8196, %v8147, %v8392
      %v8442 = vsel %vm8197, %v8148, %v8393
      %v8443 = vsel %vm8198, %v8149, %v8394
      %v8444 = vsel %vm8199, %v8150, %v8395
      %v8445 = vsel %vm8200, %v8151, %v8396
      %v8446 = vsel %vm8201, %v8152, %v8397
      %v8447 = vsel %vm8202, %v8153, %v8398
      %v8448 = vsel %vm8203, %v8154, %v8399
      %v8449 = vsel %vm8204, %v8155, %v8400
      %v8450 = vsel %vm8205, %v8156, %v8401
      %v8451 = vsel %vm8206, %v8157, %v8402
      %v8452 = vsel %vm8207, %v8158, %v8403
      %v8453 = vsel %vm8208, %v8159, %v8404
      %v8454 = vsel %vm8209, %v8160, %v8405
      %v8455 = vsel %vm8210, %v8161, %v8406
      %v8456 = vsel %vm8211, %v8162, %v8407
      %v8493 = vperm.slane %v8408, 0
      %v8494 = vperm.slane %v8409, 0
      %v8495 = vperm.slane %v8410, 0
      %v8496 = vperm.slane %v8411, 0
      %v8497 = vperm.slane %v8412, 0
      %v8498 = vperm.slane %v8413, 0
      %v8499 = vperm.slane %v8415, 0
      %v8500 = vperm.slane %v8416, 0
      %v8501 = vperm.slane %v8417, 0
      %v8502 = vperm.slane %v8418, 0
      %v8503 = vperm.slane %v8419, 0
      %v8504 = vperm.slane %v8420, 0
      %v8505 = vperm.slane %v8422, 0
      %v8506 = vperm.slane %v8423, 0
      %v8507 = vperm.slane %v8424, 0
      %v8508 = vperm.slane %v8425, 0
      %v8509 = vperm.slane %v8426, 0
      %v8510 = vperm.slane %v8427, 0
      %v8511 = vperm.slane %v8429, 0
      %v8512 = vperm.slane %v8430, 0
      %v8513 = vperm.slane %v8431, 0
      %v8514 = vperm.slane %v8432, 0
      %v8515 = vperm.slane %v8433, 0
      %v8516 = vperm.slane %v8434, 0
      %v8517 = vperm.slane %v8436, 0
      %v8518 = vperm.slane %v8437, 0
      %v8519 = vperm.slane %v8438, 0
      %v8520 = vperm.slane %v8439, 0
      %v8521 = vperm.slane %v8440, 0
      %v8522 = vperm.slane %v8441, 0
      %v8523 = vperm.slane %v8443, 0
      %v8524 = vperm.slane %v8444, 0
      %v8525 = vperm.slane %v8445, 0
      %v8526 = vperm.slane %v8446, 0
      %v8527 = vperm.slane %v8447, 0
      %v8528 = vperm.slane %v8448, 0
      %v8529 = vsel %vm5048, %v8494, %v8493
      %v8530 = vsel %vm5050, %v8495, %v8529
      %v8531 = vsel %vm5052, %v8496, %v8530
      %v8532 = vsel %vm5054, %v8497, %v8531
      %v8533 = vsel %vm5056, %v8498, %v8532
      %v8534 = vsel %vm5058, %v8499, %v8533
      %v8535 = vsel %vm5060, %v8500, %v8534
      %v8536 = vsel %vm5048, %v8502, %v8501
      %v8537 = vsel %vm5050, %v8503, %v8536
      %v8538 = vsel %vm5052, %v8504, %v8537
      %v8539 = vsel %vm5054, %v8505, %v8538
      %v8540 = vsel %vm5056, %v8506, %v8539
      %v8541 = vsel %vm5058, %v8507, %v8540
      %v8542 = vsel %vm5060, %v8508, %v8541
      %v8543 = vsel %vm5048, %v8510, %v8509
      %v8544 = vsel %vm5050, %v8511, %v8543
      %v8545 = vsel %vm5052, %v8512, %v8544
      %v8546 = vsel %vm5054, %v8513, %v8545
      %v8547 = vsel %vm5056, %v8514, %v8546
      %v8548 = vsel %vm5058, %v8515, %v8547
      %v8549 = vsel %vm5060, %v8516, %v8548
      %v8550 = vsel %vm5048, %v8518, %v8517
      %v8551 = vsel %vm5050, %v8519, %v8550
      %v8552 = vsel %vm5052, %v8520, %v8551
      %v8553 = vsel %vm5054, %v8521, %v8552
      %v8554 = vsel %vm5056, %v8522, %v8553
      %v8555 = vsel %vm5058, %v8523, %v8554
      %v8556 = vsel %vm5060, %v8524, %v8555
      %v8557 = vsel %vm5048, %v8526, %v8525
      %v8558 = vsel %vm5050, %v8527, %v8557
      %v8559 = vsel %vm5052, %v8528, %v8558
      %v8571 = vperm.slane %v8414, 0
      %v8572 = vperm.slane %v8421, 0
      %v8573 = vperm.slane %v8428, 0
      %v8574 = vperm.slane %v8435, 0
      %v8575 = vperm.slane %v8442, 0
      %v8576 = vperm.slane %v8449, 0
      %v8577 = vsel %vm5048, %v8495, %v8494
      %v8578 = vsel %vm5050, %v8496, %v8577
      %v8579 = vsel %vm5052, %v8497, %v8578
      %v8580 = vsel %vm5054, %v8498, %v8579
      %v8581 = vsel %vm5056, %v8571, %v8580
      %v8582 = vsel %vm5058, %v8500, %v8581
      %v8583 = vsel %vm5060, %v8501, %v8582
      %v8584 = vsel %vm5048, %v8503, %v8502
      %v8585 = vsel %vm5050, %v8504, %v8584
      %v8586 = vsel %vm5052, %v8572, %v8585
      %v8587 = vsel %vm5054, %v8506, %v8586
      %v8588 = vsel %vm5056, %v8507, %v8587
      %v8589 = vsel %vm5058, %v8508, %v8588
      %v8590 = vsel %vm5060, %v8509, %v8589
      %v8591 = vsel %vm5048, %v8573, %v8510
      %v8592 = vsel %vm5050, %v8512, %v8591
      %v8593 = vsel %vm5052, %v8513, %v8592
      %v8594 = vsel %vm5054, %v8514, %v8593
      %v8595 = vsel %vm5056, %v8515, %v8594
      %v8596 = vsel %vm5058, %v8516, %v8595
      %v8597 = vsel %vm5060, %v8574, %v8596
      %v8598 = vsel %vm5048, %v8519, %v8518
      %v8599 = vsel %vm5050, %v8520, %v8598
      %v8600 = vsel %vm5052, %v8521, %v8599
      %v8601 = vsel %vm5054, %v8522, %v8600
      %v8602 = vsel %vm5056, %v8575, %v8601
      %v8603 = vsel %vm5058, %v8524, %v8602
      %v8604 = vsel %vm5060, %v8525, %v8603
      %v8605 = vsel %vm5048, %v8527, %v8526
      %v8606 = vsel %vm5050, %v8528, %v8605
      %v8607 = vsel %vm5052, %v8576, %v8606
      %8608 = vrot.lane.b32.xlu0 %v8583, 64
      %v8609 = vpop.permute.xlu0 %8608
      %8610 = vrot.lane.b32.xlu0 %v8590, 64
      %v8611 = vpop.permute.xlu0 %8610
      %8612 = vrot.lane.b32.xlu0 %v8597, 64
      %v8613 = vpop.permute.xlu0 %8612
      %8614 = vrot.lane.b32.xlu0 %v8604, 64
      %v8615 = vpop.permute.xlu0 %8614
      %8616 = vrot.lane.b32.xlu0 %v8607, 64
      %v8617 = vpop.permute.xlu0 %8616
      %v8629 = vperm.slane %v8450, 0
      %v8630 = vperm.slane %v8451, 0
      %v8631 = vperm.slane %v8452, 0
      %v8632 = vperm.slane %v8453, 0
      %v8633 = vperm.slane %v8454, 0
      %v8634 = vperm.slane %v8455, 0
      %v8635 = vsel %vm5048, %v8500, %v8499
      %v8636 = vsel %vm5050, %v8501, %v8635
      %v8637 = vsel %vm5052, %v8502, %v8636
      %v8638 = vsel %vm5054, %v8503, %v8637
      %v8639 = vsel %vm5056, %v8504, %v8638
      %v8640 = vsel %vm5058, %v8505, %v8639
      %v8641 = vsel %vm5060, %v8506, %v8640
      %v8642 = vsel %vm5048, %v8508, %v8507
      %v8643 = vsel %vm5050, %v8509, %v8642
      %v8644 = vsel %vm5052, %v8510, %v8643
      %v8645 = vsel %vm5054, %v8511, %v8644
      %v8646 = vsel %vm5056, %v8512, %v8645
      %v8647 = vsel %vm5058, %v8513, %v8646
      %v8648 = vsel %vm5060, %v8514, %v8647
      %v8649 = vsel %vm5048, %v8516, %v8515
      %v8650 = vsel %vm5050, %v8517, %v8649
      %v8651 = vsel %vm5052, %v8518, %v8650
      %v8652 = vsel %vm5054, %v8519, %v8651
      %v8653 = vsel %vm5056, %v8520, %v8652
      %v8654 = vsel %vm5058, %v8521, %v8653
      %v8655 = vsel %vm5060, %v8522, %v8654
      %v8656 = vsel %vm5048, %v8524, %v8523
      %v8657 = vsel %vm5050, %v8525, %v8656
      %v8658 = vsel %vm5052, %v8526, %v8657
      %v8659 = vsel %vm5054, %v8527, %v8658
      %v8660 = vsel %vm5056, %v8528, %v8659
      %v8661 = vsel %vm5058, %v8629, %v8660
      %v8662 = vsel %vm5060, %v8630, %v8661
      %v8663 = vsel %vm5048, %v8632, %v8631
      %v8664 = vsel %vm5050, %v8633, %v8663
      %v8665 = vsel %vm5052, %v8634, %v8664
      %v8672 = vperm.slane %v8456, 0
      %v8673 = vsel %vm5048, %v8501, %v8500
      %v8674 = vsel %vm5050, %v8502, %v8673
      %v8675 = vsel %vm5052, %v8503, %v8674
      %v8676 = vsel %vm5054, %v8504, %v8675
      %v8677 = vsel %vm5056, %v8572, %v8676
      %v8678 = vsel %vm5058, %v8506, %v8677
      %v8679 = vsel %vm5060, %v8507, %v8678
      %v8680 = vsel %vm5048, %v8509, %v8508
      %v8681 = vsel %vm5050, %v8510, %v8680
      %v8682 = vsel %vm5052, %v8573, %v8681
      %v8683 = vsel %vm5054, %v8512, %v8682
      %v8684 = vsel %vm5056, %v8513, %v8683
      %v8685 = vsel %vm5058, %v8514, %v8684
      %v8686 = vsel %vm5060, %v8515, %v8685
      %v8687 = vsel %vm5048, %v8574, %v8516
      %v8688 = vsel %vm5050, %v8518, %v8687
      %v8689 = vsel %vm5052, %v8519, %v8688
      %v8690 = vsel %vm5054, %v8520, %v8689
      %v8691 = vsel %vm5056, %v8521, %v8690
      %v8692 = vsel %vm5058, %v8522, %v8691
      %v8693 = vsel %vm5060, %v8575, %v8692
      %v8694 = vsel %vm5048, %v8525, %v8524
      %v8695 = vsel %vm5050, %v8526, %v8694
      %v8696 = vsel %vm5052, %v8527, %v8695
      %v8697 = vsel %vm5054, %v8528, %v8696
      %v8698 = vsel %vm5056, %v8576, %v8697
      %v8699 = vsel %vm5058, %v8630, %v8698
      %v8700 = vsel %vm5060, %v8631, %v8699
      %v8701 = vsel %vm5048, %v8633, %v8632
      %v8702 = vsel %vm5050, %v8634, %v8701
      %v8703 = vsel %vm5052, %v8672, %v8702
      %8704 = vrot.lane.b32.xlu0 %v8679, 64
      %v8705 = vpop.permute.xlu0 %8704
      %8706 = vrot.lane.b32.xlu0 %v8686, 64
      %v8707 = vpop.permute.xlu0 %8706
      %8708 = vrot.lane.b32.xlu0 %v8693, 64
      %v8709 = vpop.permute.xlu0 %8708
      %8710 = vrot.lane.b32.xlu0 %v8700, 64
      %v8711 = vpop.permute.xlu0 %8710
      %8712 = vrot.lane.b32.xlu0 %v8703, 64
      %v8713 = vpop.permute.xlu0 %8712
      %v8719 = vsel %vm7065, %v8535, %v8609
      %v8720 = vsel %vm7065, %v8542, %v8611
      %v8721 = vsel %vm7065, %v8549, %v8613
      %v8722 = vsel %vm7065, %v8556, %v8615
      %v8723 = vsel %vm7065, %v8559, %v8617
      %v8724 = vsel %vm7065, %v8641, %v8705
      %v8725 = vsel %vm7065, %v8648, %v8707
      %v8726 = vsel %vm7065, %v8655, %v8709
      %v8727 = vsel %vm7065, %v8662, %v8711
      %v8728 = vsel %vm7065, %v8665, %v8713
      %v8729 = vpack.c.bf16 %v8720, %v8719
      %v8730 = vpack.c.bf16 %v8725, %v8724
      %v8731 = vpack.c.bf16 %v8722, %v8721
      %v8732 = vpack.c.bf16 %v8727, %v8726
      %v8733 = vpack.c.bf16 %v8723, %v8723
      %v8734 = vpack.c.bf16 %v8728, %v8728
      %v8735 = vld [vmem:[%s5] sm:$0xf]
      %v8736 = vld [vmem:[%s5 + $0x4] sm:$0xf]
      %v8737 = vld [vmem:[%s5 + $0x8] sm:$0xf]
      %v8738 = vld [vmem:[%s5 + $0xc] sm:$0xf]
      %v8739 = vld [vmem:[%s5 + $0x10] sm:$0xf]
      %v8740 = vld [vmem:[%s5 + $0x14] sm:$0xf]
      %v8741 = vld [vmem:[%s5 + $0x18] sm:$0xf]
      %v8742 = vld [vmem:[%s5 + $0x1c] sm:$0xf]
      %v8743 = vld [vmem:[%s5 + $0x20] sm:$0xf]
      %v8744 = vld [vmem:[%s5 + $0x24] sm:$0xf]
      %v8745 = vld [vmem:[%s5 + $0x28] sm:$0xf]
      %v8746 = vld [vmem:[%s5 + $0x2c] sm:$0xf]
      %v8747 = vld [vmem:[%s5 + $0x30] sm:$0xf]
      %v8748 = vld [vmem:[%s5 + $0x34] sm:$0xf]
      %v8749 = vld [vmem:[%s5 + $0x38] sm:$0xf]
      %v8750 = vld [vmem:[%s5 + $0x3c] sm:$0xf]
      %v8751 = vld [vmem:[%s5 + $0x40] sm:$0xf]
      %v8752 = vld [vmem:[%s5 + $0x44] sm:$0xf]
      %v8753 = vld [vmem:[%s5 + $0x48] sm:$0xf]
      %v8754 = vld [vmem:[%s5 + $0x4c] sm:$0xf]
      %v8755 = vld [vmem:[%s5 + $0x50] sm:$0xf]
      %v8756 = vld [vmem:[%s5 + $0x54] sm:$0xf]
      %v8757 = vld [vmem:[%s5 + $0x58] sm:$0xf]
      %v8758 = vld [vmem:[%s5 + $0x5c] sm:$0xf]
      %v8759 = vld [vmem:[%s5 + $0x60] sm:$0xf]
      %v8760 = vld [vmem:[%s5 + $0x64] sm:$0xf]
      %v8761 = vld [vmem:[%s5 + $0x68] sm:$0xf]
      %v8762 = vld [vmem:[%s5 + $0x6c] sm:$0xf]
      %v8763 = vld [vmem:[%s5 + $0x70] sm:$0xf]
      %v8764 = vld [vmem:[%s5 + $0x74] sm:$0xf]
      %v8765 = vld [vmem:[%s5 + $0x78] sm:$0xf]
      %v8766 = vld [vmem:[%s5 + $0x7c] sm:$0xf]
      %v8799 = vunpack.c.l.b16 %v8735
      %v8800 = vunpack.c.l.b16 %v8736
      %v8801 = vunpack.c.l.b16 %v8737
      %v8802 = vunpack.c.l.b16 %v8738
      %v8803 = vunpack.c.l.b16 %v8739
      %v8804 = vunpack.c.l.b16 %v8740
      %v8805 = vunpack.c.l.b16 %v8741
      %v8806 = vunpack.c.l.b16 %v8742
      %v8807 = vunpack.c.l.b16 %v8743
      %v8808 = vunpack.c.l.b16 %v8744
      %v8809 = vunpack.c.l.b16 %v8745
      %v8810 = vunpack.c.l.b16 %v8746
      %v8811 = vunpack.c.l.b16 %v8747
      %v8812 = vunpack.c.l.b16 %v8748
      %v8813 = vunpack.c.l.b16 %v8749
      %v8814 = vunpack.c.l.b16 %v8750
      %v8815 = vunpack.c.l.b16 %v8751
      %v8816 = vunpack.c.l.b16 %v8752
      %v8817 = vunpack.c.l.b16 %v8753
      %v8818 = vunpack.c.l.b16 %v8754
      %v8819 = vunpack.c.l.b16 %v8755
      %v8820 = vunpack.c.l.b16 %v8756
      %v8821 = vunpack.c.l.b16 %v8757
      %v8822 = vunpack.c.l.b16 %v8758
      %v8823 = vunpack.c.l.b16 %v8759
      %v8824 = vunpack.c.l.b16 %v8760
      %v8825 = vunpack.c.l.b16 %v8761
      %v8826 = vunpack.c.l.b16 %v8762
      %v8827 = vunpack.c.l.b16 %v8763
      %v8828 = vunpack.c.l.b16 %v8764
      %v8829 = vunpack.c.l.b16 %v8765
      %v8830 = vunpack.c.l.b16 %v8766
      %v8831 = vpack.c.b16 %v8800, %v8799
      %v8832 = vpack.c.b16 %v8802, %v8801
      %v8833 = vpack.c.b16 %v8804, %v8803
      %v8834 = vpack.c.b16 %v8806, %v8805
      %v8835 = vpack.c.b16 %v8808, %v8807
      %v8836 = vpack.c.b16 %v8810, %v8809
      %v8837 = vpack.c.b16 %v8812, %v8811
      %v8838 = vpack.c.b16 %v8814, %v8813
      %v8839 = vpack.c.b16 %v8816, %v8815
      %v8840 = vpack.c.b16 %v8818, %v8817
      %v8841 = vpack.c.b16 %v8820, %v8819
      %v8842 = vpack.c.b16 %v8822, %v8821
      %v8843 = vpack.c.b16 %v8824, %v8823
      %v8844 = vpack.c.b16 %v8826, %v8825
      %v8845 = vpack.c.b16 %v8828, %v8827
      %v8846 = vpack.c.b16 %v8830, %v8829
      %8863 = vmatpush.bf16.msra.mxu0 %v8838
      %8864 = vmatpush.bf16.msra.mxu0 %v8837
      %8865 = vmatpush.bf16.msra.mxu0 %v8836
      %8866 = vmatpush.bf16.msra.mxu0 %v8835
      %8867 = vmatpush.bf16.msra.mxu0 %v8834
      %8868 = vmatpush.bf16.msra.mxu0 %v8833
      %8869 = vmatpush.bf16.msra.mxu0 %v8832
      %8870 = vmatpush.bf16.msra.mxu0 %v8831
      %8871 = vmatmul.bf16.gmra.mxu0 %v8729
      %v8872 = vpop.f32.mrf.mxu0
      %v8873 = vadd.f32 0.0, %v8872
      %v8874 = vpop.f32.mrf.mxu0
      %v8875 = vadd.f32 0.0, %v8874
      %8876 = vmatmul.bf16.gmra.mxu0 %v8731
      %v8877 = vpop.f32.mrf.mxu0
      %v8878 = vadd.f32 0.0, %v8877
      %v8879 = vpop.f32.mrf.mxu0
      %8880 = vmatmul.bf16.gmra.mxu0 %v8733
      %v8881 = vpop.f32.mrf.mxu0
      %v8882 = vpop.f32.mrf.mxu0
      %8883 = vdwg.mxu0
      %8884 = vmatpush.bf16.msra.mxu0 %v8846
      %8885 = vmatpush.bf16.msra.mxu0 %v8845
      %8886 = vmatpush.bf16.msra.mxu0 %v8844
      %8887 = vmatpush.bf16.msra.mxu0 %v8843
      %8888 = vmatpush.bf16.msra.mxu0 %v8842
      %8889 = vmatpush.bf16.msra.mxu0 %v8841
      %8890 = vmatpush.bf16.msra.mxu0 %v8840
      %8891 = vmatpush.bf16.msra.mxu0 %v8839
      %8892 = vmatmul.bf16.gmra.mxu0 %v8730
      %v8893 = vpop.f32.mrf.mxu0
      %v8894 = vadd.f32 %v8873, %v8893
      %v8895 = vpop.f32.mrf.mxu0
      %v8896 = vadd.f32 %v8875, %v8895
      %8897 = vmatmul.bf16.gmra.mxu0 %v8732
      %v8898 = vpop.f32.mrf.mxu0
      %v8899 = vadd.f32 %v8878, %v8898
      %v8900 = vpop.f32.mrf.mxu0
      %8901 = vmatmul.bf16.gmra.mxu0 %v8734
      %v8902 = vpop.f32.mrf.mxu0
      %v8903 = vpop.f32.mrf.mxu0
      %8904 = vdwg.mxu0
      %v8908 = vrot.slane %v8894, 2
      %v8909 = vrot.slane %v8894, 6
      %v8910 = vrot.slane %v8896, 4
      %v8911 = vrot.slane %v8896, 6
      %v8912 = vrot.slane %v8899, 2
      %v8913 = vrot.slane %v8899, 4
      %v8920 = vmax.f32 %v8894, %v8909
      %v8921 = vmax.f32 %v8908, %v8896
      %v8922 = vmax.f32 %v8910, %v8912
      %v8923 = vmax.f32 %v8911, %v8913
      %v8928 = vrot.slane %v8920, 7
      %v8929 = vrot.slane %v8928, 2
      %v8930 = vrot.slane %v8921, 7
      %v8931 = vrot.slane %v8930, 2
      %v8932 = vrot.slane %v8922, 7
      %v8933 = vrot.slane %v8932, 2
      %v8934 = vrot.slane %v8923, 7
      %v8935 = vrot.slane %v8934, 2
      %v8940 = vmax.f32 %v8920, %v8929
      %v8941 = vmax.f32 %v8921, %v8931
      %v8942 = vmax.f32 %v8922, %v8933
      %v8943 = vmax.f32 %v8923, %v8935
      %v8944 = vld [vmem:[%s6] sm:$0x1]
      %v8946 = vperm.slane %v8944, 0
      %v8947 = vrot.slane %v8946, 1
      %v8950 = vadd.f32 %v8940, %v8946
      %v8951 = vadd.f32 %v8941, %v8947
      %v8952 = vadd.f32 %v8942, %v8946
      %v8953 = vadd.f32 %v8943, %v8947
      %vm8954 = vcmp.gt.f32.partialorder %v8950, 0.0
      %vm8955 = vcmp.gt.f32.partialorder %v8951, 0.0
      %vm8956 = vcmp.gt.f32.partialorder %v8952, 0.0
      %vm8957 = vcmp.gt.f32.partialorder %v8953, 0.0
      %v8958 = vmin.f32 %v8950, 0.0
      %v8959 = vmin.f32 %v8951, 0.0
      %v8960 = vmin.f32 %v8952, 0.0
      %v8961 = vmin.f32 %v8953, 0.0
      %v8962 = vmul.f32 %v8958, 1.442695
      %v8963 = vpow.pop %v8962
      %v8964 = vmul.f32 %v8959, 1.442695
      %v8965 = vpow.pop %v8964
      %v8966 = vmul.f32 %v8960, 1.442695
      %v8967 = vpow.pop %v8966
      %v8968 = vmul.f32 %v8961, 1.442695
      %v8969 = vpow.pop %v8968
      %v8970 = vsub.f32 %v8963, 1.0
      %v8971 = vsub.f32 %v8965, 1.0
      %v8972 = vsub.f32 %v8967, 1.0
      %v8973 = vsub.f32 %v8969, 1.0
      %v8974 = vsel %vm8954, %v8950, %v8970
      %v8975 = vsel %vm8955, %v8951, %v8971
      %v8976 = vsel %vm8956, %v8952, %v8972
      %v8977 = vsel %vm8957, %v8953, %v8973
      %v8978 = vpack.c.bf16 %v8974, %v8974
      %v8979 = vpack.c.bf16 %v8975, %v8975
      %v8980 = vpack.c.bf16 %v8976, %v8976
      %v8981 = vpack.c.bf16 %v8977, %v8977
      %v8982 = vld [vmem:[%s7] sm:$0xff]
      %v8983 = vld [vmem:[%s7 + $0x8] sm:$0xff]
      %v8984 = vld [vmem:[%s7 + $0x10] sm:$0xff]
      %v8985 = vld [vmem:[%s7 + $0x18] sm:$0xff]
      %v8986 = vld [vmem:[%s7 + $0x20] sm:$0xff]
      %v8987 = vld [vmem:[%s7 + $0x28] sm:$0xff]
      %v8988 = vld [vmem:[%s7 + $0x30] sm:$0xff]
      %v8989 = vld [vmem:[%s7 + $0x38] sm:$0xff]
      %v8990 = vld [vmem:[%s7 + $0x40] sm:$0xff]
      %v8991 = vld [vmem:[%s7 + $0x48] sm:$0xff]
      %v8992 = vld [vmem:[%s7 + $0x50] sm:$0xff]
      %v8993 = vld [vmem:[%s7 + $0x58] sm:$0xff]
      %v8994 = vld [vmem:[%s7 + $0x60] sm:$0xff]
      %v8995 = vld [vmem:[%s7 + $0x68] sm:$0xff]
      %v8996 = vld [vmem:[%s7 + $0x70] sm:$0xff]
      %v8997 = vld [vmem:[%s7 + $0x78] sm:$0xff]
      %v9002 = vunpack.c.l.b16 %v8978
      %v9003 = vunpack.c.l.b16 %v8979
      %v9004 = vunpack.c.l.b16 %v8980
      %v9005 = vunpack.c.l.b16 %v8981
      %v9006 = vrot.slane %v9003, 7
      %v9007 = vsel %vm5048, %v9006, %v9002
      %v9008 = vrot.slane %v9004, 6
      %v9009 = vsel %vm5050, %v9008, %v9007
      %v9010 = vrot.slane %v9005, 5
      %v9011 = vsel %vm5052, %v9010, %v9009
      %v9012 = vpack.c.b16 %v9011, %v9011
      %v9030 = vunpack.c.l.b16 %v8982
      %v9031 = vunpack.c.h.b16 %v8982
      %v9032 = vunpack.c.l.b16 %v8983
      %v9033 = vunpack.c.h.b16 %v8983
      %v9034 = vunpack.c.l.b16 %v8984
      %v9035 = vunpack.c.h.b16 %v8984
      %v9036 = vunpack.c.l.b16 %v8985
      %v9037 = vunpack.c.h.b16 %v8985
      %v9038 = vunpack.c.l.b16 %v8986
      %v9039 = vunpack.c.h.b16 %v8986
      %v9040 = vunpack.c.l.b16 %v8987
      %v9041 = vunpack.c.h.b16 %v8987
      %v9042 = vunpack.c.l.b16 %v8988
      %v9043 = vunpack.c.h.b16 %v8988
      %v9044 = vunpack.c.l.b16 %v8989
      %v9045 = vunpack.c.h.b16 %v8989
      %v9046 = vunpack.c.l.b16 %v8990
      %v9047 = vunpack.c.h.b16 %v8990
      %v9048 = vunpack.c.l.b16 %v8991
      %v9049 = vunpack.c.h.b16 %v8991
      %v9050 = vunpack.c.l.b16 %v8992
      %v9051 = vunpack.c.h.b16 %v8992
      %v9052 = vunpack.c.l.b16 %v8993
      %v9053 = vunpack.c.h.b16 %v8993
      %v9054 = vunpack.c.l.b16 %v8994
      %v9055 = vunpack.c.h.b16 %v8994
      %v9056 = vunpack.c.l.b16 %v8995
      %v9057 = vunpack.c.h.b16 %v8995
      %v9058 = vunpack.c.l.b16 %v8996
      %v9059 = vunpack.c.h.b16 %v8996
      %v9060 = vunpack.c.l.b16 %v8997
      %v9061 = vunpack.c.h.b16 %v8997
      %v9062 = vpack.c.b16 %v9032, %v9030
      %v9063 = vpack.c.b16 %v9033, %v9031
      %v9064 = vpack.c.b16 %v9036, %v9034
      %v9065 = vpack.c.b16 %v9037, %v9035
      %v9066 = vpack.c.b16 %v9040, %v9038
      %v9067 = vpack.c.b16 %v9041, %v9039
      %v9068 = vpack.c.b16 %v9044, %v9042
      %v9069 = vpack.c.b16 %v9045, %v9043
      %v9070 = vpack.c.b16 %v9048, %v9046
      %v9071 = vpack.c.b16 %v9049, %v9047
      %v9072 = vpack.c.b16 %v9052, %v9050
      %v9073 = vpack.c.b16 %v9053, %v9051
      %v9074 = vpack.c.b16 %v9056, %v9054
      %v9075 = vpack.c.b16 %v9057, %v9055
      %v9076 = vpack.c.b16 %v9060, %v9058
      %v9077 = vpack.c.b16 %v9061, %v9059
      %9094 = vmatpush.bf16.msra.mxu0 %v9076
      %9095 = vmatpush.bf16.msra.mxu0 %v9074
      %9096 = vmatpush.bf16.msra.mxu0 %v9072
      %9097 = vmatpush.bf16.msra.mxu0 %v9070
      %9098 = vmatpush.bf16.msra.mxu0 %v9068
      %9099 = vmatpush.bf16.msra.mxu0 %v9066
      %9100 = vmatpush.bf16.msra.mxu0 %v9064
      %9101 = vmatpush.bf16.msra.mxu0 %v9062
      %9102 = vmatmul.bf16.gmra.mxu0 %v9012
      %v9103 = vpop.f32.mrf.mxu0
      %v9104 = vadd.f32 0.0, %v9103
      %v9105 = vpop.f32.mrf.mxu0
      %9106 = vdwg.mxu0
      %9107 = vmatpush.bf16.msra.mxu0 %v9077
      %9108 = vmatpush.bf16.msra.mxu0 %v9075
      %9109 = vmatpush.bf16.msra.mxu0 %v9073
      %9110 = vmatpush.bf16.msra.mxu0 %v9071
      %9111 = vmatpush.bf16.msra.mxu0 %v9069
      %9112 = vmatpush.bf16.msra.mxu0 %v9067
      %9113 = vmatpush.bf16.msra.mxu0 %v9065
      %9114 = vmatpush.bf16.msra.mxu0 %v9063
      %9115 = vmatmul.bf16.gmra.mxu0 %v9012
      %v9116 = vpop.f32.mrf.mxu0
      %v9117 = vadd.f32 0.0, %v9116
      %v9118 = vpop.f32.mrf.mxu0
      %9119 = vdwg.mxu0
      %v9122 = vrot.slane %v9117, 6
      %vm9123 = vcmask 1041408
      %v9124 = vsel %vm9123, %v9104, %v9122
      %vm9125 = vcmask 1043458
      %v9126 = vsel %vm9125, %v9104, %v9122
      %v9127 = vrot.slane %v9126, 2
      %v9130 = vmax.f32 %v9124, %v9127
      %v9132 = vrot.slane %v9130, 7
      %v9133 = vrot.slane %v9132, 2
      %v9135 = vmax.f32 %v9130, %v9133
      %v9136 = vld [vmem:[%s8] sm:$0x3]
      %v9139 = vunpack.c.l.s4 857870592
      %v9140 = vunpack.c.0.s8 %v9139
      %v9141 = vperm.slane %v9136, %v9140
      %v9143 = vadd.f32 %v9135, %v9141
      %vm9144 = vcmp.gt.f32.partialorder %v9143, 0.0
      %v9145 = vmin.f32 %v9143, 0.0
      %v9146 = vmul.f32 %v9145, 1.442695
      %v9147 = vpow.pop %v9146
      %v9148 = vsub.f32 %v9147, 1.0
      %v9149 = vsel %vm9144, %v9143, %v9148
      %v9151 = vrot.slane %v9149, 1
      %v9152 = vrot.slane %v9149, 2
      %v9153 = vrot.slane %v9149, 3
      %vm9154 = vcmask 1040384
      %v9155 = vsel %vm9154, %v9149, %v9151
      %v9156 = vsel %vm5050, %v9152, %v9153
      %v9157 = vsel %vm9123, %v9155, %v9156
      %v9159 = vlaneseq
      %vm9160 = vcmp.ge.s32.totalorder %v9159, 0
      %vm9161 = vcmp.lt.s32.totalorder %v9159, 256
      %vm9162 = vmand %vm9160, %vm9161
      %9163 = vst.msk [vmem:[%s330] sm:$0x3] %vm9162, %v9157
      %p9164 = scmp.lt.s32.totalorder %s20, 1
      %s9165 = scalar_select %p9164, %s20, 1
      %s9166 = smul.addr %s9165, 2
      %s9167 = scalar_lea.vmem %s9, %s9166
      // Predicated region
      $region57: #{conv_layer_forward.1} parent=55 // pred_check
        %p9168 = pneg %p232
      $region58: #{conv_layer_forward.1} parent=55 // pred_check_branch
        %9170 = sbr.rel (%p9168) target = $region60
      $region59: #{conv_layer_forward.1} parent=55 // pred_region
        _
      $region60: #{conv_layer_forward.1} parent=55 // pred_fallthru
        _
    $region56: #{conv_layer_forward.1} parent=5 // pred_fallthru
      _
    %p9171 = scmp.le.s32.totalorder 2, %s15
    // Predicated region
    $region61: #{conv_layer_forward.1} parent=5 // pred_check
      %p9172 = pneg %p9171
    $region62: #{conv_layer_forward.1} parent=5 // pred_check_branch
      %9174 = sbr.rel (%p9172) target = $region64
    $region63: #{conv_layer_forward.1} parent=5 // pred_region
      %s9175 = ssub.s32 %s15, 2
      // Predicated region
      $region65: #{conv_layer_forward.1} parent=63 // pred_check
        %p9176 = pneg %p238
      $region66: #{conv_layer_forward.1} parent=63 // pred_check_branch
        %9178 = sbr.rel (%p9176) target = $region68
      $region67: #{conv_layer_forward.1} parent=63 // pred_region
        %p9179 = scmp.lt.s32.totalorder %s21, 1
        %s9180 = scalar_select %p9179, %s21, 1
        %s9181 = smul.addr %s9180, 2
        %s9182 = scalar_lea.vmem %s9, %s9181
      $region68: #{conv_layer_forward.1} parent=63 // pred_fallthru
        _
    $region64: #{conv_layer_forward.1} parent=5 // pred_fallthru
      _
  $region6: #{conv_layer_forward.1} parent=0 // loop_footer
    %s19 = sadd.s32 1, %s15
  $region7: #{conv_layer_forward.1} parent=0 // loop_footer_branch
    %14 = sbr.rel target = $region3
  $region8: #{conv_layer_forward.1} parent=0 // loop_exit
    _

</llo_original>
